<compile_context>
chip_gen: v7x
topology: tpu7x:2x2x1
jax: 0.10.0
libtpu: 0.0.40
codegen_flags: <defaults>
</compile_context>

<pallas_src>
import jax
import jax.numpy as jnp
from jax import lax
from jax.experimental import pallas as pl
from jax.experimental.pallas import tpu as pltpu

# ----------------------------- config ---------------------------------------
BATCH = 2
SEQ = 8
NUM_FEATURES = 4
HIDDEN = 32
NUM_HEADS = 4
HEAD_DIM = HIDDEN // NUM_HEADS
CATEGORY_CNT = 6
ROWS = BATCH * SEQ            # flat (b, t) activation rows
SLAB_W = 128                  # lane width of the packed parameter slab

F32 = jnp.float32


# ---------------- in-kernel math helpers (traced inside the kernel) ----------
def _elu(h):
    return jnp.where(h > 0, h, jnp.exp(jnp.minimum(h, 0.0)) - 1.0)


def _layer_norm(y, gamma, beta):
    mean = jnp.mean(y, axis=-1, keepdims=True)
    var = jnp.mean(jnp.square(y - mean), axis=-1, keepdims=True)
    return (y - mean) * lax.rsqrt(var + 1e-5) * gamma + beta


def _grn(x, W2, b2, W1, b1, W45, b45, gamma, beta, ctx_add=None):
    """GatedResidualNetwork, Din == Dout; GLU pair fused as W45 = [W4 | W5]."""
    d = x.shape[-1]
    h = jnp.dot(x, W2, preferred_element_type=F32) + b2
    if ctx_add is not None:
        h = h + ctx_add
    h = _elu(h)
    h = jnp.dot(h, W1, preferred_element_type=F32) + b1
    g2 = jnp.dot(h, W45, preferred_element_type=F32) + b45
    gate = jax.nn.sigmoid(g2[:, :d]) * g2[:, d:]
    return _layer_norm(x + gate, gamma, beta)


def _glu_addnorm(x, skip, W45, b45, gamma, beta):
    d = skip.shape[-1]
    g2 = jnp.dot(x, W45, preferred_element_type=F32) + b45
    gate = jax.nn.sigmoid(g2[:, :d]) * g2[:, d:]
    return _layer_norm(gate + skip, gamma, beta)


# ------------------------------- forward -------------------------------------
def make_tmt_forward(offsets):
    """Returns the jitted fused forward.  `offsets` maps slab entry -> (row, nrows, ncols)
    and is a static Python dict captured by the kernel closure."""
    B, T, F, H = BATCH, SEQ, NUM_FEATURES, HIDDEN
    NH, DK, N = NUM_HEADS, HEAD_DIM, ROWS

    def kernel(feat_ref, idemb_ref, slab_ref, out_ref, lstm_scr):
        def getp(name):
            r0, nr, nc = offsets[name]
            return slab_ref[r0:r0 + nr, 0:nc]

        def expand(x):  # (B, D) -> (N, D): repeat each batch row T times
            d = x.shape[-1]
            return jnp.broadcast_to(x[:, None, :], (B, T, d)).reshape(N, d)

        feat_flat = feat_ref[...]          # (N, F) -- flattened host-side (bitcast)
        id_embedded = idemb_ref[...]       # (B, H)

        # ---- Block 1: static variable selection (single static variable) ----
        se = _grn(id_embedded, getp("svg_W2"), getp("svg_b2"), getp("svg_W1"),
                  getp("svg_b1"), getp("svg_W45"), getp("svg_b45"),
                  getp("svg_gamma"), getp("svg_beta"))                        # (B, H)

        # ---- Block 2: per-feature embedding as ONE block-structured matmul ----
        embs_cat = jnp.dot(feat_flat, getp("emb_E"),
                           preferred_element_type=F32) + getp("emb_b")        # (N, F*H)

        # VSN weight GRN on the flattened embedding, static encoder as context.
        ctx_w = expand(jnp.dot(se, getp("vsw_Wc"), preferred_element_type=F32))
        hid = jnp.dot(embs_cat, getp("vsw_W2"), preferred_element_type=F32) \
            + getp("vsw_b2") + ctx_w
        hid = _elu(hid)
        hid = jnp.dot(hid, getp("vsw_W1"), preferred_element_type=F32) + getp("vsw_b1")
        g2 = jnp.dot(hid, getp("vsw_W45"), preferred_element_type=F32) + getp("vsw_b45")
        gate = jax.nn.sigmoid(g2[:, :F]) * g2[:, F:]
        skip = jnp.dot(embs_cat, getp("vsw_Wskip"), preferred_element_type=F32) \
            + getp("vsw_bskip")
        w_logits = _layer_norm(skip + gate, getp("vsw_gamma"), getp("vsw_beta"))   # (N, F)
        w_logits = w_logits - jnp.max(w_logits, axis=-1, keepdims=True)
        e_w = jnp.exp(w_logits)
        vsn_w = e_w / jnp.sum(e_w, axis=-1, keepdims=True)                         # (N, F)

        # Per-feature GRNs as ONE block-diagonal GRN over F*H = 128 lanes.
        hbd = _elu(jnp.dot(embs_cat, getp("vsf_W2bd"), preferred_element_type=F32)
                   + getp("vsf_b2"))
        hbd = jnp.dot(hbd, getp("vsf_W1bd"), preferred_element_type=F32) + getp("vsf_b1")
        gbd = jax.nn.sigmoid(
            jnp.dot(hbd, getp("vsf_W4bd"), preferred_element_type=F32) + getp("vsf_b4")) * (
            jnp.dot(hbd, getp("vsf_W5bd"), preferred_element_type=F32) + getp("vsf_b5"))
        y = embs_cat + gbd                                                          # (N, F*H)
        # Segmented LayerNorm (per 32-lane feature block) via constant matmuls.
        segM = getp("seg4_mean")   # (F*H, F)  block mean
        segB = getp("seg4_brd")    # (F, F*H)  block broadcast
        mean_b = jnp.dot(jnp.dot(y, segM, preferred_element_type=F32), segB,
                         preferred_element_type=F32)
        cy = y - mean_b
        var = jnp.dot(cy * cy, segM, preferred_element_type=F32)                    # (N, F)
        rstd_b = jnp.dot(lax.rsqrt(var + 1e-5), segB, preferred_element_type=F32)
        y_ln = cy * rstd_b * getp("vsf_gamma") + getp("vsf_beta")                   # (N, F*H)
        # vsn-weighted sum over features: broadcast weights per block, then block sum.
        w_b = jnp.dot(vsn_w, segB, preferred_element_type=F32)
        feature_hidden = jnp.dot(y_ln * w_b, getp("seg4_sum"),
                                 preferred_element_type=F32)                        # (N, H)

        # ---- Blocks 3/5 (static part): h0 / c0 / enrichment as ONE block-diag GRN ----
        hid3 = _elu(jnp.dot(se, getp("st_W2cat"), preferred_element_type=F32) + getp("st_b2"))
        hid3 = jnp.dot(hid3, getp("st_W1bd"), preferred_element_type=F32) + getp("st_b1")
        gate3 = jax.nn.sigmoid(
            jnp.dot(hid3, getp("st_W4bd"), preferred_element_type=F32) + getp("st_b4")) * (
            jnp.dot(hid3, getp("st_W5bd"), preferred_element_type=F32) + getp("st_b5"))
        st_gamma, st_beta = getp("st_gamma"), getp("st_beta")

        def st_out(k):
            sl = slice(k * H, (k + 1) * H)
            return _layer_norm(se + gate3[:, sl], st_gamma[:, sl], st_beta[:, sl])

        h = st_out(0)      # LSTM initial hidden state
        c = st_out(1)      # LSTM initial cell state
        senr = st_out(2)   # static enrichment context

        # ---- Block 3: LSTM encoder (gate-fused; one recurrent matmul per step) ----
        # TODO(synk): single LSTM bias (torch has b_ih + b_hh; fold when porting weights).
        Whh = getp("lstm_Whh")                                                # (H, 4H)
        xp = (jnp.dot(feature_hidden, getp("lstm_Wih"), preferred_element_type=F32)
              + getp("lstm_b")).reshape(B, T, 4 * H)                           # hoisted input proj
        for t in range(T):                      # T = 8, fully unrolled
            pre = xp[:, t, :] + jnp.dot(h, Whh, preferred_element_type=F32)    # (B, 4H)
            s = jax.nn.sigmoid(pre[:, :3 * H])  # i | f | o  (contiguous lanes)
            g = jnp.tanh(pre[:, 3 * H:])
            c = s[:, H:2 * H] * c + s[:, :H] * g
            h = s[:, 2 * H:3 * H] * jnp.tanh(c)
            lstm_scr[:, t:t + 1, :] = h[:, None, :]
        lstm_flat = lstm_scr[...].reshape(N, H)   # contiguous (b, t) rows, no concat

        # ---- Block 4: GLU + Add&Norm (skip = feature_hidden) ----
        temporal = _glu_addnorm(lstm_flat, feature_hidden, getp("lgan_W45"),
                                getp("lgan_b45"), getp("lgan_gamma"), getp("lgan_beta"))

        # ---- Block 5 (temporal part): static-enriched GRN ----
        ctx_add = expand(jnp.dot(senr, getp("sfg_Wc"), preferred_element_type=F32))
        enriched = _grn(temporal, getp("sfg_W2"), getp("sfg_b2"), getp("sfg_W1"),
                        getp("sfg_b1"), getp("sfg_W45"), getp("sfg_b45"),
                        getp("sfg_gamma"), getp("sfg_beta"), ctx_add=ctx_add)

        # ---- Block 6: interpretable multi-head self-attention (causal mask) ----
        qkv = jnp.dot(enriched, getp("attn_Wqkv"), preferred_element_type=F32)  # (N, 2H+DK)
        q3 = qkv[:, 0:H].reshape(B, T, H)          # 1/sqrt(dk) folded into Wq
        k3 = qkv[:, H:2 * H].reshape(B, T, H)
        vs = qkv[:, 2 * H:2 * H + DK].reshape(B, T, DK)
        heads = [jnp.einsum("bqd,bkd->bqk",
                            q3[:, :, hd * DK:(hd + 1) * DK],
                            k3[:, :, hd * DK:(hd + 1) * DK],
                            preferred_element_type=F32) for hd in range(NH)]
        sc = jnp.concatenate(heads, axis=-1)                                     # (B, T, NH*T)
        sc = sc + getp("attn_maskadd")[None]                                     # additive causal mask
        sc = sc - jnp.max(sc, axis=-1, keepdims=True)    # row max is constant per head segment
        e = jnp.exp(sc).reshape(N, NH * T)
        denom = jnp.maximum(jnp.dot(e, getp("attn_sumT"), preferred_element_type=F32), 1e-30)
        probs = e * jnp.dot(1.0 / denom, getp("attn_brdT"), preferred_element_type=F32)
        attn_mean = jnp.dot(probs, getp("attn_meanH"),
                            preferred_element_type=F32).reshape(B, T, T)          # head-averaged
        acc = jnp.einsum("bqt,btk->bqk", attn_mean, vs, preferred_element_type=F32)
        attn_out = jnp.dot(acc.reshape(N, DK), getp("attn_Wo"), preferred_element_type=F32)

        # ---- Block 7: GLU + Add&Norm (skip = enriched) ----
        x = _glu_addnorm(attn_out, enriched, getp("agan_W45"), getp("agan_b45"),
                         getp("agan_gamma"), getp("agan_beta"))
        # ---- Block 8: decoder GRN ----
        x = _grn(x, getp("dec_W2"), getp("dec_b2"), getp("dec_W1"), getp("dec_b1"),
                 getp("dec_W45"), getp("dec_b45"), getp("dec_gamma"), getp("dec_beta"))
        # ---- Block 9: GLU + Add&Norm (skip = temporal_feature) ----
        x = _glu_addnorm(x, temporal, getp("dgan_W45"), getp("dgan_b45"),
                         getp("dgan_gamma"), getp("dgan_beta"))
        # ---- Block 10: output linear as a lane reduce straight into (B, T) ----
        out_bt = jnp.sum(x.reshape(B, T, H) * getp("out_w")[None], axis=-1)       # (B, T)
        out_ref[...] = out_bt + getp("out_b")

    vmem = pl.BlockSpec(memory_space=pltpu.MemorySpace.VMEM)
    call = pl.pallas_call(
        kernel,
        out_shape=jax.ShapeDtypeStruct((B, T), jnp.float32),
        in_specs=[vmem, vmem, vmem],
        out_specs=vmem,
        scratch_shapes=[pltpu.VMEM((B, T, H), jnp.float32)],
    )

    def tmt_forward(feat, ids, cat_embed, slab, phase="train"):
        # TODO(synk): `phase` only selects between two causal masks in the reference;
        # both are causal here so it is unused.  Dropout is an inference no-op.
        del phase
        id_emb = cat_embed[ids]                      # (B, H) tiny host-side gather
        return call(feat.reshape(ROWS, NUM_FEATURES), id_emb, slab)

    return jax.jit(tmt_forward, static_argnames=("phase",))


# ----------------------------- parameters ------------------------------------
def _rand(key, shape, scale=0.1):
    return jax.random.normal(key, shape, dtype=jnp.float32) * scale


def init_grn_h(key, H, with_ctx=False):
    ks = jax.random.split(key, 5)
    p = {
        "W2": _rand(ks[0], (H, H)), "b2": jnp.zeros((1, H), F32),
        "W1": _rand(ks[1], (H, H)), "b1": jnp.zeros((1, H), F32),
        "W4": _rand(ks[2], (H, H)), "b4": jnp.zeros((1, H), F32),
        "W5": _rand(ks[3], (H, H)), "b5": jnp.zeros((1, H), F32),
        "gamma": jnp.ones((1, H), F32), "beta": jnp.zeros((1, H), F32),
    }
    if with_ctx:
        p["Wc"] = _rand(ks[4], (H, H))
    return p


def init_vsn_weight_grn(key, F, H):
    ks = jax.random.split(key, 6)
    return {
        "W2": _rand(ks[0], (F, H, H)), "b2": jnp.zeros((1, H), F32),
        "Wc": _rand(ks[1], (H, H)),
        "W1": _rand(ks[2], (H, F)), "b1": jnp.zeros((1, F), F32),
        "W4": _rand(ks[3], (F, F)), "b4": jnp.zeros((1, F), F32),
        "W5": _rand(ks[4], (F, F)), "b5": jnp.zeros((1, F), F32),
        "Wskip": _rand(ks[5], (F, H, F)), "bskip": jnp.zeros((1, F), F32),
        "gamma": jnp.ones((1, F), F32), "beta": jnp.zeros((1, F), F32),
    }


def init_vsn_feat_grns(key, F, H):
    ks = jax.random.split(key, 4)
    return {
        "W2": _rand(ks[0], (F, H, H)), "b2": jnp.zeros((F, H), F32),
        "W1": _rand(ks[1], (F, H, H)), "b1": jnp.zeros((F, H), F32),
        "W4": _rand(ks[2], (F, H, H)), "b4": jnp.zeros((F, H), F32),
        "W5": _rand(ks[3], (F, H, H)), "b5": jnp.zeros((F, H), F32),
        "gamma": jnp.ones((F, H), F32), "beta": jnp.zeros((F, H), F32),
    }


def init_glu_addnorm(key, H):
    ks = jax.random.split(key, 2)
    return {
        "W4": _rand(ks[0], (H, H)), "b4": jnp.zeros((1, H), F32),
        "W5": _rand(ks[1], (H, H)), "b5": jnp.zeros((1, H), F32),
        "gamma": jnp.ones((1, H), F32), "beta": jnp.zeros((1, H), F32),
    }


def init_lstm(key, H):
    ks = jax.random.split(key, 2)
    return {
        "Wih": _rand(ks[0], (4, H, H)),   # gate-major, torch order (i, f, g, o)
        "Whh": _rand(ks[1], (4, H, H)),
        "b": jnp.zeros((4, H), F32),
    }


def init_attn(key, H, n_head):
    d_k = H // n_head
    ks = jax.random.split(key, 4)
    return {
        "Wq": _rand(ks[0], (H, n_head * d_k)),
        "Wk": _rand(ks[1], (H, n_head * d_k)),
        "Wv": _rand(ks[2], (H, d_k)),      # shared across heads (interpretable MHA)
        "Wo": _rand(ks[3], (d_k, H)),
    }


def init_params(key):
    ks = jax.random.split(key, 16)
    H, F = HIDDEN, NUM_FEATURES
    net = {
        "emb_W": _rand(ks[1], (F, H)),
        "emb_b": jnp.zeros((F, H), F32),
        "static_var_grn": init_grn_h(ks[2], H),
        "vsn_w_grn": init_vsn_weight_grn(ks[3], F, H),
        "vsn_feat_grn": init_vsn_feat_grns(ks[4], F, H),
        "static_h_grn": init_grn_h(ks[5], H),
        "static_c_grn": init_grn_h(ks[6], H),
        "lstm": init_lstm(ks[7], H),
        "lstm_gan": init_glu_addnorm(ks[8], H),
        "static_enrich_grn": init_grn_h(ks[9], H),
        "static_feature_grn": init_grn_h(ks[10], H, with_ctx=True),
        "attn": init_attn(ks[11], H, NUM_HEADS),
        "attn_gan": init_glu_addnorm(ks[12], H),
        "decoder_grn": init_grn_h(ks[13], H),
        "decoder_gan": init_glu_addnorm(ks[14], H),
        "output": {"W": _rand(ks[15], (H, 1)), "b": jnp.zeros((1, 1), F32)},
    }
    return {"cat_embed": _rand(ks[0], (CATEGORY_CNT, H)), "net": net}


# -------------------- host-side, one-time weight fusion + packing ------------
def _block_diag(mats):
    rows = sum(m.shape[0] for m in mats)
    cols = sum(m.shape[1] for m in mats)
    out = jnp.zeros((rows, cols), F32)
    r = c = 0
    for m in mats:
        out = out.at[r:r + m.shape[0], c:c + m.shape[1]].set(m)
        r += m.shape[0]
        c += m.shape[1]
    return out


def _fuse_params(params):
    net = params["net"]
    H, F, T, NH, DK = HIDDEN, NUM_FEATURES, SEQ, NUM_HEADS, HEAD_DIM
    fused = {}

    def add_grn(prefix, g, with_ctx=False):
        fused[prefix + "_W2"] = g["W2"]; fused[prefix + "_b2"] = g["b2"]
        if with_ctx:
            fused[prefix + "_Wc"] = g["Wc"]
        fused[prefix + "_W1"] = g["W1"]; fused[prefix + "_b1"] = g["b1"]
        fused[prefix + "_W45"] = jnp.concatenate([g["W4"], g["W5"]], axis=1)
        fused[prefix + "_b45"] = jnp.concatenate([g["b4"], g["b5"]], axis=1)
        fused[prefix + "_gamma"] = g["gamma"]; fused[prefix + "_beta"] = g["beta"]

    def add_gan(prefix, g):
        fused[prefix + "_W45"] = jnp.concatenate([g["W4"], g["W5"]], axis=1)
        fused[prefix + "_b45"] = jnp.concatenate([g["b4"], g["b5"]], axis=1)
        fused[prefix + "_gamma"] = g["gamma"]; fused[prefix + "_beta"] = g["beta"]

    # Feature embedding as one block-structured matmul: feat(N,F) @ E(F, F*H).
    E = jnp.zeros((F, F * H), F32)
    for f in range(F):
        E = E.at[f, f * H:(f + 1) * H].set(net["emb_W"][f])
    fused["emb_E"] = E
    fused["emb_b"] = net["emb_b"].reshape(1, F * H)

    add_grn("svg", net["static_var_grn"])

    v = net["vsn_w_grn"]
    fused["vsw_W2"] = v["W2"].reshape(F * H, H)
    fused["vsw_b2"] = v["b2"]
    fused["vsw_Wc"] = v["Wc"]
    fused["vsw_W1"] = v["W1"]; fused["vsw_b1"] = v["b1"]
    fused["vsw_W45"] = jnp.concatenate([v["W4"], v["W5"]], axis=1)
    fused["vsw_b45"] = jnp.concatenate([v["b4"], v["b5"]], axis=1)
    fused["vsw_Wskip"] = v["Wskip"].reshape(F * H, F)
    fused["vsw_bskip"] = v["bskip"]
    fused["vsw_gamma"] = v["gamma"]; fused["vsw_beta"] = v["beta"]

    fg = net["vsn_feat_grn"]
    for nm in ("W2", "W1", "W4", "W5"):
        fused["vsf_" + nm + "bd"] = _block_diag([fg[nm][f] for f in range(F)])
    for nm in ("b2", "b1", "b4", "b5", "gamma", "beta"):
        fused["vsf_" + nm] = fg[nm].reshape(1, F * H)

    # Constant helpers for the segmented (per-feature-block) LayerNorm / weighted sum.
    seg_mean = jnp.zeros((F * H, F), F32)
    seg_brd = jnp.zeros((F, F * H), F32)
    seg_sum = jnp.zeros((F * H, H), F32)
    eyeH = jnp.eye(H, dtype=F32)
    for f in range(F):
        seg_mean = seg_mean.at[f * H:(f + 1) * H, f].set(1.0 / H)
        seg_brd = seg_brd.at[f, f * H:(f + 1) * H].set(1.0)
        seg_sum = seg_sum.at[f * H:(f + 1) * H, :].set(eyeH)
    fused["seg4_mean"], fused["seg4_brd"], fused["seg4_sum"] = seg_mean, seg_brd, seg_sum

    # The three static GRNs on the static encoder, batched block-diagonally (h, c, enrich).
    trio = [net["static_h_grn"], net["static_c_grn"], net["static_enrich_grn"]]
    fused["st_W2cat"] = jnp.concatenate([g["W2"] for g in trio], axis=1)
    fused["st_b2"] = jnp.concatenate([g["b2"] for g in trio], axis=1)
    fused["st_W1bd"] = _block_diag([g["W1"] for g in trio])
    fused["st_b1"] = jnp.concatenate([g["b1"] for g in trio], axis=1)
    fused["st_W4bd"] = _block_diag([g["W4"] for g in trio])
    fused["st_b4"] = jnp.concatenate([g["b4"] for g in trio], axis=1)
    fused["st_W5bd"] = _block_diag([g["W5"] for g in trio])
    fused["st_b5"] = jnp.concatenate([g["b5"] for g in trio], axis=1)
    fused["st_gamma"] = jnp.concatenate([g["gamma"] for g in trio], axis=1)
    fused["st_beta"] = jnp.concatenate([g["beta"] for g in trio], axis=1)

    # LSTM: gate-fused, reordered (i, f, g, o) -> (i, f, o, g) so sigmoid gates are contiguous.
    order = (0, 1, 3, 2)
    lw = net["lstm"]
    fused["lstm_Wih"] = jnp.concatenate([lw["Wih"][g] for g in order], axis=1)
    fused["lstm_Whh"] = jnp.concatenate([lw["Whh"][g] for g in order], axis=1)
    fused["lstm_b"] = jnp.concatenate([lw["b"][g:g + 1] for g in order], axis=1)

    add_gan("lgan", net["lstm_gan"])
    add_grn("sfg", net["static_feature_grn"], with_ctx=True)

    # Attention: fused QKV (1/sqrt(dk) folded into Wq) + constant softmax/mean helpers.
    aw = net["attn"]
    scale = 1.0 / float(DK) ** 0.5
    fused["attn_Wqkv"] = jnp.concatenate([aw["Wq"] * scale, aw["Wk"], aw["Wv"]], axis=1)
    fused["attn_Wo"] = aw["Wo"]
    row = jnp.arange(T)[:, None]
    col = jnp.arange(T)[None, :]
    causal_add = jnp.where(col <= row, 0.0, -1e9).astype(F32)
    fused["attn_maskadd"] = jnp.tile(causal_add, (1, NH))        # (T, NH*T)
    sumT = jnp.zeros((NH * T, NH), F32)
    brdT = jnp.zeros((NH, NH * T), F32)
    meanH = jnp.zeros((NH * T, T), F32)
    eyeT = jnp.eye(T, dtype=F32)
    for hd in range(NH):
        sumT = sumT.at[hd * T:(hd + 1) * T, hd].set(1.0)
        brdT = brdT.at[hd, hd * T:(hd + 1) * T].set(1.0)
        meanH = meanH.at[hd * T:(hd + 1) * T, :].set(eyeT / NH)
    fused["attn_sumT"], fused["attn_brdT"], fused["attn_meanH"] = sumT, brdT, meanH

    add_gan("agan", net["attn_gan"])
    add_grn("dec", net["decoder_grn"])
    add_gan("dgan", net["decoder_gan"])

    fused["out_w"] = net["output"]["W"].reshape(1, H)
    fused["out_b"] = net["output"]["b"]
    return fused


def _make_slab(fused):
    """Packs every fused parameter into ONE (rows, 128) f32 slab; each entry is
    8-row aligned so the in-kernel static slices are tile-aligned loads."""
    offsets = {}
    blocks = []
    r = 0
    for name, arr in fused.items():
        arr = jnp.asarray(arr, F32)
        if arr.ndim == 1:
            arr = arr.reshape(1, -1)
        nr, nc = arr.shape
        assert nc <= SLAB_W, (name, arr.shape)
        nr_pad = ((nr + 7) // 8) * 8
        block = jnp.zeros((nr_pad, SLAB_W), F32).at[:nr, :nc].set(arr)
        offsets[name] = (r, nr, nc)
        blocks.append(block)
        r += nr_pad
    return jnp.concatenate(blocks, axis=0), offsets


def pack_params(params):
    fused = _fuse_params(params)
    slab, offsets = _make_slab(fused)
    return params["cat_embed"], slab, offsets


if __name__ == "__main__":
    key = jax.random.PRNGKey(0)
    kf, ki, kp = jax.random.split(key, 3)
    feat = jax.random.normal(kf, (BATCH, SEQ, NUM_FEATURES), dtype=jnp.float32)
    ids = jax.random.randint(ki, (BATCH,), 0, CATEGORY_CNT, dtype=jnp.int32)
    params = init_params(kp)

    cat_embed, slab, offsets = pack_params(params)      # one-time weight packing
    fwd = make_tmt_forward(offsets)
    out = fwd(feat, ids, cat_embed, slab, phase="train")
    out = jax.block_until_ready(out)
    assert out.shape == (BATCH, SEQ)
    assert bool(jnp.all(jnp.isfinite(out)))
    print("KERNEL_OK")
</pallas_src>

<mosaic_0001>
module attributes {stable_mosaic.version = 11 : i64} {
  func.func @kernel(%arg0: memref<16x4xf32, #tpu.memory_space<vmem>>, %arg1: memref<2x32xf32, #tpu.memory_space<vmem>>, %arg2: memref<2400x128xf32, #tpu.memory_space<vmem>>, %arg3: memref<2x8xf32, #tpu.memory_space<vmem>>, %arg4: memref<2x8x32xf32, #tpu.memory_space<vmem>>) attributes {dimension_semantics = [], scalar_prefetch = 0 : i64, scratch_operands = 1 : i64, tpu.core_type = #tpu.core_type<tc>} {
    %c0 = arith.constant 0 : index
    %c0_0 = arith.constant 0 : index
    %0 = vector.load %arg0[%c0, %c0_0] : memref<16x4xf32, #tpu.memory_space<vmem>>, vector<16x4xf32>
    %c0_1 = arith.constant 0 : index
    %c0_2 = arith.constant 0 : index
    %1 = vector.load %arg1[%c0_1, %c0_2] : memref<2x32xf32, #tpu.memory_space<vmem>>, vector<2x32xf32>
    %c16 = arith.constant 16 : index
    %c0_3 = arith.constant 0 : index
    %2 = vector.load %arg2[%c16, %c0_3] : memref<2400x128xf32, #tpu.memory_space<vmem>>, vector<32x32xf32>
    %c48 = arith.constant 48 : index
    %c0_4 = arith.constant 0 : index
    %3 = vector.load %arg2[%c48, %c0_4] : memref<2400x128xf32, #tpu.memory_space<vmem>>, vector<1x32xf32>
    %c56 = arith.constant 56 : index
    %c0_5 = arith.constant 0 : index
    %4 = vector.load %arg2[%c56, %c0_5] : memref<2400x128xf32, #tpu.memory_space<vmem>>, vector<32x32xf32>
    %c88 = arith.constant 88 : index
    %c0_6 = arith.constant 0 : index
    %5 = vector.load %arg2[%c88, %c0_6] : memref<2400x128xf32, #tpu.memory_space<vmem>>, vector<1x32xf32>
    %c96 = arith.constant 96 : index
    %c0_7 = arith.constant 0 : index
    %6 = vector.load %arg2[%c96, %c0_7] : memref<2400x128xf32, #tpu.memory_space<vmem>>, vector<32x64xf32>
    %c128 = arith.constant 128 : index
    %c0_8 = arith.constant 0 : index
    %7 = vector.load %arg2[%c128, %c0_8] : memref<2400x128xf32, #tpu.memory_space<vmem>>, vector<1x64xf32>
    %c136 = arith.constant 136 : index
    %c0_9 = arith.constant 0 : index
    %8 = vector.load %arg2[%c136, %c0_9] : memref<2400x128xf32, #tpu.memory_space<vmem>>, vector<1x32xf32>
    %c144 = arith.constant 144 : index
    %c0_10 = arith.constant 0 : index
    %9 = vector.load %arg2[%c144, %c0_10] : memref<2400x128xf32, #tpu.memory_space<vmem>>, vector<1x32xf32>
    %cst = arith.constant dense<0.000000e+00> : vector<2x32xf32>
    %10 = tpu.matmul %1, %2, %cst {dimension_numbers = #tpu.dot_dimension_numbers<[1], [0], [0], [1], [0, 0, 1, 1], [], []>} : vector<2x32xf32>, vector<32x32xf32>, vector<2x32xf32> -> vector<2x32xf32>
    %11 = vector.broadcast %3 : vector<1x32xf32> to vector<2x32xf32>
    %12 = arith.addf %10, %11 : vector<2x32xf32>
    %cst_11 = arith.constant 0.000000e+00 : f32
    %13 = vector.broadcast %cst_11 : f32 to vector<2x32xf32>
    %14 = arith.cmpf ogt, %12, %13 : vector<2x32xf32>
    %cst_12 = arith.constant 0.000000e+00 : f32
    %15 = vector.broadcast %cst_12 : f32 to vector<2x32xf32>
    %16 = arith.minimumf %12, %15 : vector<2x32xf32>
    %17 = math.exp %16 : vector<2x32xf32>
    %cst_13 = arith.constant 1.000000e+00 : f32
    %18 = vector.broadcast %cst_13 : f32 to vector<2x32xf32>
    %19 = arith.subf %17, %18 : vector<2x32xf32>
    %20 = arith.select %14, %12, %19 : vector<2x32xi1>, vector<2x32xf32>
    %cst_14 = arith.constant dense<0.000000e+00> : vector<2x32xf32>
    %21 = tpu.matmul %20, %4, %cst_14 {dimension_numbers = #tpu.dot_dimension_numbers<[1], [0], [0], [1], [0, 0, 1, 1], [], []>} : vector<2x32xf32>, vector<32x32xf32>, vector<2x32xf32> -> vector<2x32xf32>
    %22 = vector.broadcast %5 : vector<1x32xf32> to vector<2x32xf32>
    %23 = arith.addf %21, %22 : vector<2x32xf32>
    %cst_15 = arith.constant dense<0.000000e+00> : vector<2x64xf32>
    %24 = tpu.matmul %23, %6, %cst_15 {dimension_numbers = #tpu.dot_dimension_numbers<[1], [0], [0], [1], [0, 0, 1, 1], [], []>} : vector<2x32xf32>, vector<32x64xf32>, vector<2x64xf32> -> vector<2x64xf32>
    %25 = vector.broadcast %7 : vector<1x64xf32> to vector<2x64xf32>
    %26 = arith.addf %24, %25 : vector<2x64xf32>
    %27 = vector.extract_strided_slice %26 {offsets = [0, 0], sizes = [2, 32], strides = [1, 1]} : vector<2x64xf32> to vector<2x32xf32>
    %28 = arith.negf %27 : vector<2x32xf32>
    %29 = math.exp %28 : vector<2x32xf32>
    %cst_16 = arith.constant 1.000000e+00 : f32
    %30 = vector.broadcast %cst_16 : f32 to vector<2x32xf32>
    %31 = arith.addf %30, %29 : vector<2x32xf32>
    %32 = arith.divf %30, %31 : vector<2x32xf32>
    %33 = vector.extract_strided_slice %26 {offsets = [0, 32], sizes = [2, 32], strides = [1, 1]} : vector<2x64xf32> to vector<2x32xf32>
    %34 = arith.mulf %32, %33 : vector<2x32xf32>
    %35 = arith.addf %1, %34 : vector<2x32xf32>
    %cst_17 = arith.constant dense<0.000000e+00> : vector<2xf32>
    %36 = vector.multi_reduction <add>, %35, %cst_17 [1] : vector<2x32xf32> to vector<2xf32>
    %37 = vector.shape_cast %36 : vector<2xf32> to vector<2x1xf32>
    %cst_18 = arith.constant 3.200000e+01 : f32
    %38 = vector.broadcast %cst_18 : f32 to vector<2x1xf32>
    %39 = arith.divf %37, %38 : vector<2x1xf32>
    %40 = vector.broadcast %39 : vector<2x1xf32> to vector<2x32xf32>
    %41 = arith.subf %35, %40 : vector<2x32xf32>
    %42 = arith.mulf %41, %41 : vector<2x32xf32>
    %cst_19 = arith.constant dense<0.000000e+00> : vector<2xf32>
    %43 = vector.multi_reduction <add>, %42, %cst_19 [1] : vector<2x32xf32> to vector<2xf32>
    %44 = vector.shape_cast %43 : vector<2xf32> to vector<2x1xf32>
    %cst_20 = arith.constant 3.200000e+01 : f32
    %45 = vector.broadcast %cst_20 : f32 to vector<2x1xf32>
    %46 = arith.divf %44, %45 : vector<2x1xf32>
    %47 = vector.broadcast %39 : vector<2x1xf32> to vector<2x32xf32>
    %48 = arith.subf %35, %47 : vector<2x32xf32>
    %cst_21 = arith.constant 9.99999974E-6 : f32
    %49 = vector.broadcast %cst_21 : f32 to vector<2x1xf32>
    %50 = arith.addf %46, %49 : vector<2x1xf32>
    %51 = math.rsqrt %50 : vector<2x1xf32>
    %52 = vector.broadcast %51 : vector<2x1xf32> to vector<2x32xf32>
    %53 = arith.mulf %48, %52 : vector<2x32xf32>
    %54 = vector.broadcast %8 : vector<1x32xf32> to vector<2x32xf32>
    %55 = arith.mulf %53, %54 : vector<2x32xf32>
    %56 = vector.broadcast %9 : vector<1x32xf32> to vector<2x32xf32>
    %57 = arith.addf %55, %56 : vector<2x32xf32>
    %c0_22 = arith.constant 0 : index
    %c0_23 = arith.constant 0 : index
    %58 = vector.load %arg2[%c0_22, %c0_23] : memref<2400x128xf32, #tpu.memory_space<vmem>>, vector<4x128xf32>
    %cst_24 = arith.constant dense<0.000000e+00> : vector<16x128xf32>
    %59 = tpu.matmul %0, %58, %cst_24 {dimension_numbers = #tpu.dot_dimension_numbers<[1], [0], [0], [1], [0, 0, 1, 1], [], []>} : vector<16x4xf32>, vector<4x128xf32>, vector<16x128xf32> -> vector<16x128xf32>
    %c8 = arith.constant 8 : index
    %c0_25 = arith.constant 0 : index
    %60 = vector.load %arg2[%c8, %c0_25] : memref<2400x128xf32, #tpu.memory_space<vmem>>, vector<1x128xf32>
    %61 = vector.broadcast %60 : vector<1x128xf32> to vector<16x128xf32>
    %62 = arith.addf %59, %61 : vector<16x128xf32>
    %c288 = arith.constant 288 : index
    %c0_26 = arith.constant 0 : index
    %63 = vector.load %arg2[%c288, %c0_26] : memref<2400x128xf32, #tpu.memory_space<vmem>>, vector<32x32xf32>
    %cst_27 = arith.constant dense<0.000000e+00> : vector<2x32xf32>
    %64 = tpu.matmul %57, %63, %cst_27 {dimension_numbers = #tpu.dot_dimension_numbers<[1], [0], [0], [1], [0, 0, 1, 1], [], []>} : vector<2x32xf32>, vector<32x32xf32>, vector<2x32xf32> -> vector<2x32xf32>
    %65 = vector.shape_cast %64 : vector<2x32xf32> to vector<2x1x32xf32>
    %66 = vector.shape_cast %65 : vector<2x1x32xf32> to vector<2x1x32xf32>
    %67 = vector.broadcast %66 : vector<2x1x32xf32> to vector<2x8x32xf32>
    %68 = vector.shape_cast %67 : vector<2x8x32xf32> to vector<16x32xf32>
    %c152 = arith.constant 152 : index
    %c0_28 = arith.constant 0 : index
    %69 = vector.load %arg2[%c152, %c0_28] : memref<2400x128xf32, #tpu.memory_space<vmem>>, vector<128x32xf32>
    %cst_29 = arith.constant dense<0.000000e+00> : vector<16x32xf32>
    %70 = tpu.matmul %62, %69, %cst_29 {dimension_numbers = #tpu.dot_dimension_numbers<[1], [0], [0], [1], [0, 0, 1, 1], [], []>} : vector<16x128xf32>, vector<128x32xf32>, vector<16x32xf32> -> vector<16x32xf32>
    %c280 = arith.constant 280 : index
    %c0_30 = arith.constant 0 : index
    %71 = vector.load %arg2[%c280, %c0_30] : memref<2400x128xf32, #tpu.memory_space<vmem>>, vector<1x32xf32>
    %72 = vector.broadcast %71 : vector<1x32xf32> to vector<16x32xf32>
    %73 = arith.addf %70, %72 : vector<16x32xf32>
    %74 = arith.addf %73, %68 : vector<16x32xf32>
    %cst_31 = arith.constant 0.000000e+00 : f32
    %75 = vector.broadcast %cst_31 : f32 to vector<16x32xf32>
    %76 = arith.cmpf ogt, %74, %75 : vector<16x32xf32>
    %cst_32 = arith.constant 0.000000e+00 : f32
    %77 = vector.broadcast %cst_32 : f32 to vector<16x32xf32>
    %78 = arith.minimumf %74, %77 : vector<16x32xf32>
    %79 = math.exp %78 : vector<16x32xf32>
    %cst_33 = arith.constant 1.000000e+00 : f32
    %80 = vector.broadcast %cst_33 : f32 to vector<16x32xf32>
    %81 = arith.subf %79, %80 : vector<16x32xf32>
    %82 = arith.select %76, %74, %81 : vector<16x32xi1>, vector<16x32xf32>
    %c320 = arith.constant 320 : index
    %c0_34 = arith.constant 0 : index
    %83 = vector.load %arg2[%c320, %c0_34] : memref<2400x128xf32, #tpu.memory_space<vmem>>, vector<32x4xf32>
    %cst_35 = arith.constant dense<0.000000e+00> : vector<16x4xf32>
    %84 = tpu.matmul %82, %83, %cst_35 {dimension_numbers = #tpu.dot_dimension_numbers<[1], [0], [0], [1], [0, 0, 1, 1], [], []>} : vector<16x32xf32>, vector<32x4xf32>, vector<16x4xf32> -> vector<16x4xf32>
    %c352 = arith.constant 352 : index
    %c0_36 = arith.constant 0 : index
    %85 = vector.load %arg2[%c352, %c0_36] : memref<2400x128xf32, #tpu.memory_space<vmem>>, vector<1x4xf32>
    %86 = vector.broadcast %85 : vector<1x4xf32> to vector<16x4xf32>
    %87 = arith.addf %84, %86 : vector<16x4xf32>
    %c360 = arith.constant 360 : index
    %c0_37 = arith.constant 0 : index
    %88 = vector.load %arg2[%c360, %c0_37] : memref<2400x128xf32, #tpu.memory_space<vmem>>, vector<4x8xf32>
    %cst_38 = arith.constant dense<0.000000e+00> : vector<16x8xf32>
    %89 = tpu.matmul %87, %88, %cst_38 {dimension_numbers = #tpu.dot_dimension_numbers<[1], [0], [0], [1], [0, 0, 1, 1], [], []>} : vector<16x4xf32>, vector<4x8xf32>, vector<16x8xf32> -> vector<16x8xf32>
    %c368 = arith.constant 368 : index
    %c0_39 = arith.constant 0 : index
    %90 = vector.load %arg2[%c368, %c0_39] : memref<2400x128xf32, #tpu.memory_space<vmem>>, vector<1x8xf32>
    %91 = vector.broadcast %90 : vector<1x8xf32> to vector<16x8xf32>
    %92 = arith.addf %89, %91 : vector<16x8xf32>
    %93 = vector.extract_strided_slice %92 {offsets = [0, 0], sizes = [16, 4], strides = [1, 1]} : vector<16x8xf32> to vector<16x4xf32>
    %94 = arith.negf %93 : vector<16x4xf32>
    %95 = math.exp %94 : vector<16x4xf32>
    %cst_40 = arith.constant 1.000000e+00 : f32
    %96 = vector.broadcast %cst_40 : f32 to vector<16x4xf32>
    %97 = arith.addf %96, %95 : vector<16x4xf32>
    %98 = arith.divf %96, %97 : vector<16x4xf32>
    %99 = vector.extract_strided_slice %92 {offsets = [0, 4], sizes = [16, 4], strides = [1, 1]} : vector<16x8xf32> to vector<16x4xf32>
    %100 = arith.mulf %98, %99 : vector<16x4xf32>
    %c376 = arith.constant 376 : index
    %c0_41 = arith.constant 0 : index
    %101 = vector.load %arg2[%c376, %c0_41] : memref<2400x128xf32, #tpu.memory_space<vmem>>, vector<128x4xf32>
    %cst_42 = arith.constant dense<0.000000e+00> : vector<16x4xf32>
    %102 = tpu.matmul %62, %101, %cst_42 {dimension_numbers = #tpu.dot_dimension_numbers<[1], [0], [0], [1], [0, 0, 1, 1], [], []>} : vector<16x128xf32>, vector<128x4xf32>, vector<16x4xf32> -> vector<16x4xf32>
    %c504 = arith.constant 504 : index
    %c0_43 = arith.constant 0 : index
    %103 = vector.load %arg2[%c504, %c0_43] : memref<2400x128xf32, #tpu.memory_space<vmem>>, vector<1x4xf32>
    %104 = vector.broadcast %103 : vector<1x4xf32> to vector<16x4xf32>
    %105 = arith.addf %102, %104 : vector<16x4xf32>
    %106 = arith.addf %105, %100 : vector<16x4xf32>
    %c512 = arith.constant 512 : index
    %c0_44 = arith.constant 0 : index
    %107 = vector.load %arg2[%c512, %c0_44] : memref<2400x128xf32, #tpu.memory_space<vmem>>, vector<1x4xf32>
    %c520 = arith.constant 520 : index
    %c0_45 = arith.constant 0 : index
    %108 = vector.load %arg2[%c520, %c0_45] : memref<2400x128xf32, #tpu.memory_space<vmem>>, vector<1x4xf32>
    %cst_46 = arith.constant dense<0.000000e+00> : vector<16xf32>
    %109 = vector.multi_reduction <add>, %106, %cst_46 [1] : vector<16x4xf32> to vector<16xf32>
    %110 = vector.shape_cast %109 : vector<16xf32> to vector<16x1xf32>
    %cst_47 = arith.constant 4.000000e+00 : f32
    %111 = vector.broadcast %cst_47 : f32 to vector<16x1xf32>
    %112 = arith.divf %110, %111 : vector<16x1xf32>
    %113 = vector.broadcast %112 : vector<16x1xf32> to vector<16x4xf32>
    %114 = arith.subf %106, %113 : vector<16x4xf32>
    %115 = arith.mulf %114, %114 : vector<16x4xf32>
    %cst_48 = arith.constant dense<0.000000e+00> : vector<16xf32>
    %116 = vector.multi_reduction <add>, %115, %cst_48 [1] : vector<16x4xf32> to vector<16xf32>
    %117 = vector.shape_cast %116 : vector<16xf32> to vector<16x1xf32>
    %cst_49 = arith.constant 4.000000e+00 : f32
    %118 = vector.broadcast %cst_49 : f32 to vector<16x1xf32>
    %119 = arith.divf %117, %118 : vector<16x1xf32>
    %120 = vector.broadcast %112 : vector<16x1xf32> to vector<16x4xf32>
    %121 = arith.subf %106, %120 : vector<16x4xf32>
    %cst_50 = arith.constant 9.99999974E-6 : f32
    %122 = vector.broadcast %cst_50 : f32 to vector<16x1xf32>
    %123 = arith.addf %119, %122 : vector<16x1xf32>
    %124 = math.rsqrt %123 : vector<16x1xf32>
    %125 = vector.broadcast %124 : vector<16x1xf32> to vector<16x4xf32>
    %126 = arith.mulf %121, %125 : vector<16x4xf32>
    %127 = vector.broadcast %107 : vector<1x4xf32> to vector<16x4xf32>
    %128 = arith.mulf %126, %127 : vector<16x4xf32>
    %129 = vector.broadcast %108 : vector<1x4xf32> to vector<16x4xf32>
    %130 = arith.addf %128, %129 : vector<16x4xf32>
    %cst_51 = arith.constant dense<0xFF800000> : vector<16xf32>
    %131 = vector.multi_reduction <maximumf>, %130, %cst_51 [1] : vector<16x4xf32> to vector<16xf32>
    %132 = vector.shape_cast %131 : vector<16xf32> to vector<16x1xf32>
    %133 = vector.broadcast %132 : vector<16x1xf32> to vector<16x4xf32>
    %134 = arith.subf %130, %133 : vector<16x4xf32>
    %135 = math.exp %134 : vector<16x4xf32>
    %cst_52 = arith.constant dense<0.000000e+00> : vector<16xf32>
    %136 = vector.multi_reduction <add>, %135, %cst_52 [1] : vector<16x4xf32> to vector<16xf32>
    %137 = vector.shape_cast %136 : vector<16xf32> to vector<16x1xf32>
    %138 = vector.broadcast %137 : vector<16x1xf32> to vector<16x4xf32>
    %139 = arith.divf %135, %138 : vector<16x4xf32>
    %c528 = arith.constant 528 : index
    %c0_53 = arith.constant 0 : index
    %140 = vector.load %arg2[%c528, %c0_53] : memref<2400x128xf32, #tpu.memory_space<vmem>>, vector<128x128xf32>
    %cst_54 = arith.constant dense<0.000000e+00> : vector<16x128xf32>
    %141 = tpu.matmul %62, %140, %cst_54 {dimension_numbers = #tpu.dot_dimension_numbers<[1], [0], [0], [1], [0, 0, 1, 1], [], []>} : vector<16x128xf32>, vector<128x128xf32>, vector<16x128xf32> -> vector<16x128xf32>
    %c1040 = arith.constant 1040 : index
    %c0_55 = arith.constant 0 : index
    %142 = vector.load %arg2[%c1040, %c0_55] : memref<2400x128xf32, #tpu.memory_space<vmem>>, vector<1x128xf32>
    %143 = vector.broadcast %142 : vector<1x128xf32> to vector<16x128xf32>
    %144 = arith.addf %141, %143 : vector<16x128xf32>
    %cst_56 = arith.constant 0.000000e+00 : f32
    %145 = vector.broadcast %cst_56 : f32 to vector<16x128xf32>
    %146 = arith.cmpf ogt, %144, %145 : vector<16x128xf32>
    %cst_57 = arith.constant 0.000000e+00 : f32
    %147 = vector.broadcast %cst_57 : f32 to vector<16x128xf32>
    %148 = arith.minimumf %144, %147 : vector<16x128xf32>
    %149 = math.exp %148 : vector<16x128xf32>
    %cst_58 = arith.constant 1.000000e+00 : f32
    %150 = vector.broadcast %cst_58 : f32 to vector<16x128xf32>
    %151 = arith.subf %149, %150 : vector<16x128xf32>
    %152 = arith.select %146, %144, %151 : vector<16x128xi1>, vector<16x128xf32>
    %c656 = arith.constant 656 : index
    %c0_59 = arith.constant 0 : index
    %153 = vector.load %arg2[%c656, %c0_59] : memref<2400x128xf32, #tpu.memory_space<vmem>>, vector<128x128xf32>
    %cst_60 = arith.constant dense<0.000000e+00> : vector<16x128xf32>
    %154 = tpu.matmul %152, %153, %cst_60 {dimension_numbers = #tpu.dot_dimension_numbers<[1], [0], [0], [1], [0, 0, 1, 1], [], []>} : vector<16x128xf32>, vector<128x128xf32>, vector<16x128xf32> -> vector<16x128xf32>
    %c1048 = arith.constant 1048 : index
    %c0_61 = arith.constant 0 : index
    %155 = vector.load %arg2[%c1048, %c0_61] : memref<2400x128xf32, #tpu.memory_space<vmem>>, vector<1x128xf32>
    %156 = vector.broadcast %155 : vector<1x128xf32> to vector<16x128xf32>
    %157 = arith.addf %154, %156 : vector<16x128xf32>
    %c784 = arith.constant 784 : index
    %c0_62 = arith.constant 0 : index
    %158 = vector.load %arg2[%c784, %c0_62] : memref<2400x128xf32, #tpu.memory_space<vmem>>, vector<128x128xf32>
    %cst_63 = arith.constant dense<0.000000e+00> : vector<16x128xf32>
    %159 = tpu.matmul %157, %158, %cst_63 {dimension_numbers = #tpu.dot_dimension_numbers<[1], [0], [0], [1], [0, 0, 1, 1], [], []>} : vector<16x128xf32>, vector<128x128xf32>, vector<16x128xf32> -> vector<16x128xf32>
    %c1056 = arith.constant 1056 : index
    %c0_64 = arith.constant 0 : index
    %160 = vector.load %arg2[%c1056, %c0_64] : memref<2400x128xf32, #tpu.memory_space<vmem>>, vector<1x128xf32>
    %161 = vector.broadcast %160 : vector<1x128xf32> to vector<16x128xf32>
    %162 = arith.addf %159, %161 : vector<16x128xf32>
    %163 = arith.negf %162 : vector<16x128xf32>
    %164 = math.exp %163 : vector<16x128xf32>
    %cst_65 = arith.constant 1.000000e+00 : f32
    %165 = vector.broadcast %cst_65 : f32 to vector<16x128xf32>
    %166 = arith.addf %165, %164 : vector<16x128xf32>
    %167 = arith.divf %165, %166 : vector<16x128xf32>
    %c912 = arith.constant 912 : index
    %c0_66 = arith.constant 0 : index
    %168 = vector.load %arg2[%c912, %c0_66] : memref<2400x128xf32, #tpu.memory_space<vmem>>, vector<128x128xf32>
    %cst_67 = arith.constant dense<0.000000e+00> : vector<16x128xf32>
    %169 = tpu.matmul %157, %168, %cst_67 {dimension_numbers = #tpu.dot_dimension_numbers<[1], [0], [0], [1], [0, 0, 1, 1], [], []>} : vector<16x128xf32>, vector<128x128xf32>, vector<16x128xf32> -> vector<16x128xf32>
    %c1064 = arith.constant 1064 : index
    %c0_68 = arith.constant 0 : index
    %170 = vector.load %arg2[%c1064, %c0_68] : memref<2400x128xf32, #tpu.memory_space<vmem>>, vector<1x128xf32>
    %171 = vector.broadcast %170 : vector<1x128xf32> to vector<16x128xf32>
    %172 = arith.addf %169, %171 : vector<16x128xf32>
    %173 = arith.mulf %167, %172 : vector<16x128xf32>
    %174 = arith.addf %62, %173 : vector<16x128xf32>
    %c1088 = arith.constant 1088 : index
    %c0_69 = arith.constant 0 : index
    %175 = vector.load %arg2[%c1088, %c0_69] : memref<2400x128xf32, #tpu.memory_space<vmem>>, vector<128x4xf32>
    %c1216 = arith.constant 1216 : index
    %c0_70 = arith.constant 0 : index
    %176 = vector.load %arg2[%c1216, %c0_70] : memref<2400x128xf32, #tpu.memory_space<vmem>>, vector<4x128xf32>
    %cst_71 = arith.constant dense<0.000000e+00> : vector<16x4xf32>
    %177 = tpu.matmul %174, %175, %cst_71 {dimension_numbers = #tpu.dot_dimension_numbers<[1], [0], [0], [1], [0, 0, 1, 1], [], []>} : vector<16x128xf32>, vector<128x4xf32>, vector<16x4xf32> -> vector<16x4xf32>
    %cst_72 = arith.constant dense<0.000000e+00> : vector<16x128xf32>
    %178 = tpu.matmul %177, %176, %cst_72 {dimension_numbers = #tpu.dot_dimension_numbers<[1], [0], [0], [1], [0, 0, 1, 1], [], []>} : vector<16x4xf32>, vector<4x128xf32>, vector<16x128xf32> -> vector<16x128xf32>
    %179 = arith.subf %174, %178 : vector<16x128xf32>
    %180 = arith.mulf %179, %179 : vector<16x128xf32>
    %cst_73 = arith.constant dense<0.000000e+00> : vector<16x4xf32>
    %181 = tpu.matmul %180, %175, %cst_73 {dimension_numbers = #tpu.dot_dimension_numbers<[1], [0], [0], [1], [0, 0, 1, 1], [], []>} : vector<16x128xf32>, vector<128x4xf32>, vector<16x4xf32> -> vector<16x4xf32>
    %cst_74 = arith.constant 9.99999974E-6 : f32
    %182 = vector.broadcast %cst_74 : f32 to vector<16x4xf32>
    %183 = arith.addf %181, %182 : vector<16x4xf32>
    %184 = math.rsqrt %183 : vector<16x4xf32>
    %cst_75 = arith.constant dense<0.000000e+00> : vector<16x128xf32>
    %185 = tpu.matmul %184, %176, %cst_75 {dimension_numbers = #tpu.dot_dimension_numbers<[1], [0], [0], [1], [0, 0, 1, 1], [], []>} : vector<16x4xf32>, vector<4x128xf32>, vector<16x128xf32> -> vector<16x128xf32>
    %186 = arith.mulf %179, %185 : vector<16x128xf32>
    %c1072 = arith.constant 1072 : index
    %c0_76 = arith.constant 0 : index
    %187 = vector.load %arg2[%c1072, %c0_76] : memref<2400x128xf32, #tpu.memory_space<vmem>>, vector<1x128xf32>
    %188 = vector.broadcast %187 : vector<1x128xf32> to vector<16x128xf32>
    %189 = arith.mulf %186, %188 : vector<16x128xf32>
    %c1080 = arith.constant 1080 : index
    %c0_77 = arith.constant 0 : index
    %190 = vector.load %arg2[%c1080, %c0_77] : memref<2400x128xf32, #tpu.memory_space<vmem>>, vector<1x128xf32>
    %191 = vector.broadcast %190 : vector<1x128xf32> to vector<16x128xf32>
    %192 = arith.addf %189, %191 : vector<16x128xf32>
    %cst_78 = arith.constant dense<0.000000e+00> : vector<16x128xf32>
    %193 = tpu.matmul %139, %176, %cst_78 {dimension_numbers = #tpu.dot_dimension_numbers<[1], [0], [0], [1], [0, 0, 1, 1], [], []>} : vector<16x4xf32>, vector<4x128xf32>, vector<16x128xf32> -> vector<16x128xf32>
    %194 = arith.mulf %192, %193 : vector<16x128xf32>
    %c1224 = arith.constant 1224 : index
    %c0_79 = arith.constant 0 : index
    %195 = vector.load %arg2[%c1224, %c0_79] : memref<2400x128xf32, #tpu.memory_space<vmem>>, vector<128x32xf32>
    %cst_80 = arith.constant dense<0.000000e+00> : vector<16x32xf32>
    %196 = tpu.matmul %194, %195, %cst_80 {dimension_numbers = #tpu.dot_dimension_numbers<[1], [0], [0], [1], [0, 0, 1, 1], [], []>} : vector<16x128xf32>, vector<128x32xf32>, vector<16x32xf32> -> vector<16x32xf32>
    %c1352 = arith.constant 1352 : index
    %c0_81 = arith.constant 0 : index
    %197 = vector.load %arg2[%c1352, %c0_81] : memref<2400x128xf32, #tpu.memory_space<vmem>>, vector<32x96xf32>
    %cst_82 = arith.constant dense<0.000000e+00> : vector<2x96xf32>
    %198 = tpu.matmul %57, %197, %cst_82 {dimension_numbers = #tpu.dot_dimension_numbers<[1], [0], [0], [1], [0, 0, 1, 1], [], []>} : vector<2x32xf32>, vector<32x96xf32>, vector<2x96xf32> -> vector<2x96xf32>
    %c1384 = arith.constant 1384 : index
    %c0_83 = arith.constant 0 : index
    %199 = vector.load %arg2[%c1384, %c0_83] : memref<2400x128xf32, #tpu.memory_space<vmem>>, vector<1x96xf32>
    %200 = vector.broadcast %199 : vector<1x96xf32> to vector<2x96xf32>
    %201 = arith.addf %198, %200 : vector<2x96xf32>
    %cst_84 = arith.constant 0.000000e+00 : f32
    %202 = vector.broadcast %cst_84 : f32 to vector<2x96xf32>
    %203 = arith.cmpf ogt, %201, %202 : vector<2x96xf32>
    %cst_85 = arith.constant 0.000000e+00 : f32
    %204 = vector.broadcast %cst_85 : f32 to vector<2x96xf32>
    %205 = arith.minimumf %201, %204 : vector<2x96xf32>
    %206 = math.exp %205 : vector<2x96xf32>
    %cst_86 = arith.constant 1.000000e+00 : f32
    %207 = vector.broadcast %cst_86 : f32 to vector<2x96xf32>
    %208 = arith.subf %206, %207 : vector<2x96xf32>
    %209 = arith.select %203, %201, %208 : vector<2x96xi1>, vector<2x96xf32>
    %c1392 = arith.constant 1392 : index
    %c0_87 = arith.constant 0 : index
    %210 = vector.load %arg2[%c1392, %c0_87] : memref<2400x128xf32, #tpu.memory_space<vmem>>, vector<96x96xf32>
    %cst_88 = arith.constant dense<0.000000e+00> : vector<2x96xf32>
    %211 = tpu.matmul %209, %210, %cst_88 {dimension_numbers = #tpu.dot_dimension_numbers<[1], [0], [0], [1], [0, 0, 1, 1], [], []>} : vector<2x96xf32>, vector<96x96xf32>, vector<2x96xf32> -> vector<2x96xf32>
    %c1488 = arith.constant 1488 : index
    %c0_89 = arith.constant 0 : index
    %212 = vector.load %arg2[%c1488, %c0_89] : memref<2400x128xf32, #tpu.memory_space<vmem>>, vector<1x96xf32>
    %213 = vector.broadcast %212 : vector<1x96xf32> to vector<2x96xf32>
    %214 = arith.addf %211, %213 : vector<2x96xf32>
    %c1496 = arith.constant 1496 : index
    %c0_90 = arith.constant 0 : index
    %215 = vector.load %arg2[%c1496, %c0_90] : memref<2400x128xf32, #tpu.memory_space<vmem>>, vector<96x96xf32>
    %cst_91 = arith.constant dense<0.000000e+00> : vector<2x96xf32>
    %216 = tpu.matmul %214, %215, %cst_91 {dimension_numbers = #tpu.dot_dimension_numbers<[1], [0], [0], [1], [0, 0, 1, 1], [], []>} : vector<2x96xf32>, vector<96x96xf32>, vector<2x96xf32> -> vector<2x96xf32>
    %c1592 = arith.constant 1592 : index
    %c0_92 = arith.constant 0 : index
    %217 = vector.load %arg2[%c1592, %c0_92] : memref<2400x128xf32, #tpu.memory_space<vmem>>, vector<1x96xf32>
    %218 = vector.broadcast %217 : vector<1x96xf32> to vector<2x96xf32>
    %219 = arith.addf %216, %218 : vector<2x96xf32>
    %220 = arith.negf %219 : vector<2x96xf32>
    %221 = math.exp %220 : vector<2x96xf32>
    %cst_93 = arith.constant 1.000000e+00 : f32
    %222 = vector.broadcast %cst_93 : f32 to vector<2x96xf32>
    %223 = arith.addf %222, %221 : vector<2x96xf32>
    %224 = arith.divf %222, %223 : vector<2x96xf32>
    %c1600 = arith.constant 1600 : index
    %c0_94 = arith.constant 0 : index
    %225 = vector.load %arg2[%c1600, %c0_94] : memref<2400x128xf32, #tpu.memory_space<vmem>>, vector<96x96xf32>
    %cst_95 = arith.constant dense<0.000000e+00> : vector<2x96xf32>
    %226 = tpu.matmul %214, %225, %cst_95 {dimension_numbers = #tpu.dot_dimension_numbers<[1], [0], [0], [1], [0, 0, 1, 1], [], []>} : vector<2x96xf32>, vector<96x96xf32>, vector<2x96xf32> -> vector<2x96xf32>
    %c1696 = arith.constant 1696 : index
    %c0_96 = arith.constant 0 : index
    %227 = vector.load %arg2[%c1696, %c0_96] : memref<2400x128xf32, #tpu.memory_space<vmem>>, vector<1x96xf32>
    %228 = vector.broadcast %227 : vector<1x96xf32> to vector<2x96xf32>
    %229 = arith.addf %226, %228 : vector<2x96xf32>
    %230 = arith.mulf %224, %229 : vector<2x96xf32>
    %c1704 = arith.constant 1704 : index
    %c0_97 = arith.constant 0 : index
    %231 = vector.load %arg2[%c1704, %c0_97] : memref<2400x128xf32, #tpu.memory_space<vmem>>, vector<1x96xf32>
    %c1712 = arith.constant 1712 : index
    %c0_98 = arith.constant 0 : index
    %232 = vector.load %arg2[%c1712, %c0_98] : memref<2400x128xf32, #tpu.memory_space<vmem>>, vector<1x96xf32>
    %233 = vector.extract_strided_slice %230 {offsets = [0, 0], sizes = [2, 32], strides = [1, 1]} : vector<2x96xf32> to vector<2x32xf32>
    %234 = arith.addf %57, %233 : vector<2x32xf32>
    %235 = vector.extract_strided_slice %231 {offsets = [0, 0], sizes = [1, 32], strides = [1, 1]} : vector<1x96xf32> to vector<1x32xf32>
    %236 = vector.extract_strided_slice %232 {offsets = [0, 0], sizes = [1, 32], strides = [1, 1]} : vector<1x96xf32> to vector<1x32xf32>
    %cst_99 = arith.constant dense<0.000000e+00> : vector<2xf32>
    %237 = vector.multi_reduction <add>, %234, %cst_99 [1] : vector<2x32xf32> to vector<2xf32>
    %238 = vector.shape_cast %237 : vector<2xf32> to vector<2x1xf32>
    %cst_100 = arith.constant 3.200000e+01 : f32
    %239 = vector.broadcast %cst_100 : f32 to vector<2x1xf32>
    %240 = arith.divf %238, %239 : vector<2x1xf32>
    %241 = vector.broadcast %240 : vector<2x1xf32> to vector<2x32xf32>
    %242 = arith.subf %234, %241 : vector<2x32xf32>
    %243 = arith.mulf %242, %242 : vector<2x32xf32>
    %cst_101 = arith.constant dense<0.000000e+00> : vector<2xf32>
    %244 = vector.multi_reduction <add>, %243, %cst_101 [1] : vector<2x32xf32> to vector<2xf32>
    %245 = vector.shape_cast %244 : vector<2xf32> to vector<2x1xf32>
    %cst_102 = arith.constant 3.200000e+01 : f32
    %246 = vector.broadcast %cst_102 : f32 to vector<2x1xf32>
    %247 = arith.divf %245, %246 : vector<2x1xf32>
    %248 = vector.broadcast %240 : vector<2x1xf32> to vector<2x32xf32>
    %249 = arith.subf %234, %248 : vector<2x32xf32>
    %cst_103 = arith.constant 9.99999974E-6 : f32
    %250 = vector.broadcast %cst_103 : f32 to vector<2x1xf32>
    %251 = arith.addf %247, %250 : vector<2x1xf32>
    %252 = math.rsqrt %251 : vector<2x1xf32>
    %253 = vector.broadcast %252 : vector<2x1xf32> to vector<2x32xf32>
    %254 = arith.mulf %249, %253 : vector<2x32xf32>
    %255 = vector.broadcast %235 : vector<1x32xf32> to vector<2x32xf32>
    %256 = arith.mulf %254, %255 : vector<2x32xf32>
    %257 = vector.broadcast %236 : vector<1x32xf32> to vector<2x32xf32>
    %258 = arith.addf %256, %257 : vector<2x32xf32>
    %259 = vector.extract_strided_slice %230 {offsets = [0, 32], sizes = [2, 32], strides = [1, 1]} : vector<2x96xf32> to vector<2x32xf32>
    %260 = arith.addf %57, %259 : vector<2x32xf32>
    %261 = vector.extract_strided_slice %231 {offsets = [0, 32], sizes = [1, 32], strides = [1, 1]} : vector<1x96xf32> to vector<1x32xf32>
    %262 = vector.extract_strided_slice %232 {offsets = [0, 32], sizes = [1, 32], strides = [1, 1]} : vector<1x96xf32> to vector<1x32xf32>
    %cst_104 = arith.constant dense<0.000000e+00> : vector<2xf32>
    %263 = vector.multi_reduction <add>, %260, %cst_104 [1] : vector<2x32xf32> to vector<2xf32>
    %264 = vector.shape_cast %263 : vector<2xf32> to vector<2x1xf32>
    %cst_105 = arith.constant 3.200000e+01 : f32
    %265 = vector.broadcast %cst_105 : f32 to vector<2x1xf32>
    %266 = arith.divf %264, %265 : vector<2x1xf32>
    %267 = vector.broadcast %266 : vector<2x1xf32> to vector<2x32xf32>
    %268 = arith.subf %260, %267 : vector<2x32xf32>
    %269 = arith.mulf %268, %268 : vector<2x32xf32>
    %cst_106 = arith.constant dense<0.000000e+00> : vector<2xf32>
    %270 = vector.multi_reduction <add>, %269, %cst_106 [1] : vector<2x32xf32> to vector<2xf32>
    %271 = vector.shape_cast %270 : vector<2xf32> to vector<2x1xf32>
    %cst_107 = arith.constant 3.200000e+01 : f32
    %272 = vector.broadcast %cst_107 : f32 to vector<2x1xf32>
    %273 = arith.divf %271, %272 : vector<2x1xf32>
    %274 = vector.broadcast %266 : vector<2x1xf32> to vector<2x32xf32>
    %275 = arith.subf %260, %274 : vector<2x32xf32>
    %cst_108 = arith.constant 9.99999974E-6 : f32
    %276 = vector.broadcast %cst_108 : f32 to vector<2x1xf32>
    %277 = arith.addf %273, %276 : vector<2x1xf32>
    %278 = math.rsqrt %277 : vector<2x1xf32>
    %279 = vector.broadcast %278 : vector<2x1xf32> to vector<2x32xf32>
    %280 = arith.mulf %275, %279 : vector<2x32xf32>
    %281 = vector.broadcast %261 : vector<1x32xf32> to vector<2x32xf32>
    %282 = arith.mulf %280, %281 : vector<2x32xf32>
    %283 = vector.broadcast %262 : vector<1x32xf32> to vector<2x32xf32>
    %284 = arith.addf %282, %283 : vector<2x32xf32>
    %285 = vector.extract_strided_slice %230 {offsets = [0, 64], sizes = [2, 32], strides = [1, 1]} : vector<2x96xf32> to vector<2x32xf32>
    %286 = arith.addf %57, %285 : vector<2x32xf32>
    %287 = vector.extract_strided_slice %231 {offsets = [0, 64], sizes = [1, 32], strides = [1, 1]} : vector<1x96xf32> to vector<1x32xf32>
    %288 = vector.extract_strided_slice %232 {offsets = [0, 64], sizes = [1, 32], strides = [1, 1]} : vector<1x96xf32> to vector<1x32xf32>
    %cst_109 = arith.constant dense<0.000000e+00> : vector<2xf32>
    %289 = vector.multi_reduction <add>, %286, %cst_109 [1] : vector<2x32xf32> to vector<2xf32>
    %290 = vector.shape_cast %289 : vector<2xf32> to vector<2x1xf32>
    %cst_110 = arith.constant 3.200000e+01 : f32
    %291 = vector.broadcast %cst_110 : f32 to vector<2x1xf32>
    %292 = arith.divf %290, %291 : vector<2x1xf32>
    %293 = vector.broadcast %292 : vector<2x1xf32> to vector<2x32xf32>
    %294 = arith.subf %286, %293 : vector<2x32xf32>
    %295 = arith.mulf %294, %294 : vector<2x32xf32>
    %cst_111 = arith.constant dense<0.000000e+00> : vector<2xf32>
    %296 = vector.multi_reduction <add>, %295, %cst_111 [1] : vector<2x32xf32> to vector<2xf32>
    %297 = vector.shape_cast %296 : vector<2xf32> to vector<2x1xf32>
    %cst_112 = arith.constant 3.200000e+01 : f32
    %298 = vector.broadcast %cst_112 : f32 to vector<2x1xf32>
    %299 = arith.divf %297, %298 : vector<2x1xf32>
    %300 = vector.broadcast %292 : vector<2x1xf32> to vector<2x32xf32>
    %301 = arith.subf %286, %300 : vector<2x32xf32>
    %cst_113 = arith.constant 9.99999974E-6 : f32
    %302 = vector.broadcast %cst_113 : f32 to vector<2x1xf32>
    %303 = arith.addf %299, %302 : vector<2x1xf32>
    %304 = math.rsqrt %303 : vector<2x1xf32>
    %305 = vector.broadcast %304 : vector<2x1xf32> to vector<2x32xf32>
    %306 = arith.mulf %301, %305 : vector<2x32xf32>
    %307 = vector.broadcast %287 : vector<1x32xf32> to vector<2x32xf32>
    %308 = arith.mulf %306, %307 : vector<2x32xf32>
    %309 = vector.broadcast %288 : vector<1x32xf32> to vector<2x32xf32>
    %310 = arith.addf %308, %309 : vector<2x32xf32>
    %c1752 = arith.constant 1752 : index
    %c0_114 = arith.constant 0 : index
    %311 = vector.load %arg2[%c1752, %c0_114] : memref<2400x128xf32, #tpu.memory_space<vmem>>, vector<32x128xf32>
    %c1720 = arith.constant 1720 : index
    %c0_115 = arith.constant 0 : index
    %312 = vector.load %arg2[%c1720, %c0_115] : memref<2400x128xf32, #tpu.memory_space<vmem>>, vector<32x128xf32>
    %cst_116 = arith.constant dense<0.000000e+00> : vector<16x128xf32>
    %313 = tpu.matmul %196, %312, %cst_116 {dimension_numbers = #tpu.dot_dimension_numbers<[1], [0], [0], [1], [0, 0, 1, 1], [], []>} : vector<16x32xf32>, vector<32x128xf32>, vector<16x128xf32> -> vector<16x128xf32>
    %c1784 = arith.constant 1784 : index
    %c0_117 = arith.constant 0 : index
    %314 = vector.load %arg2[%c1784, %c0_117] : memref<2400x128xf32, #tpu.memory_space<vmem>>, vector<1x128xf32>
    %315 = vector.broadcast %314 : vector<1x128xf32> to vector<16x128xf32>
    %316 = arith.addf %313, %315 : vector<16x128xf32>
    %317 = vector.shape_cast %316 : vector<16x128xf32> to vector<2x8x128xf32>
    %318 = vector.extract_strided_slice %317 {offsets = [0, 0, 0], sizes = [2, 1, 128], strides = [1, 1, 1]} : vector<2x8x128xf32> to vector<2x1x128xf32>
    %319 = vector.shape_cast %318 : vector<2x1x128xf32> to vector<2x128xf32>
    %cst_118 = arith.constant dense<0.000000e+00> : vector<2x128xf32>
    %320 = tpu.matmul %258, %311, %cst_118 {dimension_numbers = #tpu.dot_dimension_numbers<[1], [0], [0], [1], [0, 0, 1, 1], [], []>} : vector<2x32xf32>, vector<32x128xf32>, vector<2x128xf32> -> vector<2x128xf32>
    %321 = arith.addf %319, %320 : vector<2x128xf32>
    %322 = vector.extract_strided_slice %321 {offsets = [0, 0], sizes = [2, 96], strides = [1, 1]} : vector<2x128xf32> to vector<2x96xf32>
    %323 = arith.negf %322 : vector<2x96xf32>
    %324 = math.exp %323 : vector<2x96xf32>
    %cst_119 = arith.constant 1.000000e+00 : f32
    %325 = vector.broadcast %cst_119 : f32 to vector<2x96xf32>
    %326 = arith.addf %325, %324 : vector<2x96xf32>
    %327 = arith.divf %325, %326 : vector<2x96xf32>
    %328 = vector.extract_strided_slice %321 {offsets = [0, 96], sizes = [2, 32], strides = [1, 1]} : vector<2x128xf32> to vector<2x32xf32>
    %329 = math.tanh %328 : vector<2x32xf32>
    %330 = vector.extract_strided_slice %327 {offsets = [0, 32], sizes = [2, 32], strides = [1, 1]} : vector<2x96xf32> to vector<2x32xf32>
    %331 = arith.mulf %330, %284 : vector<2x32xf32>
    %332 = vector.extract_strided_slice %327 {offsets = [0, 0], sizes = [2, 32], strides = [1, 1]} : vector<2x96xf32> to vector<2x32xf32>
    %333 = arith.mulf %332, %329 : vector<2x32xf32>
    %334 = arith.addf %331, %333 : vector<2x32xf32>
    %335 = vector.extract_strided_slice %327 {offsets = [0, 64], sizes = [2, 32], strides = [1, 1]} : vector<2x96xf32> to vector<2x32xf32>
    %336 = math.tanh %334 : vector<2x32xf32>
    %337 = arith.mulf %335, %336 : vector<2x32xf32>
    %338 = vector.shape_cast %337 : vector<2x32xf32> to vector<2x1x32xf32>
    %c0_120 = arith.constant 0 : index
    %c0_121 = arith.constant 0 : index
    %c0_122 = arith.constant 0 : index
    %339 = vector.load %arg4[%c0_120, %c0_121, %c0_122] : memref<2x8x32xf32, #tpu.memory_space<vmem>>, vector<2x1x32xf32>
    tpu.vector_store %arg4[%c0_120, %c0_121, %c0_122], %338 {strides = array<i32>} : memref<2x8x32xf32, #tpu.memory_space<vmem>>, vector<2x1x32xf32>,
    %340 = vector.extract_strided_slice %317 {offsets = [0, 1, 0], sizes = [2, 1, 128], strides = [1, 1, 1]} : vector<2x8x128xf32> to vector<2x1x128xf32>
    %341 = vector.shape_cast %340 : vector<2x1x128xf32> to vector<2x128xf32>
    %cst_123 = arith.constant dense<0.000000e+00> : vector<2x128xf32>
    %342 = tpu.matmul %337, %311, %cst_123 {dimension_numbers = #tpu.dot_dimension_numbers<[1], [0], [0], [1], [0, 0, 1, 1], [], []>} : vector<2x32xf32>, vector<32x128xf32>, vector<2x128xf32> -> vector<2x128xf32>
    %343 = arith.addf %341, %342 : vector<2x128xf32>
    %344 = vector.extract_strided_slice %343 {offsets = [0, 0], sizes = [2, 96], strides = [1, 1]} : vector<2x128xf32> to vector<2x96xf32>
    %345 = arith.negf %344 : vector<2x96xf32>
    %346 = math.exp %345 : vector<2x96xf32>
    %cst_124 = arith.constant 1.000000e+00 : f32
    %347 = vector.broadcast %cst_124 : f32 to vector<2x96xf32>
    %348 = arith.addf %347, %346 : vector<2x96xf32>
    %349 = arith.divf %347, %348 : vector<2x96xf32>
    %350 = vector.extract_strided_slice %343 {offsets = [0, 96], sizes = [2, 32], strides = [1, 1]} : vector<2x128xf32> to vector<2x32xf32>
    %351 = math.tanh %350 : vector<2x32xf32>
    %352 = vector.extract_strided_slice %349 {offsets = [0, 32], sizes = [2, 32], strides = [1, 1]} : vector<2x96xf32> to vector<2x32xf32>
    %353 = arith.mulf %352, %334 : vector<2x32xf32>
    %354 = vector.extract_strided_slice %349 {offsets = [0, 0], sizes = [2, 32], strides = [1, 1]} : vector<2x96xf32> to vector<2x32xf32>
    %355 = arith.mulf %354, %351 : vector<2x32xf32>
    %356 = arith.addf %353, %355 : vector<2x32xf32>
    %357 = vector.extract_strided_slice %349 {offsets = [0, 64], sizes = [2, 32], strides = [1, 1]} : vector<2x96xf32> to vector<2x32xf32>
    %358 = math.tanh %356 : vector<2x32xf32>
    %359 = arith.mulf %357, %358 : vector<2x32xf32>
    %360 = vector.shape_cast %359 : vector<2x32xf32> to vector<2x1x32xf32>
    %c0_125 = arith.constant 0 : index
    %c1 = arith.constant 1 : index
    %c0_126 = arith.constant 0 : index
    %361 = vector.load %arg4[%c0_125, %c1, %c0_126] : memref<2x8x32xf32, #tpu.memory_space<vmem>>, vector<2x1x32xf32>
    tpu.vector_store %arg4[%c0_125, %c1, %c0_126], %360 {strides = array<i32>} : memref<2x8x32xf32, #tpu.memory_space<vmem>>, vector<2x1x32xf32>,
    %362 = vector.extract_strided_slice %317 {offsets = [0, 2, 0], sizes = [2, 1, 128], strides = [1, 1, 1]} : vector<2x8x128xf32> to vector<2x1x128xf32>
    %363 = vector.shape_cast %362 : vector<2x1x128xf32> to vector<2x128xf32>
    %cst_127 = arith.constant dense<0.000000e+00> : vector<2x128xf32>
    %364 = tpu.matmul %359, %311, %cst_127 {dimension_numbers = #tpu.dot_dimension_numbers<[1], [0], [0], [1], [0, 0, 1, 1], [], []>} : vector<2x32xf32>, vector<32x128xf32>, vector<2x128xf32> -> vector<2x128xf32>
    %365 = arith.addf %363, %364 : vector<2x128xf32>
    %366 = vector.extract_strided_slice %365 {offsets = [0, 0], sizes = [2, 96], strides = [1, 1]} : vector<2x128xf32> to vector<2x96xf32>
    %367 = arith.negf %366 : vector<2x96xf32>
    %368 = math.exp %367 : vector<2x96xf32>
    %cst_128 = arith.constant 1.000000e+00 : f32
    %369 = vector.broadcast %cst_128 : f32 to vector<2x96xf32>
    %370 = arith.addf %369, %368 : vector<2x96xf32>
    %371 = arith.divf %369, %370 : vector<2x96xf32>
    %372 = vector.extract_strided_slice %365 {offsets = [0, 96], sizes = [2, 32], strides = [1, 1]} : vector<2x128xf32> to vector<2x32xf32>
    %373 = math.tanh %372 : vector<2x32xf32>
    %374 = vector.extract_strided_slice %371 {offsets = [0, 32], sizes = [2, 32], strides = [1, 1]} : vector<2x96xf32> to vector<2x32xf32>
    %375 = arith.mulf %374, %356 : vector<2x32xf32>
    %376 = vector.extract_strided_slice %371 {offsets = [0, 0], sizes = [2, 32], strides = [1, 1]} : vector<2x96xf32> to vector<2x32xf32>
    %377 = arith.mulf %376, %373 : vector<2x32xf32>
    %378 = arith.addf %375, %377 : vector<2x32xf32>
    %379 = vector.extract_strided_slice %371 {offsets = [0, 64], sizes = [2, 32], strides = [1, 1]} : vector<2x96xf32> to vector<2x32xf32>
    %380 = math.tanh %378 : vector<2x32xf32>
    %381 = arith.mulf %379, %380 : vector<2x32xf32>
    %382 = vector.shape_cast %381 : vector<2x32xf32> to vector<2x1x32xf32>
    %c0_129 = arith.constant 0 : index
    %c2 = arith.constant 2 : index
    %c0_130 = arith.constant 0 : index
    %383 = vector.load %arg4[%c0_129, %c2, %c0_130] : memref<2x8x32xf32, #tpu.memory_space<vmem>>, vector<2x1x32xf32>
    tpu.vector_store %arg4[%c0_129, %c2, %c0_130], %382 {strides = array<i32>} : memref<2x8x32xf32, #tpu.memory_space<vmem>>, vector<2x1x32xf32>,
    %384 = vector.extract_strided_slice %317 {offsets = [0, 3, 0], sizes = [2, 1, 128], strides = [1, 1, 1]} : vector<2x8x128xf32> to vector<2x1x128xf32>
    %385 = vector.shape_cast %384 : vector<2x1x128xf32> to vector<2x128xf32>
    %cst_131 = arith.constant dense<0.000000e+00> : vector<2x128xf32>
    %386 = tpu.matmul %381, %311, %cst_131 {dimension_numbers = #tpu.dot_dimension_numbers<[1], [0], [0], [1], [0, 0, 1, 1], [], []>} : vector<2x32xf32>, vector<32x128xf32>, vector<2x128xf32> -> vector<2x128xf32>
    %387 = arith.addf %385, %386 : vector<2x128xf32>
    %388 = vector.extract_strided_slice %387 {offsets = [0, 0], sizes = [2, 96], strides = [1, 1]} : vector<2x128xf32> to vector<2x96xf32>
    %389 = arith.negf %388 : vector<2x96xf32>
    %390 = math.exp %389 : vector<2x96xf32>
    %cst_132 = arith.constant 1.000000e+00 : f32
    %391 = vector.broadcast %cst_132 : f32 to vector<2x96xf32>
    %392 = arith.addf %391, %390 : vector<2x96xf32>
    %393 = arith.divf %391, %392 : vector<2x96xf32>
    %394 = vector.extract_strided_slice %387 {offsets = [0, 96], sizes = [2, 32], strides = [1, 1]} : vector<2x128xf32> to vector<2x32xf32>
    %395 = math.tanh %394 : vector<2x32xf32>
    %396 = vector.extract_strided_slice %393 {offsets = [0, 32], sizes = [2, 32], strides = [1, 1]} : vector<2x96xf32> to vector<2x32xf32>
    %397 = arith.mulf %396, %378 : vector<2x32xf32>
    %398 = vector.extract_strided_slice %393 {offsets = [0, 0], sizes = [2, 32], strides = [1, 1]} : vector<2x96xf32> to vector<2x32xf32>
    %399 = arith.mulf %398, %395 : vector<2x32xf32>
    %400 = arith.addf %397, %399 : vector<2x32xf32>
    %401 = vector.extract_strided_slice %393 {offsets = [0, 64], sizes = [2, 32], strides = [1, 1]} : vector<2x96xf32> to vector<2x32xf32>
    %402 = math.tanh %400 : vector<2x32xf32>
    %403 = arith.mulf %401, %402 : vector<2x32xf32>
    %404 = vector.shape_cast %403 : vector<2x32xf32> to vector<2x1x32xf32>
    %c0_133 = arith.constant 0 : index
    %c3 = arith.constant 3 : index
    %c0_134 = arith.constant 0 : index
    %405 = vector.load %arg4[%c0_133, %c3, %c0_134] : memref<2x8x32xf32, #tpu.memory_space<vmem>>, vector<2x1x32xf32>
    tpu.vector_store %arg4[%c0_133, %c3, %c0_134], %404 {strides = array<i32>} : memref<2x8x32xf32, #tpu.memory_space<vmem>>, vector<2x1x32xf32>,
    %406 = vector.extract_strided_slice %317 {offsets = [0, 4, 0], sizes = [2, 1, 128], strides = [1, 1, 1]} : vector<2x8x128xf32> to vector<2x1x128xf32>
    %407 = vector.shape_cast %406 : vector<2x1x128xf32> to vector<2x128xf32>
    %cst_135 = arith.constant dense<0.000000e+00> : vector<2x128xf32>
    %408 = tpu.matmul %403, %311, %cst_135 {dimension_numbers = #tpu.dot_dimension_numbers<[1], [0], [0], [1], [0, 0, 1, 1], [], []>} : vector<2x32xf32>, vector<32x128xf32>, vector<2x128xf32> -> vector<2x128xf32>
    %409 = arith.addf %407, %408 : vector<2x128xf32>
    %410 = vector.extract_strided_slice %409 {offsets = [0, 0], sizes = [2, 96], strides = [1, 1]} : vector<2x128xf32> to vector<2x96xf32>
    %411 = arith.negf %410 : vector<2x96xf32>
    %412 = math.exp %411 : vector<2x96xf32>
    %cst_136 = arith.constant 1.000000e+00 : f32
    %413 = vector.broadcast %cst_136 : f32 to vector<2x96xf32>
    %414 = arith.addf %413, %412 : vector<2x96xf32>
    %415 = arith.divf %413, %414 : vector<2x96xf32>
    %416 = vector.extract_strided_slice %409 {offsets = [0, 96], sizes = [2, 32], strides = [1, 1]} : vector<2x128xf32> to vector<2x32xf32>
    %417 = math.tanh %416 : vector<2x32xf32>
    %418 = vector.extract_strided_slice %415 {offsets = [0, 32], sizes = [2, 32], strides = [1, 1]} : vector<2x96xf32> to vector<2x32xf32>
    %419 = arith.mulf %418, %400 : vector<2x32xf32>
    %420 = vector.extract_strided_slice %415 {offsets = [0, 0], sizes = [2, 32], strides = [1, 1]} : vector<2x96xf32> to vector<2x32xf32>
    %421 = arith.mulf %420, %417 : vector<2x32xf32>
    %422 = arith.addf %419, %421 : vector<2x32xf32>
    %423 = vector.extract_strided_slice %415 {offsets = [0, 64], sizes = [2, 32], strides = [1, 1]} : vector<2x96xf32> to vector<2x32xf32>
    %424 = math.tanh %422 : vector<2x32xf32>
    %425 = arith.mulf %423, %424 : vector<2x32xf32>
    %426 = vector.shape_cast %425 : vector<2x32xf32> to vector<2x1x32xf32>
    %c0_137 = arith.constant 0 : index
    %c4 = arith.constant 4 : index
    %c0_138 = arith.constant 0 : index
    %427 = vector.load %arg4[%c0_137, %c4, %c0_138] : memref<2x8x32xf32, #tpu.memory_space<vmem>>, vector<2x1x32xf32>
    tpu.vector_store %arg4[%c0_137, %c4, %c0_138], %426 {strides = array<i32>} : memref<2x8x32xf32, #tpu.memory_space<vmem>>, vector<2x1x32xf32>,
    %428 = vector.extract_strided_slice %317 {offsets = [0, 5, 0], sizes = [2, 1, 128], strides = [1, 1, 1]} : vector<2x8x128xf32> to vector<2x1x128xf32>
    %429 = vector.shape_cast %428 : vector<2x1x128xf32> to vector<2x128xf32>
    %cst_139 = arith.constant dense<0.000000e+00> : vector<2x128xf32>
    %430 = tpu.matmul %425, %311, %cst_139 {dimension_numbers = #tpu.dot_dimension_numbers<[1], [0], [0], [1], [0, 0, 1, 1], [], []>} : vector<2x32xf32>, vector<32x128xf32>, vector<2x128xf32> -> vector<2x128xf32>
    %431 = arith.addf %429, %430 : vector<2x128xf32>
    %432 = vector.extract_strided_slice %431 {offsets = [0, 0], sizes = [2, 96], strides = [1, 1]} : vector<2x128xf32> to vector<2x96xf32>
    %433 = arith.negf %432 : vector<2x96xf32>
    %434 = math.exp %433 : vector<2x96xf32>
    %cst_140 = arith.constant 1.000000e+00 : f32
    %435 = vector.broadcast %cst_140 : f32 to vector<2x96xf32>
    %436 = arith.addf %435, %434 : vector<2x96xf32>
    %437 = arith.divf %435, %436 : vector<2x96xf32>
    %438 = vector.extract_strided_slice %431 {offsets = [0, 96], sizes = [2, 32], strides = [1, 1]} : vector<2x128xf32> to vector<2x32xf32>
    %439 = math.tanh %438 : vector<2x32xf32>
    %440 = vector.extract_strided_slice %437 {offsets = [0, 32], sizes = [2, 32], strides = [1, 1]} : vector<2x96xf32> to vector<2x32xf32>
    %441 = arith.mulf %440, %422 : vector<2x32xf32>
    %442 = vector.extract_strided_slice %437 {offsets = [0, 0], sizes = [2, 32], strides = [1, 1]} : vector<2x96xf32> to vector<2x32xf32>
    %443 = arith.mulf %442, %439 : vector<2x32xf32>
    %444 = arith.addf %441, %443 : vector<2x32xf32>
    %445 = vector.extract_strided_slice %437 {offsets = [0, 64], sizes = [2, 32], strides = [1, 1]} : vector<2x96xf32> to vector<2x32xf32>
    %446 = math.tanh %444 : vector<2x32xf32>
    %447 = arith.mulf %445, %446 : vector<2x32xf32>
    %448 = vector.shape_cast %447 : vector<2x32xf32> to vector<2x1x32xf32>
    %c0_141 = arith.constant 0 : index
    %c5 = arith.constant 5 : index
    %c0_142 = arith.constant 0 : index
    %449 = vector.load %arg4[%c0_141, %c5, %c0_142] : memref<2x8x32xf32, #tpu.memory_space<vmem>>, vector<2x1x32xf32>
    tpu.vector_store %arg4[%c0_141, %c5, %c0_142], %448 {strides = array<i32>} : memref<2x8x32xf32, #tpu.memory_space<vmem>>, vector<2x1x32xf32>,
    %450 = vector.extract_strided_slice %317 {offsets = [0, 6, 0], sizes = [2, 1, 128], strides = [1, 1, 1]} : vector<2x8x128xf32> to vector<2x1x128xf32>
    %451 = vector.shape_cast %450 : vector<2x1x128xf32> to vector<2x128xf32>
    %cst_143 = arith.constant dense<0.000000e+00> : vector<2x128xf32>
    %452 = tpu.matmul %447, %311, %cst_143 {dimension_numbers = #tpu.dot_dimension_numbers<[1], [0], [0], [1], [0, 0, 1, 1], [], []>} : vector<2x32xf32>, vector<32x128xf32>, vector<2x128xf32> -> vector<2x128xf32>
    %453 = arith.addf %451, %452 : vector<2x128xf32>
    %454 = vector.extract_strided_slice %453 {offsets = [0, 0], sizes = [2, 96], strides = [1, 1]} : vector<2x128xf32> to vector<2x96xf32>
    %455 = arith.negf %454 : vector<2x96xf32>
    %456 = math.exp %455 : vector<2x96xf32>
    %cst_144 = arith.constant 1.000000e+00 : f32
    %457 = vector.broadcast %cst_144 : f32 to vector<2x96xf32>
    %458 = arith.addf %457, %456 : vector<2x96xf32>
    %459 = arith.divf %457, %458 : vector<2x96xf32>
    %460 = vector.extract_strided_slice %453 {offsets = [0, 96], sizes = [2, 32], strides = [1, 1]} : vector<2x128xf32> to vector<2x32xf32>
    %461 = math.tanh %460 : vector<2x32xf32>
    %462 = vector.extract_strided_slice %459 {offsets = [0, 32], sizes = [2, 32], strides = [1, 1]} : vector<2x96xf32> to vector<2x32xf32>
    %463 = arith.mulf %462, %444 : vector<2x32xf32>
    %464 = vector.extract_strided_slice %459 {offsets = [0, 0], sizes = [2, 32], strides = [1, 1]} : vector<2x96xf32> to vector<2x32xf32>
    %465 = arith.mulf %464, %461 : vector<2x32xf32>
    %466 = arith.addf %463, %465 : vector<2x32xf32>
    %467 = vector.extract_strided_slice %459 {offsets = [0, 64], sizes = [2, 32], strides = [1, 1]} : vector<2x96xf32> to vector<2x32xf32>
    %468 = math.tanh %466 : vector<2x32xf32>
    %469 = arith.mulf %467, %468 : vector<2x32xf32>
    %470 = vector.shape_cast %469 : vector<2x32xf32> to vector<2x1x32xf32>
    %c0_145 = arith.constant 0 : index
    %c6 = arith.constant 6 : index
    %c0_146 = arith.constant 0 : index
    %471 = vector.load %arg4[%c0_145, %c6, %c0_146] : memref<2x8x32xf32, #tpu.memory_space<vmem>>, vector<2x1x32xf32>
    tpu.vector_store %arg4[%c0_145, %c6, %c0_146], %470 {strides = array<i32>} : memref<2x8x32xf32, #tpu.memory_space<vmem>>, vector<2x1x32xf32>,
    %472 = vector.extract_strided_slice %317 {offsets = [0, 7, 0], sizes = [2, 1, 128], strides = [1, 1, 1]} : vector<2x8x128xf32> to vector<2x1x128xf32>
    %473 = vector.shape_cast %472 : vector<2x1x128xf32> to vector<2x128xf32>
    %cst_147 = arith.constant dense<0.000000e+00> : vector<2x128xf32>
    %474 = tpu.matmul %469, %311, %cst_147 {dimension_numbers = #tpu.dot_dimension_numbers<[1], [0], [0], [1], [0, 0, 1, 1], [], []>} : vector<2x32xf32>, vector<32x128xf32>, vector<2x128xf32> -> vector<2x128xf32>
    %475 = arith.addf %473, %474 : vector<2x128xf32>
    %476 = vector.extract_strided_slice %475 {offsets = [0, 0], sizes = [2, 96], strides = [1, 1]} : vector<2x128xf32> to vector<2x96xf32>
    %477 = arith.negf %476 : vector<2x96xf32>
    %478 = math.exp %477 : vector<2x96xf32>
    %cst_148 = arith.constant 1.000000e+00 : f32
    %479 = vector.broadcast %cst_148 : f32 to vector<2x96xf32>
    %480 = arith.addf %479, %478 : vector<2x96xf32>
    %481 = arith.divf %479, %480 : vector<2x96xf32>
    %482 = vector.extract_strided_slice %475 {offsets = [0, 96], sizes = [2, 32], strides = [1, 1]} : vector<2x128xf32> to vector<2x32xf32>
    %483 = math.tanh %482 : vector<2x32xf32>
    %484 = vector.extract_strided_slice %481 {offsets = [0, 32], sizes = [2, 32], strides = [1, 1]} : vector<2x96xf32> to vector<2x32xf32>
    %485 = arith.mulf %484, %466 : vector<2x32xf32>
    %486 = vector.extract_strided_slice %481 {offsets = [0, 0], sizes = [2, 32], strides = [1, 1]} : vector<2x96xf32> to vector<2x32xf32>
    %487 = arith.mulf %486, %483 : vector<2x32xf32>
    %488 = arith.addf %485, %487 : vector<2x32xf32>
    %489 = vector.extract_strided_slice %481 {offsets = [0, 64], sizes = [2, 32], strides = [1, 1]} : vector<2x96xf32> to vector<2x32xf32>
    %490 = math.tanh %488 : vector<2x32xf32>
    %491 = arith.mulf %489, %490 : vector<2x32xf32>
    %492 = vector.shape_cast %491 : vector<2x32xf32> to vector<2x1x32xf32>
    %c0_149 = arith.constant 0 : index
    %c7 = arith.constant 7 : index
    %c0_150 = arith.constant 0 : index
    %493 = vector.load %arg4[%c0_149, %c7, %c0_150] : memref<2x8x32xf32, #tpu.memory_space<vmem>>, vector<2x1x32xf32>
    tpu.vector_store %arg4[%c0_149, %c7, %c0_150], %492 {strides = array<i32>} : memref<2x8x32xf32, #tpu.memory_space<vmem>>, vector<2x1x32xf32>,
    %c0_151 = arith.constant 0 : index
    %c0_152 = arith.constant 0 : index
    %c0_153 = arith.constant 0 : index
    %494 = vector.load %arg4[%c0_151, %c0_152, %c0_153] : memref<2x8x32xf32, #tpu.memory_space<vmem>>, vector<2x8x32xf32>
    %495 = vector.shape_cast %494 : vector<2x8x32xf32> to vector<16x32xf32>
    %c1792 = arith.constant 1792 : index
    %c0_154 = arith.constant 0 : index
    %496 = vector.load %arg2[%c1792, %c0_154] : memref<2400x128xf32, #tpu.memory_space<vmem>>, vector<32x64xf32>
    %c1824 = arith.constant 1824 : index
    %c0_155 = arith.constant 0 : index
    %497 = vector.load %arg2[%c1824, %c0_155] : memref<2400x128xf32, #tpu.memory_space<vmem>>, vector<1x64xf32>
    %c1832 = arith.constant 1832 : index
    %c0_156 = arith.constant 0 : index
    %498 = vector.load %arg2[%c1832, %c0_156] : memref<2400x128xf32, #tpu.memory_space<vmem>>, vector<1x32xf32>
    %c1840 = arith.constant 1840 : index
    %c0_157 = arith.constant 0 : index
    %499 = vector.load %arg2[%c1840, %c0_157] : memref<2400x128xf32, #tpu.memory_space<vmem>>, vector<1x32xf32>
    %cst_158 = arith.constant dense<0.000000e+00> : vector<16x64xf32>
    %500 = tpu.matmul %495, %496, %cst_158 {dimension_numbers = #tpu.dot_dimension_numbers<[1], [0], [0], [1], [0, 0, 1, 1], [], []>} : vector<16x32xf32>, vector<32x64xf32>, vector<16x64xf32> -> vector<16x64xf32>
    %501 = vector.broadcast %497 : vector<1x64xf32> to vector<16x64xf32>
    %502 = arith.addf %500, %501 : vector<16x64xf32>
    %503 = vector.extract_strided_slice %502 {offsets = [0, 0], sizes = [16, 32], strides = [1, 1]} : vector<16x64xf32> to vector<16x32xf32>
    %504 = arith.negf %503 : vector<16x32xf32>
    %505 = math.exp %504 : vector<16x32xf32>
    %cst_159 = arith.constant 1.000000e+00 : f32
    %506 = vector.broadcast %cst_159 : f32 to vector<16x32xf32>
    %507 = arith.addf %506, %505 : vector<16x32xf32>
    %508 = arith.divf %506, %507 : vector<16x32xf32>
    %509 = vector.extract_strided_slice %502 {offsets = [0, 32], sizes = [16, 32], strides = [1, 1]} : vector<16x64xf32> to vector<16x32xf32>
    %510 = arith.mulf %508, %509 : vector<16x32xf32>
    %511 = arith.addf %510, %196 : vector<16x32xf32>
    %cst_160 = arith.constant dense<0.000000e+00> : vector<16xf32>
    %512 = vector.multi_reduction <add>, %511, %cst_160 [1] : vector<16x32xf32> to vector<16xf32>
    %513 = vector.shape_cast %512 : vector<16xf32> to vector<16x1xf32>
    %cst_161 = arith.constant 3.200000e+01 : f32
    %514 = vector.broadcast %cst_161 : f32 to vector<16x1xf32>
    %515 = arith.divf %513, %514 : vector<16x1xf32>
    %516 = vector.broadcast %515 : vector<16x1xf32> to vector<16x32xf32>
    %517 = arith.subf %511, %516 : vector<16x32xf32>
    %518 = arith.mulf %517, %517 : vector<16x32xf32>
    %cst_162 = arith.constant dense<0.000000e+00> : vector<16xf32>
    %519 = vector.multi_reduction <add>, %518, %cst_162 [1] : vector<16x32xf32> to vector<16xf32>
    %520 = vector.shape_cast %519 : vector<16xf32> to vector<16x1xf32>
    %cst_163 = arith.constant 3.200000e+01 : f32
    %521 = vector.broadcast %cst_163 : f32 to vector<16x1xf32>
    %522 = arith.divf %520, %521 : vector<16x1xf32>
    %523 = vector.broadcast %515 : vector<16x1xf32> to vector<16x32xf32>
    %524 = arith.subf %511, %523 : vector<16x32xf32>
    %cst_164 = arith.constant 9.99999974E-6 : f32
    %525 = vector.broadcast %cst_164 : f32 to vector<16x1xf32>
    %526 = arith.addf %522, %525 : vector<16x1xf32>
    %527 = math.rsqrt %526 : vector<16x1xf32>
    %528 = vector.broadcast %527 : vector<16x1xf32> to vector<16x32xf32>
    %529 = arith.mulf %524, %528 : vector<16x32xf32>
    %530 = vector.broadcast %498 : vector<1x32xf32> to vector<16x32xf32>
    %531 = arith.mulf %529, %530 : vector<16x32xf32>
    %532 = vector.broadcast %499 : vector<1x32xf32> to vector<16x32xf32>
    %533 = arith.addf %531, %532 : vector<16x32xf32>
    %c1888 = arith.constant 1888 : index
    %c0_165 = arith.constant 0 : index
    %534 = vector.load %arg2[%c1888, %c0_165] : memref<2400x128xf32, #tpu.memory_space<vmem>>, vector<32x32xf32>
    %cst_166 = arith.constant dense<0.000000e+00> : vector<2x32xf32>
    %535 = tpu.matmul %310, %534, %cst_166 {dimension_numbers = #tpu.dot_dimension_numbers<[1], [0], [0], [1], [0, 0, 1, 1], [], []>} : vector<2x32xf32>, vector<32x32xf32>, vector<2x32xf32> -> vector<2x32xf32>
    %536 = vector.shape_cast %535 : vector<2x32xf32> to vector<2x1x32xf32>
    %537 = vector.shape_cast %536 : vector<2x1x32xf32> to vector<2x1x32xf32>
    %538 = vector.broadcast %537 : vector<2x1x32xf32> to vector<2x8x32xf32>
    %539 = vector.shape_cast %538 : vector<2x8x32xf32> to vector<16x32xf32>
    %c1848 = arith.constant 1848 : index
    %c0_167 = arith.constant 0 : index
    %540 = vector.load %arg2[%c1848, %c0_167] : memref<2400x128xf32, #tpu.memory_space<vmem>>, vector<32x32xf32>
    %c1880 = arith.constant 1880 : index
    %c0_168 = arith.constant 0 : index
    %541 = vector.load %arg2[%c1880, %c0_168] : memref<2400x128xf32, #tpu.memory_space<vmem>>, vector<1x32xf32>
    %c1920 = arith.constant 1920 : index
    %c0_169 = arith.constant 0 : index
    %542 = vector.load %arg2[%c1920, %c0_169] : memref<2400x128xf32, #tpu.memory_space<vmem>>, vector<32x32xf32>
    %c1952 = arith.constant 1952 : index
    %c0_170 = arith.constant 0 : index
    %543 = vector.load %arg2[%c1952, %c0_170] : memref<2400x128xf32, #tpu.memory_space<vmem>>, vector<1x32xf32>
    %c1960 = arith.constant 1960 : index
    %c0_171 = arith.constant 0 : index
    %544 = vector.load %arg2[%c1960, %c0_171] : memref<2400x128xf32, #tpu.memory_space<vmem>>, vector<32x64xf32>
    %c1992 = arith.constant 1992 : index
    %c0_172 = arith.constant 0 : index
    %545 = vector.load %arg2[%c1992, %c0_172] : memref<2400x128xf32, #tpu.memory_space<vmem>>, vector<1x64xf32>
    %c2000 = arith.constant 2000 : index
    %c0_173 = arith.constant 0 : index
    %546 = vector.load %arg2[%c2000, %c0_173] : memref<2400x128xf32, #tpu.memory_space<vmem>>, vector<1x32xf32>
    %c2008 = arith.constant 2008 : index
    %c0_174 = arith.constant 0 : index
    %547 = vector.load %arg2[%c2008, %c0_174] : memref<2400x128xf32, #tpu.memory_space<vmem>>, vector<1x32xf32>
    %cst_175 = arith.constant dense<0.000000e+00> : vector<16x32xf32>
    %548 = tpu.matmul %533, %540, %cst_175 {dimension_numbers = #tpu.dot_dimension_numbers<[1], [0], [0], [1], [0, 0, 1, 1], [], []>} : vector<16x32xf32>, vector<32x32xf32>, vector<16x32xf32> -> vector<16x32xf32>
    %549 = vector.broadcast %541 : vector<1x32xf32> to vector<16x32xf32>
    %550 = arith.addf %548, %549 : vector<16x32xf32>
    %551 = arith.addf %550, %539 : vector<16x32xf32>
    %cst_176 = arith.constant 0.000000e+00 : f32
    %552 = vector.broadcast %cst_176 : f32 to vector<16x32xf32>
    %553 = arith.cmpf ogt, %551, %552 : vector<16x32xf32>
    %cst_177 = arith.constant 0.000000e+00 : f32
    %554 = vector.broadcast %cst_177 : f32 to vector<16x32xf32>
    %555 = arith.minimumf %551, %554 : vector<16x32xf32>
    %556 = math.exp %555 : vector<16x32xf32>
    %cst_178 = arith.constant 1.000000e+00 : f32
    %557 = vector.broadcast %cst_178 : f32 to vector<16x32xf32>
    %558 = arith.subf %556, %557 : vector<16x32xf32>
    %559 = arith.select %553, %551, %558 : vector<16x32xi1>, vector<16x32xf32>
    %cst_179 = arith.constant dense<0.000000e+00> : vector<16x32xf32>
    %560 = tpu.matmul %559, %542, %cst_179 {dimension_numbers = #tpu.dot_dimension_numbers<[1], [0], [0], [1], [0, 0, 1, 1], [], []>} : vector<16x32xf32>, vector<32x32xf32>, vector<16x32xf32> -> vector<16x32xf32>
    %561 = vector.broadcast %543 : vector<1x32xf32> to vector<16x32xf32>
    %562 = arith.addf %560, %561 : vector<16x32xf32>
    %cst_180 = arith.constant dense<0.000000e+00> : vector<16x64xf32>
    %563 = tpu.matmul %562, %544, %cst_180 {dimension_numbers = #tpu.dot_dimension_numbers<[1], [0], [0], [1], [0, 0, 1, 1], [], []>} : vector<16x32xf32>, vector<32x64xf32>, vector<16x64xf32> -> vector<16x64xf32>
    %564 = vector.broadcast %545 : vector<1x64xf32> to vector<16x64xf32>
    %565 = arith.addf %563, %564 : vector<16x64xf32>
    %566 = vector.extract_strided_slice %565 {offsets = [0, 0], sizes = [16, 32], strides = [1, 1]} : vector<16x64xf32> to vector<16x32xf32>
    %567 = arith.negf %566 : vector<16x32xf32>
    %568 = math.exp %567 : vector<16x32xf32>
    %cst_181 = arith.constant 1.000000e+00 : f32
    %569 = vector.broadcast %cst_181 : f32 to vector<16x32xf32>
    %570 = arith.addf %569, %568 : vector<16x32xf32>
    %571 = arith.divf %569, %570 : vector<16x32xf32>
    %572 = vector.extract_strided_slice %565 {offsets = [0, 32], sizes = [16, 32], strides = [1, 1]} : vector<16x64xf32> to vector<16x32xf32>
    %573 = arith.mulf %571, %572 : vector<16x32xf32>
    %574 = arith.addf %533, %573 : vector<16x32xf32>
    %cst_182 = arith.constant dense<0.000000e+00> : vector<16xf32>
    %575 = vector.multi_reduction <add>, %574, %cst_182 [1] : vector<16x32xf32> to vector<16xf32>
    %576 = vector.shape_cast %575 : vector<16xf32> to vector<16x1xf32>
    %cst_183 = arith.constant 3.200000e+01 : f32
    %577 = vector.broadcast %cst_183 : f32 to vector<16x1xf32>
    %578 = arith.divf %576, %577 : vector<16x1xf32>
    %579 = vector.broadcast %578 : vector<16x1xf32> to vector<16x32xf32>
    %580 = arith.subf %574, %579 : vector<16x32xf32>
    %581 = arith.mulf %580, %580 : vector<16x32xf32>
    %cst_184 = arith.constant dense<0.000000e+00> : vector<16xf32>
    %582 = vector.multi_reduction <add>, %581, %cst_184 [1] : vector<16x32xf32> to vector<16xf32>
    %583 = vector.shape_cast %582 : vector<16xf32> to vector<16x1xf32>
    %cst_185 = arith.constant 3.200000e+01 : f32
    %584 = vector.broadcast %cst_185 : f32 to vector<16x1xf32>
    %585 = arith.divf %583, %584 : vector<16x1xf32>
    %586 = vector.broadcast %578 : vector<16x1xf32> to vector<16x32xf32>
    %587 = arith.subf %574, %586 : vector<16x32xf32>
    %cst_186 = arith.constant 9.99999974E-6 : f32
    %588 = vector.broadcast %cst_186 : f32 to vector<16x1xf32>
    %589 = arith.addf %585, %588 : vector<16x1xf32>
    %590 = math.rsqrt %589 : vector<16x1xf32>
    %591 = vector.broadcast %590 : vector<16x1xf32> to vector<16x32xf32>
    %592 = arith.mulf %587, %591 : vector<16x32xf32>
    %593 = vector.broadcast %546 : vector<1x32xf32> to vector<16x32xf32>
    %594 = arith.mulf %592, %593 : vector<16x32xf32>
    %595 = vector.broadcast %547 : vector<1x32xf32> to vector<16x32xf32>
    %596 = arith.addf %594, %595 : vector<16x32xf32>
    %c2016 = arith.constant 2016 : index
    %c0_187 = arith.constant 0 : index
    %597 = vector.load %arg2[%c2016, %c0_187] : memref<2400x128xf32, #tpu.memory_space<vmem>>, vector<32x72xf32>
    %cst_188 = arith.constant dense<0.000000e+00> : vector<16x72xf32>
    %598 = tpu.matmul %596, %597, %cst_188 {dimension_numbers = #tpu.dot_dimension_numbers<[1], [0], [0], [1], [0, 0, 1, 1], [], []>} : vector<16x32xf32>, vector<32x72xf32>, vector<16x72xf32> -> vector<16x72xf32>
    %599 = vector.extract_strided_slice %598 {offsets = [0, 0], sizes = [16, 32], strides = [1, 1]} : vector<16x72xf32> to vector<16x32xf32>
    %600 = vector.shape_cast %599 : vector<16x32xf32> to vector<2x8x32xf32>
    %601 = vector.extract_strided_slice %598 {offsets = [0, 32], sizes = [16, 32], strides = [1, 1]} : vector<16x72xf32> to vector<16x32xf32>
    %602 = vector.shape_cast %601 : vector<16x32xf32> to vector<2x8x32xf32>
    %603 = vector.extract_strided_slice %598 {offsets = [0, 64], sizes = [16, 8], strides = [1, 1]} : vector<16x72xf32> to vector<16x8xf32>
    %604 = vector.shape_cast %603 : vector<16x8xf32> to vector<2x8x8xf32>
    %605 = vector.extract_strided_slice %600 {offsets = [0, 0, 0], sizes = [2, 8, 8], strides = [1, 1, 1]} : vector<2x8x32xf32> to vector<2x8x8xf32>
    %606 = vector.extract_strided_slice %602 {offsets = [0, 0, 0], sizes = [2, 8, 8], strides = [1, 1, 1]} : vector<2x8x32xf32> to vector<2x8x8xf32>
    "tpu.trace_start"() <{level = 10 : i32, message = "bqd,bkd->bqk"}> : () -> ()
    %cst_189 = arith.constant dense<0.000000e+00> : vector<2x8x8xf32>
    %607 = tpu.matmul %605, %606, %cst_189 {dimension_numbers = #tpu.dot_dimension_numbers<[2], [2], [1], [1], [0, 0, 0, 1, 1, 1], [0], [0]>} : vector<2x8x8xf32>, vector<2x8x8xf32>, vector<2x8x8xf32> -> vector<2x8x8xf32>
    "tpu.trace_stop"() : () -> ()
    %608 = vector.extract_strided_slice %600 {offsets = [0, 0, 8], sizes = [2, 8, 8], strides = [1, 1, 1]} : vector<2x8x32xf32> to vector<2x8x8xf32>
    %609 = vector.extract_strided_slice %602 {offsets = [0, 0, 8], sizes = [2, 8, 8], strides = [1, 1, 1]} : vector<2x8x32xf32> to vector<2x8x8xf32>
    "tpu.trace_start"() <{level = 10 : i32, message = "bqd,bkd->bqk"}> : () -> ()
    %cst_190 = arith.constant dense<0.000000e+00> : vector<2x8x8xf32>
    %610 = tpu.matmul %608, %609, %cst_190 {dimension_numbers = #tpu.dot_dimension_numbers<[2], [2], [1], [1], [0, 0, 0, 1, 1, 1], [0], [0]>} : vector<2x8x8xf32>, vector<2x8x8xf32>, vector<2x8x8xf32> -> vector<2x8x8xf32>
    "tpu.trace_stop"() : () -> ()
    %611 = vector.extract_strided_slice %600 {offsets = [0, 0, 16], sizes = [2, 8, 8], strides = [1, 1, 1]} : vector<2x8x32xf32> to vector<2x8x8xf32>
    %612 = vector.extract_strided_slice %602 {offsets = [0, 0, 16], sizes = [2, 8, 8], strides = [1, 1, 1]} : vector<2x8x32xf32> to vector<2x8x8xf32>
    "tpu.trace_start"() <{level = 10 : i32, message = "bqd,bkd->bqk"}> : () -> ()
    %cst_191 = arith.constant dense<0.000000e+00> : vector<2x8x8xf32>
    %613 = tpu.matmul %611, %612, %cst_191 {dimension_numbers = #tpu.dot_dimension_numbers<[2], [2], [1], [1], [0, 0, 0, 1, 1, 1], [0], [0]>} : vector<2x8x8xf32>, vector<2x8x8xf32>, vector<2x8x8xf32> -> vector<2x8x8xf32>
    "tpu.trace_stop"() : () -> ()
    %614 = vector.extract_strided_slice %600 {offsets = [0, 0, 24], sizes = [2, 8, 8], strides = [1, 1, 1]} : vector<2x8x32xf32> to vector<2x8x8xf32>
    %615 = vector.extract_strided_slice %602 {offsets = [0, 0, 24], sizes = [2, 8, 8], strides = [1, 1, 1]} : vector<2x8x32xf32> to vector<2x8x8xf32>
    "tpu.trace_start"() <{level = 10 : i32, message = "bqd,bkd->bqk"}> : () -> ()
    %cst_192 = arith.constant dense<0.000000e+00> : vector<2x8x8xf32>
    %616 = tpu.matmul %614, %615, %cst_192 {dimension_numbers = #tpu.dot_dimension_numbers<[2], [2], [1], [1], [0, 0, 0, 1, 1, 1], [0], [0]>} : vector<2x8x8xf32>, vector<2x8x8xf32>, vector<2x8x8xf32> -> vector<2x8x8xf32>
    "tpu.trace_stop"() : () -> ()
    %617 = tpu.concatenate %607, %610, %613, %616 in 2 : vector<2x8x8xf32>, vector<2x8x8xf32>, vector<2x8x8xf32>, vector<2x8x8xf32> -> vector<2x8x32xf32>
    %c2056 = arith.constant 2056 : index
    %c0_193 = arith.constant 0 : index
    %618 = vector.load %arg2[%c2056, %c0_193] : memref<2400x128xf32, #tpu.memory_space<vmem>>, vector<8x32xf32>
    %619 = vector.shape_cast %618 : vector<8x32xf32> to vector<1x8x32xf32>
    %620 = vector.broadcast %619 : vector<1x8x32xf32> to vector<2x8x32xf32>
    %621 = arith.addf %617, %620 : vector<2x8x32xf32>
    %cst_194 = arith.constant dense<0xFF800000> : vector<2x8xf32>
    %622 = vector.multi_reduction <maximumf>, %621, %cst_194 [2] : vector<2x8x32xf32> to vector<2x8xf32>
    %623 = vector.shape_cast %622 : vector<2x8xf32> to vector<2x8x1xf32>
    %624 = vector.broadcast %623 : vector<2x8x1xf32> to vector<2x8x32xf32>
    %625 = arith.subf %621, %624 : vector<2x8x32xf32>
    %626 = math.exp %625 : vector<2x8x32xf32>
    %627 = vector.shape_cast %626 : vector<2x8x32xf32> to vector<16x32xf32>
    %c2064 = arith.constant 2064 : index
    %c0_195 = arith.constant 0 : index
    %628 = vector.load %arg2[%c2064, %c0_195] : memref<2400x128xf32, #tpu.memory_space<vmem>>, vector<32x4xf32>
    %cst_196 = arith.constant dense<0.000000e+00> : vector<16x4xf32>
    %629 = tpu.matmul %627, %628, %cst_196 {dimension_numbers = #tpu.dot_dimension_numbers<[1], [0], [0], [1], [0, 0, 1, 1], [], []>} : vector<16x32xf32>, vector<32x4xf32>, vector<16x4xf32> -> vector<16x4xf32>
    %cst_197 = arith.constant 1.000000e-30 : f32
    %630 = vector.broadcast %cst_197 : f32 to vector<16x4xf32>
    %631 = arith.maximumf %629, %630 : vector<16x4xf32>
    %cst_198 = arith.constant 1.000000e+00 : f32
    %632 = vector.broadcast %cst_198 : f32 to vector<16x4xf32>
    %633 = arith.divf %632, %631 : vector<16x4xf32>
    %c2096 = arith.constant 2096 : index
    %c0_199 = arith.constant 0 : index
    %634 = vector.load %arg2[%c2096, %c0_199] : memref<2400x128xf32, #tpu.memory_space<vmem>>, vector<4x32xf32>
    %cst_200 = arith.constant dense<0.000000e+00> : vector<16x32xf32>
    %635 = tpu.matmul %633, %634, %cst_200 {dimension_numbers = #tpu.dot_dimension_numbers<[1], [0], [0], [1], [0, 0, 1, 1], [], []>} : vector<16x4xf32>, vector<4x32xf32>, vector<16x32xf32> -> vector<16x32xf32>
    %636 = arith.mulf %627, %635 : vector<16x32xf32>
    %c2104 = arith.constant 2104 : index
    %c0_201 = arith.constant 0 : index
    %637 = vector.load %arg2[%c2104, %c0_201] : memref<2400x128xf32, #tpu.memory_space<vmem>>, vector<32x8xf32>
    %cst_202 = arith.constant dense<0.000000e+00> : vector<16x8xf32>
    %638 = tpu.matmul %636, %637, %cst_202 {dimension_numbers = #tpu.dot_dimension_numbers<[1], [0], [0], [1], [0, 0, 1, 1], [], []>} : vector<16x32xf32>, vector<32x8xf32>, vector<16x8xf32> -> vector<16x8xf32>
    %639 = vector.shape_cast %638 : vector<16x8xf32> to vector<2x8x8xf32>
    "tpu.trace_start"() <{level = 10 : i32, message = "bqt,btk->bqk"}> : () -> ()
    %cst_203 = arith.constant dense<0.000000e+00> : vector<2x8x8xf32>
    %640 = tpu.matmul %639, %604, %cst_203 {dimension_numbers = #tpu.dot_dimension_numbers<[2], [1], [1], [2], [0, 0, 0, 1, 1, 2], [0], [0]>} : vector<2x8x8xf32>, vector<2x8x8xf32>, vector<2x8x8xf32> -> vector<2x8x8xf32>
    "tpu.trace_stop"() : () -> ()
    %641 = vector.shape_cast %640 : vector<2x8x8xf32> to vector<16x8xf32>
    %c2048 = arith.constant 2048 : index
    %c0_204 = arith.constant 0 : index
    %642 = vector.load %arg2[%c2048, %c0_204] : memref<2400x128xf32, #tpu.memory_space<vmem>>, vector<8x32xf32>
    %cst_205 = arith.constant dense<0.000000e+00> : vector<16x32xf32>
    %643 = tpu.matmul %641, %642, %cst_205 {dimension_numbers = #tpu.dot_dimension_numbers<[1], [0], [0], [1], [0, 0, 1, 1], [], []>} : vector<16x8xf32>, vector<8x32xf32>, vector<16x32xf32> -> vector<16x32xf32>
    %c2136 = arith.constant 2136 : index
    %c0_206 = arith.constant 0 : index
    %644 = vector.load %arg2[%c2136, %c0_206] : memref<2400x128xf32, #tpu.memory_space<vmem>>, vector<32x64xf32>
    %c2168 = arith.constant 2168 : index
    %c0_207 = arith.constant 0 : index
    %645 = vector.load %arg2[%c2168, %c0_207] : memref<2400x128xf32, #tpu.memory_space<vmem>>, vector<1x64xf32>
    %c2176 = arith.constant 2176 : index
    %c0_208 = arith.constant 0 : index
    %646 = vector.load %arg2[%c2176, %c0_208] : memref<2400x128xf32, #tpu.memory_space<vmem>>, vector<1x32xf32>
    %c2184 = arith.constant 2184 : index
    %c0_209 = arith.constant 0 : index
    %647 = vector.load %arg2[%c2184, %c0_209] : memref<2400x128xf32, #tpu.memory_space<vmem>>, vector<1x32xf32>
    %cst_210 = arith.constant dense<0.000000e+00> : vector<16x64xf32>
    %648 = tpu.matmul %643, %644, %cst_210 {dimension_numbers = #tpu.dot_dimension_numbers<[1], [0], [0], [1], [0, 0, 1, 1], [], []>} : vector<16x32xf32>, vector<32x64xf32>, vector<16x64xf32> -> vector<16x64xf32>
    %649 = vector.broadcast %645 : vector<1x64xf32> to vector<16x64xf32>
    %650 = arith.addf %648, %649 : vector<16x64xf32>
    %651 = vector.extract_strided_slice %650 {offsets = [0, 0], sizes = [16, 32], strides = [1, 1]} : vector<16x64xf32> to vector<16x32xf32>
    %652 = arith.negf %651 : vector<16x32xf32>
    %653 = math.exp %652 : vector<16x32xf32>
    %cst_211 = arith.constant 1.000000e+00 : f32
    %654 = vector.broadcast %cst_211 : f32 to vector<16x32xf32>
    %655 = arith.addf %654, %653 : vector<16x32xf32>
    %656 = arith.divf %654, %655 : vector<16x32xf32>
    %657 = vector.extract_strided_slice %650 {offsets = [0, 32], sizes = [16, 32], strides = [1, 1]} : vector<16x64xf32> to vector<16x32xf32>
    %658 = arith.mulf %656, %657 : vector<16x32xf32>
    %659 = arith.addf %658, %596 : vector<16x32xf32>
    %cst_212 = arith.constant dense<0.000000e+00> : vector<16xf32>
    %660 = vector.multi_reduction <add>, %659, %cst_212 [1] : vector<16x32xf32> to vector<16xf32>
    %661 = vector.shape_cast %660 : vector<16xf32> to vector<16x1xf32>
    %cst_213 = arith.constant 3.200000e+01 : f32
    %662 = vector.broadcast %cst_213 : f32 to vector<16x1xf32>
    %663 = arith.divf %661, %662 : vector<16x1xf32>
    %664 = vector.broadcast %663 : vector<16x1xf32> to vector<16x32xf32>
    %665 = arith.subf %659, %664 : vector<16x32xf32>
    %666 = arith.mulf %665, %665 : vector<16x32xf32>
    %cst_214 = arith.constant dense<0.000000e+00> : vector<16xf32>
    %667 = vector.multi_reduction <add>, %666, %cst_214 [1] : vector<16x32xf32> to vector<16xf32>
    %668 = vector.shape_cast %667 : vector<16xf32> to vector<16x1xf32>
    %cst_215 = arith.constant 3.200000e+01 : f32
    %669 = vector.broadcast %cst_215 : f32 to vector<16x1xf32>
    %670 = arith.divf %668, %669 : vector<16x1xf32>
    %671 = vector.broadcast %663 : vector<16x1xf32> to vector<16x32xf32>
    %672 = arith.subf %659, %671 : vector<16x32xf32>
    %cst_216 = arith.constant 9.99999974E-6 : f32
    %673 = vector.broadcast %cst_216 : f32 to vector<16x1xf32>
    %674 = arith.addf %670, %673 : vector<16x1xf32>
    %675 = math.rsqrt %674 : vector<16x1xf32>
    %676 = vector.broadcast %675 : vector<16x1xf32> to vector<16x32xf32>
    %677 = arith.mulf %672, %676 : vector<16x32xf32>
    %678 = vector.broadcast %646 : vector<1x32xf32> to vector<16x32xf32>
    %679 = arith.mulf %677, %678 : vector<16x32xf32>
    %680 = vector.broadcast %647 : vector<1x32xf32> to vector<16x32xf32>
    %681 = arith.addf %679, %680 : vector<16x32xf32>
    %c2192 = arith.constant 2192 : index
    %c0_217 = arith.constant 0 : index
    %682 = vector.load %arg2[%c2192, %c0_217] : memref<2400x128xf32, #tpu.memory_space<vmem>>, vector<32x32xf32>
    %c2224 = arith.constant 2224 : index
    %c0_218 = arith.constant 0 : index
    %683 = vector.load %arg2[%c2224, %c0_218] : memref<2400x128xf32, #tpu.memory_space<vmem>>, vector<1x32xf32>
    %c2232 = arith.constant 2232 : index
    %c0_219 = arith.constant 0 : index
    %684 = vector.load %arg2[%c2232, %c0_219] : memref<2400x128xf32, #tpu.memory_space<vmem>>, vector<32x32xf32>
    %c2264 = arith.constant 2264 : index
    %c0_220 = arith.constant 0 : index
    %685 = vector.load %arg2[%c2264, %c0_220] : memref<2400x128xf32, #tpu.memory_space<vmem>>, vector<1x32xf32>
    %c2272 = arith.constant 2272 : index
    %c0_221 = arith.constant 0 : index
    %686 = vector.load %arg2[%c2272, %c0_221] : memref<2400x128xf32, #tpu.memory_space<vmem>>, vector<32x64xf32>
    %c2304 = arith.constant 2304 : index
    %c0_222 = arith.constant 0 : index
    %687 = vector.load %arg2[%c2304, %c0_222] : memref<2400x128xf32, #tpu.memory_space<vmem>>, vector<1x64xf32>
    %c2312 = arith.constant 2312 : index
    %c0_223 = arith.constant 0 : index
    %688 = vector.load %arg2[%c2312, %c0_223] : memref<2400x128xf32, #tpu.memory_space<vmem>>, vector<1x32xf32>
    %c2320 = arith.constant 2320 : index
    %c0_224 = arith.constant 0 : index
    %689 = vector.load %arg2[%c2320, %c0_224] : memref<2400x128xf32, #tpu.memory_space<vmem>>, vector<1x32xf32>
    %cst_225 = arith.constant dense<0.000000e+00> : vector<16x32xf32>
    %690 = tpu.matmul %681, %682, %cst_225 {dimension_numbers = #tpu.dot_dimension_numbers<[1], [0], [0], [1], [0, 0, 1, 1], [], []>} : vector<16x32xf32>, vector<32x32xf32>, vector<16x32xf32> -> vector<16x32xf32>
    %691 = vector.broadcast %683 : vector<1x32xf32> to vector<16x32xf32>
    %692 = arith.addf %690, %691 : vector<16x32xf32>
    %cst_226 = arith.constant 0.000000e+00 : f32
    %693 = vector.broadcast %cst_226 : f32 to vector<16x32xf32>
    %694 = arith.cmpf ogt, %692, %693 : vector<16x32xf32>
    %cst_227 = arith.constant 0.000000e+00 : f32
    %695 = vector.broadcast %cst_227 : f32 to vector<16x32xf32>
    %696 = arith.minimumf %692, %695 : vector<16x32xf32>
    %697 = math.exp %696 : vector<16x32xf32>
    %cst_228 = arith.constant 1.000000e+00 : f32
    %698 = vector.broadcast %cst_228 : f32 to vector<16x32xf32>
    %699 = arith.subf %697, %698 : vector<16x32xf32>
    %700 = arith.select %694, %692, %699 : vector<16x32xi1>, vector<16x32xf32>
    %cst_229 = arith.constant dense<0.000000e+00> : vector<16x32xf32>
    %701 = tpu.matmul %700, %684, %cst_229 {dimension_numbers = #tpu.dot_dimension_numbers<[1], [0], [0], [1], [0, 0, 1, 1], [], []>} : vector<16x32xf32>, vector<32x32xf32>, vector<16x32xf32> -> vector<16x32xf32>
    %702 = vector.broadcast %685 : vector<1x32xf32> to vector<16x32xf32>
    %703 = arith.addf %701, %702 : vector<16x32xf32>
    %cst_230 = arith.constant dense<0.000000e+00> : vector<16x64xf32>
    %704 = tpu.matmul %703, %686, %cst_230 {dimension_numbers = #tpu.dot_dimension_numbers<[1], [0], [0], [1], [0, 0, 1, 1], [], []>} : vector<16x32xf32>, vector<32x64xf32>, vector<16x64xf32> -> vector<16x64xf32>
    %705 = vector.broadcast %687 : vector<1x64xf32> to vector<16x64xf32>
    %706 = arith.addf %704, %705 : vector<16x64xf32>
    %707 = vector.extract_strided_slice %706 {offsets = [0, 0], sizes = [16, 32], strides = [1, 1]} : vector<16x64xf32> to vector<16x32xf32>
    %708 = arith.negf %707 : vector<16x32xf32>
    %709 = math.exp %708 : vector<16x32xf32>
    %cst_231 = arith.constant 1.000000e+00 : f32
    %710 = vector.broadcast %cst_231 : f32 to vector<16x32xf32>
    %711 = arith.addf %710, %709 : vector<16x32xf32>
    %712 = arith.divf %710, %711 : vector<16x32xf32>
    %713 = vector.extract_strided_slice %706 {offsets = [0, 32], sizes = [16, 32], strides = [1, 1]} : vector<16x64xf32> to vector<16x32xf32>
    %714 = arith.mulf %712, %713 : vector<16x32xf32>
    %715 = arith.addf %681, %714 : vector<16x32xf32>
    %cst_232 = arith.constant dense<0.000000e+00> : vector<16xf32>
    %716 = vector.multi_reduction <add>, %715, %cst_232 [1] : vector<16x32xf32> to vector<16xf32>
    %717 = vector.shape_cast %716 : vector<16xf32> to vector<16x1xf32>
    %cst_233 = arith.constant 3.200000e+01 : f32
    %718 = vector.broadcast %cst_233 : f32 to vector<16x1xf32>
    %719 = arith.divf %717, %718 : vector<16x1xf32>
    %720 = vector.broadcast %719 : vector<16x1xf32> to vector<16x32xf32>
    %721 = arith.subf %715, %720 : vector<16x32xf32>
    %722 = arith.mulf %721, %721 : vector<16x32xf32>
    %cst_234 = arith.constant dense<0.000000e+00> : vector<16xf32>
    %723 = vector.multi_reduction <add>, %722, %cst_234 [1] : vector<16x32xf32> to vector<16xf32>
    %724 = vector.shape_cast %723 : vector<16xf32> to vector<16x1xf32>
    %cst_235 = arith.constant 3.200000e+01 : f32
    %725 = vector.broadcast %cst_235 : f32 to vector<16x1xf32>
    %726 = arith.divf %724, %725 : vector<16x1xf32>
    %727 = vector.broadcast %719 : vector<16x1xf32> to vector<16x32xf32>
    %728 = arith.subf %715, %727 : vector<16x32xf32>
    %cst_236 = arith.constant 9.99999974E-6 : f32
    %729 = vector.broadcast %cst_236 : f32 to vector<16x1xf32>
    %730 = arith.addf %726, %729 : vector<16x1xf32>
    %731 = math.rsqrt %730 : vector<16x1xf32>
    %732 = vector.broadcast %731 : vector<16x1xf32> to vector<16x32xf32>
    %733 = arith.mulf %728, %732 : vector<16x32xf32>
    %734 = vector.broadcast %688 : vector<1x32xf32> to vector<16x32xf32>
    %735 = arith.mulf %733, %734 : vector<16x32xf32>
    %736 = vector.broadcast %689 : vector<1x32xf32> to vector<16x32xf32>
    %737 = arith.addf %735, %736 : vector<16x32xf32>
    %c2328 = arith.constant 2328 : index
    %c0_237 = arith.constant 0 : index
    %738 = vector.load %arg2[%c2328, %c0_237] : memref<2400x128xf32, #tpu.memory_space<vmem>>, vector<32x64xf32>
    %c2360 = arith.constant 2360 : index
    %c0_238 = arith.constant 0 : index
    %739 = vector.load %arg2[%c2360, %c0_238] : memref<2400x128xf32, #tpu.memory_space<vmem>>, vector<1x64xf32>
    %c2368 = arith.constant 2368 : index
    %c0_239 = arith.constant 0 : index
    %740 = vector.load %arg2[%c2368, %c0_239] : memref<2400x128xf32, #tpu.memory_space<vmem>>, vector<1x32xf32>
    %c2376 = arith.constant 2376 : index
    %c0_240 = arith.constant 0 : index
    %741 = vector.load %arg2[%c2376, %c0_240] : memref<2400x128xf32, #tpu.memory_space<vmem>>, vector<1x32xf32>
    %cst_241 = arith.constant dense<0.000000e+00> : vector<16x64xf32>
    %742 = tpu.matmul %737, %738, %cst_241 {dimension_numbers = #tpu.dot_dimension_numbers<[1], [0], [0], [1], [0, 0, 1, 1], [], []>} : vector<16x32xf32>, vector<32x64xf32>, vector<16x64xf32> -> vector<16x64xf32>
    %743 = vector.broadcast %739 : vector<1x64xf32> to vector<16x64xf32>
    %744 = arith.addf %742, %743 : vector<16x64xf32>
    %745 = vector.extract_strided_slice %744 {offsets = [0, 0], sizes = [16, 32], strides = [1, 1]} : vector<16x64xf32> to vector<16x32xf32>
    %746 = arith.negf %745 : vector<16x32xf32>
    %747 = math.exp %746 : vector<16x32xf32>
    %cst_242 = arith.constant 1.000000e+00 : f32
    %748 = vector.broadcast %cst_242 : f32 to vector<16x32xf32>
    %749 = arith.addf %748, %747 : vector<16x32xf32>
    %750 = arith.divf %748, %749 : vector<16x32xf32>
    %751 = vector.extract_strided_slice %744 {offsets = [0, 32], sizes = [16, 32], strides = [1, 1]} : vector<16x64xf32> to vector<16x32xf32>
    %752 = arith.mulf %750, %751 : vector<16x32xf32>
    %753 = arith.addf %752, %533 : vector<16x32xf32>
    %cst_243 = arith.constant dense<0.000000e+00> : vector<16xf32>
    %754 = vector.multi_reduction <add>, %753, %cst_243 [1] : vector<16x32xf32> to vector<16xf32>
    %755 = vector.shape_cast %754 : vector<16xf32> to vector<16x1xf32>
    %cst_244 = arith.constant 3.200000e+01 : f32
    %756 = vector.broadcast %cst_244 : f32 to vector<16x1xf32>
    %757 = arith.divf %755, %756 : vector<16x1xf32>
    %758 = vector.broadcast %757 : vector<16x1xf32> to vector<16x32xf32>
    %759 = arith.subf %753, %758 : vector<16x32xf32>
    %760 = arith.mulf %759, %759 : vector<16x32xf32>
    %cst_245 = arith.constant dense<0.000000e+00> : vector<16xf32>
    %761 = vector.multi_reduction <add>, %760, %cst_245 [1] : vector<16x32xf32> to vector<16xf32>
    %762 = vector.shape_cast %761 : vector<16xf32> to vector<16x1xf32>
    %cst_246 = arith.constant 3.200000e+01 : f32
    %763 = vector.broadcast %cst_246 : f32 to vector<16x1xf32>
    %764 = arith.divf %762, %763 : vector<16x1xf32>
    %765 = vector.broadcast %757 : vector<16x1xf32> to vector<16x32xf32>
    %766 = arith.subf %753, %765 : vector<16x32xf32>
    %cst_247 = arith.constant 9.99999974E-6 : f32
    %767 = vector.broadcast %cst_247 : f32 to vector<16x1xf32>
    %768 = arith.addf %764, %767 : vector<16x1xf32>
    %769 = math.rsqrt %768 : vector<16x1xf32>
    %770 = vector.broadcast %769 : vector<16x1xf32> to vector<16x32xf32>
    %771 = arith.mulf %766, %770 : vector<16x32xf32>
    %772 = vector.broadcast %740 : vector<1x32xf32> to vector<16x32xf32>
    %773 = arith.mulf %771, %772 : vector<16x32xf32>
    %774 = vector.broadcast %741 : vector<1x32xf32> to vector<16x32xf32>
    %775 = arith.addf %773, %774 : vector<16x32xf32>
    %776 = vector.shape_cast %775 : vector<16x32xf32> to vector<2x8x32xf32>
    %c2384 = arith.constant 2384 : index
    %c0_248 = arith.constant 0 : index
    %777 = vector.load %arg2[%c2384, %c0_248] : memref<2400x128xf32, #tpu.memory_space<vmem>>, vector<1x32xf32>
    %778 = vector.shape_cast %777 : vector<1x32xf32> to vector<1x1x32xf32>
    %779 = vector.broadcast %778 : vector<1x1x32xf32> to vector<2x8x32xf32>
    %780 = arith.mulf %776, %779 : vector<2x8x32xf32>
    %cst_249 = arith.constant dense<0.000000e+00> : vector<2x8xf32>
    %781 = vector.multi_reduction <add>, %780, %cst_249 [2] : vector<2x8x32xf32> to vector<2x8xf32>
    %c2392 = arith.constant 2392 : index
    %c0_250 = arith.constant 0 : index
    %782 = vector.load %arg2[%c2392, %c0_250] : memref<2400x128xf32, #tpu.memory_space<vmem>>, vector<1x1xf32>
    %783 = vector.broadcast %782 : vector<1x1xf32> to vector<2x8xf32>
    %784 = arith.addf %781, %783 : vector<2x8xf32>
    %c0_251 = arith.constant 0 : index
    %c0_252 = arith.constant 0 : index
    %785 = vector.load %arg3[%c0_251, %c0_252] : memref<2x8xf32, #tpu.memory_space<vmem>>, vector<2x8xf32>
    tpu.vector_store %arg3[%c0_251, %c0_252], %784 {strides = array<i32>} : memref<2x8xf32, #tpu.memory_space<vmem>>, vector<2x8xf32>,
    return
  }
}

</mosaic_0001>

<llo_original>
// kernel: tmt_forward.1
$region0: #{tmt_forward.1}
  #allocation0 [shape = 'u32[]', space=smem, size = 0x4, offset = 0x4, fixed_abs, tag = 'smem constant byte address 0x4 - core index']
  #allocation1 [shape = 'u32[144,128]{1,0:T(1,128)}', space=vmem, size = 0x12000, scoped, tag = 'internal scratch']
  #allocation2 [shape = 'f32[2,8,32]{2,1,0:T(8,128)}', space=vmem, size = 0x2000, scoped, tag = 'scratch operand']
  %s0 = inlined_call_operand.vmem [shape: f32[16,4], index: 0, kind: input, shape index: {}]
  %s1 = inlined_call_operand.vmem [shape: f32[2,32], index: 1, kind: input, shape index: {}]
  %s2 = inlined_call_operand.hbm [shape: f32[2400,128], index: 2, kind: input, shape index: {}]
  %s3 = inlined_call_operand.hbm [shape: f32[2,8], index: 3, kind: output, shape index: {}]
  %s4 = sld [smem:[#allocation0]]
  $region26: #{tmt_forward.1} parent=0
    _
  %s6 = ssub.s32 1, %s4
  %s7 = scalar_select 0, %s6, %s4
  $region1: #{tmt_forward.1} parent=0
    #allocation3 [shape = 'u8[1228800]{0}', space=vmem, size = 0x12c000, scoped, tag = 'input window, operand 2, single buffered']
    #allocation4 [shape = 's32[1]{0}', space=sflag, size = 0x4, scoped, tag = 'scoped memory for tmt_forward.1']
    #allocation5 [shape = 's32[1]{0}', space=sflag, size = 0x4, scoped, tag = 'scoped memory for tmt_forward.1']
    #allocation6 [shape = 'u8[1024]{0}', space=vmem, size = 0x400, scoped, tag = 'output window, operand 0, single buffered']
    %8 = vsyncpa [#allocation4], 0
    %9 = vsyncpa [#allocation5], 0
    // Predicated region
    $region2: #{tmt_forward.1} parent=1 // pred_check
      _
    $region3: #{tmt_forward.1} parent=1 // pred_check_branch
      %11 = sbr.rel (0) target = $region5
    $region4: #{tmt_forward.1} parent=1 // pred_region
      _
    $region5: #{tmt_forward.1} parent=1 // pred_fallthru
      _
    // Predicated region
    $region6: #{tmt_forward.1} parent=1 // pred_check
      _
    $region7: #{tmt_forward.1} parent=1 // pred_check_branch
      %13 = sbr.rel (0) target = $region9
    $region8: #{tmt_forward.1} parent=1 // pred_region
      _
    $region9: #{tmt_forward.1} parent=1 // pred_fallthru
      _
    // Predicated region
    $region10: #{tmt_forward.1} parent=1 // pred_check
      _
    $region11: #{tmt_forward.1} parent=1 // pred_check_branch
      %15 = sbr.rel (0) target = $region13
    $region12: #{tmt_forward.1} parent=1 // pred_region
      %s17 = ssub.s32 38400, 38400
      %18 = vsyncadd [#allocation4], %s17
      %s19 = sshll.u32 [#allocation3], 4
      %s20 = int_to_ptr.vmem [resolvable:$true] %s19
      %25 = dma.hbm_to_vmem [thread:$0]  %s2, 38400, %s20, [#allocation4], 128, 128, 8
    $region13: #{tmt_forward.1} parent=1 // pred_fallthru
      _
    // Predicated region
    $region14: #{tmt_forward.1} parent=1 // pred_check
      _
    $region15: #{tmt_forward.1} parent=1 // pred_check_branch
      %27 = sbr.rel (0) target = $region17
    $region16: #{tmt_forward.1} parent=1 // pred_region
      %28 = dma.done [#allocation4], 38400
    $region17: #{tmt_forward.1} parent=1 // pred_fallthru
      _
    %v29 = vld [vmem:[%s0] sm:$0xff]
    %v30 = vld [vmem:[%s0 + $0x8] sm:$0xff]
    %v31 = vld [vmem:[%s1] sm:$0x3]
    %v32 = vld [vmem:[#allocation3 + $0x10] sm:$0xff]
    %v33 = vld [vmem:[#allocation3 + $0x18] sm:$0xff]
    %v34 = vld [vmem:[#allocation3 + $0x20] sm:$0xff]
    %v35 = vld [vmem:[#allocation3 + $0x28] sm:$0xff]
    %v36 = vld [vmem:[#allocation3 + $0x30] sm:$0x1]
    %v37 = vld [vmem:[#allocation3 + $0x38] sm:$0xff]
    %v38 = vld [vmem:[#allocation3 + $0x40] sm:$0xff]
    %v39 = vld [vmem:[#allocation3 + $0x48] sm:$0xff]
    %v40 = vld [vmem:[#allocation3 + $0x50] sm:$0xff]
    %v41 = vld [vmem:[#allocation3 + $0x58] sm:$0x1]
    %v42 = vld [vmem:[#allocation3 + $0x60] sm:$0xff]
    %v43 = vld [vmem:[#allocation3 + $0x68] sm:$0xff]
    %v44 = vld [vmem:[#allocation3 + $0x70] sm:$0xff]
    %v45 = vld [vmem:[#allocation3 + $0x78] sm:$0xff]
    %v46 = vld [vmem:[#allocation3 + $0x80] sm:$0x1]
    %v47 = vld [vmem:[#allocation3 + $0x88] sm:$0x1]
    %v48 = vld [vmem:[#allocation3 + $0x90] sm:$0x1]
    %v49 = vlaneseq
    %v50 = vshrl.u32 %v49, 7
    %v51 = vsub.s32 0, %v50
    %v52 = vrot.slane %v36, %v51
    %vm53 = vcmask 261120
    %v55 = vsel %vm53, %v31, 0
    %57 = vmatprep.subr.mxu0 0.0
    %58 = vmatpush1.msra.mxu0 %v32
    %59 = vmatprep.subr.mxu0 0.0
    %60 = vmatpush1.msra.mxu0 %v33
    %61 = vmatprep.subr.mxu0 0.0
    %62 = vmatpush1.msra.mxu0 %v34
    %63 = vmatprep.subr.mxu0 0.0
    %64 = vmatpush1.msra.mxu0 %v35
    %65 = vmatprep.subr.mxu0 0.0
    %66 = vmatpush1.msra.mxu0 0.0
    %67 = vmatprep.subr.mxu0 0.0
    %68 = vmatpush1.msra.mxu0 0.0
    %69 = vmatprep.subr.mxu0 0.0
    %70 = vmatpush1.msra.mxu0 0.0
    %71 = vmatprep.subr.mxu0 0.0
    %72 = vmatpush1.msra.mxu0 0.0
    %73 = vmatprep.subr.mxu0 0.0
    %74 = vmatpush1.msra.mxu0 0.0
    %75 = vmatprep.subr.mxu0 0.0
    %76 = vmatpush1.msra.mxu0 0.0
    %77 = vmatprep.subr.mxu0 0.0
    %78 = vmatpush1.msra.mxu0 0.0
    %79 = vmatprep.subr.mxu0 0.0
    %80 = vmatpush1.msra.mxu0 0.0
    %81 = vmatprep.subr.mxu0 0.0
    %82 = vmatpush1.msra.mxu0 0.0
    %83 = vmatprep.subr.mxu0 0.0
    %84 = vmatpush1.msra.mxu0 0.0
    %85 = vmatprep.subr.mxu0 0.0
    %86 = vmatpush1.msra.mxu0 0.0
    %87 = vmatprep.subr.mxu0 0.0
    %88 = vmatpush1.msra.mxu0 0.0
    %89 = vmatprep.subr.mxu0 0.0
    %90 = vmatpush1.msra.mxu0 0.0
    %91 = vmatprep.subr.mxu0 0.0
    %92 = vmatpush1.msra.mxu0 0.0
    %93 = vmatprep.subr.mxu0 0.0
    %94 = vmatpush1.msra.mxu0 0.0
    %95 = vmatprep.subr.mxu0 0.0
    %96 = vmatpush1.msra.mxu0 0.0
    %97 = vmatprep.subr.mxu0 0.0
    %98 = vmatpush1.msra.mxu0 0.0
    %99 = vmatprep.subr.mxu0 0.0
    %100 = vmatpush1.msra.mxu0 0.0
    %101 = vmatprep.subr.mxu0 0.0
    %102 = vmatpush1.msra.mxu0 0.0
    %103 = vmatprep.subr.mxu0 0.0
    %104 = vmatpush1.msra.mxu0 0.0
    %105 = vmatprep.subr.mxu0 0.0
    %106 = vmatpush1.msra.mxu0 0.0
    %107 = vmatprep.subr.mxu0 0.0
    %108 = vmatpush1.msra.mxu0 0.0
    %109 = vmatprep.subr.mxu0 0.0
    %110 = vmatpush1.msra.mxu0 0.0
    %111 = vmatprep.subr.mxu0 0.0
    %112 = vmatpush1.msra.mxu0 0.0
    %113 = vmatprep.subr.mxu0 0.0
    %114 = vmatpush1.msra.mxu0 0.0
    %115 = vmatprep.subr.mxu0 0.0
    %116 = vmatpush1.msra.mxu0 0.0
    %117 = vmatprep.subr.mxu0 0.0
    %118 = vmatpush1.msra.mxu0 0.0
    %119 = vmatprep.subr.mxu0 0.0
    %120 = vmatpush1.msra.mxu0 0.0
    %121 = vmatprep.mubr.f32.mxu0 0.0
    %122 = vmatmul.mubr.f32.gmra.mrb[0].mxu0 %v55
    %v123 = vpop.f32.mrb[0].mxu0
    %v124 = vadd.f32 %v52, %v123
    %v125 = vpop.f32.mrb[0].mxu0
    %126 = vdwg.mxu0
    %vm127 = vcmp.gt.f32.partialorder %v124, 0.0
    %v128 = vmin.f32 %v124, 0.0
    %v129 = vmul.f32 %v128, 1.442695
    %v130 = vpow.pop %v129
    %v131 = vsub.f32 %v130, 1.0
    %v132 = vsel %vm127, %v124, %v131
    %v133 = vlaneseq
    %v134 = vshrl.u32 %v133, 7
    %v135 = vsub.s32 0, %v134
    %v136 = vrot.slane %v41, %v135
    %v138 = vsel %vm53, %v132, 0
    %140 = vmatprep.subr.mxu0 0.0
    %141 = vmatpush1.msra.mxu0 %v37
    %142 = vmatprep.subr.mxu0 0.0
    %143 = vmatpush1.msra.mxu0 %v38
    %144 = vmatprep.subr.mxu0 0.0
    %145 = vmatpush1.msra.mxu0 %v39
    %146 = vmatprep.subr.mxu0 0.0
    %147 = vmatpush1.msra.mxu0 %v40
    %148 = vmatprep.subr.mxu0 0.0
    %149 = vmatpush1.msra.mxu0 0.0
    %150 = vmatprep.subr.mxu0 0.0
    %151 = vmatpush1.msra.mxu0 0.0
    %152 = vmatprep.subr.mxu0 0.0
    %153 = vmatpush1.msra.mxu0 0.0
    %154 = vmatprep.subr.mxu0 0.0
    %155 = vmatpush1.msra.mxu0 0.0
    %156 = vmatprep.subr.mxu0 0.0
    %157 = vmatpush1.msra.mxu0 0.0
    %158 = vmatprep.subr.mxu0 0.0
    %159 = vmatpush1.msra.mxu0 0.0
    %160 = vmatprep.subr.mxu0 0.0
    %161 = vmatpush1.msra.mxu0 0.0
    %162 = vmatprep.subr.mxu0 0.0
    %163 = vmatpush1.msra.mxu0 0.0
    %164 = vmatprep.subr.mxu0 0.0
    %165 = vmatpush1.msra.mxu0 0.0
    %166 = vmatprep.subr.mxu0 0.0
    %167 = vmatpush1.msra.mxu0 0.0
    %168 = vmatprep.subr.mxu0 0.0
    %169 = vmatpush1.msra.mxu0 0.0
    %170 = vmatprep.subr.mxu0 0.0
    %171 = vmatpush1.msra.mxu0 0.0
    %172 = vmatprep.subr.mxu0 0.0
    %173 = vmatpush1.msra.mxu0 0.0
    %174 = vmatprep.subr.mxu0 0.0
    %175 = vmatpush1.msra.mxu0 0.0
    %176 = vmatprep.subr.mxu0 0.0
    %177 = vmatpush1.msra.mxu0 0.0
    %178 = vmatprep.subr.mxu0 0.0
    %179 = vmatpush1.msra.mxu0 0.0
    %180 = vmatprep.subr.mxu0 0.0
    %181 = vmatpush1.msra.mxu0 0.0
    %182 = vmatprep.subr.mxu0 0.0
    %183 = vmatpush1.msra.mxu0 0.0
    %184 = vmatprep.subr.mxu0 0.0
    %185 = vmatpush1.msra.mxu0 0.0
    %186 = vmatprep.subr.mxu0 0.0
    %187 = vmatpush1.msra.mxu0 0.0
    %188 = vmatprep.subr.mxu0 0.0
    %189 = vmatpush1.msra.mxu0 0.0
    %190 = vmatprep.subr.mxu0 0.0
    %191 = vmatpush1.msra.mxu0 0.0
    %192 = vmatprep.subr.mxu0 0.0
    %193 = vmatpush1.msra.mxu0 0.0
    %194 = vmatprep.subr.mxu0 0.0
    %195 = vmatpush1.msra.mxu0 0.0
    %196 = vmatprep.subr.mxu0 0.0
    %197 = vmatpush1.msra.mxu0 0.0
    %198 = vmatprep.subr.mxu0 0.0
    %199 = vmatpush1.msra.mxu0 0.0
    %200 = vmatprep.subr.mxu0 0.0
    %201 = vmatpush1.msra.mxu0 0.0
    %202 = vmatprep.subr.mxu0 0.0
    %203 = vmatpush1.msra.mxu0 0.0
    %204 = vmatprep.mubr.f32.mxu0 0.0
    %205 = vmatmul.mubr.f32.gmra.mrb[0].mxu0 %v138
    %v206 = vpop.f32.mrb[0].mxu0
    %v207 = vadd.f32 %v136, %v206
    %v208 = vpop.f32.mrb[0].mxu0
    %209 = vdwg.mxu0
    %v210 = vlaneseq
    %v211 = vshrl.u32 %v210, 7
    %v212 = vsub.s32 0, %v211
    %v213 = vrot.slane %v46, %v212
    %v215 = vsel %vm53, %v207, 0
    %217 = vmatprep.subr.mxu0 0.0
    %218 = vmatpush1.msra.mxu0 %v42
    %219 = vmatprep.subr.mxu0 0.0
    %220 = vmatpush1.msra.mxu0 %v43
    %221 = vmatprep.subr.mxu0 0.0
    %222 = vmatpush1.msra.mxu0 %v44
    %223 = vmatprep.subr.mxu0 0.0
    %224 = vmatpush1.msra.mxu0 %v45
    %225 = vmatprep.subr.mxu0 0.0
    %226 = vmatpush1.msra.mxu0 0.0
    %227 = vmatprep.subr.mxu0 0.0
    %228 = vmatpush1.msra.mxu0 0.0
    %229 = vmatprep.subr.mxu0 0.0
    %230 = vmatpush1.msra.mxu0 0.0
    %231 = vmatprep.subr.mxu0 0.0
    %232 = vmatpush1.msra.mxu0 0.0
    %233 = vmatprep.subr.mxu0 0.0
    %234 = vmatpush1.msra.mxu0 0.0
    %235 = vmatprep.subr.mxu0 0.0
    %236 = vmatpush1.msra.mxu0 0.0
    %237 = vmatprep.subr.mxu0 0.0
    %238 = vmatpush1.msra.mxu0 0.0
    %239 = vmatprep.subr.mxu0 0.0
    %240 = vmatpush1.msra.mxu0 0.0
    %241 = vmatprep.subr.mxu0 0.0
    %242 = vmatpush1.msra.mxu0 0.0
    %243 = vmatprep.subr.mxu0 0.0
    %244 = vmatpush1.msra.mxu0 0.0
    %245 = vmatprep.subr.mxu0 0.0
    %246 = vmatpush1.msra.mxu0 0.0
    %247 = vmatprep.subr.mxu0 0.0
    %248 = vmatpush1.msra.mxu0 0.0
    %249 = vmatprep.subr.mxu0 0.0
    %250 = vmatpush1.msra.mxu0 0.0
    %251 = vmatprep.subr.mxu0 0.0
    %252 = vmatpush1.msra.mxu0 0.0
    %253 = vmatprep.subr.mxu0 0.0
    %254 = vmatpush1.msra.mxu0 0.0
    %255 = vmatprep.subr.mxu0 0.0
    %256 = vmatpush1.msra.mxu0 0.0
    %257 = vmatprep.subr.mxu0 0.0
    %258 = vmatpush1.msra.mxu0 0.0
    %259 = vmatprep.subr.mxu0 0.0
    %260 = vmatpush1.msra.mxu0 0.0
    %261 = vmatprep.subr.mxu0 0.0
    %262 = vmatpush1.msra.mxu0 0.0
    %263 = vmatprep.subr.mxu0 0.0
    %264 = vmatpush1.msra.mxu0 0.0
    %265 = vmatprep.subr.mxu0 0.0
    %266 = vmatpush1.msra.mxu0 0.0
    %267 = vmatprep.subr.mxu0 0.0
    %268 = vmatpush1.msra.mxu0 0.0
    %269 = vmatprep.subr.mxu0 0.0
    %270 = vmatpush1.msra.mxu0 0.0
    %271 = vmatprep.subr.mxu0 0.0
    %272 = vmatpush1.msra.mxu0 0.0
    %273 = vmatprep.subr.mxu0 0.0
    %274 = vmatpush1.msra.mxu0 0.0
    %275 = vmatprep.subr.mxu0 0.0
    %276 = vmatpush1.msra.mxu0 0.0
    %277 = vmatprep.subr.mxu0 0.0
    %278 = vmatpush1.msra.mxu0 0.0
    %279 = vmatprep.subr.mxu0 0.0
    %280 = vmatpush1.msra.mxu0 0.0
    %281 = vmatprep.mubr.f32.mxu0 0.0
    %282 = vmatmul.mubr.f32.gmra.mrb[0].mxu0 %v215
    %v283 = vpop.f32.mrb[0].mxu0
    %v284 = vadd.f32 %v213, %v283
    %v285 = vpop.f32.mrb[0].mxu0
    %286 = vdwg.mxu0
    %v287 = vxor.u32 %v284, 2147483648
    %v288 = vmul.f32 %v287, 1.442695
    %v289 = vpow.pop %v288
    %v290 = vadd.f32 %v289, 1.0
    %v291 = vrcp.pop %v290
    %v292 = vmul.f32 1.0, %v291
    %294 = vrot.lane.b32.xlu0 %v284, 96
    %v295 = vpop.permute.xlu0 %294
    %v297 = vmul.f32 %v292, %v295
    %v298 = vadd.f32 %v31, %v297
    %vm299 = vcmask 254976
    %v300 = vsel %vm299, %v298, 0.0
    %301 = vadd.xlane.f32.xlu0 %v300
    %v302 = vpop.xlane.xlu0 %301
    %v303 = vrcp.pop 32.0
    %v304 = vmul.f32 %v302, %v303
    %v305 = vsub.f32 %v298, %v304
    %v306 = vmul.f32 %v305, %v305
    %v307 = vsel %vm299, %v306, 0.0
    %308 = vadd.xlane.f32.xlu0 %v307
    %v309 = vpop.xlane.xlu0 %308
    %v310 = vmul.f32 %v309, %v303
    %v311 = vadd.f32 %v310, 1e-05
    %v312 = vrsqrt.pop %v311
    %v313 = vmul.f32 %v305, %v312
    %v314 = vlaneseq
    %v315 = vshrl.u32 %v314, 7
    %v316 = vsub.s32 0, %v315
    %v317 = vrot.slane %v47, %v316
    %v318 = vmul.f32 %v313, %v317
    %v319 = vlaneseq
    %v320 = vshrl.u32 %v319, 7
    %v321 = vsub.s32 0, %v320
    %v322 = vrot.slane %v48, %v321
    %v323 = vadd.f32 %v318, %v322
    %v324 = vld [vmem:[#allocation3] sm:$0xf]
    %v325 = vld [vmem:[#allocation3 + $0x8] sm:$0x1]
    %v326 = vlaneseq
    %v327 = vshrl.u32 %v326, 7
    %v328 = vsub.s32 0, %v327
    %v329 = vrot.slane %v325, %v328
    %vm330 = vcmask 31744
    %v332 = vsel %vm330, %v29, 0
    %v335 = vsel %vm330, %v30, 0
    %vm337 = vcmask 1043456
    %v339 = vsel %vm337, %v324, 0
    %341 = vmatprep.subr.mxu0 0.0
    %342 = vmatpush1.msra.mxu0 %v339
    %343 = vmatprep.subr.mxu0 0.0
    %344 = vmatpush1.msra.mxu0 0.0
    %345 = vmatprep.subr.mxu0 0.0
    %346 = vmatpush1.msra.mxu0 0.0
    %347 = vmatprep.subr.mxu0 0.0
    %348 = vmatpush1.msra.mxu0 0.0
    %349 = vmatprep.subr.mxu0 0.0
    %350 = vmatpush1.msra.mxu0 0.0
    %351 = vmatprep.subr.mxu0 0.0
    %352 = vmatpush1.msra.mxu0 0.0
    %353 = vmatprep.subr.mxu0 0.0
    %354 = vmatpush1.msra.mxu0 0.0
    %355 = vmatprep.subr.mxu0 0.0
    %356 = vmatpush1.msra.mxu0 0.0
    %357 = vmatprep.subr.mxu0 0.0
    %358 = vmatpush1.msra.mxu0 0.0
    %359 = vmatprep.subr.mxu0 0.0
    %360 = vmatpush1.msra.mxu0 0.0
    %361 = vmatprep.subr.mxu0 0.0
    %362 = vmatpush1.msra.mxu0 0.0
    %363 = vmatprep.subr.mxu0 0.0
    %364 = vmatpush1.msra.mxu0 0.0
    %365 = vmatprep.subr.mxu0 0.0
    %366 = vmatpush1.msra.mxu0 0.0
    %367 = vmatprep.subr.mxu0 0.0
    %368 = vmatpush1.msra.mxu0 0.0
    %369 = vmatprep.subr.mxu0 0.0
    %370 = vmatpush1.msra.mxu0 0.0
    %371 = vmatprep.subr.mxu0 0.0
    %372 = vmatpush1.msra.mxu0 0.0
    %373 = vmatprep.subr.mxu0 0.0
    %374 = vmatpush1.msra.mxu0 0.0
    %375 = vmatprep.subr.mxu0 0.0
    %376 = vmatpush1.msra.mxu0 0.0
    %377 = vmatprep.subr.mxu0 0.0
    %378 = vmatpush1.msra.mxu0 0.0
    %379 = vmatprep.subr.mxu0 0.0
    %380 = vmatpush1.msra.mxu0 0.0
    %381 = vmatprep.subr.mxu0 0.0
    %382 = vmatpush1.msra.mxu0 0.0
    %383 = vmatprep.subr.mxu0 0.0
    %384 = vmatpush1.msra.mxu0 0.0
    %385 = vmatprep.subr.mxu0 0.0
    %386 = vmatpush1.msra.mxu0 0.0
    %387 = vmatprep.subr.mxu0 0.0
    %388 = vmatpush1.msra.mxu0 0.0
    %389 = vmatprep.subr.mxu0 0.0
    %390 = vmatpush1.msra.mxu0 0.0
    %391 = vmatprep.subr.mxu0 0.0
    %392 = vmatpush1.msra.mxu0 0.0
    %393 = vmatprep.subr.mxu0 0.0
    %394 = vmatpush1.msra.mxu0 0.0
    %395 = vmatprep.subr.mxu0 0.0
    %396 = vmatpush1.msra.mxu0 0.0
    %397 = vmatprep.subr.mxu0 0.0
    %398 = vmatpush1.msra.mxu0 0.0
    %399 = vmatprep.subr.mxu0 0.0
    %400 = vmatpush1.msra.mxu0 0.0
    %401 = vmatprep.subr.mxu0 0.0
    %402 = vmatpush1.msra.mxu0 0.0
    %403 = vmatprep.subr.mxu0 0.0
    %404 = vmatpush1.msra.mxu0 0.0
    %405 = vmatprep.mubr.f32.mxu0 0.0
    %406 = vmatmul.mubr.f32.gmra.mrb[0].mxu0 %v332
    %v407 = vpop.f32.mrb[0].mxu0
    %v408 = vadd.f32 %v329, %v407
    %v409 = vpop.f32.mrb[0].mxu0
    %410 = vmatprep.mubr.f32.mxu0 0.0
    %411 = vmatmul.mubr.f32.gmra.mrb[0].mxu0 %v335
    %v412 = vpop.f32.mrb[0].mxu0
    %v413 = vadd.f32 %v329, %v412
    %v414 = vpop.f32.mrb[0].mxu0
    %415 = vdwg.mxu0
    %v416 = vld [vmem:[#allocation3 + $0x120] sm:$0xff]
    %v417 = vld [vmem:[#allocation3 + $0x128] sm:$0xff]
    %v418 = vld [vmem:[#allocation3 + $0x130] sm:$0xff]
    %v419 = vld [vmem:[#allocation3 + $0x138] sm:$0xff]
    %v421 = vsel %vm53, %v323, 0
    %423 = vmatprep.subr.mxu0 0.0
    %424 = vmatpush1.msra.mxu0 %v416
    %425 = vmatprep.subr.mxu0 0.0
    %426 = vmatpush1.msra.mxu0 %v417
    %427 = vmatprep.subr.mxu0 0.0
    %428 = vmatpush1.msra.mxu0 %v418
    %429 = vmatprep.subr.mxu0 0.0
    %430 = vmatpush1.msra.mxu0 %v419
    %431 = vmatprep.subr.mxu0 0.0
    %432 = vmatpush1.msra.mxu0 0.0
    %433 = vmatprep.subr.mxu0 0.0
    %434 = vmatpush1.msra.mxu0 0.0
    %435 = vmatprep.subr.mxu0 0.0
    %436 = vmatpush1.msra.mxu0 0.0
    %437 = vmatprep.subr.mxu0 0.0
    %438 = vmatpush1.msra.mxu0 0.0
    %439 = vmatprep.subr.mxu0 0.0
    %440 = vmatpush1.msra.mxu0 0.0
    %441 = vmatprep.subr.mxu0 0.0
    %442 = vmatpush1.msra.mxu0 0.0
    %443 = vmatprep.subr.mxu0 0.0
    %444 = vmatpush1.msra.mxu0 0.0
    %445 = vmatprep.subr.mxu0 0.0
    %446 = vmatpush1.msra.mxu0 0.0
    %447 = vmatprep.subr.mxu0 0.0
    %448 = vmatpush1.msra.mxu0 0.0
    %449 = vmatprep.subr.mxu0 0.0
    %450 = vmatpush1.msra.mxu0 0.0
    %451 = vmatprep.subr.mxu0 0.0
    %452 = vmatpush1.msra.mxu0 0.0
    %453 = vmatprep.subr.mxu0 0.0
    %454 = vmatpush1.msra.mxu0 0.0
    %455 = vmatprep.subr.mxu0 0.0
    %456 = vmatpush1.msra.mxu0 0.0
    %457 = vmatprep.subr.mxu0 0.0
    %458 = vmatpush1.msra.mxu0 0.0
    %459 = vmatprep.subr.mxu0 0.0
    %460 = vmatpush1.msra.mxu0 0.0
    %461 = vmatprep.subr.mxu0 0.0
    %462 = vmatpush1.msra.mxu0 0.0
    %463 = vmatprep.subr.mxu0 0.0
    %464 = vmatpush1.msra.mxu0 0.0
    %465 = vmatprep.subr.mxu0 0.0
    %466 = vmatpush1.msra.mxu0 0.0
    %467 = vmatprep.subr.mxu0 0.0
    %468 = vmatpush1.msra.mxu0 0.0
    %469 = vmatprep.subr.mxu0 0.0
    %470 = vmatpush1.msra.mxu0 0.0
    %471 = vmatprep.subr.mxu0 0.0
    %472 = vmatpush1.msra.mxu0 0.0
    %473 = vmatprep.subr.mxu0 0.0
    %474 = vmatpush1.msra.mxu0 0.0
    %475 = vmatprep.subr.mxu0 0.0
    %476 = vmatpush1.msra.mxu0 0.0
    %477 = vmatprep.subr.mxu0 0.0
    %478 = vmatpush1.msra.mxu0 0.0
    %479 = vmatprep.subr.mxu0 0.0
    %480 = vmatpush1.msra.mxu0 0.0
    %481 = vmatprep.subr.mxu0 0.0
    %482 = vmatpush1.msra.mxu0 0.0
    %483 = vmatprep.subr.mxu0 0.0
    %484 = vmatpush1.msra.mxu0 0.0
    %485 = vmatprep.subr.mxu0 0.0
    %486 = vmatpush1.msra.mxu0 0.0
    %487 = vmatprep.mubr.f32.mxu0 0.0
    %488 = vmatmul.mubr.f32.gmra.mrb[0].mxu0 %v421
    %v489 = vpop.f32.mrb[0].mxu0
    %v490 = vadd.f32 0.0, %v489
    %v491 = vpop.f32.mrb[0].mxu0
    %492 = vdwg.mxu0
    %v495 = vunpack.c.l.s4 1966171168
    %v496 = vunpack.c.0.s8 %v495
    %v497 = vlaneseq
    %v498 = vshrl.u32 %v497, 7
    %v499 = vsub.s32 %v496, %v498
    %v500 = vrot.slane %v490, %v499
    %v501 = vcombine.high %v500, %v500
    %v503 = vunpack.c.l.s4 1966171168
    %v504 = vunpack.c.0.s8 %v503
    %v505 = vlaneseq
    %v506 = vshrl.u32 %v505, 7
    %v507 = vsub.s32 %v504, %v506
    %v508 = vrot.slane %v500, %v507
    %v510 = vunpack.c.l.s4 1966171168
    %v511 = vunpack.c.0.s8 %v510
    %v512 = vlaneseq
    %v513 = vshrl.u32 %v512, 7
    %v514 = vsub.s32 %v511, %v513
    %v515 = vrot.slane %v501, %v514
    %v516 = vlaneseq
    %v517 = vshrl.u32 %v516, 7
    %v518 = vsub.s32 0, %v517
    %v519 = vrot.slane %v508, %v518
    %v520 = vlaneseq
    %v521 = vshrl.u32 %v520, 7
    %v522 = vsub.s32 0, %v521
    %v523 = vrot.slane %v515, %v522
    %v526 = vld [vmem:[#allocation3 + $0x98] sm:$0xff]
    %v527 = vld [vmem:[#allocation3 + $0xa0] sm:$0xff]
    %v528 = vld [vmem:[#allocation3 + $0xa8] sm:$0xff]
    %v529 = vld [vmem:[#allocation3 + $0xb0] sm:$0xff]
    %v530 = vld [vmem:[#allocation3 + $0xb8] sm:$0xff]
    %v531 = vld [vmem:[#allocation3 + $0xc0] sm:$0xff]
    %v532 = vld [vmem:[#allocation3 + $0xc8] sm:$0xff]
    %v533 = vld [vmem:[#allocation3 + $0xd0] sm:$0xff]
    %v534 = vld [vmem:[#allocation3 + $0xd8] sm:$0xff]
    %v535 = vld [vmem:[#allocation3 + $0xe0] sm:$0xff]
    %v536 = vld [vmem:[#allocation3 + $0xe8] sm:$0xff]
    %v537 = vld [vmem:[#allocation3 + $0xf0] sm:$0xff]
    %v538 = vld [vmem:[#allocation3 + $0xf8] sm:$0xff]
    %v539 = vld [vmem:[#allocation3 + $0x100] sm:$0xff]
    %v540 = vld [vmem:[#allocation3 + $0x108] sm:$0xff]
    %v541 = vld [vmem:[#allocation3 + $0x110] sm:$0xff]
    %v542 = vld [vmem:[#allocation3 + $0x118] sm:$0x1]
    %v543 = vlaneseq
    %v544 = vshrl.u32 %v543, 7
    %v545 = vsub.s32 0, %v544
    %v546 = vrot.slane %v542, %v545
    %547 = vmatprep.subr.mxu0 0.0
    %548 = vmatpush1.msra.mxu0 %v526
    %549 = vmatprep.subr.mxu0 0.0
    %550 = vmatpush1.msra.mxu0 %v527
    %551 = vmatprep.subr.mxu0 0.0
    %552 = vmatpush1.msra.mxu0 %v528
    %553 = vmatprep.subr.mxu0 0.0
    %554 = vmatpush1.msra.mxu0 %v529
    %555 = vmatprep.subr.mxu0 0.0
    %556 = vmatpush1.msra.mxu0 %v530
    %557 = vmatprep.subr.mxu0 0.0
    %558 = vmatpush1.msra.mxu0 %v531
    %559 = vmatprep.subr.mxu0 0.0
    %560 = vmatpush1.msra.mxu0 %v532
    %561 = vmatprep.subr.mxu0 0.0
    %562 = vmatpush1.msra.mxu0 %v533
    %563 = vmatprep.subr.mxu0 0.0
    %564 = vmatpush1.msra.mxu0 %v534
    %565 = vmatprep.subr.mxu0 0.0
    %566 = vmatpush1.msra.mxu0 %v535
    %567 = vmatprep.subr.mxu0 0.0
    %568 = vmatpush1.msra.mxu0 %v536
    %569 = vmatprep.subr.mxu0 0.0
    %570 = vmatpush1.msra.mxu0 %v537
    %571 = vmatprep.subr.mxu0 0.0
    %572 = vmatpush1.msra.mxu0 %v538
    %573 = vmatprep.subr.mxu0 0.0
    %574 = vmatpush1.msra.mxu0 %v539
    %575 = vmatprep.subr.mxu0 0.0
    %576 = vmatpush1.msra.mxu0 %v540
    %577 = vmatprep.subr.mxu0 0.0
    %578 = vmatpush1.msra.mxu0 %v541
    %579 = vmatprep.subr.mxu0 0.0
    %580 = vmatpush1.msra.mxu0 0.0
    %581 = vmatprep.subr.mxu0 0.0
    %582 = vmatpush1.msra.mxu0 0.0
    %583 = vmatprep.subr.mxu0 0.0
    %584 = vmatpush1.msra.mxu0 0.0
    %585 = vmatprep.subr.mxu0 0.0
    %586 = vmatpush1.msra.mxu0 0.0
    %587 = vmatprep.subr.mxu0 0.0
    %588 = vmatpush1.msra.mxu0 0.0
    %589 = vmatprep.subr.mxu0 0.0
    %590 = vmatpush1.msra.mxu0 0.0
    %591 = vmatprep.subr.mxu0 0.0
    %592 = vmatpush1.msra.mxu0 0.0
    %593 = vmatprep.subr.mxu0 0.0
    %594 = vmatpush1.msra.mxu0 0.0
    %595 = vmatprep.subr.mxu0 0.0
    %596 = vmatpush1.msra.mxu0 0.0
    %597 = vmatprep.subr.mxu0 0.0
    %598 = vmatpush1.msra.mxu0 0.0
    %599 = vmatprep.subr.mxu0 0.0
    %600 = vmatpush1.msra.mxu0 0.0
    %601 = vmatprep.subr.mxu0 0.0
    %602 = vmatpush1.msra.mxu0 0.0
    %603 = vmatprep.subr.mxu0 0.0
    %604 = vmatpush1.msra.mxu0 0.0
    %605 = vmatprep.subr.mxu0 0.0
    %606 = vmatpush1.msra.mxu0 0.0
    %607 = vmatprep.subr.mxu0 0.0
    %608 = vmatpush1.msra.mxu0 0.0
    %609 = vmatprep.subr.mxu0 0.0
    %610 = vmatpush1.msra.mxu0 0.0
    %611 = vmatprep.mubr.f32.mxu0 0.0
    %612 = vmatmul.mubr.f32.gmra.mrb[0].mxu0 %v408
    %v613 = vpop.f32.mrb[0].mxu0
    %v614 = vadd.f32 %v546, %v613
    %v615 = vpop.f32.mrb[0].mxu0
    %616 = vmatprep.mubr.f32.mxu0 0.0
    %617 = vmatmul.mubr.f32.gmra.mrb[0].mxu0 %v413
    %v618 = vpop.f32.mrb[0].mxu0
    %v619 = vadd.f32 %v546, %v618
    %v620 = vpop.f32.mrb[0].mxu0
    %621 = vdwg.mxu0
    %v622 = vadd.f32 %v614, %v519
    %v623 = vadd.f32 %v619, %v523
    %vm624 = vcmp.gt.f32.partialorder %v622, 0.0
    %vm625 = vcmp.gt.f32.partialorder %v623, 0.0
    %v626 = vmin.f32 %v622, 0.0
    %v627 = vmin.f32 %v623, 0.0
    %v628 = vmul.f32 %v626, 1.442695
    %v629 = vpow.pop %v628
    %v630 = vmul.f32 %v627, 1.442695
    %v631 = vpow.pop %v630
    %v632 = vsub.f32 %v629, 1.0
    %v633 = vsub.f32 %v631, 1.0
    %v634 = vsel %vm624, %v622, %v632
    %v635 = vsel %vm625, %v623, %v633
    %v636 = vld [vmem:[#allocation3 + $0x140] sm:$0xff]
    %v637 = vld [vmem:[#allocation3 + $0x148] sm:$0xff]
    %v638 = vld [vmem:[#allocation3 + $0x150] sm:$0xff]
    %v639 = vld [vmem:[#allocation3 + $0x158] sm:$0xff]
    %v640 = vld [vmem:[#allocation3 + $0x160] sm:$0x1]
    %v641 = vlaneseq
    %v642 = vshrl.u32 %v641, 7
    %v643 = vsub.s32 0, %v642
    %v644 = vrot.slane %v640, %v643
    %v646 = vsel %vm53, %v634, 0
    %v649 = vsel %vm53, %v635, 0
    %651 = vmatprep.subr.mxu0 0.0
    %652 = vmatpush1.msra.mxu0 %v636
    %653 = vmatprep.subr.mxu0 0.0
    %654 = vmatpush1.msra.mxu0 %v637
    %655 = vmatprep.subr.mxu0 0.0
    %656 = vmatpush1.msra.mxu0 %v638
    %657 = vmatprep.subr.mxu0 0.0
    %658 = vmatpush1.msra.mxu0 %v639
    %659 = vmatprep.subr.mxu0 0.0
    %660 = vmatpush1.msra.mxu0 0.0
    %661 = vmatprep.subr.mxu0 0.0
    %662 = vmatpush1.msra.mxu0 0.0
    %663 = vmatprep.subr.mxu0 0.0
    %664 = vmatpush1.msra.mxu0 0.0
    %665 = vmatprep.subr.mxu0 0.0
    %666 = vmatpush1.msra.mxu0 0.0
    %667 = vmatprep.subr.mxu0 0.0
    %668 = vmatpush1.msra.mxu0 0.0
    %669 = vmatprep.subr.mxu0 0.0
    %670 = vmatpush1.msra.mxu0 0.0
    %671 = vmatprep.subr.mxu0 0.0
    %672 = vmatpush1.msra.mxu0 0.0
    %673 = vmatprep.subr.mxu0 0.0
    %674 = vmatpush1.msra.mxu0 0.0
    %675 = vmatprep.subr.mxu0 0.0
    %676 = vmatpush1.msra.mxu0 0.0
    %677 = vmatprep.subr.mxu0 0.0
    %678 = vmatpush1.msra.mxu0 0.0
    %679 = vmatprep.subr.mxu0 0.0
    %680 = vmatpush1.msra.mxu0 0.0
    %681 = vmatprep.subr.mxu0 0.0
    %682 = vmatpush1.msra.mxu0 0.0
    %683 = vmatprep.subr.mxu0 0.0
    %684 = vmatpush1.msra.mxu0 0.0
    %685 = vmatprep.subr.mxu0 0.0
    %686 = vmatpush1.msra.mxu0 0.0
    %687 = vmatprep.subr.mxu0 0.0
    %688 = vmatpush1.msra.mxu0 0.0
    %689 = vmatprep.subr.mxu0 0.0
    %690 = vmatpush1.msra.mxu0 0.0
    %691 = vmatprep.subr.mxu0 0.0
    %692 = vmatpush1.msra.mxu0 0.0
    %693 = vmatprep.subr.mxu0 0.0
    %694 = vmatpush1.msra.mxu0 0.0
    %695 = vmatprep.subr.mxu0 0.0
    %696 = vmatpush1.msra.mxu0 0.0
    %697 = vmatprep.subr.mxu0 0.0
    %698 = vmatpush1.msra.mxu0 0.0
    %699 = vmatprep.subr.mxu0 0.0
    %700 = vmatpush1.msra.mxu0 0.0
    %701 = vmatprep.subr.mxu0 0.0
    %702 = vmatpush1.msra.mxu0 0.0
    %703 = vmatprep.subr.mxu0 0.0
    %704 = vmatpush1.msra.mxu0 0.0
    %705 = vmatprep.subr.mxu0 0.0
    %706 = vmatpush1.msra.mxu0 0.0
    %707 = vmatprep.subr.mxu0 0.0
    %708 = vmatpush1.msra.mxu0 0.0
    %709 = vmatprep.subr.mxu0 0.0
    %710 = vmatpush1.msra.mxu0 0.0
    %711 = vmatprep.subr.mxu0 0.0
    %712 = vmatpush1.msra.mxu0 0.0
    %713 = vmatprep.subr.mxu0 0.0
    %714 = vmatpush1.msra.mxu0 0.0
    %715 = vmatprep.mubr.f32.mxu0 0.0
    %716 = vmatmul.mubr.f32.gmra.mrb[0].mxu0 %v646
    %v717 = vpop.f32.mrb[0].mxu0
    %v718 = vadd.f32 %v644, %v717
    %v719 = vpop.f32.mrb[0].mxu0
    %720 = vmatprep.mubr.f32.mxu0 0.0
    %721 = vmatmul.mubr.f32.gmra.mrb[0].mxu0 %v649
    %v722 = vpop.f32.mrb[0].mxu0
    %v723 = vadd.f32 %v644, %v722
    %v724 = vpop.f32.mrb[0].mxu0
    %725 = vdwg.mxu0
    %v726 = vld [vmem:[#allocation3 + $0x168] sm:$0xf]
    %v727 = vld [vmem:[#allocation3 + $0x170] sm:$0x1]
    %v728 = vlaneseq
    %v729 = vshrl.u32 %v728, 7
    %v730 = vsub.s32 0, %v729
    %v731 = vrot.slane %v727, %v730
    %v733 = vsel %vm330, %v718, 0
    %v736 = vsel %vm330, %v723, 0
    %v739 = vsel %vm337, %v726, 0
    %741 = vmatprep.subr.mxu0 0.0
    %742 = vmatpush1.msra.mxu0 %v739
    %743 = vmatprep.subr.mxu0 0.0
    %744 = vmatpush1.msra.mxu0 0.0
    %745 = vmatprep.subr.mxu0 0.0
    %746 = vmatpush1.msra.mxu0 0.0
    %747 = vmatprep.subr.mxu0 0.0
    %748 = vmatpush1.msra.mxu0 0.0
    %749 = vmatprep.subr.mxu0 0.0
    %750 = vmatpush1.msra.mxu0 0.0
    %751 = vmatprep.subr.mxu0 0.0
    %752 = vmatpush1.msra.mxu0 0.0
    %753 = vmatprep.subr.mxu0 0.0
    %754 = vmatpush1.msra.mxu0 0.0
    %755 = vmatprep.subr.mxu0 0.0
    %756 = vmatpush1.msra.mxu0 0.0
    %757 = vmatprep.subr.mxu0 0.0
    %758 = vmatpush1.msra.mxu0 0.0
    %759 = vmatprep.subr.mxu0 0.0
    %760 = vmatpush1.msra.mxu0 0.0
    %761 = vmatprep.subr.mxu0 0.0
    %762 = vmatpush1.msra.mxu0 0.0
    %763 = vmatprep.subr.mxu0 0.0
    %764 = vmatpush1.msra.mxu0 0.0
    %765 = vmatprep.subr.mxu0 0.0
    %766 = vmatpush1.msra.mxu0 0.0
    %767 = vmatprep.subr.mxu0 0.0
    %768 = vmatpush1.msra.mxu0 0.0
    %769 = vmatprep.subr.mxu0 0.0
    %770 = vmatpush1.msra.mxu0 0.0
    %771 = vmatprep.subr.mxu0 0.0
    %772 = vmatpush1.msra.mxu0 0.0
    %773 = vmatprep.subr.mxu0 0.0
    %774 = vmatpush1.msra.mxu0 0.0
    %775 = vmatprep.subr.mxu0 0.0
    %776 = vmatpush1.msra.mxu0 0.0
    %777 = vmatprep.subr.mxu0 0.0
    %778 = vmatpush1.msra.mxu0 0.0
    %779 = vmatprep.subr.mxu0 0.0
    %780 = vmatpush1.msra.mxu0 0.0
    %781 = vmatprep.subr.mxu0 0.0
    %782 = vmatpush1.msra.mxu0 0.0
    %783 = vmatprep.subr.mxu0 0.0
    %784 = vmatpush1.msra.mxu0 0.0
    %785 = vmatprep.subr.mxu0 0.0
    %786 = vmatpush1.msra.mxu0 0.0
    %787 = vmatprep.subr.mxu0 0.0
    %788 = vmatpush1.msra.mxu0 0.0
    %789 = vmatprep.subr.mxu0 0.0
    %790 = vmatpush1.msra.mxu0 0.0
    %791 = vmatprep.subr.mxu0 0.0
    %792 = vmatpush1.msra.mxu0 0.0
    %793 = vmatprep.subr.mxu0 0.0
    %794 = vmatpush1.msra.mxu0 0.0
    %795 = vmatprep.subr.mxu0 0.0
    %796 = vmatpush1.msra.mxu0 0.0
    %797 = vmatprep.subr.mxu0 0.0
    %798 = vmatpush1.msra.mxu0 0.0
    %799 = vmatprep.subr.mxu0 0.0
    %800 = vmatpush1.msra.mxu0 0.0
    %801 = vmatprep.subr.mxu0 0.0
    %802 = vmatpush1.msra.mxu0 0.0
    %803 = vmatprep.subr.mxu0 0.0
    %804 = vmatpush1.msra.mxu0 0.0
    %805 = vmatprep.mubr.f32.mxu0 0.0
    %806 = vmatmul.mubr.f32.gmra.mrb[0].mxu0 %v733
    %v807 = vpop.f32.mrb[0].mxu0
    %v808 = vadd.f32 %v731, %v807
    %v809 = vpop.f32.mrb[0].mxu0
    %810 = vmatprep.mubr.f32.mxu0 0.0
    %811 = vmatmul.mubr.f32.gmra.mrb[0].mxu0 %v736
    %v812 = vpop.f32.mrb[0].mxu0
    %v813 = vadd.f32 %v731, %v812
    %v814 = vpop.f32.mrb[0].mxu0
    %815 = vdwg.mxu0
    %v816 = vxor.u32 %v808, 2147483648
    %v817 = vxor.u32 %v813, 2147483648
    %v818 = vmul.f32 %v816, 1.442695
    %v819 = vpow.pop %v818
    %v820 = vmul.f32 %v817, 1.442695
    %v821 = vpow.pop %v820
    %v822 = vadd.f32 %v819, 1.0
    %v823 = vadd.f32 %v821, 1.0
    %v824 = vrcp.pop %v822
    %v825 = vmul.f32 1.0, %v824
    %v826 = vrcp.pop %v823
    %v827 = vmul.f32 1.0, %v826
    %830 = vrot.lane.b32.xlu0 %v808, 124
    %v831 = vpop.permute.xlu0 %830
    %832 = vrot.lane.b32.xlu0 %v813, 124
    %v833 = vpop.permute.xlu0 %832
    %v836 = vmul.f32 %v825, %v831
    %v837 = vmul.f32 %v827, %v833
    %v838 = vld [vmem:[#allocation3 + $0x178] sm:$0xff]
    %v839 = vld [vmem:[#allocation3 + $0x180] sm:$0xff]
    %v840 = vld [vmem:[#allocation3 + $0x188] sm:$0xff]
    %v841 = vld [vmem:[#allocation3 + $0x190] sm:$0xff]
    %v842 = vld [vmem:[#allocation3 + $0x198] sm:$0xff]
    %v843 = vld [vmem:[#allocation3 + $0x1a0] sm:$0xff]
    %v844 = vld [vmem:[#allocation3 + $0x1a8] sm:$0xff]
    %v845 = vld [vmem:[#allocation3 + $0x1b0] sm:$0xff]
    %v846 = vld [vmem:[#allocation3 + $0x1b8] sm:$0xff]
    %v847 = vld [vmem:[#allocation3 + $0x1c0] sm:$0xff]
    %v848 = vld [vmem:[#allocation3 + $0x1c8] sm:$0xff]
    %v849 = vld [vmem:[#allocation3 + $0x1d0] sm:$0xff]
    %v850 = vld [vmem:[#allocation3 + $0x1d8] sm:$0xff]
    %v851 = vld [vmem:[#allocation3 + $0x1e0] sm:$0xff]
    %v852 = vld [vmem:[#allocation3 + $0x1e8] sm:$0xff]
    %v853 = vld [vmem:[#allocation3 + $0x1f0] sm:$0xff]
    %v854 = vld [vmem:[#allocation3 + $0x1f8] sm:$0x1]
    %v855 = vlaneseq
    %v856 = vshrl.u32 %v855, 7
    %v857 = vsub.s32 0, %v856
    %v858 = vrot.slane %v854, %v857
    %859 = vmatprep.subr.mxu0 0.0
    %860 = vmatpush1.msra.mxu0 %v838
    %861 = vmatprep.subr.mxu0 0.0
    %862 = vmatpush1.msra.mxu0 %v839
    %863 = vmatprep.subr.mxu0 0.0
    %864 = vmatpush1.msra.mxu0 %v840
    %865 = vmatprep.subr.mxu0 0.0
    %866 = vmatpush1.msra.mxu0 %v841
    %867 = vmatprep.subr.mxu0 0.0
    %868 = vmatpush1.msra.mxu0 %v842
    %869 = vmatprep.subr.mxu0 0.0
    %870 = vmatpush1.msra.mxu0 %v843
    %871 = vmatprep.subr.mxu0 0.0
    %872 = vmatpush1.msra.mxu0 %v844
    %873 = vmatprep.subr.mxu0 0.0
    %874 = vmatpush1.msra.mxu0 %v845
    %875 = vmatprep.subr.mxu0 0.0
    %876 = vmatpush1.msra.mxu0 %v846
    %877 = vmatprep.subr.mxu0 0.0
    %878 = vmatpush1.msra.mxu0 %v847
    %879 = vmatprep.subr.mxu0 0.0
    %880 = vmatpush1.msra.mxu0 %v848
    %881 = vmatprep.subr.mxu0 0.0
    %882 = vmatpush1.msra.mxu0 %v849
    %883 = vmatprep.subr.mxu0 0.0
    %884 = vmatpush1.msra.mxu0 %v850
    %885 = vmatprep.subr.mxu0 0.0
    %886 = vmatpush1.msra.mxu0 %v851
    %887 = vmatprep.subr.mxu0 0.0
    %888 = vmatpush1.msra.mxu0 %v852
    %889 = vmatprep.subr.mxu0 0.0
    %890 = vmatpush1.msra.mxu0 %v853
    %891 = vmatprep.subr.mxu0 0.0
    %892 = vmatpush1.msra.mxu0 0.0
    %893 = vmatprep.subr.mxu0 0.0
    %894 = vmatpush1.msra.mxu0 0.0
    %895 = vmatprep.subr.mxu0 0.0
    %896 = vmatpush1.msra.mxu0 0.0
    %897 = vmatprep.subr.mxu0 0.0
    %898 = vmatpush1.msra.mxu0 0.0
    %899 = vmatprep.subr.mxu0 0.0
    %900 = vmatpush1.msra.mxu0 0.0
    %901 = vmatprep.subr.mxu0 0.0
    %902 = vmatpush1.msra.mxu0 0.0
    %903 = vmatprep.subr.mxu0 0.0
    %904 = vmatpush1.msra.mxu0 0.0
    %905 = vmatprep.subr.mxu0 0.0
    %906 = vmatpush1.msra.mxu0 0.0
    %907 = vmatprep.subr.mxu0 0.0
    %908 = vmatpush1.msra.mxu0 0.0
    %909 = vmatprep.subr.mxu0 0.0
    %910 = vmatpush1.msra.mxu0 0.0
    %911 = vmatprep.subr.mxu0 0.0
    %912 = vmatpush1.msra.mxu0 0.0
    %913 = vmatprep.subr.mxu0 0.0
    %914 = vmatpush1.msra.mxu0 0.0
    %915 = vmatprep.subr.mxu0 0.0
    %916 = vmatpush1.msra.mxu0 0.0
    %917 = vmatprep.subr.mxu0 0.0
    %918 = vmatpush1.msra.mxu0 0.0
    %919 = vmatprep.subr.mxu0 0.0
    %920 = vmatpush1.msra.mxu0 0.0
    %921 = vmatprep.subr.mxu0 0.0
    %922 = vmatpush1.msra.mxu0 0.0
    %923 = vmatprep.mubr.f32.mxu0 0.0
    %924 = vmatmul.mubr.f32.gmra.mrb[0].mxu0 %v408
    %v925 = vpop.f32.mrb[0].mxu0
    %v926 = vadd.f32 %v858, %v925
    %v927 = vpop.f32.mrb[0].mxu0
    %928 = vmatprep.mubr.f32.mxu0 0.0
    %929 = vmatmul.mubr.f32.gmra.mrb[0].mxu0 %v413
    %v930 = vpop.f32.mrb[0].mxu0
    %v931 = vadd.f32 %v858, %v930
    %v932 = vpop.f32.mrb[0].mxu0
    %933 = vdwg.mxu0
    %v934 = vadd.f32 %v926, %v836
    %v935 = vadd.f32 %v931, %v837
    %v936 = vld [vmem:[#allocation3 + $0x200] sm:$0x1]
    %v937 = vld [vmem:[#allocation3 + $0x208] sm:$0x1]
    %v938 = vsel %vm330, %v934, 0.0
    %939 = vadd.xlane.f32.xlu0 %v938
    %v940 = vpop.xlane.xlu0 %939
    %v941 = vsel %vm330, %v935, 0.0
    %942 = vadd.xlane.f32.xlu0 %v941
    %v943 = vpop.xlane.xlu0 %942
    %v944 = vrcp.pop 4.0
    %v945 = vmul.f32 %v940, %v944
    %v946 = vmul.f32 %v943, %v944
    %v947 = vsub.f32 %v934, %v945
    %v948 = vsub.f32 %v935, %v946
    %v949 = vmul.f32 %v947, %v947
    %v950 = vmul.f32 %v948, %v948
    %v951 = vsel %vm330, %v949, 0.0
    %952 = vadd.xlane.f32.xlu0 %v951
    %v953 = vpop.xlane.xlu0 %952
    %v954 = vsel %vm330, %v950, 0.0
    %955 = vadd.xlane.f32.xlu0 %v954
    %v956 = vpop.xlane.xlu0 %955
    %v957 = vmul.f32 %v953, %v944
    %v958 = vmul.f32 %v956, %v944
    %v959 = vadd.f32 %v957, 1e-05
    %v960 = vadd.f32 %v958, 1e-05
    %v961 = vrsqrt.pop %v959
    %v962 = vrsqrt.pop %v960
    %v963 = vmul.f32 %v947, %v961
    %v964 = vmul.f32 %v948, %v962
    %v965 = vlaneseq
    %v966 = vshrl.u32 %v965, 7
    %v967 = vsub.s32 0, %v966
    %v968 = vrot.slane %v936, %v967
    %v969 = vmul.f32 %v963, %v968
    %v970 = vmul.f32 %v964, %v968
    %v971 = vlaneseq
    %v972 = vshrl.u32 %v971, 7
    %v973 = vsub.s32 0, %v972
    %v974 = vrot.slane %v937, %v973
    %v975 = vadd.f32 %v969, %v974
    %v976 = vadd.f32 %v970, %v974
    %v977 = vsel %vm330, %v975, -inf
    %978 = vmax.xlane.f32.xlu0 %v977
    %v979 = vpop.xlane.xlu0 %978
    %v980 = vsel %vm330, %v976, -inf
    %981 = vmax.xlane.f32.xlu0 %v980
    %v982 = vpop.xlane.xlu0 %981
    %v983 = vsub.f32 %v975, %v979
    %v984 = vsub.f32 %v976, %v982
    %v985 = vmul.f32 %v983, 1.442695
    %v986 = vpow.pop %v985
    %v987 = vmul.f32 %v984, 1.442695
    %v988 = vpow.pop %v987
    %v989 = vsel %vm330, %v986, 0.0
    %990 = vadd.xlane.f32.xlu0 %v989
    %v991 = vpop.xlane.xlu0 %990
    %v992 = vsel %vm330, %v988, 0.0
    %993 = vadd.xlane.f32.xlu0 %v992
    %v994 = vpop.xlane.xlu0 %993
    %v995 = vrcp.pop %v991
    %v996 = vmul.f32 %v986, %v995
    %v997 = vrcp.pop %v994
    %v998 = vmul.f32 %v988, %v997
    %v999 = vld [vmem:[#allocation3 + $0x210] sm:$0xff]
    %v1000 = vld [vmem:[#allocation3 + $0x218] sm:$0xff]
    %v1001 = vld [vmem:[#allocation3 + $0x220] sm:$0xff]
    %v1002 = vld [vmem:[#allocation3 + $0x228] sm:$0xff]
    %v1003 = vld [vmem:[#allocation3 + $0x230] sm:$0xff]
    %v1004 = vld [vmem:[#allocation3 + $0x238] sm:$0xff]
    %v1005 = vld [vmem:[#allocation3 + $0x240] sm:$0xff]
    %v1006 = vld [vmem:[#allocation3 + $0x248] sm:$0xff]
    %v1007 = vld [vmem:[#allocation3 + $0x250] sm:$0xff]
    %v1008 = vld [vmem:[#allocation3 + $0x258] sm:$0xff]
    %v1009 = vld [vmem:[#allocation3 + $0x260] sm:$0xff]
    %v1010 = vld [vmem:[#allocation3 + $0x268] sm:$0xff]
    %v1011 = vld [vmem:[#allocation3 + $0x270] sm:$0xff]
    %v1012 = vld [vmem:[#allocation3 + $0x278] sm:$0xff]
    %v1013 = vld [vmem:[#allocation3 + $0x280] sm:$0xff]
    %v1014 = vld [vmem:[#allocation3 + $0x288] sm:$0xff]
    %v1015 = vld [vmem:[#allocation3 + $0x410] sm:$0x1]
    %v1016 = vlaneseq
    %v1017 = vshrl.u32 %v1016, 7
    %v1018 = vsub.s32 0, %v1017
    %v1019 = vrot.slane %v1015, %v1018
    %1020 = vmatprep.subr.mxu0 0.0
    %1021 = vmatpush1.msra.mxu0 %v999
    %1022 = vmatprep.subr.mxu0 0.0
    %1023 = vmatpush1.msra.mxu0 %v1000
    %1024 = vmatprep.subr.mxu0 0.0
    %1025 = vmatpush1.msra.mxu0 %v1001
    %1026 = vmatprep.subr.mxu0 0.0
    %1027 = vmatpush1.msra.mxu0 %v1002
    %1028 = vmatprep.subr.mxu0 0.0
    %1029 = vmatpush1.msra.mxu0 %v1003
    %1030 = vmatprep.subr.mxu0 0.0
    %1031 = vmatpush1.msra.mxu0 %v1004
    %1032 = vmatprep.subr.mxu0 0.0
    %1033 = vmatpush1.msra.mxu0 %v1005
    %1034 = vmatprep.subr.mxu0 0.0
    %1035 = vmatpush1.msra.mxu0 %v1006
    %1036 = vmatprep.subr.mxu0 0.0
    %1037 = vmatpush1.msra.mxu0 %v1007
    %1038 = vmatprep.subr.mxu0 0.0
    %1039 = vmatpush1.msra.mxu0 %v1008
    %1040 = vmatprep.subr.mxu0 0.0
    %1041 = vmatpush1.msra.mxu0 %v1009
    %1042 = vmatprep.subr.mxu0 0.0
    %1043 = vmatpush1.msra.mxu0 %v1010
    %1044 = vmatprep.subr.mxu0 0.0
    %1045 = vmatpush1.msra.mxu0 %v1011
    %1046 = vmatprep.subr.mxu0 0.0
    %1047 = vmatpush1.msra.mxu0 %v1012
    %1048 = vmatprep.subr.mxu0 0.0
    %1049 = vmatpush1.msra.mxu0 %v1013
    %1050 = vmatprep.subr.mxu0 0.0
    %1051 = vmatpush1.msra.mxu0 %v1014
    %1052 = vmatprep.subr.mxu0 0.0
    %1053 = vmatpush1.msra.mxu0 0.0
    %1054 = vmatprep.subr.mxu0 0.0
    %1055 = vmatpush1.msra.mxu0 0.0
    %1056 = vmatprep.subr.mxu0 0.0
    %1057 = vmatpush1.msra.mxu0 0.0
    %1058 = vmatprep.subr.mxu0 0.0
    %1059 = vmatpush1.msra.mxu0 0.0
    %1060 = vmatprep.subr.mxu0 0.0
    %1061 = vmatpush1.msra.mxu0 0.0
    %1062 = vmatprep.subr.mxu0 0.0
    %1063 = vmatpush1.msra.mxu0 0.0
    %1064 = vmatprep.subr.mxu0 0.0
    %1065 = vmatpush1.msra.mxu0 0.0
    %1066 = vmatprep.subr.mxu0 0.0
    %1067 = vmatpush1.msra.mxu0 0.0
    %1068 = vmatprep.subr.mxu0 0.0
    %1069 = vmatpush1.msra.mxu0 0.0
    %1070 = vmatprep.subr.mxu0 0.0
    %1071 = vmatpush1.msra.mxu0 0.0
    %1072 = vmatprep.subr.mxu0 0.0
    %1073 = vmatpush1.msra.mxu0 0.0
    %1074 = vmatprep.subr.mxu0 0.0
    %1075 = vmatpush1.msra.mxu0 0.0
    %1076 = vmatprep.subr.mxu0 0.0
    %1077 = vmatpush1.msra.mxu0 0.0
    %1078 = vmatprep.subr.mxu0 0.0
    %1079 = vmatpush1.msra.mxu0 0.0
    %1080 = vmatprep.subr.mxu0 0.0
    %1081 = vmatpush1.msra.mxu0 0.0
    %1082 = vmatprep.subr.mxu0 0.0
    %1083 = vmatpush1.msra.mxu0 0.0
    %1084 = vmatprep.mubr.f32.mxu0 0.0
    %1085 = vmatmul.mubr.f32.gmra.mrb[0].mxu0 %v408
    %v1086 = vpop.f32.mrb[0].mxu0
    %v1087 = vadd.f32 %v1019, %v1086
    %v1088 = vpop.f32.mrb[0].mxu0
    %1089 = vmatprep.mubr.f32.mxu0 0.0
    %1090 = vmatmul.mubr.f32.gmra.mrb[0].mxu0 %v413
    %v1091 = vpop.f32.mrb[0].mxu0
    %v1092 = vadd.f32 %v1019, %v1091
    %v1093 = vpop.f32.mrb[0].mxu0
    %1094 = vdwg.mxu0
    %vm1095 = vcmp.gt.f32.partialorder %v1087, 0.0
    %vm1096 = vcmp.gt.f32.partialorder %v1092, 0.0
    %v1097 = vmin.f32 %v1087, 0.0
    %v1098 = vmin.f32 %v1092, 0.0
    %v1099 = vmul.f32 %v1097, 1.442695
    %v1100 = vpow.pop %v1099
    %v1101 = vmul.f32 %v1098, 1.442695
    %v1102 = vpow.pop %v1101
    %v1103 = vsub.f32 %v1100, 1.0
    %v1104 = vsub.f32 %v1102, 1.0
    %v1105 = vsel %vm1095, %v1087, %v1103
    %v1106 = vsel %vm1096, %v1092, %v1104
    %v1107 = vld [vmem:[#allocation3 + $0x290] sm:$0xff]
    %v1108 = vld [vmem:[#allocation3 + $0x298] sm:$0xff]
    %v1109 = vld [vmem:[#allocation3 + $0x2a0] sm:$0xff]
    %v1110 = vld [vmem:[#allocation3 + $0x2a8] sm:$0xff]
    %v1111 = vld [vmem:[#allocation3 + $0x2b0] sm:$0xff]
    %v1112 = vld [vmem:[#allocation3 + $0x2b8] sm:$0xff]
    %v1113 = vld [vmem:[#allocation3 + $0x2c0] sm:$0xff]
    %v1114 = vld [vmem:[#allocation3 + $0x2c8] sm:$0xff]
    %v1115 = vld [vmem:[#allocation3 + $0x2d0] sm:$0xff]
    %v1116 = vld [vmem:[#allocation3 + $0x2d8] sm:$0xff]
    %v1117 = vld [vmem:[#allocation3 + $0x2e0] sm:$0xff]
    %v1118 = vld [vmem:[#allocation3 + $0x2e8] sm:$0xff]
    %v1119 = vld [vmem:[#allocation3 + $0x2f0] sm:$0xff]
    %v1120 = vld [vmem:[#allocation3 + $0x2f8] sm:$0xff]
    %v1121 = vld [vmem:[#allocation3 + $0x300] sm:$0xff]
    %v1122 = vld [vmem:[#allocation3 + $0x308] sm:$0xff]
    %v1123 = vld [vmem:[#allocation3 + $0x418] sm:$0x1]
    %v1124 = vlaneseq
    %v1125 = vshrl.u32 %v1124, 7
    %v1126 = vsub.s32 0, %v1125
    %v1127 = vrot.slane %v1123, %v1126
    %1128 = vmatprep.subr.mxu0 0.0
    %1129 = vmatpush1.msra.mxu0 %v1107
    %1130 = vmatprep.subr.mxu0 0.0
    %1131 = vmatpush1.msra.mxu0 %v1108
    %1132 = vmatprep.subr.mxu0 0.0
    %1133 = vmatpush1.msra.mxu0 %v1109
    %1134 = vmatprep.subr.mxu0 0.0
    %1135 = vmatpush1.msra.mxu0 %v1110
    %1136 = vmatprep.subr.mxu0 0.0
    %1137 = vmatpush1.msra.mxu0 %v1111
    %1138 = vmatprep.subr.mxu0 0.0
    %1139 = vmatpush1.msra.mxu0 %v1112
    %1140 = vmatprep.subr.mxu0 0.0
    %1141 = vmatpush1.msra.mxu0 %v1113
    %1142 = vmatprep.subr.mxu0 0.0
    %1143 = vmatpush1.msra.mxu0 %v1114
    %1144 = vmatprep.subr.mxu0 0.0
    %1145 = vmatpush1.msra.mxu0 %v1115
    %1146 = vmatprep.subr.mxu0 0.0
    %1147 = vmatpush1.msra.mxu0 %v1116
    %1148 = vmatprep.subr.mxu0 0.0
    %1149 = vmatpush1.msra.mxu0 %v1117
    %1150 = vmatprep.subr.mxu0 0.0
    %1151 = vmatpush1.msra.mxu0 %v1118
    %1152 = vmatprep.subr.mxu0 0.0
    %1153 = vmatpush1.msra.mxu0 %v1119
    %1154 = vmatprep.subr.mxu0 0.0
    %1155 = vmatpush1.msra.mxu0 %v1120
    %1156 = vmatprep.subr.mxu0 0.0
    %1157 = vmatpush1.msra.mxu0 %v1121
    %1158 = vmatprep.subr.mxu0 0.0
    %1159 = vmatpush1.msra.mxu0 %v1122
    %1160 = vmatprep.subr.mxu0 0.0
    %1161 = vmatpush1.msra.mxu0 0.0
    %1162 = vmatprep.subr.mxu0 0.0
    %1163 = vmatpush1.msra.mxu0 0.0
    %1164 = vmatprep.subr.mxu0 0.0
    %1165 = vmatpush1.msra.mxu0 0.0
    %1166 = vmatprep.subr.mxu0 0.0
    %1167 = vmatpush1.msra.mxu0 0.0
    %1168 = vmatprep.subr.mxu0 0.0
    %1169 = vmatpush1.msra.mxu0 0.0
    %1170 = vmatprep.subr.mxu0 0.0
    %1171 = vmatpush1.msra.mxu0 0.0
    %1172 = vmatprep.subr.mxu0 0.0
    %1173 = vmatpush1.msra.mxu0 0.0
    %1174 = vmatprep.subr.mxu0 0.0
    %1175 = vmatpush1.msra.mxu0 0.0
    %1176 = vmatprep.subr.mxu0 0.0
    %1177 = vmatpush1.msra.mxu0 0.0
    %1178 = vmatprep.subr.mxu0 0.0
    %1179 = vmatpush1.msra.mxu0 0.0
    %1180 = vmatprep.subr.mxu0 0.0
    %1181 = vmatpush1.msra.mxu0 0.0
    %1182 = vmatprep.subr.mxu0 0.0
    %1183 = vmatpush1.msra.mxu0 0.0
    %1184 = vmatprep.subr.mxu0 0.0
    %1185 = vmatpush1.msra.mxu0 0.0
    %1186 = vmatprep.subr.mxu0 0.0
    %1187 = vmatpush1.msra.mxu0 0.0
    %1188 = vmatprep.subr.mxu0 0.0
    %1189 = vmatpush1.msra.mxu0 0.0
    %1190 = vmatprep.subr.mxu0 0.0
    %1191 = vmatpush1.msra.mxu0 0.0
    %1192 = vmatprep.mubr.f32.mxu0 0.0
    %1193 = vmatmul.mubr.f32.gmra.mrb[0].mxu0 %v1105
    %v1194 = vpop.f32.mrb[0].mxu0
    %v1195 = vadd.f32 %v1127, %v1194
    %v1196 = vpop.f32.mrb[0].mxu0
    %1197 = vmatprep.mubr.f32.mxu0 0.0
    %1198 = vmatmul.mubr.f32.gmra.mrb[0].mxu0 %v1106
    %v1199 = vpop.f32.mrb[0].mxu0
    %v1200 = vadd.f32 %v1127, %v1199
    %v1201 = vpop.f32.mrb[0].mxu0
    %1202 = vdwg.mxu0
    %v1203 = vld [vmem:[#allocation3 + $0x310] sm:$0xff]
    %v1204 = vld [vmem:[#allocation3 + $0x318] sm:$0xff]
    %v1205 = vld [vmem:[#allocation3 + $0x320] sm:$0xff]
    %v1206 = vld [vmem:[#allocation3 + $0x328] sm:$0xff]
    %v1207 = vld [vmem:[#allocation3 + $0x330] sm:$0xff]
    %v1208 = vld [vmem:[#allocation3 + $0x338] sm:$0xff]
    %v1209 = vld [vmem:[#allocation3 + $0x340] sm:$0xff]
    %v1210 = vld [vmem:[#allocation3 + $0x348] sm:$0xff]
    %v1211 = vld [vmem:[#allocation3 + $0x350] sm:$0xff]
    %v1212 = vld [vmem:[#allocation3 + $0x358] sm:$0xff]
    %v1213 = vld [vmem:[#allocation3 + $0x360] sm:$0xff]
    %v1214 = vld [vmem:[#allocation3 + $0x368] sm:$0xff]
    %v1215 = vld [vmem:[#allocation3 + $0x370] sm:$0xff]
    %v1216 = vld [vmem:[#allocation3 + $0x378] sm:$0xff]
    %v1217 = vld [vmem:[#allocation3 + $0x380] sm:$0xff]
    %v1218 = vld [vmem:[#allocation3 + $0x388] sm:$0xff]
    %v1219 = vld [vmem:[#allocation3 + $0x420] sm:$0x1]
    %v1220 = vlaneseq
    %v1221 = vshrl.u32 %v1220, 7
    %v1222 = vsub.s32 0, %v1221
    %v1223 = vrot.slane %v1219, %v1222
    %1224 = vmatprep.subr.mxu0 0.0
    %1225 = vmatpush1.msra.mxu0 %v1203
    %1226 = vmatprep.subr.mxu0 0.0
    %1227 = vmatpush1.msra.mxu0 %v1204
    %1228 = vmatprep.subr.mxu0 0.0
    %1229 = vmatpush1.msra.mxu0 %v1205
    %1230 = vmatprep.subr.mxu0 0.0
    %1231 = vmatpush1.msra.mxu0 %v1206
    %1232 = vmatprep.subr.mxu0 0.0
    %1233 = vmatpush1.msra.mxu0 %v1207
    %1234 = vmatprep.subr.mxu0 0.0
    %1235 = vmatpush1.msra.mxu0 %v1208
    %1236 = vmatprep.subr.mxu0 0.0
    %1237 = vmatpush1.msra.mxu0 %v1209
    %1238 = vmatprep.subr.mxu0 0.0
    %1239 = vmatpush1.msra.mxu0 %v1210
    %1240 = vmatprep.subr.mxu0 0.0
    %1241 = vmatpush1.msra.mxu0 %v1211
    %1242 = vmatprep.subr.mxu0 0.0
    %1243 = vmatpush1.msra.mxu0 %v1212
    %1244 = vmatprep.subr.mxu0 0.0
    %1245 = vmatpush1.msra.mxu0 %v1213
    %1246 = vmatprep.subr.mxu0 0.0
    %1247 = vmatpush1.msra.mxu0 %v1214
    %1248 = vmatprep.subr.mxu0 0.0
    %1249 = vmatpush1.msra.mxu0 %v1215
    %1250 = vmatprep.subr.mxu0 0.0
    %1251 = vmatpush1.msra.mxu0 %v1216
    %1252 = vmatprep.subr.mxu0 0.0
    %1253 = vmatpush1.msra.mxu0 %v1217
    %1254 = vmatprep.subr.mxu0 0.0
    %1255 = vmatpush1.msra.mxu0 %v1218
    %1256 = vmatprep.subr.mxu0 0.0
    %1257 = vmatpush1.msra.mxu0 0.0
    %1258 = vmatprep.subr.mxu0 0.0
    %1259 = vmatpush1.msra.mxu0 0.0
    %1260 = vmatprep.subr.mxu0 0.0
    %1261 = vmatpush1.msra.mxu0 0.0
    %1262 = vmatprep.subr.mxu0 0.0
    %1263 = vmatpush1.msra.mxu0 0.0
    %1264 = vmatprep.subr.mxu0 0.0
    %1265 = vmatpush1.msra.mxu0 0.0
    %1266 = vmatprep.subr.mxu0 0.0
    %1267 = vmatpush1.msra.mxu0 0.0
    %1268 = vmatprep.subr.mxu0 0.0
    %1269 = vmatpush1.msra.mxu0 0.0
    %1270 = vmatprep.subr.mxu0 0.0
    %1271 = vmatpush1.msra.mxu0 0.0
    %1272 = vmatprep.subr.mxu0 0.0
    %1273 = vmatpush1.msra.mxu0 0.0
    %1274 = vmatprep.subr.mxu0 0.0
    %1275 = vmatpush1.msra.mxu0 0.0
    %1276 = vmatprep.subr.mxu0 0.0
    %1277 = vmatpush1.msra.mxu0 0.0
    %1278 = vmatprep.subr.mxu0 0.0
    %1279 = vmatpush1.msra.mxu0 0.0
    %1280 = vmatprep.subr.mxu0 0.0
    %1281 = vmatpush1.msra.mxu0 0.0
    %1282 = vmatprep.subr.mxu0 0.0
    %1283 = vmatpush1.msra.mxu0 0.0
    %1284 = vmatprep.subr.mxu0 0.0
    %1285 = vmatpush1.msra.mxu0 0.0
    %1286 = vmatprep.subr.mxu0 0.0
    %1287 = vmatpush1.msra.mxu0 0.0
    %1288 = vmatprep.mubr.f32.mxu0 0.0
    %1289 = vmatmul.mubr.f32.gmra.mrb[0].mxu0 %v1195
    %v1290 = vpop.f32.mrb[0].mxu0
    %v1291 = vadd.f32 %v1223, %v1290
    %v1292 = vpop.f32.mrb[0].mxu0
    %1293 = vmatprep.mubr.f32.mxu0 0.0
    %1294 = vmatmul.mubr.f32.gmra.mrb[0].mxu0 %v1200
    %v1295 = vpop.f32.mrb[0].mxu0
    %v1296 = vadd.f32 %v1223, %v1295
    %v1297 = vpop.f32.mrb[0].mxu0
    %1298 = vdwg.mxu0
    %v1299 = vxor.u32 %v1291, 2147483648
    %v1300 = vxor.u32 %v1296, 2147483648
    %v1301 = vmul.f32 %v1299, 1.442695
    %v1302 = vpow.pop %v1301
    %v1303 = vmul.f32 %v1300, 1.442695
    %v1304 = vpow.pop %v1303
    %v1305 = vadd.f32 %v1302, 1.0
    %v1306 = vadd.f32 %v1304, 1.0
    %v1307 = vrcp.pop %v1305
    %v1308 = vmul.f32 1.0, %v1307
    %v1309 = vrcp.pop %v1306
    %v1310 = vmul.f32 1.0, %v1309
    %v1311 = vld [vmem:[#allocation3 + $0x390] sm:$0xff]
    %v1312 = vld [vmem:[#allocation3 + $0x398] sm:$0xff]
    %v1313 = vld [vmem:[#allocation3 + $0x3a0] sm:$0xff]
    %v1314 = vld [vmem:[#allocation3 + $0x3a8] sm:$0xff]
    %v1315 = vld [vmem:[#allocation3 + $0x3b0] sm:$0xff]
    %v1316 = vld [vmem:[#allocation3 + $0x3b8] sm:$0xff]
    %v1317 = vld [vmem:[#allocation3 + $0x3c0] sm:$0xff]
    %v1318 = vld [vmem:[#allocation3 + $0x3c8] sm:$0xff]
    %v1319 = vld [vmem:[#allocation3 + $0x3d0] sm:$0xff]
    %v1320 = vld [vmem:[#allocation3 + $0x3d8] sm:$0xff]
    %v1321 = vld [vmem:[#allocation3 + $0x3e0] sm:$0xff]
    %v1322 = vld [vmem:[#allocation3 + $0x3e8] sm:$0xff]
    %v1323 = vld [vmem:[#allocation3 + $0x3f0] sm:$0xff]
    %v1324 = vld [vmem:[#allocation3 + $0x3f8] sm:$0xff]
    %v1325 = vld [vmem:[#allocation3 + $0x400] sm:$0xff]
    %v1326 = vld [vmem:[#allocation3 + $0x408] sm:$0xff]
    %v1327 = vld [vmem:[#allocation3 + $0x428] sm:$0x1]
    %v1328 = vlaneseq
    %v1329 = vshrl.u32 %v1328, 7
    %v1330 = vsub.s32 0, %v1329
    %v1331 = vrot.slane %v1327, %v1330
    %1332 = vmatprep.subr.mxu0 0.0
    %1333 = vmatpush1.msra.mxu0 %v1311
    %1334 = vmatprep.subr.mxu0 0.0
    %1335 = vmatpush1.msra.mxu0 %v1312
    %1336 = vmatprep.subr.mxu0 0.0
    %1337 = vmatpush1.msra.mxu0 %v1313
    %1338 = vmatprep.subr.mxu0 0.0
    %1339 = vmatpush1.msra.mxu0 %v1314
    %1340 = vmatprep.subr.mxu0 0.0
    %1341 = vmatpush1.msra.mxu0 %v1315
    %1342 = vmatprep.subr.mxu0 0.0
    %1343 = vmatpush1.msra.mxu0 %v1316
    %1344 = vmatprep.subr.mxu0 0.0
    %1345 = vmatpush1.msra.mxu0 %v1317
    %1346 = vmatprep.subr.mxu0 0.0
    %1347 = vmatpush1.msra.mxu0 %v1318
    %1348 = vmatprep.subr.mxu0 0.0
    %1349 = vmatpush1.msra.mxu0 %v1319
    %1350 = vmatprep.subr.mxu0 0.0
    %1351 = vmatpush1.msra.mxu0 %v1320
    %1352 = vmatprep.subr.mxu0 0.0
    %1353 = vmatpush1.msra.mxu0 %v1321
    %1354 = vmatprep.subr.mxu0 0.0
    %1355 = vmatpush1.msra.mxu0 %v1322
    %1356 = vmatprep.subr.mxu0 0.0
    %1357 = vmatpush1.msra.mxu0 %v1323
    %1358 = vmatprep.subr.mxu0 0.0
    %1359 = vmatpush1.msra.mxu0 %v1324
    %1360 = vmatprep.subr.mxu0 0.0
    %1361 = vmatpush1.msra.mxu0 %v1325
    %1362 = vmatprep.subr.mxu0 0.0
    %1363 = vmatpush1.msra.mxu0 %v1326
    %1364 = vmatprep.subr.mxu0 0.0
    %1365 = vmatpush1.msra.mxu0 0.0
    %1366 = vmatprep.subr.mxu0 0.0
    %1367 = vmatpush1.msra.mxu0 0.0
    %1368 = vmatprep.subr.mxu0 0.0
    %1369 = vmatpush1.msra.mxu0 0.0
    %1370 = vmatprep.subr.mxu0 0.0
    %1371 = vmatpush1.msra.mxu0 0.0
    %1372 = vmatprep.subr.mxu0 0.0
    %1373 = vmatpush1.msra.mxu0 0.0
    %1374 = vmatprep.subr.mxu0 0.0
    %1375 = vmatpush1.msra.mxu0 0.0
    %1376 = vmatprep.subr.mxu0 0.0
    %1377 = vmatpush1.msra.mxu0 0.0
    %1378 = vmatprep.subr.mxu0 0.0
    %1379 = vmatpush1.msra.mxu0 0.0
    %1380 = vmatprep.subr.mxu0 0.0
    %1381 = vmatpush1.msra.mxu0 0.0
    %1382 = vmatprep.subr.mxu0 0.0
    %1383 = vmatpush1.msra.mxu0 0.0
    %1384 = vmatprep.subr.mxu0 0.0
    %1385 = vmatpush1.msra.mxu0 0.0
    %1386 = vmatprep.subr.mxu0 0.0
    %1387 = vmatpush1.msra.mxu0 0.0
    %1388 = vmatprep.subr.mxu0 0.0
    %1389 = vmatpush1.msra.mxu0 0.0
    %1390 = vmatprep.subr.mxu0 0.0
    %1391 = vmatpush1.msra.mxu0 0.0
    %1392 = vmatprep.subr.mxu0 0.0
    %1393 = vmatpush1.msra.mxu0 0.0
    %1394 = vmatprep.subr.mxu0 0.0
    %1395 = vmatpush1.msra.mxu0 0.0
    %1396 = vmatprep.mubr.f32.mxu0 0.0
    %1397 = vmatmul.mubr.f32.gmra.mrb[0].mxu0 %v1195
    %v1398 = vpop.f32.mrb[0].mxu0
    %v1399 = vadd.f32 %v1331, %v1398
    %v1400 = vpop.f32.mrb[0].mxu0
    %1401 = vmatprep.mubr.f32.mxu0 0.0
    %1402 = vmatmul.mubr.f32.gmra.mrb[0].mxu0 %v1200
    %v1403 = vpop.f32.mrb[0].mxu0
    %v1404 = vadd.f32 %v1331, %v1403
    %v1405 = vpop.f32.mrb[0].mxu0
    %1406 = vdwg.mxu0
    %v1407 = vmul.f32 %v1308, %v1399
    %v1408 = vmul.f32 %v1310, %v1404
    %v1409 = vadd.f32 %v408, %v1407
    %v1410 = vadd.f32 %v413, %v1408
    %v1411 = vld [vmem:[#allocation3 + $0x440] sm:$0xff]
    %v1412 = vld [vmem:[#allocation3 + $0x448] sm:$0xff]
    %v1413 = vld [vmem:[#allocation3 + $0x450] sm:$0xff]
    %v1414 = vld [vmem:[#allocation3 + $0x458] sm:$0xff]
    %v1415 = vld [vmem:[#allocation3 + $0x460] sm:$0xff]
    %v1416 = vld [vmem:[#allocation3 + $0x468] sm:$0xff]
    %v1417 = vld [vmem:[#allocation3 + $0x470] sm:$0xff]
    %v1418 = vld [vmem:[#allocation3 + $0x478] sm:$0xff]
    %v1419 = vld [vmem:[#allocation3 + $0x480] sm:$0xff]
    %v1420 = vld [vmem:[#allocation3 + $0x488] sm:$0xff]
    %v1421 = vld [vmem:[#allocation3 + $0x490] sm:$0xff]
    %v1422 = vld [vmem:[#allocation3 + $0x498] sm:$0xff]
    %v1423 = vld [vmem:[#allocation3 + $0x4a0] sm:$0xff]
    %v1424 = vld [vmem:[#allocation3 + $0x4a8] sm:$0xff]
    %v1425 = vld [vmem:[#allocation3 + $0x4b0] sm:$0xff]
    %v1426 = vld [vmem:[#allocation3 + $0x4b8] sm:$0xff]
    %v1427 = vld [vmem:[#allocation3 + $0x4c0] sm:$0xf]
    %1428 = vmatprep.subr.mxu0 0.0
    %1429 = vmatpush1.msra.mxu0 %v1411
    %1430 = vmatprep.subr.mxu0 0.0
    %1431 = vmatpush1.msra.mxu0 %v1412
    %1432 = vmatprep.subr.mxu0 0.0
    %1433 = vmatpush1.msra.mxu0 %v1413
    %1434 = vmatprep.subr.mxu0 0.0
    %1435 = vmatpush1.msra.mxu0 %v1414
    %1436 = vmatprep.subr.mxu0 0.0
    %1437 = vmatpush1.msra.mxu0 %v1415
    %1438 = vmatprep.subr.mxu0 0.0
    %1439 = vmatpush1.msra.mxu0 %v1416
    %1440 = vmatprep.subr.mxu0 0.0
    %1441 = vmatpush1.msra.mxu0 %v1417
    %1442 = vmatprep.subr.mxu0 0.0
    %1443 = vmatpush1.msra.mxu0 %v1418
    %1444 = vmatprep.subr.mxu0 0.0
    %1445 = vmatpush1.msra.mxu0 %v1419
    %1446 = vmatprep.subr.mxu0 0.0
    %1447 = vmatpush1.msra.mxu0 %v1420
    %1448 = vmatprep.subr.mxu0 0.0
    %1449 = vmatpush1.msra.mxu0 %v1421
    %1450 = vmatprep.subr.mxu0 0.0
    %1451 = vmatpush1.msra.mxu0 %v1422
    %1452 = vmatprep.subr.mxu0 0.0
    %1453 = vmatpush1.msra.mxu0 %v1423
    %1454 = vmatprep.subr.mxu0 0.0
    %1455 = vmatpush1.msra.mxu0 %v1424
    %1456 = vmatprep.subr.mxu0 0.0
    %1457 = vmatpush1.msra.mxu0 %v1425
    %1458 = vmatprep.subr.mxu0 0.0
    %1459 = vmatpush1.msra.mxu0 %v1426
    %1460 = vmatprep.subr.mxu0 0.0
    %1461 = vmatpush1.msra.mxu0 0.0
    %1462 = vmatprep.subr.mxu0 0.0
    %1463 = vmatpush1.msra.mxu0 0.0
    %1464 = vmatprep.subr.mxu0 0.0
    %1465 = vmatpush1.msra.mxu0 0.0
    %1466 = vmatprep.subr.mxu0 0.0
    %1467 = vmatpush1.msra.mxu0 0.0
    %1468 = vmatprep.subr.mxu0 0.0
    %1469 = vmatpush1.msra.mxu0 0.0
    %1470 = vmatprep.subr.mxu0 0.0
    %1471 = vmatpush1.msra.mxu0 0.0
    %1472 = vmatprep.subr.mxu0 0.0
    %1473 = vmatpush1.msra.mxu0 0.0
    %1474 = vmatprep.subr.mxu0 0.0
    %1475 = vmatpush1.msra.mxu0 0.0
    %1476 = vmatprep.subr.mxu0 0.0
    %1477 = vmatpush1.msra.mxu0 0.0
    %1478 = vmatprep.subr.mxu0 0.0
    %1479 = vmatpush1.msra.mxu0 0.0
    %1480 = vmatprep.subr.mxu0 0.0
    %1481 = vmatpush1.msra.mxu0 0.0
    %1482 = vmatprep.subr.mxu0 0.0
    %1483 = vmatpush1.msra.mxu0 0.0
    %1484 = vmatprep.subr.mxu0 0.0
    %1485 = vmatpush1.msra.mxu0 0.0
    %1486 = vmatprep.subr.mxu0 0.0
    %1487 = vmatpush1.msra.mxu0 0.0
    %1488 = vmatprep.subr.mxu0 0.0
    %1489 = vmatpush1.msra.mxu0 0.0
    %1490 = vmatprep.subr.mxu0 0.0
    %1491 = vmatpush1.msra.mxu0 0.0
    %1492 = vmatprep.mubr.f32.mxu0 0.0
    %1493 = vmatmul.mubr.f32.gmra.mrb[0].mxu0 %v1409
    %v1494 = vpop.f32.mrb[0].mxu0
    %v1495 = vadd.f32 0.0, %v1494
    %v1496 = vpop.f32.mrb[0].mxu0
    %1497 = vmatprep.mubr.f32.mxu0 0.0
    %1498 = vmatmul.mubr.f32.gmra.mrb[0].mxu0 %v1410
    %v1499 = vpop.f32.mrb[0].mxu0
    %v1500 = vadd.f32 0.0, %v1499
    %v1501 = vpop.f32.mrb[0].mxu0
    %1502 = vdwg.mxu0
    %v1504 = vsel %vm330, %v1495, 0
    %v1507 = vsel %vm330, %v1500, 0
    %v1510 = vsel %vm337, %v1427, 0
    %1512 = vmatprep.subr.mxu0 0.0
    %1513 = vmatpush1.msra.mxu0 %v1510
    %1514 = vmatprep.subr.mxu0 0.0
    %1515 = vmatpush1.msra.mxu0 0.0
    %1516 = vmatprep.subr.mxu0 0.0
    %1517 = vmatpush1.msra.mxu0 0.0
    %1518 = vmatprep.subr.mxu0 0.0
    %1519 = vmatpush1.msra.mxu0 0.0
    %1520 = vmatprep.subr.mxu0 0.0
    %1521 = vmatpush1.msra.mxu0 0.0
    %1522 = vmatprep.subr.mxu0 0.0
    %1523 = vmatpush1.msra.mxu0 0.0
    %1524 = vmatprep.subr.mxu0 0.0
    %1525 = vmatpush1.msra.mxu0 0.0
    %1526 = vmatprep.subr.mxu0 0.0
    %1527 = vmatpush1.msra.mxu0 0.0
    %1528 = vmatprep.subr.mxu0 0.0
    %1529 = vmatpush1.msra.mxu0 0.0
    %1530 = vmatprep.subr.mxu0 0.0
    %1531 = vmatpush1.msra.mxu0 0.0
    %1532 = vmatprep.subr.mxu0 0.0
    %1533 = vmatpush1.msra.mxu0 0.0
    %1534 = vmatprep.subr.mxu0 0.0
    %1535 = vmatpush1.msra.mxu0 0.0
    %1536 = vmatprep.subr.mxu0 0.0
    %1537 = vmatpush1.msra.mxu0 0.0
    %1538 = vmatprep.subr.mxu0 0.0
    %1539 = vmatpush1.msra.mxu0 0.0
    %1540 = vmatprep.subr.mxu0 0.0
    %1541 = vmatpush1.msra.mxu0 0.0
    %1542 = vmatprep.subr.mxu0 0.0
    %1543 = vmatpush1.msra.mxu0 0.0
    %1544 = vmatprep.subr.mxu0 0.0
    %1545 = vmatpush1.msra.mxu0 0.0
    %1546 = vmatprep.subr.mxu0 0.0
    %1547 = vmatpush1.msra.mxu0 0.0
    %1548 = vmatprep.subr.mxu0 0.0
    %1549 = vmatpush1.msra.mxu0 0.0
    %1550 = vmatprep.subr.mxu0 0.0
    %1551 = vmatpush1.msra.mxu0 0.0
    %1552 = vmatprep.subr.mxu0 0.0
    %1553 = vmatpush1.msra.mxu0 0.0
    %1554 = vmatprep.subr.mxu0 0.0
    %1555 = vmatpush1.msra.mxu0 0.0
    %1556 = vmatprep.subr.mxu0 0.0
    %1557 = vmatpush1.msra.mxu0 0.0
    %1558 = vmatprep.subr.mxu0 0.0
    %1559 = vmatpush1.msra.mxu0 0.0
    %1560 = vmatprep.subr.mxu0 0.0
    %1561 = vmatpush1.msra.mxu0 0.0
    %1562 = vmatprep.subr.mxu0 0.0
    %1563 = vmatpush1.msra.mxu0 0.0
    %1564 = vmatprep.subr.mxu0 0.0
    %1565 = vmatpush1.msra.mxu0 0.0
    %1566 = vmatprep.subr.mxu0 0.0
    %1567 = vmatpush1.msra.mxu0 0.0
    %1568 = vmatprep.subr.mxu0 0.0
    %1569 = vmatpush1.msra.mxu0 0.0
    %1570 = vmatprep.subr.mxu0 0.0
    %1571 = vmatpush1.msra.mxu0 0.0
    %1572 = vmatprep.subr.mxu0 0.0
    %1573 = vmatpush1.msra.mxu0 0.0
    %1574 = vmatprep.subr.mxu0 0.0
    %1575 = vmatpush1.msra.mxu0 0.0
    %1576 = vmatprep.mubr.f32.mxu0 0.0
    %1577 = vmatmul.mubr.f32.gmra.mrb[0].mxu0 %v1504
    %v1578 = vpop.f32.mrb[0].mxu0
    %v1579 = vadd.f32 0.0, %v1578
    %v1580 = vpop.f32.mrb[0].mxu0
    %1581 = vmatprep.mubr.f32.mxu0 0.0
    %1582 = vmatmul.mubr.f32.gmra.mrb[0].mxu0 %v1507
    %v1583 = vpop.f32.mrb[0].mxu0
    %v1584 = vadd.f32 0.0, %v1583
    %v1585 = vpop.f32.mrb[0].mxu0
    %1586 = vdwg.mxu0
    %v1587 = vsub.f32 %v1409, %v1579
    %v1588 = vsub.f32 %v1410, %v1584
    %v1589 = vmul.f32 %v1587, %v1587
    %v1590 = vmul.f32 %v1588, %v1588
    %1591 = vmatprep.subr.mxu0 0.0
    %1592 = vmatpush1.msra.mxu0 %v1411
    %1593 = vmatprep.subr.mxu0 0.0
    %1594 = vmatpush1.msra.mxu0 %v1412
    %1595 = vmatprep.subr.mxu0 0.0
    %1596 = vmatpush1.msra.mxu0 %v1413
    %1597 = vmatprep.subr.mxu0 0.0
    %1598 = vmatpush1.msra.mxu0 %v1414
    %1599 = vmatprep.subr.mxu0 0.0
    %1600 = vmatpush1.msra.mxu0 %v1415
    %1601 = vmatprep.subr.mxu0 0.0
    %1602 = vmatpush1.msra.mxu0 %v1416
    %1603 = vmatprep.subr.mxu0 0.0
    %1604 = vmatpush1.msra.mxu0 %v1417
    %1605 = vmatprep.subr.mxu0 0.0
    %1606 = vmatpush1.msra.mxu0 %v1418
    %1607 = vmatprep.subr.mxu0 0.0
    %1608 = vmatpush1.msra.mxu0 %v1419
    %1609 = vmatprep.subr.mxu0 0.0
    %1610 = vmatpush1.msra.mxu0 %v1420
    %1611 = vmatprep.subr.mxu0 0.0
    %1612 = vmatpush1.msra.mxu0 %v1421
    %1613 = vmatprep.subr.mxu0 0.0
    %1614 = vmatpush1.msra.mxu0 %v1422
    %1615 = vmatprep.subr.mxu0 0.0
    %1616 = vmatpush1.msra.mxu0 %v1423
    %1617 = vmatprep.subr.mxu0 0.0
    %1618 = vmatpush1.msra.mxu0 %v1424
    %1619 = vmatprep.subr.mxu0 0.0
    %1620 = vmatpush1.msra.mxu0 %v1425
    %1621 = vmatprep.subr.mxu0 0.0
    %1622 = vmatpush1.msra.mxu0 %v1426
    %1623 = vmatprep.subr.mxu0 0.0
    %1624 = vmatpush1.msra.mxu0 0.0
    %1625 = vmatprep.subr.mxu0 0.0
    %1626 = vmatpush1.msra.mxu0 0.0
    %1627 = vmatprep.subr.mxu0 0.0
    %1628 = vmatpush1.msra.mxu0 0.0
    %1629 = vmatprep.subr.mxu0 0.0
    %1630 = vmatpush1.msra.mxu0 0.0
    %1631 = vmatprep.subr.mxu0 0.0
    %1632 = vmatpush1.msra.mxu0 0.0
    %1633 = vmatprep.subr.mxu0 0.0
    %1634 = vmatpush1.msra.mxu0 0.0
    %1635 = vmatprep.subr.mxu0 0.0
    %1636 = vmatpush1.msra.mxu0 0.0
    %1637 = vmatprep.subr.mxu0 0.0
    %1638 = vmatpush1.msra.mxu0 0.0
    %1639 = vmatprep.subr.mxu0 0.0
    %1640 = vmatpush1.msra.mxu0 0.0
    %1641 = vmatprep.subr.mxu0 0.0
    %1642 = vmatpush1.msra.mxu0 0.0
    %1643 = vmatprep.subr.mxu0 0.0
    %1644 = vmatpush1.msra.mxu0 0.0
    %1645 = vmatprep.subr.mxu0 0.0
    %1646 = vmatpush1.msra.mxu0 0.0
    %1647 = vmatprep.subr.mxu0 0.0
    %1648 = vmatpush1.msra.mxu0 0.0
    %1649 = vmatprep.subr.mxu0 0.0
    %1650 = vmatpush1.msra.mxu0 0.0
    %1651 = vmatprep.subr.mxu0 0.0
    %1652 = vmatpush1.msra.mxu0 0.0
    %1653 = vmatprep.subr.mxu0 0.0
    %1654 = vmatpush1.msra.mxu0 0.0
    %1655 = vmatprep.mubr.f32.mxu0 0.0
    %1656 = vmatmul.mubr.f32.gmra.mrb[0].mxu0 %v1589
    %v1657 = vpop.f32.mrb[0].mxu0
    %v1658 = vadd.f32 1e-05, %v1657
    %v1659 = vpop.f32.mrb[0].mxu0
    %1660 = vmatprep.mubr.f32.mxu0 0.0
    %1661 = vmatmul.mubr.f32.gmra.mrb[0].mxu0 %v1590
    %v1662 = vpop.f32.mrb[0].mxu0
    %v1663 = vadd.f32 1e-05, %v1662
    %v1664 = vpop.f32.mrb[0].mxu0
    %1665 = vdwg.mxu0
    %v1666 = vrsqrt.pop %v1658
    %v1667 = vrsqrt.pop %v1663
    %v1669 = vsel %vm330, %v1666, 0
    %v1672 = vsel %vm330, %v1667, 0
    %1674 = vmatprep.subr.mxu0 0.0
    %1675 = vmatpush1.msra.mxu0 %v1510
    %1676 = vmatprep.subr.mxu0 0.0
    %1677 = vmatpush1.msra.mxu0 0.0
    %1678 = vmatprep.subr.mxu0 0.0
    %1679 = vmatpush1.msra.mxu0 0.0
    %1680 = vmatprep.subr.mxu0 0.0
    %1681 = vmatpush1.msra.mxu0 0.0
    %1682 = vmatprep.subr.mxu0 0.0
    %1683 = vmatpush1.msra.mxu0 0.0
    %1684 = vmatprep.subr.mxu0 0.0
    %1685 = vmatpush1.msra.mxu0 0.0
    %1686 = vmatprep.subr.mxu0 0.0
    %1687 = vmatpush1.msra.mxu0 0.0
    %1688 = vmatprep.subr.mxu0 0.0
    %1689 = vmatpush1.msra.mxu0 0.0
    %1690 = vmatprep.subr.mxu0 0.0
    %1691 = vmatpush1.msra.mxu0 0.0
    %1692 = vmatprep.subr.mxu0 0.0
    %1693 = vmatpush1.msra.mxu0 0.0
    %1694 = vmatprep.subr.mxu0 0.0
    %1695 = vmatpush1.msra.mxu0 0.0
    %1696 = vmatprep.subr.mxu0 0.0
    %1697 = vmatpush1.msra.mxu0 0.0
    %1698 = vmatprep.subr.mxu0 0.0
    %1699 = vmatpush1.msra.mxu0 0.0
    %1700 = vmatprep.subr.mxu0 0.0
    %1701 = vmatpush1.msra.mxu0 0.0
    %1702 = vmatprep.subr.mxu0 0.0
    %1703 = vmatpush1.msra.mxu0 0.0
    %1704 = vmatprep.subr.mxu0 0.0
    %1705 = vmatpush1.msra.mxu0 0.0
    %1706 = vmatprep.subr.mxu0 0.0
    %1707 = vmatpush1.msra.mxu0 0.0
    %1708 = vmatprep.subr.mxu0 0.0
    %1709 = vmatpush1.msra.mxu0 0.0
    %1710 = vmatprep.subr.mxu0 0.0
    %1711 = vmatpush1.msra.mxu0 0.0
    %1712 = vmatprep.subr.mxu0 0.0
    %1713 = vmatpush1.msra.mxu0 0.0
    %1714 = vmatprep.subr.mxu0 0.0
    %1715 = vmatpush1.msra.mxu0 0.0
    %1716 = vmatprep.subr.mxu0 0.0
    %1717 = vmatpush1.msra.mxu0 0.0
    %1718 = vmatprep.subr.mxu0 0.0
    %1719 = vmatpush1.msra.mxu0 0.0
    %1720 = vmatprep.subr.mxu0 0.0
    %1721 = vmatpush1.msra.mxu0 0.0
    %1722 = vmatprep.subr.mxu0 0.0
    %1723 = vmatpush1.msra.mxu0 0.0
    %1724 = vmatprep.subr.mxu0 0.0
    %1725 = vmatpush1.msra.mxu0 0.0
    %1726 = vmatprep.subr.mxu0 0.0
    %1727 = vmatpush1.msra.mxu0 0.0
    %1728 = vmatprep.subr.mxu0 0.0
    %1729 = vmatpush1.msra.mxu0 0.0
    %1730 = vmatprep.subr.mxu0 0.0
    %1731 = vmatpush1.msra.mxu0 0.0
    %1732 = vmatprep.subr.mxu0 0.0
    %1733 = vmatpush1.msra.mxu0 0.0
    %1734 = vmatprep.subr.mxu0 0.0
    %1735 = vmatpush1.msra.mxu0 0.0
    %1736 = vmatprep.subr.mxu0 0.0
    %1737 = vmatpush1.msra.mxu0 0.0
    %1738 = vmatprep.mubr.f32.mxu0 0.0
    %1739 = vmatmul.mubr.f32.gmra.mrb[0].mxu0 %v1669
    %v1740 = vpop.f32.mrb[0].mxu0
    %v1741 = vadd.f32 0.0, %v1740
    %v1742 = vpop.f32.mrb[0].mxu0
    %1743 = vmatprep.mubr.f32.mxu0 0.0
    %1744 = vmatmul.mubr.f32.gmra.mrb[0].mxu0 %v1672
    %v1745 = vpop.f32.mrb[0].mxu0
    %v1746 = vadd.f32 0.0, %v1745
    %v1747 = vpop.f32.mrb[0].mxu0
    %1748 = vdwg.mxu0
    %v1749 = vmul.f32 %v1587, %v1741
    %v1750 = vmul.f32 %v1588, %v1746
    %v1751 = vld [vmem:[#allocation3 + $0x430] sm:$0x1]
    %v1752 = vlaneseq
    %v1753 = vshrl.u32 %v1752, 7
    %v1754 = vsub.s32 0, %v1753
    %v1755 = vrot.slane %v1751, %v1754
    %v1756 = vmul.f32 %v1749, %v1755
    %v1757 = vmul.f32 %v1750, %v1755
    %v1758 = vld [vmem:[#allocation3 + $0x438] sm:$0x1]
    %v1759 = vlaneseq
    %v1760 = vshrl.u32 %v1759, 7
    %v1761 = vsub.s32 0, %v1760
    %v1762 = vrot.slane %v1758, %v1761
    %v1763 = vadd.f32 %v1756, %v1762
    %v1764 = vadd.f32 %v1757, %v1762
    %v1766 = vsel %vm330, %v996, 0
    %v1769 = vsel %vm330, %v998, 0
    %1771 = vmatprep.subr.mxu0 0.0
    %1772 = vmatpush1.msra.mxu0 %v1510
    %1773 = vmatprep.subr.mxu0 0.0
    %1774 = vmatpush1.msra.mxu0 0.0
    %1775 = vmatprep.subr.mxu0 0.0
    %1776 = vmatpush1.msra.mxu0 0.0
    %1777 = vmatprep.subr.mxu0 0.0
    %1778 = vmatpush1.msra.mxu0 0.0
    %1779 = vmatprep.subr.mxu0 0.0
    %1780 = vmatpush1.msra.mxu0 0.0
    %1781 = vmatprep.subr.mxu0 0.0
    %1782 = vmatpush1.msra.mxu0 0.0
    %1783 = vmatprep.subr.mxu0 0.0
    %1784 = vmatpush1.msra.mxu0 0.0
    %1785 = vmatprep.subr.mxu0 0.0
    %1786 = vmatpush1.msra.mxu0 0.0
    %1787 = vmatprep.subr.mxu0 0.0
    %1788 = vmatpush1.msra.mxu0 0.0
    %1789 = vmatprep.subr.mxu0 0.0
    %1790 = vmatpush1.msra.mxu0 0.0
    %1791 = vmatprep.subr.mxu0 0.0
    %1792 = vmatpush1.msra.mxu0 0.0
    %1793 = vmatprep.subr.mxu0 0.0
    %1794 = vmatpush1.msra.mxu0 0.0
    %1795 = vmatprep.subr.mxu0 0.0
    %1796 = vmatpush1.msra.mxu0 0.0
    %1797 = vmatprep.subr.mxu0 0.0
    %1798 = vmatpush1.msra.mxu0 0.0
    %1799 = vmatprep.subr.mxu0 0.0
    %1800 = vmatpush1.msra.mxu0 0.0
    %1801 = vmatprep.subr.mxu0 0.0
    %1802 = vmatpush1.msra.mxu0 0.0
    %1803 = vmatprep.subr.mxu0 0.0
    %1804 = vmatpush1.msra.mxu0 0.0
    %1805 = vmatprep.subr.mxu0 0.0
    %1806 = vmatpush1.msra.mxu0 0.0
    %1807 = vmatprep.subr.mxu0 0.0
    %1808 = vmatpush1.msra.mxu0 0.0
    %1809 = vmatprep.subr.mxu0 0.0
    %1810 = vmatpush1.msra.mxu0 0.0
    %1811 = vmatprep.subr.mxu0 0.0
    %1812 = vmatpush1.msra.mxu0 0.0
    %1813 = vmatprep.subr.mxu0 0.0
    %1814 = vmatpush1.msra.mxu0 0.0
    %1815 = vmatprep.subr.mxu0 0.0
    %1816 = vmatpush1.msra.mxu0 0.0
    %1817 = vmatprep.subr.mxu0 0.0
    %1818 = vmatpush1.msra.mxu0 0.0
    %1819 = vmatprep.subr.mxu0 0.0
    %1820 = vmatpush1.msra.mxu0 0.0
    %1821 = vmatprep.subr.mxu0 0.0
    %1822 = vmatpush1.msra.mxu0 0.0
    %1823 = vmatprep.subr.mxu0 0.0
    %1824 = vmatpush1.msra.mxu0 0.0
    %1825 = vmatprep.subr.mxu0 0.0
    %1826 = vmatpush1.msra.mxu0 0.0
    %1827 = vmatprep.subr.mxu0 0.0
    %1828 = vmatpush1.msra.mxu0 0.0
    %1829 = vmatprep.subr.mxu0 0.0
    %1830 = vmatpush1.msra.mxu0 0.0
    %1831 = vmatprep.subr.mxu0 0.0
    %1832 = vmatpush1.msra.mxu0 0.0
    %1833 = vmatprep.subr.mxu0 0.0
    %1834 = vmatpush1.msra.mxu0 0.0
    %1835 = vmatprep.mubr.f32.mxu0 0.0
    %1836 = vmatmul.mubr.f32.gmra.mrb[0].mxu0 %v1766
    %v1837 = vpop.f32.mrb[0].mxu0
    %v1838 = vadd.f32 0.0, %v1837
    %v1839 = vpop.f32.mrb[0].mxu0
    %1840 = vmatprep.mubr.f32.mxu0 0.0
    %1841 = vmatmul.mubr.f32.gmra.mrb[0].mxu0 %v1769
    %v1842 = vpop.f32.mrb[0].mxu0
    %v1843 = vadd.f32 0.0, %v1842
    %v1844 = vpop.f32.mrb[0].mxu0
    %1845 = vdwg.mxu0
    %v1846 = vmul.f32 %v1763, %v1838
    %v1847 = vmul.f32 %v1764, %v1843
    %v1848 = vld [vmem:[#allocation3 + $0x4c8] sm:$0xff]
    %v1849 = vld [vmem:[#allocation3 + $0x4d0] sm:$0xff]
    %v1850 = vld [vmem:[#allocation3 + $0x4d8] sm:$0xff]
    %v1851 = vld [vmem:[#allocation3 + $0x4e0] sm:$0xff]
    %v1852 = vld [vmem:[#allocation3 + $0x4e8] sm:$0xff]
    %v1853 = vld [vmem:[#allocation3 + $0x4f0] sm:$0xff]
    %v1854 = vld [vmem:[#allocation3 + $0x4f8] sm:$0xff]
    %v1855 = vld [vmem:[#allocation3 + $0x500] sm:$0xff]
    %v1856 = vld [vmem:[#allocation3 + $0x508] sm:$0xff]
    %v1857 = vld [vmem:[#allocation3 + $0x510] sm:$0xff]
    %v1858 = vld [vmem:[#allocation3 + $0x518] sm:$0xff]
    %v1859 = vld [vmem:[#allocation3 + $0x520] sm:$0xff]
    %v1860 = vld [vmem:[#allocation3 + $0x528] sm:$0xff]
    %v1861 = vld [vmem:[#allocation3 + $0x530] sm:$0xff]
    %v1862 = vld [vmem:[#allocation3 + $0x538] sm:$0xff]
    %v1863 = vld [vmem:[#allocation3 + $0x540] sm:$0xff]
    %1864 = vmatprep.subr.mxu0 0.0
    %1865 = vmatpush1.msra.mxu0 %v1848
    %1866 = vmatprep.subr.mxu0 0.0
    %1867 = vmatpush1.msra.mxu0 %v1849
    %1868 = vmatprep.subr.mxu0 0.0
    %1869 = vmatpush1.msra.mxu0 %v1850
    %1870 = vmatprep.subr.mxu0 0.0
    %1871 = vmatpush1.msra.mxu0 %v1851
    %1872 = vmatprep.subr.mxu0 0.0
    %1873 = vmatpush1.msra.mxu0 %v1852
    %1874 = vmatprep.subr.mxu0 0.0
    %1875 = vmatpush1.msra.mxu0 %v1853
    %1876 = vmatprep.subr.mxu0 0.0
    %1877 = vmatpush1.msra.mxu0 %v1854
    %1878 = vmatprep.subr.mxu0 0.0
    %1879 = vmatpush1.msra.mxu0 %v1855
    %1880 = vmatprep.subr.mxu0 0.0
    %1881 = vmatpush1.msra.mxu0 %v1856
    %1882 = vmatprep.subr.mxu0 0.0
    %1883 = vmatpush1.msra.mxu0 %v1857
    %1884 = vmatprep.subr.mxu0 0.0
    %1885 = vmatpush1.msra.mxu0 %v1858
    %1886 = vmatprep.subr.mxu0 0.0
    %1887 = vmatpush1.msra.mxu0 %v1859
    %1888 = vmatprep.subr.mxu0 0.0
    %1889 = vmatpush1.msra.mxu0 %v1860
    %1890 = vmatprep.subr.mxu0 0.0
    %1891 = vmatpush1.msra.mxu0 %v1861
    %1892 = vmatprep.subr.mxu0 0.0
    %1893 = vmatpush1.msra.mxu0 %v1862
    %1894 = vmatprep.subr.mxu0 0.0
    %1895 = vmatpush1.msra.mxu0 %v1863
    %1896 = vmatprep.subr.mxu0 0.0
    %1897 = vmatpush1.msra.mxu0 0.0
    %1898 = vmatprep.subr.mxu0 0.0
    %1899 = vmatpush1.msra.mxu0 0.0
    %1900 = vmatprep.subr.mxu0 0.0
    %1901 = vmatpush1.msra.mxu0 0.0
    %1902 = vmatprep.subr.mxu0 0.0
    %1903 = vmatpush1.msra.mxu0 0.0
    %1904 = vmatprep.subr.mxu0 0.0
    %1905 = vmatpush1.msra.mxu0 0.0
    %1906 = vmatprep.subr.mxu0 0.0
    %1907 = vmatpush1.msra.mxu0 0.0
    %1908 = vmatprep.subr.mxu0 0.0
    %1909 = vmatpush1.msra.mxu0 0.0
    %1910 = vmatprep.subr.mxu0 0.0
    %1911 = vmatpush1.msra.mxu0 0.0
    %1912 = vmatprep.subr.mxu0 0.0
    %1913 = vmatpush1.msra.mxu0 0.0
    %1914 = vmatprep.subr.mxu0 0.0
    %1915 = vmatpush1.msra.mxu0 0.0
    %1916 = vmatprep.subr.mxu0 0.0
    %1917 = vmatpush1.msra.mxu0 0.0
    %1918 = vmatprep.subr.mxu0 0.0
    %1919 = vmatpush1.msra.mxu0 0.0
    %1920 = vmatprep.subr.mxu0 0.0
    %1921 = vmatpush1.msra.mxu0 0.0
    %1922 = vmatprep.subr.mxu0 0.0
    %1923 = vmatpush1.msra.mxu0 0.0
    %1924 = vmatprep.subr.mxu0 0.0
    %1925 = vmatpush1.msra.mxu0 0.0
    %1926 = vmatprep.subr.mxu0 0.0
    %1927 = vmatpush1.msra.mxu0 0.0
    %1928 = vmatprep.mubr.f32.mxu0 0.0
    %1929 = vmatmul.mubr.f32.gmra.mrb[0].mxu0 %v1846
    %v1930 = vpop.f32.mrb[0].mxu0
    %v1931 = vadd.f32 0.0, %v1930
    %v1932 = vpop.f32.mrb[0].mxu0
    %1933 = vmatprep.mubr.f32.mxu0 0.0
    %1934 = vmatmul.mubr.f32.gmra.mrb[0].mxu0 %v1847
    %v1935 = vpop.f32.mrb[0].mxu0
    %v1936 = vadd.f32 0.0, %v1935
    %v1937 = vpop.f32.mrb[0].mxu0
    %1938 = vdwg.mxu0
    %v1939 = vld [vmem:[#allocation3 + $0x548] sm:$0xff]
    %v1940 = vld [vmem:[#allocation3 + $0x550] sm:$0xff]
    %v1941 = vld [vmem:[#allocation3 + $0x558] sm:$0xff]
    %v1942 = vld [vmem:[#allocation3 + $0x560] sm:$0xff]
    %v1943 = vld [vmem:[#allocation3 + $0x568] sm:$0x1]
    %v1944 = vlaneseq
    %v1945 = vshrl.u32 %v1944, 7
    %v1946 = vsub.s32 0, %v1945
    %v1947 = vrot.slane %v1943, %v1946
    %1948 = vmatprep.subr.mxu0 0.0
    %1949 = vmatpush1.msra.mxu0 %v1939
    %1950 = vmatprep.subr.mxu0 0.0
    %1951 = vmatpush1.msra.mxu0 %v1940
    %1952 = vmatprep.subr.mxu0 0.0
    %1953 = vmatpush1.msra.mxu0 %v1941
    %1954 = vmatprep.subr.mxu0 0.0
    %1955 = vmatpush1.msra.mxu0 %v1942
    %1956 = vmatprep.subr.mxu0 0.0
    %1957 = vmatpush1.msra.mxu0 0.0
    %1958 = vmatprep.subr.mxu0 0.0
    %1959 = vmatpush1.msra.mxu0 0.0
    %1960 = vmatprep.subr.mxu0 0.0
    %1961 = vmatpush1.msra.mxu0 0.0
    %1962 = vmatprep.subr.mxu0 0.0
    %1963 = vmatpush1.msra.mxu0 0.0
    %1964 = vmatprep.subr.mxu0 0.0
    %1965 = vmatpush1.msra.mxu0 0.0
    %1966 = vmatprep.subr.mxu0 0.0
    %1967 = vmatpush1.msra.mxu0 0.0
    %1968 = vmatprep.subr.mxu0 0.0
    %1969 = vmatpush1.msra.mxu0 0.0
    %1970 = vmatprep.subr.mxu0 0.0
    %1971 = vmatpush1.msra.mxu0 0.0
    %1972 = vmatprep.subr.mxu0 0.0
    %1973 = vmatpush1.msra.mxu0 0.0
    %1974 = vmatprep.subr.mxu0 0.0
    %1975 = vmatpush1.msra.mxu0 0.0
    %1976 = vmatprep.subr.mxu0 0.0
    %1977 = vmatpush1.msra.mxu0 0.0
    %1978 = vmatprep.subr.mxu0 0.0
    %1979 = vmatpush1.msra.mxu0 0.0
    %1980 = vmatprep.subr.mxu0 0.0
    %1981 = vmatpush1.msra.mxu0 0.0
    %1982 = vmatprep.subr.mxu0 0.0
    %1983 = vmatpush1.msra.mxu0 0.0
    %1984 = vmatprep.subr.mxu0 0.0
    %1985 = vmatpush1.msra.mxu0 0.0
    %1986 = vmatprep.subr.mxu0 0.0
    %1987 = vmatpush1.msra.mxu0 0.0
    %1988 = vmatprep.subr.mxu0 0.0
    %1989 = vmatpush1.msra.mxu0 0.0
    %1990 = vmatprep.subr.mxu0 0.0
    %1991 = vmatpush1.msra.mxu0 0.0
    %1992 = vmatprep.subr.mxu0 0.0
    %1993 = vmatpush1.msra.mxu0 0.0
    %1994 = vmatprep.subr.mxu0 0.0
    %1995 = vmatpush1.msra.mxu0 0.0
    %1996 = vmatprep.subr.mxu0 0.0
    %1997 = vmatpush1.msra.mxu0 0.0
    %1998 = vmatprep.subr.mxu0 0.0
    %1999 = vmatpush1.msra.mxu0 0.0
    %2000 = vmatprep.subr.mxu0 0.0
    %2001 = vmatpush1.msra.mxu0 0.0
    %2002 = vmatprep.subr.mxu0 0.0
    %2003 = vmatpush1.msra.mxu0 0.0
    %2004 = vmatprep.subr.mxu0 0.0
    %2005 = vmatpush1.msra.mxu0 0.0
    %2006 = vmatprep.subr.mxu0 0.0
    %2007 = vmatpush1.msra.mxu0 0.0
    %2008 = vmatprep.subr.mxu0 0.0
    %2009 = vmatpush1.msra.mxu0 0.0
    %2010 = vmatprep.subr.mxu0 0.0
    %2011 = vmatpush1.msra.mxu0 0.0
    %2012 = vmatprep.mubr.f32.mxu0 0.0
    %2013 = vmatmul.mubr.f32.gmra.mrb[0].mxu0 %v421
    %v2014 = vpop.f32.mrb[0].mxu0
    %v2015 = vadd.f32 %v1947, %v2014
    %v2016 = vpop.f32.mrb[0].mxu0
    %2017 = vdwg.mxu0
    %vm2018 = vcmp.gt.f32.partialorder %v2015, 0.0
    %v2019 = vmin.f32 %v2015, 0.0
    %v2020 = vmul.f32 %v2019, 1.442695
    %v2021 = vpow.pop %v2020
    %v2022 = vsub.f32 %v2021, 1.0
    %v2023 = vsel %vm2018, %v2015, %v2022
    %v2024 = vld [vmem:[#allocation3 + $0x570] sm:$0xff]
    %v2025 = vld [vmem:[#allocation3 + $0x578] sm:$0xff]
    %v2026 = vld [vmem:[#allocation3 + $0x580] sm:$0xff]
    %v2027 = vld [vmem:[#allocation3 + $0x588] sm:$0xff]
    %v2028 = vld [vmem:[#allocation3 + $0x590] sm:$0xff]
    %v2029 = vld [vmem:[#allocation3 + $0x598] sm:$0xff]
    %v2030 = vld [vmem:[#allocation3 + $0x5a0] sm:$0xff]
    %v2031 = vld [vmem:[#allocation3 + $0x5a8] sm:$0xff]
    %v2032 = vld [vmem:[#allocation3 + $0x5b0] sm:$0xff]
    %v2033 = vld [vmem:[#allocation3 + $0x5b8] sm:$0xff]
    %v2034 = vld [vmem:[#allocation3 + $0x5c0] sm:$0xff]
    %v2035 = vld [vmem:[#allocation3 + $0x5c8] sm:$0xff]
    %v2036 = vld [vmem:[#allocation3 + $0x5d0] sm:$0x1]
    %v2037 = vlaneseq
    %v2038 = vshrl.u32 %v2037, 7
    %v2039 = vsub.s32 0, %v2038
    %v2040 = vrot.slane %v2036, %v2039
    %vm2041 = vcmask 785408
    %v2043 = vsel %vm2041, %v2023, 0
    %2045 = vmatprep.subr.mxu0 0.0
    %2046 = vmatpush1.msra.mxu0 %v2024
    %2047 = vmatprep.subr.mxu0 0.0
    %2048 = vmatpush1.msra.mxu0 %v2025
    %2049 = vmatprep.subr.mxu0 0.0
    %2050 = vmatpush1.msra.mxu0 %v2026
    %2051 = vmatprep.subr.mxu0 0.0
    %2052 = vmatpush1.msra.mxu0 %v2027
    %2053 = vmatprep.subr.mxu0 0.0
    %2054 = vmatpush1.msra.mxu0 %v2028
    %2055 = vmatprep.subr.mxu0 0.0
    %2056 = vmatpush1.msra.mxu0 %v2029
    %2057 = vmatprep.subr.mxu0 0.0
    %2058 = vmatpush1.msra.mxu0 %v2030
    %2059 = vmatprep.subr.mxu0 0.0
    %2060 = vmatpush1.msra.mxu0 %v2031
    %2061 = vmatprep.subr.mxu0 0.0
    %2062 = vmatpush1.msra.mxu0 %v2032
    %2063 = vmatprep.subr.mxu0 0.0
    %2064 = vmatpush1.msra.mxu0 %v2033
    %2065 = vmatprep.subr.mxu0 0.0
    %2066 = vmatpush1.msra.mxu0 %v2034
    %2067 = vmatprep.subr.mxu0 0.0
    %2068 = vmatpush1.msra.mxu0 %v2035
    %2069 = vmatprep.subr.mxu0 0.0
    %2070 = vmatpush1.msra.mxu0 0.0
    %2071 = vmatprep.subr.mxu0 0.0
    %2072 = vmatpush1.msra.mxu0 0.0
    %2073 = vmatprep.subr.mxu0 0.0
    %2074 = vmatpush1.msra.mxu0 0.0
    %2075 = vmatprep.subr.mxu0 0.0
    %2076 = vmatpush1.msra.mxu0 0.0
    %2077 = vmatprep.subr.mxu0 0.0
    %2078 = vmatpush1.msra.mxu0 0.0
    %2079 = vmatprep.subr.mxu0 0.0
    %2080 = vmatpush1.msra.mxu0 0.0
    %2081 = vmatprep.subr.mxu0 0.0
    %2082 = vmatpush1.msra.mxu0 0.0
    %2083 = vmatprep.subr.mxu0 0.0
    %2084 = vmatpush1.msra.mxu0 0.0
    %2085 = vmatprep.subr.mxu0 0.0
    %2086 = vmatpush1.msra.mxu0 0.0
    %2087 = vmatprep.subr.mxu0 0.0
    %2088 = vmatpush1.msra.mxu0 0.0
    %2089 = vmatprep.subr.mxu0 0.0
    %2090 = vmatpush1.msra.mxu0 0.0
    %2091 = vmatprep.subr.mxu0 0.0
    %2092 = vmatpush1.msra.mxu0 0.0
    %2093 = vmatprep.subr.mxu0 0.0
    %2094 = vmatpush1.msra.mxu0 0.0
    %2095 = vmatprep.subr.mxu0 0.0
    %2096 = vmatpush1.msra.mxu0 0.0
    %2097 = vmatprep.subr.mxu0 0.0
    %2098 = vmatpush1.msra.mxu0 0.0
    %2099 = vmatprep.subr.mxu0 0.0
    %2100 = vmatpush1.msra.mxu0 0.0
    %2101 = vmatprep.subr.mxu0 0.0
    %2102 = vmatpush1.msra.mxu0 0.0
    %2103 = vmatprep.subr.mxu0 0.0
    %2104 = vmatpush1.msra.mxu0 0.0
    %2105 = vmatprep.subr.mxu0 0.0
    %2106 = vmatpush1.msra.mxu0 0.0
    %2107 = vmatprep.subr.mxu0 0.0
    %2108 = vmatpush1.msra.mxu0 0.0
    %2109 = vmatprep.mubr.f32.mxu0 0.0
    %2110 = vmatmul.mubr.f32.gmra.mrb[0].mxu0 %v2043
    %v2111 = vpop.f32.mrb[0].mxu0
    %v2112 = vadd.f32 %v2040, %v2111
    %v2113 = vpop.f32.mrb[0].mxu0
    %2114 = vdwg.mxu0
    %v2115 = vld [vmem:[#allocation3 + $0x5d8] sm:$0xff]
    %v2116 = vld [vmem:[#allocation3 + $0x5e0] sm:$0xff]
    %v2117 = vld [vmem:[#allocation3 + $0x5e8] sm:$0xff]
    %v2118 = vld [vmem:[#allocation3 + $0x5f0] sm:$0xff]
    %v2119 = vld [vmem:[#allocation3 + $0x5f8] sm:$0xff]
    %v2120 = vld [vmem:[#allocation3 + $0x600] sm:$0xff]
    %v2121 = vld [vmem:[#allocation3 + $0x608] sm:$0xff]
    %v2122 = vld [vmem:[#allocation3 + $0x610] sm:$0xff]
    %v2123 = vld [vmem:[#allocation3 + $0x618] sm:$0xff]
    %v2124 = vld [vmem:[#allocation3 + $0x620] sm:$0xff]
    %v2125 = vld [vmem:[#allocation3 + $0x628] sm:$0xff]
    %v2126 = vld [vmem:[#allocation3 + $0x630] sm:$0xff]
    %v2127 = vld [vmem:[#allocation3 + $0x638] sm:$0x1]
    %v2128 = vlaneseq
    %v2129 = vshrl.u32 %v2128, 7
    %v2130 = vsub.s32 0, %v2129
    %v2131 = vrot.slane %v2127, %v2130
    %v2133 = vsel %vm2041, %v2112, 0
    %2135 = vmatprep.subr.mxu0 0.0
    %2136 = vmatpush1.msra.mxu0 %v2115
    %2137 = vmatprep.subr.mxu0 0.0
    %2138 = vmatpush1.msra.mxu0 %v2116
    %2139 = vmatprep.subr.mxu0 0.0
    %2140 = vmatpush1.msra.mxu0 %v2117
    %2141 = vmatprep.subr.mxu0 0.0
    %2142 = vmatpush1.msra.mxu0 %v2118
    %2143 = vmatprep.subr.mxu0 0.0
    %2144 = vmatpush1.msra.mxu0 %v2119
    %2145 = vmatprep.subr.mxu0 0.0
    %2146 = vmatpush1.msra.mxu0 %v2120
    %2147 = vmatprep.subr.mxu0 0.0
    %2148 = vmatpush1.msra.mxu0 %v2121
    %2149 = vmatprep.subr.mxu0 0.0
    %2150 = vmatpush1.msra.mxu0 %v2122
    %2151 = vmatprep.subr.mxu0 0.0
    %2152 = vmatpush1.msra.mxu0 %v2123
    %2153 = vmatprep.subr.mxu0 0.0
    %2154 = vmatpush1.msra.mxu0 %v2124
    %2155 = vmatprep.subr.mxu0 0.0
    %2156 = vmatpush1.msra.mxu0 %v2125
    %2157 = vmatprep.subr.mxu0 0.0
    %2158 = vmatpush1.msra.mxu0 %v2126
    %2159 = vmatprep.subr.mxu0 0.0
    %2160 = vmatpush1.msra.mxu0 0.0
    %2161 = vmatprep.subr.mxu0 0.0
    %2162 = vmatpush1.msra.mxu0 0.0
    %2163 = vmatprep.subr.mxu0 0.0
    %2164 = vmatpush1.msra.mxu0 0.0
    %2165 = vmatprep.subr.mxu0 0.0
    %2166 = vmatpush1.msra.mxu0 0.0
    %2167 = vmatprep.subr.mxu0 0.0
    %2168 = vmatpush1.msra.mxu0 0.0
    %2169 = vmatprep.subr.mxu0 0.0
    %2170 = vmatpush1.msra.mxu0 0.0
    %2171 = vmatprep.subr.mxu0 0.0
    %2172 = vmatpush1.msra.mxu0 0.0
    %2173 = vmatprep.subr.mxu0 0.0
    %2174 = vmatpush1.msra.mxu0 0.0
    %2175 = vmatprep.subr.mxu0 0.0
    %2176 = vmatpush1.msra.mxu0 0.0
    %2177 = vmatprep.subr.mxu0 0.0
    %2178 = vmatpush1.msra.mxu0 0.0
    %2179 = vmatprep.subr.mxu0 0.0
    %2180 = vmatpush1.msra.mxu0 0.0
    %2181 = vmatprep.subr.mxu0 0.0
    %2182 = vmatpush1.msra.mxu0 0.0
    %2183 = vmatprep.subr.mxu0 0.0
    %2184 = vmatpush1.msra.mxu0 0.0
    %2185 = vmatprep.subr.mxu0 0.0
    %2186 = vmatpush1.msra.mxu0 0.0
    %2187 = vmatprep.subr.mxu0 0.0
    %2188 = vmatpush1.msra.mxu0 0.0
    %2189 = vmatprep.subr.mxu0 0.0
    %2190 = vmatpush1.msra.mxu0 0.0
    %2191 = vmatprep.subr.mxu0 0.0
    %2192 = vmatpush1.msra.mxu0 0.0
    %2193 = vmatprep.subr.mxu0 0.0
    %2194 = vmatpush1.msra.mxu0 0.0
    %2195 = vmatprep.subr.mxu0 0.0
    %2196 = vmatpush1.msra.mxu0 0.0
    %2197 = vmatprep.subr.mxu0 0.0
    %2198 = vmatpush1.msra.mxu0 0.0
    %2199 = vmatprep.mubr.f32.mxu0 0.0
    %2200 = vmatmul.mubr.f32.gmra.mrb[0].mxu0 %v2133
    %v2201 = vpop.f32.mrb[0].mxu0
    %v2202 = vadd.f32 %v2131, %v2201
    %v2203 = vpop.f32.mrb[0].mxu0
    %2204 = vdwg.mxu0
    %v2205 = vxor.u32 %v2202, 2147483648
    %v2206 = vmul.f32 %v2205, 1.442695
    %v2207 = vpow.pop %v2206
    %v2208 = vadd.f32 %v2207, 1.0
    %v2209 = vrcp.pop %v2208
    %v2210 = vmul.f32 1.0, %v2209
    %v2211 = vld [vmem:[#allocation3 + $0x640] sm:$0xff]
    %v2212 = vld [vmem:[#allocation3 + $0x648] sm:$0xff]
    %v2213 = vld [vmem:[#allocation3 + $0x650] sm:$0xff]
    %v2214 = vld [vmem:[#allocation3 + $0x658] sm:$0xff]
    %v2215 = vld [vmem:[#allocation3 + $0x660] sm:$0xff]
    %v2216 = vld [vmem:[#allocation3 + $0x668] sm:$0xff]
    %v2217 = vld [vmem:[#allocation3 + $0x670] sm:$0xff]
    %v2218 = vld [vmem:[#allocation3 + $0x678] sm:$0xff]
    %v2219 = vld [vmem:[#allocation3 + $0x680] sm:$0xff]
    %v2220 = vld [vmem:[#allocation3 + $0x688] sm:$0xff]
    %v2221 = vld [vmem:[#allocation3 + $0x690] sm:$0xff]
    %v2222 = vld [vmem:[#allocation3 + $0x698] sm:$0xff]
    %v2223 = vld [vmem:[#allocation3 + $0x6a0] sm:$0x1]
    %v2224 = vlaneseq
    %v2225 = vshrl.u32 %v2224, 7
    %v2226 = vsub.s32 0, %v2225
    %v2227 = vrot.slane %v2223, %v2226
    %2228 = vmatprep.subr.mxu0 0.0
    %2229 = vmatpush1.msra.mxu0 %v2211
    %2230 = vmatprep.subr.mxu0 0.0
    %2231 = vmatpush1.msra.mxu0 %v2212
    %2232 = vmatprep.subr.mxu0 0.0
    %2233 = vmatpush1.msra.mxu0 %v2213
    %2234 = vmatprep.subr.mxu0 0.0
    %2235 = vmatpush1.msra.mxu0 %v2214
    %2236 = vmatprep.subr.mxu0 0.0
    %2237 = vmatpush1.msra.mxu0 %v2215
    %2238 = vmatprep.subr.mxu0 0.0
    %2239 = vmatpush1.msra.mxu0 %v2216
    %2240 = vmatprep.subr.mxu0 0.0
    %2241 = vmatpush1.msra.mxu0 %v2217
    %2242 = vmatprep.subr.mxu0 0.0
    %2243 = vmatpush1.msra.mxu0 %v2218
    %2244 = vmatprep.subr.mxu0 0.0
    %2245 = vmatpush1.msra.mxu0 %v2219
    %2246 = vmatprep.subr.mxu0 0.0
    %2247 = vmatpush1.msra.mxu0 %v2220
    %2248 = vmatprep.subr.mxu0 0.0
    %2249 = vmatpush1.msra.mxu0 %v2221
    %2250 = vmatprep.subr.mxu0 0.0
    %2251 = vmatpush1.msra.mxu0 %v2222
    %2252 = vmatprep.subr.mxu0 0.0
    %2253 = vmatpush1.msra.mxu0 0.0
    %2254 = vmatprep.subr.mxu0 0.0
    %2255 = vmatpush1.msra.mxu0 0.0
    %2256 = vmatprep.subr.mxu0 0.0
    %2257 = vmatpush1.msra.mxu0 0.0
    %2258 = vmatprep.subr.mxu0 0.0
    %2259 = vmatpush1.msra.mxu0 0.0
    %2260 = vmatprep.subr.mxu0 0.0
    %2261 = vmatpush1.msra.mxu0 0.0
    %2262 = vmatprep.subr.mxu0 0.0
    %2263 = vmatpush1.msra.mxu0 0.0
    %2264 = vmatprep.subr.mxu0 0.0
    %2265 = vmatpush1.msra.mxu0 0.0
    %2266 = vmatprep.subr.mxu0 0.0
    %2267 = vmatpush1.msra.mxu0 0.0
    %2268 = vmatprep.subr.mxu0 0.0
    %2269 = vmatpush1.msra.mxu0 0.0
    %2270 = vmatprep.subr.mxu0 0.0
    %2271 = vmatpush1.msra.mxu0 0.0
    %2272 = vmatprep.subr.mxu0 0.0
    %2273 = vmatpush1.msra.mxu0 0.0
    %2274 = vmatprep.subr.mxu0 0.0
    %2275 = vmatpush1.msra.mxu0 0.0
    %2276 = vmatprep.subr.mxu0 0.0
    %2277 = vmatpush1.msra.mxu0 0.0
    %2278 = vmatprep.subr.mxu0 0.0
    %2279 = vmatpush1.msra.mxu0 0.0
    %2280 = vmatprep.subr.mxu0 0.0
    %2281 = vmatpush1.msra.mxu0 0.0
    %2282 = vmatprep.subr.mxu0 0.0
    %2283 = vmatpush1.msra.mxu0 0.0
    %2284 = vmatprep.subr.mxu0 0.0
    %2285 = vmatpush1.msra.mxu0 0.0
    %2286 = vmatprep.subr.mxu0 0.0
    %2287 = vmatpush1.msra.mxu0 0.0
    %2288 = vmatprep.subr.mxu0 0.0
    %2289 = vmatpush1.msra.mxu0 0.0
    %2290 = vmatprep.subr.mxu0 0.0
    %2291 = vmatpush1.msra.mxu0 0.0
    %2292 = vmatprep.mubr.f32.mxu0 0.0
    %2293 = vmatmul.mubr.f32.gmra.mrb[0].mxu0 %v2133
    %v2294 = vpop.f32.mrb[0].mxu0
    %v2295 = vadd.f32 %v2227, %v2294
    %v2296 = vpop.f32.mrb[0].mxu0
    %2297 = vdwg.mxu0
    %v2298 = vmul.f32 %v2210, %v2295
    %v2299 = vld [vmem:[#allocation3 + $0x6a8] sm:$0x1]
    %v2300 = vld [vmem:[#allocation3 + $0x6b0] sm:$0x1]
    %v2301 = vadd.f32 %v323, %v2298
    %v2302 = vsel %vm299, %v2301, 0.0
    %2303 = vadd.xlane.f32.xlu0 %v2302
    %v2304 = vpop.xlane.xlu0 %2303
    %v2305 = vmul.f32 %v2304, %v303
    %v2306 = vsub.f32 %v2301, %v2305
    %v2307 = vmul.f32 %v2306, %v2306
    %v2308 = vsel %vm299, %v2307, 0.0
    %2309 = vadd.xlane.f32.xlu0 %v2308
    %v2310 = vpop.xlane.xlu0 %2309
    %v2311 = vmul.f32 %v2310, %v303
    %v2312 = vadd.f32 %v2311, 1e-05
    %v2313 = vrsqrt.pop %v2312
    %v2314 = vmul.f32 %v2306, %v2313
    %v2315 = vlaneseq
    %v2316 = vshrl.u32 %v2315, 7
    %v2317 = vsub.s32 0, %v2316
    %v2318 = vrot.slane %v2299, %v2317
    %v2319 = vmul.f32 %v2314, %v2318
    %v2320 = vlaneseq
    %v2321 = vshrl.u32 %v2320, 7
    %v2322 = vsub.s32 0, %v2321
    %v2323 = vrot.slane %v2300, %v2322
    %v2324 = vadd.f32 %v2319, %v2323
    %2326 = vrot.lane.b32.xlu0 %v2298, 96
    %v2327 = vpop.permute.xlu0 %2326
    %v2329 = vadd.f32 %v323, %v2327
    %v2330 = vsel %vm299, %v2329, 0.0
    %2331 = vadd.xlane.f32.xlu0 %v2330
    %v2332 = vpop.xlane.xlu0 %2331
    %v2333 = vmul.f32 %v2332, %v303
    %v2334 = vsub.f32 %v2329, %v2333
    %v2335 = vmul.f32 %v2334, %v2334
    %v2336 = vsel %vm299, %v2335, 0.0
    %2337 = vadd.xlane.f32.xlu0 %v2336
    %v2338 = vpop.xlane.xlu0 %2337
    %v2339 = vmul.f32 %v2338, %v303
    %v2340 = vadd.f32 %v2339, 1e-05
    %v2341 = vrsqrt.pop %v2340
    %v2342 = vmul.f32 %v2334, %v2341
    %2344 = vrot.lane.b32.xlu0 %v2318, 96
    %v2345 = vpop.permute.xlu0 %2344
    %v2347 = vmul.f32 %v2342, %v2345
    %2349 = vrot.lane.b32.xlu0 %v2323, 96
    %v2350 = vpop.permute.xlu0 %2349
    %v2352 = vadd.f32 %v2347, %v2350
    %2353 = vrot.lane.b32.xlu0 %v2298, 64
    %v2354 = vpop.permute.xlu0 %2353
    %v2356 = vadd.f32 %v323, %v2354
    %v2357 = vsel %vm299, %v2356, 0.0
    %2358 = vadd.xlane.f32.xlu0 %v2357
    %v2359 = vpop.xlane.xlu0 %2358
    %v2360 = vmul.f32 %v2359, %v303
    %v2361 = vsub.f32 %v2356, %v2360
    %v2362 = vmul.f32 %v2361, %v2361
    %v2363 = vsel %vm299, %v2362, 0.0
    %2364 = vadd.xlane.f32.xlu0 %v2363
    %v2365 = vpop.xlane.xlu0 %2364
    %v2366 = vmul.f32 %v2365, %v303
    %v2367 = vadd.f32 %v2366, 1e-05
    %v2368 = vrsqrt.pop %v2367
    %v2369 = vmul.f32 %v2361, %v2368
    %2370 = vrot.lane.b32.xlu0 %v2318, 64
    %v2371 = vpop.permute.xlu0 %2370
    %v2373 = vmul.f32 %v2369, %v2371
    %2374 = vrot.lane.b32.xlu0 %v2323, 64
    %v2375 = vpop.permute.xlu0 %2374
    %v2377 = vadd.f32 %v2373, %v2375
    %v2378 = vld [vmem:[#allocation3 + $0x6d8] sm:$0xff]
    %v2379 = vld [vmem:[#allocation3 + $0x6e0] sm:$0xff]
    %v2380 = vld [vmem:[#allocation3 + $0x6e8] sm:$0xff]
    %v2381 = vld [vmem:[#allocation3 + $0x6f0] sm:$0xff]
    %v2382 = vld [vmem:[#allocation3 + $0x6b8] sm:$0xff]
    %v2383 = vld [vmem:[#allocation3 + $0x6c0] sm:$0xff]
    %v2384 = vld [vmem:[#allocation3 + $0x6c8] sm:$0xff]
    %v2385 = vld [vmem:[#allocation3 + $0x6d0] sm:$0xff]
    %v2386 = vld [vmem:[#allocation3 + $0x6f8] sm:$0x1]
    %v2387 = vlaneseq
    %v2388 = vshrl.u32 %v2387, 7
    %v2389 = vsub.s32 0, %v2388
    %v2390 = vrot.slane %v2386, %v2389
    %v2392 = vsel %vm53, %v1931, 0
    %v2395 = vsel %vm53, %v1936, 0
    %2397 = vmatprep.subr.mxu0 0.0
    %2398 = vmatpush1.msra.mxu0 %v2382
    %2399 = vmatprep.subr.mxu0 0.0
    %2400 = vmatpush1.msra.mxu0 %v2383
    %2401 = vmatprep.subr.mxu0 0.0
    %2402 = vmatpush1.msra.mxu0 %v2384
    %2403 = vmatprep.subr.mxu0 0.0
    %2404 = vmatpush1.msra.mxu0 %v2385
    %2405 = vmatprep.subr.mxu0 0.0
    %2406 = vmatpush1.msra.mxu0 0.0
    %2407 = vmatprep.subr.mxu0 0.0
    %2408 = vmatpush1.msra.mxu0 0.0
    %2409 = vmatprep.subr.mxu0 0.0
    %2410 = vmatpush1.msra.mxu0 0.0
    %2411 = vmatprep.subr.mxu0 0.0
    %2412 = vmatpush1.msra.mxu0 0.0
    %2413 = vmatprep.subr.mxu0 0.0
    %2414 = vmatpush1.msra.mxu0 0.0
    %2415 = vmatprep.subr.mxu0 0.0
    %2416 = vmatpush1.msra.mxu0 0.0
    %2417 = vmatprep.subr.mxu0 0.0
    %2418 = vmatpush1.msra.mxu0 0.0
    %2419 = vmatprep.subr.mxu0 0.0
    %2420 = vmatpush1.msra.mxu0 0.0
    %2421 = vmatprep.subr.mxu0 0.0
    %2422 = vmatpush1.msra.mxu0 0.0
    %2423 = vmatprep.subr.mxu0 0.0
    %2424 = vmatpush1.msra.mxu0 0.0
    %2425 = vmatprep.subr.mxu0 0.0
    %2426 = vmatpush1.msra.mxu0 0.0
    %2427 = vmatprep.subr.mxu0 0.0
    %2428 = vmatpush1.msra.mxu0 0.0
    %2429 = vmatprep.subr.mxu0 0.0
    %2430 = vmatpush1.msra.mxu0 0.0
    %2431 = vmatprep.subr.mxu0 0.0
    %2432 = vmatpush1.msra.mxu0 0.0
    %2433 = vmatprep.subr.mxu0 0.0
    %2434 = vmatpush1.msra.mxu0 0.0
    %2435 = vmatprep.subr.mxu0 0.0
    %2436 = vmatpush1.msra.mxu0 0.0
    %2437 = vmatprep.subr.mxu0 0.0
    %2438 = vmatpush1.msra.mxu0 0.0
    %2439 = vmatprep.subr.mxu0 0.0
    %2440 = vmatpush1.msra.mxu0 0.0
    %2441 = vmatprep.subr.mxu0 0.0
    %2442 = vmatpush1.msra.mxu0 0.0
    %2443 = vmatprep.subr.mxu0 0.0
    %2444 = vmatpush1.msra.mxu0 0.0
    %2445 = vmatprep.subr.mxu0 0.0
    %2446 = vmatpush1.msra.mxu0 0.0
    %2447 = vmatprep.subr.mxu0 0.0
    %2448 = vmatpush1.msra.mxu0 0.0
    %2449 = vmatprep.subr.mxu0 0.0
    %2450 = vmatpush1.msra.mxu0 0.0
    %2451 = vmatprep.subr.mxu0 0.0
    %2452 = vmatpush1.msra.mxu0 0.0
    %2453 = vmatprep.subr.mxu0 0.0
    %2454 = vmatpush1.msra.mxu0 0.0
    %2455 = vmatprep.subr.mxu0 0.0
    %2456 = vmatpush1.msra.mxu0 0.0
    %2457 = vmatprep.subr.mxu0 0.0
    %2458 = vmatpush1.msra.mxu0 0.0
    %2459 = vmatprep.subr.mxu0 0.0
    %2460 = vmatpush1.msra.mxu0 0.0
    %2461 = vmatprep.mubr.f32.mxu0 0.0
    %2462 = vmatmul.mubr.f32.gmra.mrb[0].mxu0 %v2392
    %v2463 = vpop.f32.mrb[0].mxu0
    %v2464 = vadd.f32 %v2390, %v2463
    %v2465 = vpop.f32.mrb[0].mxu0
    %2466 = vmatprep.mubr.f32.mxu0 0.0
    %2467 = vmatmul.mubr.f32.gmra.mrb[0].mxu0 %v2395
    %v2468 = vpop.f32.mrb[0].mxu0
    %v2469 = vadd.f32 %v2390, %v2468
    %v2470 = vpop.f32.mrb[0].mxu0
    %2471 = vdwg.mxu0
    %v2473 = vsel %vm53, %v2324, 0
    %2475 = vmatprep.subr.mxu0 0.0
    %2476 = vmatpush1.msra.mxu0 %v2378
    %2477 = vmatprep.subr.mxu0 0.0
    %2478 = vmatpush1.msra.mxu0 %v2379
    %2479 = vmatprep.subr.mxu0 0.0
    %2480 = vmatpush1.msra.mxu0 %v2380
    %2481 = vmatprep.subr.mxu0 0.0
    %2482 = vmatpush1.msra.mxu0 %v2381
    %2483 = vmatprep.subr.mxu0 0.0
    %2484 = vmatpush1.msra.mxu0 0.0
    %2485 = vmatprep.subr.mxu0 0.0
    %2486 = vmatpush1.msra.mxu0 0.0
    %2487 = vmatprep.subr.mxu0 0.0
    %2488 = vmatpush1.msra.mxu0 0.0
    %2489 = vmatprep.subr.mxu0 0.0
    %2490 = vmatpush1.msra.mxu0 0.0
    %2491 = vmatprep.subr.mxu0 0.0
    %2492 = vmatpush1.msra.mxu0 0.0
    %2493 = vmatprep.subr.mxu0 0.0
    %2494 = vmatpush1.msra.mxu0 0.0
    %2495 = vmatprep.subr.mxu0 0.0
    %2496 = vmatpush1.msra.mxu0 0.0
    %2497 = vmatprep.subr.mxu0 0.0
    %2498 = vmatpush1.msra.mxu0 0.0
    %2499 = vmatprep.subr.mxu0 0.0
    %2500 = vmatpush1.msra.mxu0 0.0
    %2501 = vmatprep.subr.mxu0 0.0
    %2502 = vmatpush1.msra.mxu0 0.0
    %2503 = vmatprep.subr.mxu0 0.0
    %2504 = vmatpush1.msra.mxu0 0.0
    %2505 = vmatprep.subr.mxu0 0.0
    %2506 = vmatpush1.msra.mxu0 0.0
    %2507 = vmatprep.subr.mxu0 0.0
    %2508 = vmatpush1.msra.mxu0 0.0
    %2509 = vmatprep.subr.mxu0 0.0
    %2510 = vmatpush1.msra.mxu0 0.0
    %2511 = vmatprep.subr.mxu0 0.0
    %2512 = vmatpush1.msra.mxu0 0.0
    %2513 = vmatprep.subr.mxu0 0.0
    %2514 = vmatpush1.msra.mxu0 0.0
    %2515 = vmatprep.subr.mxu0 0.0
    %2516 = vmatpush1.msra.mxu0 0.0
    %2517 = vmatprep.subr.mxu0 0.0
    %2518 = vmatpush1.msra.mxu0 0.0
    %2519 = vmatprep.subr.mxu0 0.0
    %2520 = vmatpush1.msra.mxu0 0.0
    %2521 = vmatprep.subr.mxu0 0.0
    %2522 = vmatpush1.msra.mxu0 0.0
    %2523 = vmatprep.subr.mxu0 0.0
    %2524 = vmatpush1.msra.mxu0 0.0
    %2525 = vmatprep.subr.mxu0 0.0
    %2526 = vmatpush1.msra.mxu0 0.0
    %2527 = vmatprep.subr.mxu0 0.0
    %2528 = vmatpush1.msra.mxu0 0.0
    %2529 = vmatprep.subr.mxu0 0.0
    %2530 = vmatpush1.msra.mxu0 0.0
    %2531 = vmatprep.subr.mxu0 0.0
    %2532 = vmatpush1.msra.mxu0 0.0
    %2533 = vmatprep.subr.mxu0 0.0
    %2534 = vmatpush1.msra.mxu0 0.0
    %2535 = vmatprep.subr.mxu0 0.0
    %2536 = vmatpush1.msra.mxu0 0.0
    %2537 = vmatprep.subr.mxu0 0.0
    %2538 = vmatpush1.msra.mxu0 0.0
    %2539 = vmatprep.mubr.f32.mxu0 0.0
    %2540 = vmatmul.mubr.f32.gmra.mrb[0].mxu0 %v2473
    %v2541 = vpop.f32.mrb[0].mxu0
    %v2542 = vadd.f32 0.0, %v2541
    %v2543 = vpop.f32.mrb[0].mxu0
    %2544 = vdwg.mxu0
    %v2546 = vrot.slane %v2542, 1
    %v2549 = vadd.f32 %v2464, %v2542
    %v2550 = vadd.f32 %v2469, %v2546
    %v2551 = vxor.u32 %v2549, 2147483648
    %v2552 = vxor.u32 %v2550, 2147483648
    %v2553 = vmul.f32 %v2551, 1.442695
    %v2554 = vpow.pop %v2553
    %v2555 = vmul.f32 %v2552, 1.442695
    %v2556 = vpow.pop %v2555
    %v2557 = vadd.f32 %v2554, 1.0
    %v2558 = vadd.f32 %v2556, 1.0
    %v2559 = vrcp.pop %v2557
    %v2560 = vmul.f32 1.0, %v2559
    %v2561 = vrcp.pop %v2558
    %v2562 = vmul.f32 1.0, %v2561
    %v2563 = vtanh.pop %v2549
    %v2564 = vtanh.pop %v2550
    %v2566 = vrot.slane %v2352, 1
    %2567 = vrot.lane.b32.xlu0 %v2352, 32
    %v2568 = vpop.permute.xlu0 %2567
    %2569 = vrot.lane.b32.xlu0 %v2566, 32
    %v2570 = vpop.permute.xlu0 %2569
    %v2573 = vmul.f32 %v2560, %v2568
    %v2574 = vmul.f32 %v2562, %v2570
    %2577 = vrot.lane.b32.xlu0 %v2563, 32
    %v2578 = vpop.permute.xlu0 %2577
    %2579 = vrot.lane.b32.xlu0 %v2564, 32
    %v2580 = vpop.permute.xlu0 %2579
    %v2583 = vmul.f32 %v2560, %v2578
    %v2584 = vmul.f32 %v2562, %v2580
    %2587 = vrot.lane.b32.xlu0 %v2583, 32
    %v2588 = vpop.permute.xlu0 %2587
    %2589 = vrot.lane.b32.xlu0 %v2584, 32
    %v2590 = vpop.permute.xlu0 %2589
    %v2593 = vadd.f32 %v2573, %v2588
    %v2594 = vadd.f32 %v2574, %v2590
    %v2595 = vtanh.pop %v2593
    %v2596 = vtanh.pop %v2594
    %2599 = vrot.lane.b32.xlu0 %v2595, 32
    %v2600 = vpop.permute.xlu0 %2599
    %2601 = vrot.lane.b32.xlu0 %v2596, 32
    %v2602 = vpop.permute.xlu0 %2601
    %v2605 = vmul.f32 %v2560, %v2600
    %v2606 = vmul.f32 %v2562, %v2602
    %2609 = vrot.lane.b32.xlu0 %v2605, 64
    %v2610 = vpop.permute.xlu0 %2609
    %2611 = vrot.lane.b32.xlu0 %v2606, 64
    %v2612 = vpop.permute.xlu0 %2611
    %vm2615 = vcmask 253952
    %2616 = vst.msk [vmem:[#allocation2] sm:$0x1] %vm2615, %v2610
    %2617 = vst.msk [vmem:[#allocation2 + $0x8] sm:$0x1] %vm2615, %v2612
    %v2618 = vrot.slane %v2606, 7
    %vm2619 = vcmask 1041409
    %v2620 = vsel %vm2619, %v2618, %v2605
    %2621 = vrot.lane.b32.xlu0 %v2620, 64
    %v2622 = vpop.permute.xlu0 %2621
    %v2623 = vsel %vm53, %v2622, 0
    %2625 = vmatprep.subr.mxu0 0.0
    %2626 = vmatpush1.msra.mxu0 %v2378
    %2627 = vmatprep.subr.mxu0 0.0
    %2628 = vmatpush1.msra.mxu0 %v2379
    %2629 = vmatprep.subr.mxu0 0.0
    %2630 = vmatpush1.msra.mxu0 %v2380
    %2631 = vmatprep.subr.mxu0 0.0
    %2632 = vmatpush1.msra.mxu0 %v2381
    %2633 = vmatprep.subr.mxu0 0.0
    %2634 = vmatpush1.msra.mxu0 0.0
    %2635 = vmatprep.subr.mxu0 0.0
    %2636 = vmatpush1.msra.mxu0 0.0
    %2637 = vmatprep.subr.mxu0 0.0
    %2638 = vmatpush1.msra.mxu0 0.0
    %2639 = vmatprep.subr.mxu0 0.0
    %2640 = vmatpush1.msra.mxu0 0.0
    %2641 = vmatprep.subr.mxu0 0.0
    %2642 = vmatpush1.msra.mxu0 0.0
    %2643 = vmatprep.subr.mxu0 0.0
    %2644 = vmatpush1.msra.mxu0 0.0
    %2645 = vmatprep.subr.mxu0 0.0
    %2646 = vmatpush1.msra.mxu0 0.0
    %2647 = vmatprep.subr.mxu0 0.0
    %2648 = vmatpush1.msra.mxu0 0.0
    %2649 = vmatprep.subr.mxu0 0.0
    %2650 = vmatpush1.msra.mxu0 0.0
    %2651 = vmatprep.subr.mxu0 0.0
    %2652 = vmatpush1.msra.mxu0 0.0
    %2653 = vmatprep.subr.mxu0 0.0
    %2654 = vmatpush1.msra.mxu0 0.0
    %2655 = vmatprep.subr.mxu0 0.0
    %2656 = vmatpush1.msra.mxu0 0.0
    %2657 = vmatprep.subr.mxu0 0.0
    %2658 = vmatpush1.msra.mxu0 0.0
    %2659 = vmatprep.subr.mxu0 0.0
    %2660 = vmatpush1.msra.mxu0 0.0
    %2661 = vmatprep.subr.mxu0 0.0
    %2662 = vmatpush1.msra.mxu0 0.0
    %2663 = vmatprep.subr.mxu0 0.0
    %2664 = vmatpush1.msra.mxu0 0.0
    %2665 = vmatprep.subr.mxu0 0.0
    %2666 = vmatpush1.msra.mxu0 0.0
    %2667 = vmatprep.subr.mxu0 0.0
    %2668 = vmatpush1.msra.mxu0 0.0
    %2669 = vmatprep.subr.mxu0 0.0
    %2670 = vmatpush1.msra.mxu0 0.0
    %2671 = vmatprep.subr.mxu0 0.0
    %2672 = vmatpush1.msra.mxu0 0.0
    %2673 = vmatprep.subr.mxu0 0.0
    %2674 = vmatpush1.msra.mxu0 0.0
    %2675 = vmatprep.subr.mxu0 0.0
    %2676 = vmatpush1.msra.mxu0 0.0
    %2677 = vmatprep.subr.mxu0 0.0
    %2678 = vmatpush1.msra.mxu0 0.0
    %2679 = vmatprep.subr.mxu0 0.0
    %2680 = vmatpush1.msra.mxu0 0.0
    %2681 = vmatprep.subr.mxu0 0.0
    %2682 = vmatpush1.msra.mxu0 0.0
    %2683 = vmatprep.subr.mxu0 0.0
    %2684 = vmatpush1.msra.mxu0 0.0
    %2685 = vmatprep.subr.mxu0 0.0
    %2686 = vmatpush1.msra.mxu0 0.0
    %2687 = vmatprep.subr.mxu0 0.0
    %2688 = vmatpush1.msra.mxu0 0.0
    %2689 = vmatprep.mubr.f32.mxu0 0.0
    %2690 = vmatmul.mubr.f32.gmra.mrb[0].mxu0 %v2623
    %v2691 = vpop.f32.mrb[0].mxu0
    %v2692 = vadd.f32 0.0, %v2691
    %v2693 = vpop.f32.mrb[0].mxu0
    %2694 = vdwg.mxu0
    %v2696 = vrot.slane %v2692, 7
    %v2699 = vadd.f32 %v2464, %v2696
    %v2700 = vadd.f32 %v2469, %v2692
    %v2701 = vxor.u32 %v2699, 2147483648
    %v2702 = vxor.u32 %v2700, 2147483648
    %v2703 = vmul.f32 %v2701, 1.442695
    %v2704 = vpow.pop %v2703
    %v2705 = vmul.f32 %v2702, 1.442695
    %v2706 = vpow.pop %v2705
    %v2707 = vadd.f32 %v2704, 1.0
    %v2708 = vadd.f32 %v2706, 1.0
    %v2709 = vrcp.pop %v2707
    %v2710 = vmul.f32 1.0, %v2709
    %v2711 = vrcp.pop %v2708
    %v2712 = vmul.f32 1.0, %v2711
    %v2713 = vtanh.pop %v2699
    %v2714 = vtanh.pop %v2700
    %v2717 = vrot.slane %v2593, 7
    %v2718 = vrot.slane %v2594, 7
    %v2721 = vmul.f32 %v2710, %v2717
    %v2722 = vmul.f32 %v2712, %v2718
    %2725 = vrot.lane.b32.xlu0 %v2713, 32
    %v2726 = vpop.permute.xlu0 %2725
    %2727 = vrot.lane.b32.xlu0 %v2714, 32
    %v2728 = vpop.permute.xlu0 %2727
    %v2731 = vmul.f32 %v2710, %v2726
    %v2732 = vmul.f32 %v2712, %v2728
    %2735 = vrot.lane.b32.xlu0 %v2731, 32
    %v2736 = vpop.permute.xlu0 %2735
    %2737 = vrot.lane.b32.xlu0 %v2732, 32
    %v2738 = vpop.permute.xlu0 %2737
    %v2741 = vadd.f32 %v2721, %v2736
    %v2742 = vadd.f32 %v2722, %v2738
    %v2743 = vtanh.pop %v2741
    %v2744 = vtanh.pop %v2742
    %2747 = vrot.lane.b32.xlu0 %v2743, 32
    %v2748 = vpop.permute.xlu0 %2747
    %2749 = vrot.lane.b32.xlu0 %v2744, 32
    %v2750 = vpop.permute.xlu0 %2749
    %v2753 = vmul.f32 %v2710, %v2748
    %v2754 = vmul.f32 %v2712, %v2750
    %2757 = vrot.lane.b32.xlu0 %v2753, 64
    %v2758 = vpop.permute.xlu0 %2757
    %2759 = vrot.lane.b32.xlu0 %v2754, 64
    %v2760 = vpop.permute.xlu0 %2759
    %vm2763 = vcmask 254977
    %2764 = vst.msk [vmem:[#allocation2] sm:$0x2] %vm2763, %v2758
    %2765 = vst.msk [vmem:[#allocation2 + $0x8] sm:$0x2] %vm2763, %v2760
    %v2766 = vrot.slane %v2753, 1
    %v2767 = vsel %vm2619, %v2754, %v2766
    %2768 = vrot.lane.b32.xlu0 %v2767, 64
    %v2769 = vpop.permute.xlu0 %2768
    %v2770 = vsel %vm53, %v2769, 0
    %2772 = vmatprep.subr.mxu0 0.0
    %2773 = vmatpush1.msra.mxu0 %v2378
    %2774 = vmatprep.subr.mxu0 0.0
    %2775 = vmatpush1.msra.mxu0 %v2379
    %2776 = vmatprep.subr.mxu0 0.0
    %2777 = vmatpush1.msra.mxu0 %v2380
    %2778 = vmatprep.subr.mxu0 0.0
    %2779 = vmatpush1.msra.mxu0 %v2381
    %2780 = vmatprep.subr.mxu0 0.0
    %2781 = vmatpush1.msra.mxu0 0.0
    %2782 = vmatprep.subr.mxu0 0.0
    %2783 = vmatpush1.msra.mxu0 0.0
    %2784 = vmatprep.subr.mxu0 0.0
    %2785 = vmatpush1.msra.mxu0 0.0
    %2786 = vmatprep.subr.mxu0 0.0
    %2787 = vmatpush1.msra.mxu0 0.0
    %2788 = vmatprep.subr.mxu0 0.0
    %2789 = vmatpush1.msra.mxu0 0.0
    %2790 = vmatprep.subr.mxu0 0.0
    %2791 = vmatpush1.msra.mxu0 0.0
    %2792 = vmatprep.subr.mxu0 0.0
    %2793 = vmatpush1.msra.mxu0 0.0
    %2794 = vmatprep.subr.mxu0 0.0
    %2795 = vmatpush1.msra.mxu0 0.0
    %2796 = vmatprep.subr.mxu0 0.0
    %2797 = vmatpush1.msra.mxu0 0.0
    %2798 = vmatprep.subr.mxu0 0.0
    %2799 = vmatpush1.msra.mxu0 0.0
    %2800 = vmatprep.subr.mxu0 0.0
    %2801 = vmatpush1.msra.mxu0 0.0
    %2802 = vmatprep.subr.mxu0 0.0
    %2803 = vmatpush1.msra.mxu0 0.0
    %2804 = vmatprep.subr.mxu0 0.0
    %2805 = vmatpush1.msra.mxu0 0.0
    %2806 = vmatprep.subr.mxu0 0.0
    %2807 = vmatpush1.msra.mxu0 0.0
    %2808 = vmatprep.subr.mxu0 0.0
    %2809 = vmatpush1.msra.mxu0 0.0
    %2810 = vmatprep.subr.mxu0 0.0
    %2811 = vmatpush1.msra.mxu0 0.0
    %2812 = vmatprep.subr.mxu0 0.0
    %2813 = vmatpush1.msra.mxu0 0.0
    %2814 = vmatprep.subr.mxu0 0.0
    %2815 = vmatpush1.msra.mxu0 0.0
    %2816 = vmatprep.subr.mxu0 0.0
    %2817 = vmatpush1.msra.mxu0 0.0
    %2818 = vmatprep.subr.mxu0 0.0
    %2819 = vmatpush1.msra.mxu0 0.0
    %2820 = vmatprep.subr.mxu0 0.0
    %2821 = vmatpush1.msra.mxu0 0.0
    %2822 = vmatprep.subr.mxu0 0.0
    %2823 = vmatpush1.msra.mxu0 0.0
    %2824 = vmatprep.subr.mxu0 0.0
    %2825 = vmatpush1.msra.mxu0 0.0
    %2826 = vmatprep.subr.mxu0 0.0
    %2827 = vmatpush1.msra.mxu0 0.0
    %2828 = vmatprep.subr.mxu0 0.0
    %2829 = vmatpush1.msra.mxu0 0.0
    %2830 = vmatprep.subr.mxu0 0.0
    %2831 = vmatpush1.msra.mxu0 0.0
    %2832 = vmatprep.subr.mxu0 0.0
    %2833 = vmatpush1.msra.mxu0 0.0
    %2834 = vmatprep.subr.mxu0 0.0
    %2835 = vmatpush1.msra.mxu0 0.0
    %2836 = vmatprep.mubr.f32.mxu0 0.0
    %2837 = vmatmul.mubr.f32.gmra.mrb[0].mxu0 %v2770
    %v2838 = vpop.f32.mrb[0].mxu0
    %v2839 = vadd.f32 0.0, %v2838
    %v2840 = vpop.f32.mrb[0].mxu0
    %2841 = vdwg.mxu0
    %v2843 = vrot.slane %v2839, 6
    %v2844 = vrot.slane %v2839, 7
    %v2847 = vadd.f32 %v2464, %v2843
    %v2848 = vadd.f32 %v2469, %v2844
    %v2849 = vxor.u32 %v2847, 2147483648
    %v2850 = vxor.u32 %v2848, 2147483648
    %v2851 = vmul.f32 %v2849, 1.442695
    %v2852 = vpow.pop %v2851
    %v2853 = vmul.f32 %v2850, 1.442695
    %v2854 = vpow.pop %v2853
    %v2855 = vadd.f32 %v2852, 1.0
    %v2856 = vadd.f32 %v2854, 1.0
    %v2857 = vrcp.pop %v2855
    %v2858 = vmul.f32 1.0, %v2857
    %v2859 = vrcp.pop %v2856
    %v2860 = vmul.f32 1.0, %v2859
    %v2861 = vtanh.pop %v2847
    %v2862 = vtanh.pop %v2848
    %v2865 = vrot.slane %v2741, 7
    %v2866 = vrot.slane %v2742, 7
    %v2869 = vmul.f32 %v2858, %v2865
    %v2870 = vmul.f32 %v2860, %v2866
    %2873 = vrot.lane.b32.xlu0 %v2861, 32
    %v2874 = vpop.permute.xlu0 %2873
    %2875 = vrot.lane.b32.xlu0 %v2862, 32
    %v2876 = vpop.permute.xlu0 %2875
    %v2879 = vmul.f32 %v2858, %v2874
    %v2880 = vmul.f32 %v2860, %v2876
    %2883 = vrot.lane.b32.xlu0 %v2879, 32
    %v2884 = vpop.permute.xlu0 %2883
    %2885 = vrot.lane.b32.xlu0 %v2880, 32
    %v2886 = vpop.permute.xlu0 %2885
    %v2889 = vadd.f32 %v2869, %v2884
    %v2890 = vadd.f32 %v2870, %v2886
    %v2891 = vtanh.pop %v2889
    %v2892 = vtanh.pop %v2890
    %2895 = vrot.lane.b32.xlu0 %v2891, 32
    %v2896 = vpop.permute.xlu0 %2895
    %2897 = vrot.lane.b32.xlu0 %v2892, 32
    %v2898 = vpop.permute.xlu0 %2897
    %v2901 = vmul.f32 %v2858, %v2896
    %v2902 = vmul.f32 %v2860, %v2898
    %2905 = vrot.lane.b32.xlu0 %v2901, 64
    %v2906 = vpop.permute.xlu0 %2905
    %2907 = vrot.lane.b32.xlu0 %v2902, 64
    %v2908 = vpop.permute.xlu0 %2907
    %vm2911 = vcmask 256002
    %2912 = vst.msk [vmem:[#allocation2] sm:$0x4] %vm2911, %v2906
    %2913 = vst.msk [vmem:[#allocation2 + $0x8] sm:$0x4] %vm2911, %v2908
    %v2914 = vrot.slane %v2901, 2
    %v2915 = vrot.slane %v2902, 1
    %v2916 = vsel %vm2619, %v2915, %v2914
    %2917 = vrot.lane.b32.xlu0 %v2916, 64
    %v2918 = vpop.permute.xlu0 %2917
    %v2919 = vsel %vm53, %v2918, 0
    %2921 = vmatprep.subr.mxu0 0.0
    %2922 = vmatpush1.msra.mxu0 %v2378
    %2923 = vmatprep.subr.mxu0 0.0
    %2924 = vmatpush1.msra.mxu0 %v2379
    %2925 = vmatprep.subr.mxu0 0.0
    %2926 = vmatpush1.msra.mxu0 %v2380
    %2927 = vmatprep.subr.mxu0 0.0
    %2928 = vmatpush1.msra.mxu0 %v2381
    %2929 = vmatprep.subr.mxu0 0.0
    %2930 = vmatpush1.msra.mxu0 0.0
    %2931 = vmatprep.subr.mxu0 0.0
    %2932 = vmatpush1.msra.mxu0 0.0
    %2933 = vmatprep.subr.mxu0 0.0
    %2934 = vmatpush1.msra.mxu0 0.0
    %2935 = vmatprep.subr.mxu0 0.0
    %2936 = vmatpush1.msra.mxu0 0.0
    %2937 = vmatprep.subr.mxu0 0.0
    %2938 = vmatpush1.msra.mxu0 0.0
    %2939 = vmatprep.subr.mxu0 0.0
    %2940 = vmatpush1.msra.mxu0 0.0
    %2941 = vmatprep.subr.mxu0 0.0
    %2942 = vmatpush1.msra.mxu0 0.0
    %2943 = vmatprep.subr.mxu0 0.0
    %2944 = vmatpush1.msra.mxu0 0.0
    %2945 = vmatprep.subr.mxu0 0.0
    %2946 = vmatpush1.msra.mxu0 0.0
    %2947 = vmatprep.subr.mxu0 0.0
    %2948 = vmatpush1.msra.mxu0 0.0
    %2949 = vmatprep.subr.mxu0 0.0
    %2950 = vmatpush1.msra.mxu0 0.0
    %2951 = vmatprep.subr.mxu0 0.0
    %2952 = vmatpush1.msra.mxu0 0.0
    %2953 = vmatprep.subr.mxu0 0.0
    %2954 = vmatpush1.msra.mxu0 0.0
    %2955 = vmatprep.subr.mxu0 0.0
    %2956 = vmatpush1.msra.mxu0 0.0
    %2957 = vmatprep.subr.mxu0 0.0
    %2958 = vmatpush1.msra.mxu0 0.0
    %2959 = vmatprep.subr.mxu0 0.0
    %2960 = vmatpush1.msra.mxu0 0.0
    %2961 = vmatprep.subr.mxu0 0.0
    %2962 = vmatpush1.msra.mxu0 0.0
    %2963 = vmatprep.subr.mxu0 0.0
    %2964 = vmatpush1.msra.mxu0 0.0
    %2965 = vmatprep.subr.mxu0 0.0
    %2966 = vmatpush1.msra.mxu0 0.0
    %2967 = vmatprep.subr.mxu0 0.0
    %2968 = vmatpush1.msra.mxu0 0.0
    %2969 = vmatprep.subr.mxu0 0.0
    %2970 = vmatpush1.msra.mxu0 0.0
    %2971 = vmatprep.subr.mxu0 0.0
    %2972 = vmatpush1.msra.mxu0 0.0
    %2973 = vmatprep.subr.mxu0 0.0
    %2974 = vmatpush1.msra.mxu0 0.0
    %2975 = vmatprep.subr.mxu0 0.0
    %2976 = vmatpush1.msra.mxu0 0.0
    %2977 = vmatprep.subr.mxu0 0.0
    %2978 = vmatpush1.msra.mxu0 0.0
    %2979 = vmatprep.subr.mxu0 0.0
    %2980 = vmatpush1.msra.mxu0 0.0
    %2981 = vmatprep.subr.mxu0 0.0
    %2982 = vmatpush1.msra.mxu0 0.0
    %2983 = vmatprep.subr.mxu0 0.0
    %2984 = vmatpush1.msra.mxu0 0.0
    %2985 = vmatprep.mubr.f32.mxu0 0.0
    %2986 = vmatmul.mubr.f32.gmra.mrb[0].mxu0 %v2919
    %v2987 = vpop.f32.mrb[0].mxu0
    %v2988 = vadd.f32 0.0, %v2987
    %v2989 = vpop.f32.mrb[0].mxu0
    %2990 = vdwg.mxu0
    %v2992 = vrot.slane %v2988, 5
    %v2993 = vrot.slane %v2988, 6
    %v2996 = vadd.f32 %v2464, %v2992
    %v2997 = vadd.f32 %v2469, %v2993
    %v2998 = vxor.u32 %v2996, 2147483648
    %v2999 = vxor.u32 %v2997, 2147483648
    %v3000 = vmul.f32 %v2998, 1.442695
    %v3001 = vpow.pop %v3000
    %v3002 = vmul.f32 %v2999, 1.442695
    %v3003 = vpow.pop %v3002
    %v3004 = vadd.f32 %v3001, 1.0
    %v3005 = vadd.f32 %v3003, 1.0
    %v3006 = vrcp.pop %v3004
    %v3007 = vmul.f32 1.0, %v3006
    %v3008 = vrcp.pop %v3005
    %v3009 = vmul.f32 1.0, %v3008
    %v3010 = vtanh.pop %v2996
    %v3011 = vtanh.pop %v2997
    %v3014 = vrot.slane %v2889, 7
    %v3015 = vrot.slane %v2890, 7
    %v3018 = vmul.f32 %v3007, %v3014
    %v3019 = vmul.f32 %v3009, %v3015
    %3022 = vrot.lane.b32.xlu0 %v3010, 32
    %v3023 = vpop.permute.xlu0 %3022
    %3024 = vrot.lane.b32.xlu0 %v3011, 32
    %v3025 = vpop.permute.xlu0 %3024
    %v3028 = vmul.f32 %v3007, %v3023
    %v3029 = vmul.f32 %v3009, %v3025
    %3032 = vrot.lane.b32.xlu0 %v3028, 32
    %v3033 = vpop.permute.xlu0 %3032
    %3034 = vrot.lane.b32.xlu0 %v3029, 32
    %v3035 = vpop.permute.xlu0 %3034
    %v3038 = vadd.f32 %v3018, %v3033
    %v3039 = vadd.f32 %v3019, %v3035
    %v3040 = vtanh.pop %v3038
    %v3041 = vtanh.pop %v3039
    %3044 = vrot.lane.b32.xlu0 %v3040, 32
    %v3045 = vpop.permute.xlu0 %3044
    %3046 = vrot.lane.b32.xlu0 %v3041, 32
    %v3047 = vpop.permute.xlu0 %3046
    %v3050 = vmul.f32 %v3007, %v3045
    %v3051 = vmul.f32 %v3009, %v3047
    %3054 = vrot.lane.b32.xlu0 %v3050, 64
    %v3055 = vpop.permute.xlu0 %3054
    %3056 = vrot.lane.b32.xlu0 %v3051, 64
    %v3057 = vpop.permute.xlu0 %3056
    %vm3060 = vcmask 257027
    %3061 = vst.msk [vmem:[#allocation2] sm:$0x8] %vm3060, %v3055
    %3062 = vst.msk [vmem:[#allocation2 + $0x8] sm:$0x8] %vm3060, %v3057
    %v3063 = vrot.slane %v3050, 3
    %v3064 = vrot.slane %v3051, 2
    %v3065 = vsel %vm2619, %v3064, %v3063
    %3066 = vrot.lane.b32.xlu0 %v3065, 64
    %v3067 = vpop.permute.xlu0 %3066
    %v3068 = vsel %vm53, %v3067, 0
    %3070 = vmatprep.subr.mxu0 0.0
    %3071 = vmatpush1.msra.mxu0 %v2378
    %3072 = vmatprep.subr.mxu0 0.0
    %3073 = vmatpush1.msra.mxu0 %v2379
    %3074 = vmatprep.subr.mxu0 0.0
    %3075 = vmatpush1.msra.mxu0 %v2380
    %3076 = vmatprep.subr.mxu0 0.0
    %3077 = vmatpush1.msra.mxu0 %v2381
    %3078 = vmatprep.subr.mxu0 0.0
    %3079 = vmatpush1.msra.mxu0 0.0
    %3080 = vmatprep.subr.mxu0 0.0
    %3081 = vmatpush1.msra.mxu0 0.0
    %3082 = vmatprep.subr.mxu0 0.0
    %3083 = vmatpush1.msra.mxu0 0.0
    %3084 = vmatprep.subr.mxu0 0.0
    %3085 = vmatpush1.msra.mxu0 0.0
    %3086 = vmatprep.subr.mxu0 0.0
    %3087 = vmatpush1.msra.mxu0 0.0
    %3088 = vmatprep.subr.mxu0 0.0
    %3089 = vmatpush1.msra.mxu0 0.0
    %3090 = vmatprep.subr.mxu0 0.0
    %3091 = vmatpush1.msra.mxu0 0.0
    %3092 = vmatprep.subr.mxu0 0.0
    %3093 = vmatpush1.msra.mxu0 0.0
    %3094 = vmatprep.subr.mxu0 0.0
    %3095 = vmatpush1.msra.mxu0 0.0
    %3096 = vmatprep.subr.mxu0 0.0
    %3097 = vmatpush1.msra.mxu0 0.0
    %3098 = vmatprep.subr.mxu0 0.0
    %3099 = vmatpush1.msra.mxu0 0.0
    %3100 = vmatprep.subr.mxu0 0.0
    %3101 = vmatpush1.msra.mxu0 0.0
    %3102 = vmatprep.subr.mxu0 0.0
    %3103 = vmatpush1.msra.mxu0 0.0
    %3104 = vmatprep.subr.mxu0 0.0
    %3105 = vmatpush1.msra.mxu0 0.0
    %3106 = vmatprep.subr.mxu0 0.0
    %3107 = vmatpush1.msra.mxu0 0.0
    %3108 = vmatprep.subr.mxu0 0.0
    %3109 = vmatpush1.msra.mxu0 0.0
    %3110 = vmatprep.subr.mxu0 0.0
    %3111 = vmatpush1.msra.mxu0 0.0
    %3112 = vmatprep.subr.mxu0 0.0
    %3113 = vmatpush1.msra.mxu0 0.0
    %3114 = vmatprep.subr.mxu0 0.0
    %3115 = vmatpush1.msra.mxu0 0.0
    %3116 = vmatprep.subr.mxu0 0.0
    %3117 = vmatpush1.msra.mxu0 0.0
    %3118 = vmatprep.subr.mxu0 0.0
    %3119 = vmatpush1.msra.mxu0 0.0
    %3120 = vmatprep.subr.mxu0 0.0
    %3121 = vmatpush1.msra.mxu0 0.0
    %3122 = vmatprep.subr.mxu0 0.0
    %3123 = vmatpush1.msra.mxu0 0.0
    %3124 = vmatprep.subr.mxu0 0.0
    %3125 = vmatpush1.msra.mxu0 0.0
    %3126 = vmatprep.subr.mxu0 0.0
    %3127 = vmatpush1.msra.mxu0 0.0
    %3128 = vmatprep.subr.mxu0 0.0
    %3129 = vmatpush1.msra.mxu0 0.0
    %3130 = vmatprep.subr.mxu0 0.0
    %3131 = vmatpush1.msra.mxu0 0.0
    %3132 = vmatprep.subr.mxu0 0.0
    %3133 = vmatpush1.msra.mxu0 0.0
    %3134 = vmatprep.mubr.f32.mxu0 0.0
    %3135 = vmatmul.mubr.f32.gmra.mrb[0].mxu0 %v3068
    %v3136 = vpop.f32.mrb[0].mxu0
    %v3137 = vadd.f32 0.0, %v3136
    %v3138 = vpop.f32.mrb[0].mxu0
    %3139 = vdwg.mxu0
    %v3141 = vrot.slane %v3137, 4
    %v3142 = vrot.slane %v3137, 5
    %v3145 = vadd.f32 %v2464, %v3141
    %v3146 = vadd.f32 %v2469, %v3142
    %v3147 = vxor.u32 %v3145, 2147483648
    %v3148 = vxor.u32 %v3146, 2147483648
    %v3149 = vmul.f32 %v3147, 1.442695
    %v3150 = vpow.pop %v3149
    %v3151 = vmul.f32 %v3148, 1.442695
    %v3152 = vpow.pop %v3151
    %v3153 = vadd.f32 %v3150, 1.0
    %v3154 = vadd.f32 %v3152, 1.0
    %v3155 = vrcp.pop %v3153
    %v3156 = vmul.f32 1.0, %v3155
    %v3157 = vrcp.pop %v3154
    %v3158 = vmul.f32 1.0, %v3157
    %v3159 = vtanh.pop %v3145
    %v3160 = vtanh.pop %v3146
    %v3163 = vrot.slane %v3038, 7
    %v3164 = vrot.slane %v3039, 7
    %v3167 = vmul.f32 %v3156, %v3163
    %v3168 = vmul.f32 %v3158, %v3164
    %3171 = vrot.lane.b32.xlu0 %v3159, 32
    %v3172 = vpop.permute.xlu0 %3171
    %3173 = vrot.lane.b32.xlu0 %v3160, 32
    %v3174 = vpop.permute.xlu0 %3173
    %v3177 = vmul.f32 %v3156, %v3172
    %v3178 = vmul.f32 %v3158, %v3174
    %3181 = vrot.lane.b32.xlu0 %v3177, 32
    %v3182 = vpop.permute.xlu0 %3181
    %3183 = vrot.lane.b32.xlu0 %v3178, 32
    %v3184 = vpop.permute.xlu0 %3183
    %v3187 = vadd.f32 %v3167, %v3182
    %v3188 = vadd.f32 %v3168, %v3184
    %v3189 = vtanh.pop %v3187
    %v3190 = vtanh.pop %v3188
    %3193 = vrot.lane.b32.xlu0 %v3189, 32
    %v3194 = vpop.permute.xlu0 %3193
    %3195 = vrot.lane.b32.xlu0 %v3190, 32
    %v3196 = vpop.permute.xlu0 %3195
    %v3199 = vmul.f32 %v3156, %v3194
    %v3200 = vmul.f32 %v3158, %v3196
    %3203 = vrot.lane.b32.xlu0 %v3199, 64
    %v3204 = vpop.permute.xlu0 %3203
    %3205 = vrot.lane.b32.xlu0 %v3200, 64
    %v3206 = vpop.permute.xlu0 %3205
    %vm3209 = vcmask 258052
    %3210 = vst.msk [vmem:[#allocation2] sm:$0x10] %vm3209, %v3204
    %3211 = vst.msk [vmem:[#allocation2 + $0x8] sm:$0x10] %vm3209, %v3206
    %v3212 = vrot.slane %v3199, 4
    %v3213 = vrot.slane %v3200, 3
    %v3214 = vsel %vm2619, %v3213, %v3212
    %3215 = vrot.lane.b32.xlu0 %v3214, 64
    %v3216 = vpop.permute.xlu0 %3215
    %v3217 = vsel %vm53, %v3216, 0
    %3219 = vmatprep.subr.mxu0 0.0
    %3220 = vmatpush1.msra.mxu0 %v2378
    %3221 = vmatprep.subr.mxu0 0.0
    %3222 = vmatpush1.msra.mxu0 %v2379
    %3223 = vmatprep.subr.mxu0 0.0
    %3224 = vmatpush1.msra.mxu0 %v2380
    %3225 = vmatprep.subr.mxu0 0.0
    %3226 = vmatpush1.msra.mxu0 %v2381
    %3227 = vmatprep.subr.mxu0 0.0
    %3228 = vmatpush1.msra.mxu0 0.0
    %3229 = vmatprep.subr.mxu0 0.0
    %3230 = vmatpush1.msra.mxu0 0.0
    %3231 = vmatprep.subr.mxu0 0.0
    %3232 = vmatpush1.msra.mxu0 0.0
    %3233 = vmatprep.subr.mxu0 0.0
    %3234 = vmatpush1.msra.mxu0 0.0
    %3235 = vmatprep.subr.mxu0 0.0
    %3236 = vmatpush1.msra.mxu0 0.0
    %3237 = vmatprep.subr.mxu0 0.0
    %3238 = vmatpush1.msra.mxu0 0.0
    %3239 = vmatprep.subr.mxu0 0.0
    %3240 = vmatpush1.msra.mxu0 0.0
    %3241 = vmatprep.subr.mxu0 0.0
    %3242 = vmatpush1.msra.mxu0 0.0
    %3243 = vmatprep.subr.mxu0 0.0
    %3244 = vmatpush1.msra.mxu0 0.0
    %3245 = vmatprep.subr.mxu0 0.0
    %3246 = vmatpush1.msra.mxu0 0.0
    %3247 = vmatprep.subr.mxu0 0.0
    %3248 = vmatpush1.msra.mxu0 0.0
    %3249 = vmatprep.subr.mxu0 0.0
    %3250 = vmatpush1.msra.mxu0 0.0
    %3251 = vmatprep.subr.mxu0 0.0
    %3252 = vmatpush1.msra.mxu0 0.0
    %3253 = vmatprep.subr.mxu0 0.0
    %3254 = vmatpush1.msra.mxu0 0.0
    %3255 = vmatprep.subr.mxu0 0.0
    %3256 = vmatpush1.msra.mxu0 0.0
    %3257 = vmatprep.subr.mxu0 0.0
    %3258 = vmatpush1.msra.mxu0 0.0
    %3259 = vmatprep.subr.mxu0 0.0
    %3260 = vmatpush1.msra.mxu0 0.0
    %3261 = vmatprep.subr.mxu0 0.0
    %3262 = vmatpush1.msra.mxu0 0.0
    %3263 = vmatprep.subr.mxu0 0.0
    %3264 = vmatpush1.msra.mxu0 0.0
    %3265 = vmatprep.subr.mxu0 0.0
    %3266 = vmatpush1.msra.mxu0 0.0
    %3267 = vmatprep.subr.mxu0 0.0
    %3268 = vmatpush1.msra.mxu0 0.0
    %3269 = vmatprep.subr.mxu0 0.0
    %3270 = vmatpush1.msra.mxu0 0.0
    %3271 = vmatprep.subr.mxu0 0.0
    %3272 = vmatpush1.msra.mxu0 0.0
    %3273 = vmatprep.subr.mxu0 0.0
    %3274 = vmatpush1.msra.mxu0 0.0
    %3275 = vmatprep.subr.mxu0 0.0
    %3276 = vmatpush1.msra.mxu0 0.0
    %3277 = vmatprep.subr.mxu0 0.0
    %3278 = vmatpush1.msra.mxu0 0.0
    %3279 = vmatprep.subr.mxu0 0.0
    %3280 = vmatpush1.msra.mxu0 0.0
    %3281 = vmatprep.subr.mxu0 0.0
    %3282 = vmatpush1.msra.mxu0 0.0
    %3283 = vmatprep.mubr.f32.mxu0 0.0
    %3284 = vmatmul.mubr.f32.gmra.mrb[0].mxu0 %v3217
    %v3285 = vpop.f32.mrb[0].mxu0
    %v3286 = vadd.f32 0.0, %v3285
    %v3287 = vpop.f32.mrb[0].mxu0
    %3288 = vdwg.mxu0
    %v3290 = vrot.slane %v3286, 3
    %v3291 = vrot.slane %v3286, 4
    %v3294 = vadd.f32 %v2464, %v3290
    %v3295 = vadd.f32 %v2469, %v3291
    %v3296 = vxor.u32 %v3294, 2147483648
    %v3297 = vxor.u32 %v3295, 2147483648
    %v3298 = vmul.f32 %v3296, 1.442695
    %v3299 = vpow.pop %v3298
    %v3300 = vmul.f32 %v3297, 1.442695
    %v3301 = vpow.pop %v3300
    %v3302 = vadd.f32 %v3299, 1.0
    %v3303 = vadd.f32 %v3301, 1.0
    %v3304 = vrcp.pop %v3302
    %v3305 = vmul.f32 1.0, %v3304
    %v3306 = vrcp.pop %v3303
    %v3307 = vmul.f32 1.0, %v3306
    %v3308 = vtanh.pop %v3294
    %v3309 = vtanh.pop %v3295
    %v3312 = vrot.slane %v3187, 7
    %v3313 = vrot.slane %v3188, 7
    %v3316 = vmul.f32 %v3305, %v3312
    %v3317 = vmul.f32 %v3307, %v3313
    %3320 = vrot.lane.b32.xlu0 %v3308, 32
    %v3321 = vpop.permute.xlu0 %3320
    %3322 = vrot.lane.b32.xlu0 %v3309, 32
    %v3323 = vpop.permute.xlu0 %3322
    %v3326 = vmul.f32 %v3305, %v3321
    %v3327 = vmul.f32 %v3307, %v3323
    %3330 = vrot.lane.b32.xlu0 %v3326, 32
    %v3331 = vpop.permute.xlu0 %3330
    %3332 = vrot.lane.b32.xlu0 %v3327, 32
    %v3333 = vpop.permute.xlu0 %3332
    %v3336 = vadd.f32 %v3316, %v3331
    %v3337 = vadd.f32 %v3317, %v3333
    %v3338 = vtanh.pop %v3336
    %v3339 = vtanh.pop %v3337
    %3342 = vrot.lane.b32.xlu0 %v3338, 32
    %v3343 = vpop.permute.xlu0 %3342
    %3344 = vrot.lane.b32.xlu0 %v3339, 32
    %v3345 = vpop.permute.xlu0 %3344
    %v3348 = vmul.f32 %v3305, %v3343
    %v3349 = vmul.f32 %v3307, %v3345
    %3352 = vrot.lane.b32.xlu0 %v3348, 64
    %v3353 = vpop.permute.xlu0 %3352
    %3354 = vrot.lane.b32.xlu0 %v3349, 64
    %v3355 = vpop.permute.xlu0 %3354
    %vm3358 = vcmask 259077
    %3359 = vst.msk [vmem:[#allocation2] sm:$0x20] %vm3358, %v3353
    %3360 = vst.msk [vmem:[#allocation2 + $0x8] sm:$0x20] %vm3358, %v3355
    %v3361 = vrot.slane %v3348, 5
    %v3362 = vrot.slane %v3349, 4
    %v3363 = vsel %vm2619, %v3362, %v3361
    %3364 = vrot.lane.b32.xlu0 %v3363, 64
    %v3365 = vpop.permute.xlu0 %3364
    %v3366 = vsel %vm53, %v3365, 0
    %3368 = vmatprep.subr.mxu0 0.0
    %3369 = vmatpush1.msra.mxu0 %v2378
    %3370 = vmatprep.subr.mxu0 0.0
    %3371 = vmatpush1.msra.mxu0 %v2379
    %3372 = vmatprep.subr.mxu0 0.0
    %3373 = vmatpush1.msra.mxu0 %v2380
    %3374 = vmatprep.subr.mxu0 0.0
    %3375 = vmatpush1.msra.mxu0 %v2381
    %3376 = vmatprep.subr.mxu0 0.0
    %3377 = vmatpush1.msra.mxu0 0.0
    %3378 = vmatprep.subr.mxu0 0.0
    %3379 = vmatpush1.msra.mxu0 0.0
    %3380 = vmatprep.subr.mxu0 0.0
    %3381 = vmatpush1.msra.mxu0 0.0
    %3382 = vmatprep.subr.mxu0 0.0
    %3383 = vmatpush1.msra.mxu0 0.0
    %3384 = vmatprep.subr.mxu0 0.0
    %3385 = vmatpush1.msra.mxu0 0.0
    %3386 = vmatprep.subr.mxu0 0.0
    %3387 = vmatpush1.msra.mxu0 0.0
    %3388 = vmatprep.subr.mxu0 0.0
    %3389 = vmatpush1.msra.mxu0 0.0
    %3390 = vmatprep.subr.mxu0 0.0
    %3391 = vmatpush1.msra.mxu0 0.0
    %3392 = vmatprep.subr.mxu0 0.0
    %3393 = vmatpush1.msra.mxu0 0.0
    %3394 = vmatprep.subr.mxu0 0.0
    %3395 = vmatpush1.msra.mxu0 0.0
    %3396 = vmatprep.subr.mxu0 0.0
    %3397 = vmatpush1.msra.mxu0 0.0
    %3398 = vmatprep.subr.mxu0 0.0
    %3399 = vmatpush1.msra.mxu0 0.0
    %3400 = vmatprep.subr.mxu0 0.0
    %3401 = vmatpush1.msra.mxu0 0.0
    %3402 = vmatprep.subr.mxu0 0.0
    %3403 = vmatpush1.msra.mxu0 0.0
    %3404 = vmatprep.subr.mxu0 0.0
    %3405 = vmatpush1.msra.mxu0 0.0
    %3406 = vmatprep.subr.mxu0 0.0
    %3407 = vmatpush1.msra.mxu0 0.0
    %3408 = vmatprep.subr.mxu0 0.0
    %3409 = vmatpush1.msra.mxu0 0.0
    %3410 = vmatprep.subr.mxu0 0.0
    %3411 = vmatpush1.msra.mxu0 0.0
    %3412 = vmatprep.subr.mxu0 0.0
    %3413 = vmatpush1.msra.mxu0 0.0
    %3414 = vmatprep.subr.mxu0 0.0
    %3415 = vmatpush1.msra.mxu0 0.0
    %3416 = vmatprep.subr.mxu0 0.0
    %3417 = vmatpush1.msra.mxu0 0.0
    %3418 = vmatprep.subr.mxu0 0.0
    %3419 = vmatpush1.msra.mxu0 0.0
    %3420 = vmatprep.subr.mxu0 0.0
    %3421 = vmatpush1.msra.mxu0 0.0
    %3422 = vmatprep.subr.mxu0 0.0
    %3423 = vmatpush1.msra.mxu0 0.0
    %3424 = vmatprep.subr.mxu0 0.0
    %3425 = vmatpush1.msra.mxu0 0.0
    %3426 = vmatprep.subr.mxu0 0.0
    %3427 = vmatpush1.msra.mxu0 0.0
    %3428 = vmatprep.subr.mxu0 0.0
    %3429 = vmatpush1.msra.mxu0 0.0
    %3430 = vmatprep.subr.mxu0 0.0
    %3431 = vmatpush1.msra.mxu0 0.0
    %3432 = vmatprep.mubr.f32.mxu0 0.0
    %3433 = vmatmul.mubr.f32.gmra.mrb[0].mxu0 %v3366
    %v3434 = vpop.f32.mrb[0].mxu0
    %v3435 = vadd.f32 0.0, %v3434
    %v3436 = vpop.f32.mrb[0].mxu0
    %3437 = vdwg.mxu0
    %v3439 = vrot.slane %v3435, 2
    %v3440 = vrot.slane %v3435, 3
    %v3443 = vadd.f32 %v2464, %v3439
    %v3444 = vadd.f32 %v2469, %v3440
    %v3445 = vxor.u32 %v3443, 2147483648
    %v3446 = vxor.u32 %v3444, 2147483648
    %v3447 = vmul.f32 %v3445, 1.442695
    %v3448 = vpow.pop %v3447
    %v3449 = vmul.f32 %v3446, 1.442695
    %v3450 = vpow.pop %v3449
    %v3451 = vadd.f32 %v3448, 1.0
    %v3452 = vadd.f32 %v3450, 1.0
    %v3453 = vrcp.pop %v3451
    %v3454 = vmul.f32 1.0, %v3453
    %v3455 = vrcp.pop %v3452
    %v3456 = vmul.f32 1.0, %v3455
    %v3457 = vtanh.pop %v3443
    %v3458 = vtanh.pop %v3444
    %v3461 = vrot.slane %v3336, 7
    %v3462 = vrot.slane %v3337, 7
    %v3465 = vmul.f32 %v3454, %v3461
    %v3466 = vmul.f32 %v3456, %v3462
    %3469 = vrot.lane.b32.xlu0 %v3457, 32
    %v3470 = vpop.permute.xlu0 %3469
    %3471 = vrot.lane.b32.xlu0 %v3458, 32
    %v3472 = vpop.permute.xlu0 %3471
    %v3475 = vmul.f32 %v3454, %v3470
    %v3476 = vmul.f32 %v3456, %v3472
    %3479 = vrot.lane.b32.xlu0 %v3475, 32
    %v3480 = vpop.permute.xlu0 %3479
    %3481 = vrot.lane.b32.xlu0 %v3476, 32
    %v3482 = vpop.permute.xlu0 %3481
    %v3485 = vadd.f32 %v3465, %v3480
    %v3486 = vadd.f32 %v3466, %v3482
    %v3487 = vtanh.pop %v3485
    %v3488 = vtanh.pop %v3486
    %3491 = vrot.lane.b32.xlu0 %v3487, 32
    %v3492 = vpop.permute.xlu0 %3491
    %3493 = vrot.lane.b32.xlu0 %v3488, 32
    %v3494 = vpop.permute.xlu0 %3493
    %v3497 = vmul.f32 %v3454, %v3492
    %v3498 = vmul.f32 %v3456, %v3494
    %3501 = vrot.lane.b32.xlu0 %v3497, 64
    %v3502 = vpop.permute.xlu0 %3501
    %3503 = vrot.lane.b32.xlu0 %v3498, 64
    %v3504 = vpop.permute.xlu0 %3503
    %vm3507 = vcmask 260102
    %3508 = vst.msk [vmem:[#allocation2] sm:$0x40] %vm3507, %v3502
    %3509 = vst.msk [vmem:[#allocation2 + $0x8] sm:$0x40] %vm3507, %v3504
    %v3510 = vrot.slane %v3497, 6
    %v3511 = vrot.slane %v3498, 5
    %v3512 = vsel %vm2619, %v3511, %v3510
    %3513 = vrot.lane.b32.xlu0 %v3512, 64
    %v3514 = vpop.permute.xlu0 %3513
    %v3515 = vsel %vm53, %v3514, 0
    %3517 = vmatprep.subr.mxu0 0.0
    %3518 = vmatpush1.msra.mxu0 %v2378
    %3519 = vmatprep.subr.mxu0 0.0
    %3520 = vmatpush1.msra.mxu0 %v2379
    %3521 = vmatprep.subr.mxu0 0.0
    %3522 = vmatpush1.msra.mxu0 %v2380
    %3523 = vmatprep.subr.mxu0 0.0
    %3524 = vmatpush1.msra.mxu0 %v2381
    %3525 = vmatprep.subr.mxu0 0.0
    %3526 = vmatpush1.msra.mxu0 0.0
    %3527 = vmatprep.subr.mxu0 0.0
    %3528 = vmatpush1.msra.mxu0 0.0
    %3529 = vmatprep.subr.mxu0 0.0
    %3530 = vmatpush1.msra.mxu0 0.0
    %3531 = vmatprep.subr.mxu0 0.0
    %3532 = vmatpush1.msra.mxu0 0.0
    %3533 = vmatprep.subr.mxu0 0.0
    %3534 = vmatpush1.msra.mxu0 0.0
    %3535 = vmatprep.subr.mxu0 0.0
    %3536 = vmatpush1.msra.mxu0 0.0
    %3537 = vmatprep.subr.mxu0 0.0
    %3538 = vmatpush1.msra.mxu0 0.0
    %3539 = vmatprep.subr.mxu0 0.0
    %3540 = vmatpush1.msra.mxu0 0.0
    %3541 = vmatprep.subr.mxu0 0.0
    %3542 = vmatpush1.msra.mxu0 0.0
    %3543 = vmatprep.subr.mxu0 0.0
    %3544 = vmatpush1.msra.mxu0 0.0
    %3545 = vmatprep.subr.mxu0 0.0
    %3546 = vmatpush1.msra.mxu0 0.0
    %3547 = vmatprep.subr.mxu0 0.0
    %3548 = vmatpush1.msra.mxu0 0.0
    %3549 = vmatprep.subr.mxu0 0.0
    %3550 = vmatpush1.msra.mxu0 0.0
    %3551 = vmatprep.subr.mxu0 0.0
    %3552 = vmatpush1.msra.mxu0 0.0
    %3553 = vmatprep.subr.mxu0 0.0
    %3554 = vmatpush1.msra.mxu0 0.0
    %3555 = vmatprep.subr.mxu0 0.0
    %3556 = vmatpush1.msra.mxu0 0.0
    %3557 = vmatprep.subr.mxu0 0.0
    %3558 = vmatpush1.msra.mxu0 0.0
    %3559 = vmatprep.subr.mxu0 0.0
    %3560 = vmatpush1.msra.mxu0 0.0
    %3561 = vmatprep.subr.mxu0 0.0
    %3562 = vmatpush1.msra.mxu0 0.0
    %3563 = vmatprep.subr.mxu0 0.0
    %3564 = vmatpush1.msra.mxu0 0.0
    %3565 = vmatprep.subr.mxu0 0.0
    %3566 = vmatpush1.msra.mxu0 0.0
    %3567 = vmatprep.subr.mxu0 0.0
    %3568 = vmatpush1.msra.mxu0 0.0
    %3569 = vmatprep.subr.mxu0 0.0
    %3570 = vmatpush1.msra.mxu0 0.0
    %3571 = vmatprep.subr.mxu0 0.0
    %3572 = vmatpush1.msra.mxu0 0.0
    %3573 = vmatprep.subr.mxu0 0.0
    %3574 = vmatpush1.msra.mxu0 0.0
    %3575 = vmatprep.subr.mxu0 0.0
    %3576 = vmatpush1.msra.mxu0 0.0
    %3577 = vmatprep.subr.mxu0 0.0
    %3578 = vmatpush1.msra.mxu0 0.0
    %3579 = vmatprep.subr.mxu0 0.0
    %3580 = vmatpush1.msra.mxu0 0.0
    %3581 = vmatprep.mubr.f32.mxu0 0.0
    %3582 = vmatmul.mubr.f32.gmra.mrb[0].mxu0 %v3515
    %v3583 = vpop.f32.mrb[0].mxu0
    %v3584 = vadd.f32 0.0, %v3583
    %v3585 = vpop.f32.mrb[0].mxu0
    %3586 = vdwg.mxu0
    %v3588 = vrot.slane %v3584, 1
    %v3589 = vrot.slane %v3584, 2
    %v3592 = vadd.f32 %v2464, %v3588
    %v3593 = vadd.f32 %v2469, %v3589
    %v3594 = vxor.u32 %v3592, 2147483648
    %v3595 = vxor.u32 %v3593, 2147483648
    %v3596 = vmul.f32 %v3594, 1.442695
    %v3597 = vpow.pop %v3596
    %v3598 = vmul.f32 %v3595, 1.442695
    %v3599 = vpow.pop %v3598
    %v3600 = vadd.f32 %v3597, 1.0
    %v3601 = vadd.f32 %v3599, 1.0
    %v3602 = vrcp.pop %v3600
    %v3603 = vmul.f32 1.0, %v3602
    %v3604 = vrcp.pop %v3601
    %v3605 = vmul.f32 1.0, %v3604
    %v3606 = vtanh.pop %v3592
    %v3607 = vtanh.pop %v3593
    %v3610 = vrot.slane %v3485, 7
    %v3611 = vrot.slane %v3486, 7
    %v3614 = vmul.f32 %v3603, %v3610
    %v3615 = vmul.f32 %v3605, %v3611
    %3618 = vrot.lane.b32.xlu0 %v3606, 32
    %v3619 = vpop.permute.xlu0 %3618
    %3620 = vrot.lane.b32.xlu0 %v3607, 32
    %v3621 = vpop.permute.xlu0 %3620
    %v3624 = vmul.f32 %v3603, %v3619
    %v3625 = vmul.f32 %v3605, %v3621
    %3628 = vrot.lane.b32.xlu0 %v3624, 32
    %v3629 = vpop.permute.xlu0 %3628
    %3630 = vrot.lane.b32.xlu0 %v3625, 32
    %v3631 = vpop.permute.xlu0 %3630
    %v3634 = vadd.f32 %v3614, %v3629
    %v3635 = vadd.f32 %v3615, %v3631
    %v3636 = vtanh.pop %v3634
    %v3637 = vtanh.pop %v3635
    %3640 = vrot.lane.b32.xlu0 %v3636, 32
    %v3641 = vpop.permute.xlu0 %3640
    %3642 = vrot.lane.b32.xlu0 %v3637, 32
    %v3643 = vpop.permute.xlu0 %3642
    %v3646 = vmul.f32 %v3603, %v3641
    %v3647 = vmul.f32 %v3605, %v3643
    %3650 = vrot.lane.b32.xlu0 %v3646, 64
    %v3651 = vpop.permute.xlu0 %3650
    %3652 = vrot.lane.b32.xlu0 %v3647, 64
    %v3653 = vpop.permute.xlu0 %3652
    %vm3656 = vcmask 261127
    %3657 = vst.msk [vmem:[#allocation2] sm:$0x80] %vm3656, %v3651
    %3658 = vst.msk [vmem:[#allocation2 + $0x8] sm:$0x80] %vm3656, %v3653
    %v3659 = vld [vmem:[#allocation2] sm:$0xff]
    %v3660 = vld [vmem:[#allocation2 + $0x8] sm:$0xff]
    %v3661 = vld [vmem:[#allocation3 + $0x700] sm:$0xff]
    %v3662 = vld [vmem:[#allocation3 + $0x708] sm:$0xff]
    %v3663 = vld [vmem:[#allocation3 + $0x710] sm:$0xff]
    %v3664 = vld [vmem:[#allocation3 + $0x718] sm:$0xff]
    %v3665 = vld [vmem:[#allocation3 + $0x720] sm:$0x1]
    %v3666 = vld [vmem:[#allocation3 + $0x728] sm:$0x1]
    %v3667 = vld [vmem:[#allocation3 + $0x730] sm:$0x1]
    %v3668 = vlaneseq
    %v3669 = vshrl.u32 %v3668, 7
    %v3670 = vsub.s32 0, %v3669
    %v3671 = vrot.slane %v3665, %v3670
    %v3673 = vsel %vm53, %v3659, 0
    %v3676 = vsel %vm53, %v3660, 0
    %3678 = vmatprep.subr.mxu0 0.0
    %3679 = vmatpush1.msra.mxu0 %v3661
    %3680 = vmatprep.subr.mxu0 0.0
    %3681 = vmatpush1.msra.mxu0 %v3662
    %3682 = vmatprep.subr.mxu0 0.0
    %3683 = vmatpush1.msra.mxu0 %v3663
    %3684 = vmatprep.subr.mxu0 0.0
    %3685 = vmatpush1.msra.mxu0 %v3664
    %3686 = vmatprep.subr.mxu0 0.0
    %3687 = vmatpush1.msra.mxu0 0.0
    %3688 = vmatprep.subr.mxu0 0.0
    %3689 = vmatpush1.msra.mxu0 0.0
    %3690 = vmatprep.subr.mxu0 0.0
    %3691 = vmatpush1.msra.mxu0 0.0
    %3692 = vmatprep.subr.mxu0 0.0
    %3693 = vmatpush1.msra.mxu0 0.0
    %3694 = vmatprep.subr.mxu0 0.0
    %3695 = vmatpush1.msra.mxu0 0.0
    %3696 = vmatprep.subr.mxu0 0.0
    %3697 = vmatpush1.msra.mxu0 0.0
    %3698 = vmatprep.subr.mxu0 0.0
    %3699 = vmatpush1.msra.mxu0 0.0
    %3700 = vmatprep.subr.mxu0 0.0
    %3701 = vmatpush1.msra.mxu0 0.0
    %3702 = vmatprep.subr.mxu0 0.0
    %3703 = vmatpush1.msra.mxu0 0.0
    %3704 = vmatprep.subr.mxu0 0.0
    %3705 = vmatpush1.msra.mxu0 0.0
    %3706 = vmatprep.subr.mxu0 0.0
    %3707 = vmatpush1.msra.mxu0 0.0
    %3708 = vmatprep.subr.mxu0 0.0
    %3709 = vmatpush1.msra.mxu0 0.0
    %3710 = vmatprep.subr.mxu0 0.0
    %3711 = vmatpush1.msra.mxu0 0.0
    %3712 = vmatprep.subr.mxu0 0.0
    %3713 = vmatpush1.msra.mxu0 0.0
    %3714 = vmatprep.subr.mxu0 0.0
    %3715 = vmatpush1.msra.mxu0 0.0
    %3716 = vmatprep.subr.mxu0 0.0
    %3717 = vmatpush1.msra.mxu0 0.0
    %3718 = vmatprep.subr.mxu0 0.0
    %3719 = vmatpush1.msra.mxu0 0.0
    %3720 = vmatprep.subr.mxu0 0.0
    %3721 = vmatpush1.msra.mxu0 0.0
    %3722 = vmatprep.subr.mxu0 0.0
    %3723 = vmatpush1.msra.mxu0 0.0
    %3724 = vmatprep.subr.mxu0 0.0
    %3725 = vmatpush1.msra.mxu0 0.0
    %3726 = vmatprep.subr.mxu0 0.0
    %3727 = vmatpush1.msra.mxu0 0.0
    %3728 = vmatprep.subr.mxu0 0.0
    %3729 = vmatpush1.msra.mxu0 0.0
    %3730 = vmatprep.subr.mxu0 0.0
    %3731 = vmatpush1.msra.mxu0 0.0
    %3732 = vmatprep.subr.mxu0 0.0
    %3733 = vmatpush1.msra.mxu0 0.0
    %3734 = vmatprep.subr.mxu0 0.0
    %3735 = vmatpush1.msra.mxu0 0.0
    %3736 = vmatprep.subr.mxu0 0.0
    %3737 = vmatpush1.msra.mxu0 0.0
    %3738 = vmatprep.subr.mxu0 0.0
    %3739 = vmatpush1.msra.mxu0 0.0
    %3740 = vmatprep.subr.mxu0 0.0
    %3741 = vmatpush1.msra.mxu0 0.0
    %3742 = vmatprep.mubr.f32.mxu0 0.0
    %3743 = vmatmul.mubr.f32.gmra.mrb[0].mxu0 %v3673
    %v3744 = vpop.f32.mrb[0].mxu0
    %v3745 = vadd.f32 %v3671, %v3744
    %v3746 = vpop.f32.mrb[0].mxu0
    %3747 = vmatprep.mubr.f32.mxu0 0.0
    %3748 = vmatmul.mubr.f32.gmra.mrb[0].mxu0 %v3676
    %v3749 = vpop.f32.mrb[0].mxu0
    %v3750 = vadd.f32 %v3671, %v3749
    %v3751 = vpop.f32.mrb[0].mxu0
    %3752 = vdwg.mxu0
    %v3753 = vxor.u32 %v3745, 2147483648
    %v3754 = vxor.u32 %v3750, 2147483648
    %v3755 = vmul.f32 %v3753, 1.442695
    %v3756 = vpow.pop %v3755
    %v3757 = vmul.f32 %v3754, 1.442695
    %v3758 = vpow.pop %v3757
    %v3759 = vadd.f32 %v3756, 1.0
    %v3760 = vadd.f32 %v3758, 1.0
    %v3761 = vrcp.pop %v3759
    %v3762 = vmul.f32 1.0, %v3761
    %v3763 = vrcp.pop %v3760
    %v3764 = vmul.f32 1.0, %v3763
    %3767 = vrot.lane.b32.xlu0 %v3745, 96
    %v3768 = vpop.permute.xlu0 %3767
    %3769 = vrot.lane.b32.xlu0 %v3750, 96
    %v3770 = vpop.permute.xlu0 %3769
    %v3773 = vmul.f32 %v3762, %v3768
    %v3774 = vmul.f32 %v3764, %v3770
    %v3775 = vadd.f32 %v3773, %v1931
    %v3776 = vadd.f32 %v3774, %v1936
    %v3777 = vsel %vm53, %v3775, 0.0
    %3778 = vadd.xlane.f32.xlu0 %v3777
    %v3779 = vpop.xlane.xlu0 %3778
    %v3780 = vsel %vm53, %v3776, 0.0
    %3781 = vadd.xlane.f32.xlu0 %v3780
    %v3782 = vpop.xlane.xlu0 %3781
    %v3783 = vmul.f32 %v3779, %v303
    %v3784 = vmul.f32 %v3782, %v303
    %v3785 = vsub.f32 %v3775, %v3783
    %v3786 = vsub.f32 %v3776, %v3784
    %v3787 = vmul.f32 %v3785, %v3785
    %v3788 = vmul.f32 %v3786, %v3786
    %v3789 = vsel %vm53, %v3787, 0.0
    %3790 = vadd.xlane.f32.xlu0 %v3789
    %v3791 = vpop.xlane.xlu0 %3790
    %v3792 = vsel %vm53, %v3788, 0.0
    %3793 = vadd.xlane.f32.xlu0 %v3792
    %v3794 = vpop.xlane.xlu0 %3793
    %v3795 = vmul.f32 %v3791, %v303
    %v3796 = vmul.f32 %v3794, %v303
    %v3797 = vadd.f32 %v3795, 1e-05
    %v3798 = vadd.f32 %v3796, 1e-05
    %v3799 = vrsqrt.pop %v3797
    %v3800 = vrsqrt.pop %v3798
    %v3801 = vmul.f32 %v3785, %v3799
    %v3802 = vmul.f32 %v3786, %v3800
    %v3803 = vlaneseq
    %v3804 = vshrl.u32 %v3803, 7
    %v3805 = vsub.s32 0, %v3804
    %v3806 = vrot.slane %v3666, %v3805
    %v3807 = vmul.f32 %v3801, %v3806
    %v3808 = vmul.f32 %v3802, %v3806
    %v3809 = vlaneseq
    %v3810 = vshrl.u32 %v3809, 7
    %v3811 = vsub.s32 0, %v3810
    %v3812 = vrot.slane %v3667, %v3811
    %v3813 = vadd.f32 %v3807, %v3812
    %v3814 = vadd.f32 %v3808, %v3812
    %v3815 = vld [vmem:[#allocation3 + $0x760] sm:$0xff]
    %v3816 = vld [vmem:[#allocation3 + $0x768] sm:$0xff]
    %v3817 = vld [vmem:[#allocation3 + $0x770] sm:$0xff]
    %v3818 = vld [vmem:[#allocation3 + $0x778] sm:$0xff]
    %v3820 = vsel %vm53, %v2377, 0
    %3822 = vmatprep.subr.mxu0 0.0
    %3823 = vmatpush1.msra.mxu0 %v3815
    %3824 = vmatprep.subr.mxu0 0.0
    %3825 = vmatpush1.msra.mxu0 %v3816
    %3826 = vmatprep.subr.mxu0 0.0
    %3827 = vmatpush1.msra.mxu0 %v3817
    %3828 = vmatprep.subr.mxu0 0.0
    %3829 = vmatpush1.msra.mxu0 %v3818
    %3830 = vmatprep.subr.mxu0 0.0
    %3831 = vmatpush1.msra.mxu0 0.0
    %3832 = vmatprep.subr.mxu0 0.0
    %3833 = vmatpush1.msra.mxu0 0.0
    %3834 = vmatprep.subr.mxu0 0.0
    %3835 = vmatpush1.msra.mxu0 0.0
    %3836 = vmatprep.subr.mxu0 0.0
    %3837 = vmatpush1.msra.mxu0 0.0
    %3838 = vmatprep.subr.mxu0 0.0
    %3839 = vmatpush1.msra.mxu0 0.0
    %3840 = vmatprep.subr.mxu0 0.0
    %3841 = vmatpush1.msra.mxu0 0.0
    %3842 = vmatprep.subr.mxu0 0.0
    %3843 = vmatpush1.msra.mxu0 0.0
    %3844 = vmatprep.subr.mxu0 0.0
    %3845 = vmatpush1.msra.mxu0 0.0
    %3846 = vmatprep.subr.mxu0 0.0
    %3847 = vmatpush1.msra.mxu0 0.0
    %3848 = vmatprep.subr.mxu0 0.0
    %3849 = vmatpush1.msra.mxu0 0.0
    %3850 = vmatprep.subr.mxu0 0.0
    %3851 = vmatpush1.msra.mxu0 0.0
    %3852 = vmatprep.subr.mxu0 0.0
    %3853 = vmatpush1.msra.mxu0 0.0
    %3854 = vmatprep.subr.mxu0 0.0
    %3855 = vmatpush1.msra.mxu0 0.0
    %3856 = vmatprep.subr.mxu0 0.0
    %3857 = vmatpush1.msra.mxu0 0.0
    %3858 = vmatprep.subr.mxu0 0.0
    %3859 = vmatpush1.msra.mxu0 0.0
    %3860 = vmatprep.subr.mxu0 0.0
    %3861 = vmatpush1.msra.mxu0 0.0
    %3862 = vmatprep.subr.mxu0 0.0
    %3863 = vmatpush1.msra.mxu0 0.0
    %3864 = vmatprep.subr.mxu0 0.0
    %3865 = vmatpush1.msra.mxu0 0.0
    %3866 = vmatprep.subr.mxu0 0.0
    %3867 = vmatpush1.msra.mxu0 0.0
    %3868 = vmatprep.subr.mxu0 0.0
    %3869 = vmatpush1.msra.mxu0 0.0
    %3870 = vmatprep.subr.mxu0 0.0
    %3871 = vmatpush1.msra.mxu0 0.0
    %3872 = vmatprep.subr.mxu0 0.0
    %3873 = vmatpush1.msra.mxu0 0.0
    %3874 = vmatprep.subr.mxu0 0.0
    %3875 = vmatpush1.msra.mxu0 0.0
    %3876 = vmatprep.subr.mxu0 0.0
    %3877 = vmatpush1.msra.mxu0 0.0
    %3878 = vmatprep.subr.mxu0 0.0
    %3879 = vmatpush1.msra.mxu0 0.0
    %3880 = vmatprep.subr.mxu0 0.0
    %3881 = vmatpush1.msra.mxu0 0.0
    %3882 = vmatprep.subr.mxu0 0.0
    %3883 = vmatpush1.msra.mxu0 0.0
    %3884 = vmatprep.subr.mxu0 0.0
    %3885 = vmatpush1.msra.mxu0 0.0
    %3886 = vmatprep.mubr.f32.mxu0 0.0
    %3887 = vmatmul.mubr.f32.gmra.mrb[0].mxu0 %v3820
    %v3888 = vpop.f32.mrb[0].mxu0
    %v3889 = vadd.f32 0.0, %v3888
    %v3890 = vpop.f32.mrb[0].mxu0
    %3891 = vdwg.mxu0
    %v3894 = vunpack.c.l.s4 1966171168
    %v3895 = vunpack.c.0.s8 %v3894
    %v3896 = vlaneseq
    %v3897 = vshrl.u32 %v3896, 7
    %v3898 = vsub.s32 %v3895, %v3897
    %v3899 = vrot.slane %v3889, %v3898
    %v3900 = vcombine.high %v3899, %v3899
    %v3902 = vunpack.c.l.s4 1966171168
    %v3903 = vunpack.c.0.s8 %v3902
    %v3904 = vlaneseq
    %v3905 = vshrl.u32 %v3904, 7
    %v3906 = vsub.s32 %v3903, %v3905
    %v3907 = vrot.slane %v3899, %v3906
    %v3909 = vunpack.c.l.s4 1966171168
    %v3910 = vunpack.c.0.s8 %v3909
    %v3911 = vlaneseq
    %v3912 = vshrl.u32 %v3911, 7
    %v3913 = vsub.s32 %v3910, %v3912
    %v3914 = vrot.slane %v3900, %v3913
    %v3915 = vlaneseq
    %v3916 = vshrl.u32 %v3915, 7
    %v3917 = vsub.s32 0, %v3916
    %v3918 = vrot.slane %v3907, %v3917
    %v3919 = vlaneseq
    %v3920 = vshrl.u32 %v3919, 7
    %v3921 = vsub.s32 0, %v3920
    %v3922 = vrot.slane %v3914, %v3921
    %v3925 = vld [vmem:[#allocation3 + $0x738] sm:$0xff]
    %v3926 = vld [vmem:[#allocation3 + $0x740] sm:$0xff]
    %v3927 = vld [vmem:[#allocation3 + $0x748] sm:$0xff]
    %v3928 = vld [vmem:[#allocation3 + $0x750] sm:$0xff]
    %v3929 = vld [vmem:[#allocation3 + $0x758] sm:$0x1]
    %v3930 = vld [vmem:[#allocation3 + $0x780] sm:$0xff]
    %v3931 = vld [vmem:[#allocation3 + $0x788] sm:$0xff]
    %v3932 = vld [vmem:[#allocation3 + $0x790] sm:$0xff]
    %v3933 = vld [vmem:[#allocation3 + $0x798] sm:$0xff]
    %v3934 = vld [vmem:[#allocation3 + $0x7a0] sm:$0x1]
    %v3935 = vld [vmem:[#allocation3 + $0x7a8] sm:$0xff]
    %v3936 = vld [vmem:[#allocation3 + $0x7b0] sm:$0xff]
    %v3937 = vld [vmem:[#allocation3 + $0x7b8] sm:$0xff]
    %v3938 = vld [vmem:[#allocation3 + $0x7c0] sm:$0xff]
    %v3939 = vld [vmem:[#allocation3 + $0x7c8] sm:$0x1]
    %v3940 = vld [vmem:[#allocation3 + $0x7d0] sm:$0x1]
    %v3941 = vld [vmem:[#allocation3 + $0x7d8] sm:$0x1]
    %v3942 = vlaneseq
    %v3943 = vshrl.u32 %v3942, 7
    %v3944 = vsub.s32 0, %v3943
    %v3945 = vrot.slane %v3929, %v3944
    %v3947 = vsel %vm53, %v3813, 0
    %v3950 = vsel %vm53, %v3814, 0
    %3952 = vmatprep.subr.mxu0 0.0
    %3953 = vmatpush1.msra.mxu0 %v3925
    %3954 = vmatprep.subr.mxu0 0.0
    %3955 = vmatpush1.msra.mxu0 %v3926
    %3956 = vmatprep.subr.mxu0 0.0
    %3957 = vmatpush1.msra.mxu0 %v3927
    %3958 = vmatprep.subr.mxu0 0.0
    %3959 = vmatpush1.msra.mxu0 %v3928
    %3960 = vmatprep.subr.mxu0 0.0
    %3961 = vmatpush1.msra.mxu0 0.0
    %3962 = vmatprep.subr.mxu0 0.0
    %3963 = vmatpush1.msra.mxu0 0.0
    %3964 = vmatprep.subr.mxu0 0.0
    %3965 = vmatpush1.msra.mxu0 0.0
    %3966 = vmatprep.subr.mxu0 0.0
    %3967 = vmatpush1.msra.mxu0 0.0
    %3968 = vmatprep.subr.mxu0 0.0
    %3969 = vmatpush1.msra.mxu0 0.0
    %3970 = vmatprep.subr.mxu0 0.0
    %3971 = vmatpush1.msra.mxu0 0.0
    %3972 = vmatprep.subr.mxu0 0.0
    %3973 = vmatpush1.msra.mxu0 0.0
    %3974 = vmatprep.subr.mxu0 0.0
    %3975 = vmatpush1.msra.mxu0 0.0
    %3976 = vmatprep.subr.mxu0 0.0
    %3977 = vmatpush1.msra.mxu0 0.0
    %3978 = vmatprep.subr.mxu0 0.0
    %3979 = vmatpush1.msra.mxu0 0.0
    %3980 = vmatprep.subr.mxu0 0.0
    %3981 = vmatpush1.msra.mxu0 0.0
    %3982 = vmatprep.subr.mxu0 0.0
    %3983 = vmatpush1.msra.mxu0 0.0
    %3984 = vmatprep.subr.mxu0 0.0
    %3985 = vmatpush1.msra.mxu0 0.0
    %3986 = vmatprep.subr.mxu0 0.0
    %3987 = vmatpush1.msra.mxu0 0.0
    %3988 = vmatprep.subr.mxu0 0.0
    %3989 = vmatpush1.msra.mxu0 0.0
    %3990 = vmatprep.subr.mxu0 0.0
    %3991 = vmatpush1.msra.mxu0 0.0
    %3992 = vmatprep.subr.mxu0 0.0
    %3993 = vmatpush1.msra.mxu0 0.0
    %3994 = vmatprep.subr.mxu0 0.0
    %3995 = vmatpush1.msra.mxu0 0.0
    %3996 = vmatprep.subr.mxu0 0.0
    %3997 = vmatpush1.msra.mxu0 0.0
    %3998 = vmatprep.subr.mxu0 0.0
    %3999 = vmatpush1.msra.mxu0 0.0
    %4000 = vmatprep.subr.mxu0 0.0
    %4001 = vmatpush1.msra.mxu0 0.0
    %4002 = vmatprep.subr.mxu0 0.0
    %4003 = vmatpush1.msra.mxu0 0.0
    %4004 = vmatprep.subr.mxu0 0.0
    %4005 = vmatpush1.msra.mxu0 0.0
    %4006 = vmatprep.subr.mxu0 0.0
    %4007 = vmatpush1.msra.mxu0 0.0
    %4008 = vmatprep.subr.mxu0 0.0
    %4009 = vmatpush1.msra.mxu0 0.0
    %4010 = vmatprep.subr.mxu0 0.0
    %4011 = vmatpush1.msra.mxu0 0.0
    %4012 = vmatprep.subr.mxu0 0.0
    %4013 = vmatpush1.msra.mxu0 0.0
    %4014 = vmatprep.subr.mxu0 0.0
    %4015 = vmatpush1.msra.mxu0 0.0
    %4016 = vmatprep.mubr.f32.mxu0 0.0
    %4017 = vmatmul.mubr.f32.gmra.mrb[0].mxu0 %v3947
    %v4018 = vpop.f32.mrb[0].mxu0
    %v4019 = vadd.f32 %v3945, %v4018
    %v4020 = vpop.f32.mrb[0].mxu0
    %4021 = vmatprep.mubr.f32.mxu0 0.0
    %4022 = vmatmul.mubr.f32.gmra.mrb[0].mxu0 %v3950
    %v4023 = vpop.f32.mrb[0].mxu0
    %v4024 = vadd.f32 %v3945, %v4023
    %v4025 = vpop.f32.mrb[0].mxu0
    %4026 = vdwg.mxu0
    %v4027 = vadd.f32 %v4019, %v3918
    %v4028 = vadd.f32 %v4024, %v3922
    %vm4029 = vcmp.gt.f32.partialorder %v4027, 0.0
    %vm4030 = vcmp.gt.f32.partialorder %v4028, 0.0
    %v4031 = vmin.f32 %v4027, 0.0
    %v4032 = vmin.f32 %v4028, 0.0
    %v4033 = vmul.f32 %v4031, 1.442695
    %v4034 = vpow.pop %v4033
    %v4035 = vmul.f32 %v4032, 1.442695
    %v4036 = vpow.pop %v4035
    %v4037 = vsub.f32 %v4034, 1.0
    %v4038 = vsub.f32 %v4036, 1.0
    %v4039 = vsel %vm4029, %v4027, %v4037
    %v4040 = vsel %vm4030, %v4028, %v4038
    %v4041 = vlaneseq
    %v4042 = vshrl.u32 %v4041, 7
    %v4043 = vsub.s32 0, %v4042
    %v4044 = vrot.slane %v3934, %v4043
    %v4046 = vsel %vm53, %v4039, 0
    %v4049 = vsel %vm53, %v4040, 0
    %4051 = vmatprep.subr.mxu0 0.0
    %4052 = vmatpush1.msra.mxu0 %v3930
    %4053 = vmatprep.subr.mxu0 0.0
    %4054 = vmatpush1.msra.mxu0 %v3931
    %4055 = vmatprep.subr.mxu0 0.0
    %4056 = vmatpush1.msra.mxu0 %v3932
    %4057 = vmatprep.subr.mxu0 0.0
    %4058 = vmatpush1.msra.mxu0 %v3933
    %4059 = vmatprep.subr.mxu0 0.0
    %4060 = vmatpush1.msra.mxu0 0.0
    %4061 = vmatprep.subr.mxu0 0.0
    %4062 = vmatpush1.msra.mxu0 0.0
    %4063 = vmatprep.subr.mxu0 0.0
    %4064 = vmatpush1.msra.mxu0 0.0
    %4065 = vmatprep.subr.mxu0 0.0
    %4066 = vmatpush1.msra.mxu0 0.0
    %4067 = vmatprep.subr.mxu0 0.0
    %4068 = vmatpush1.msra.mxu0 0.0
    %4069 = vmatprep.subr.mxu0 0.0
    %4070 = vmatpush1.msra.mxu0 0.0
    %4071 = vmatprep.subr.mxu0 0.0
    %4072 = vmatpush1.msra.mxu0 0.0
    %4073 = vmatprep.subr.mxu0 0.0
    %4074 = vmatpush1.msra.mxu0 0.0
    %4075 = vmatprep.subr.mxu0 0.0
    %4076 = vmatpush1.msra.mxu0 0.0
    %4077 = vmatprep.subr.mxu0 0.0
    %4078 = vmatpush1.msra.mxu0 0.0
    %4079 = vmatprep.subr.mxu0 0.0
    %4080 = vmatpush1.msra.mxu0 0.0
    %4081 = vmatprep.subr.mxu0 0.0
    %4082 = vmatpush1.msra.mxu0 0.0
    %4083 = vmatprep.subr.mxu0 0.0
    %4084 = vmatpush1.msra.mxu0 0.0
    %4085 = vmatprep.subr.mxu0 0.0
    %4086 = vmatpush1.msra.mxu0 0.0
    %4087 = vmatprep.subr.mxu0 0.0
    %4088 = vmatpush1.msra.mxu0 0.0
    %4089 = vmatprep.subr.mxu0 0.0
    %4090 = vmatpush1.msra.mxu0 0.0
    %4091 = vmatprep.subr.mxu0 0.0
    %4092 = vmatpush1.msra.mxu0 0.0
    %4093 = vmatprep.subr.mxu0 0.0
    %4094 = vmatpush1.msra.mxu0 0.0
    %4095 = vmatprep.subr.mxu0 0.0
    %4096 = vmatpush1.msra.mxu0 0.0
    %4097 = vmatprep.subr.mxu0 0.0
    %4098 = vmatpush1.msra.mxu0 0.0
    %4099 = vmatprep.subr.mxu0 0.0
    %4100 = vmatpush1.msra.mxu0 0.0
    %4101 = vmatprep.subr.mxu0 0.0
    %4102 = vmatpush1.msra.mxu0 0.0
    %4103 = vmatprep.subr.mxu0 0.0
    %4104 = vmatpush1.msra.mxu0 0.0
    %4105 = vmatprep.subr.mxu0 0.0
    %4106 = vmatpush1.msra.mxu0 0.0
    %4107 = vmatprep.subr.mxu0 0.0
    %4108 = vmatpush1.msra.mxu0 0.0
    %4109 = vmatprep.subr.mxu0 0.0
    %4110 = vmatpush1.msra.mxu0 0.0
    %4111 = vmatprep.subr.mxu0 0.0
    %4112 = vmatpush1.msra.mxu0 0.0
    %4113 = vmatprep.subr.mxu0 0.0
    %4114 = vmatpush1.msra.mxu0 0.0
    %4115 = vmatprep.mubr.f32.mxu0 0.0
    %4116 = vmatmul.mubr.f32.gmra.mrb[0].mxu0 %v4046
    %v4117 = vpop.f32.mrb[0].mxu0
    %v4118 = vadd.f32 %v4044, %v4117
    %v4119 = vpop.f32.mrb[0].mxu0
    %4120 = vmatprep.mubr.f32.mxu0 0.0
    %4121 = vmatmul.mubr.f32.gmra.mrb[0].mxu0 %v4049
    %v4122 = vpop.f32.mrb[0].mxu0
    %v4123 = vadd.f32 %v4044, %v4122
    %v4124 = vpop.f32.mrb[0].mxu0
    %4125 = vdwg.mxu0
    %v4126 = vlaneseq
    %v4127 = vshrl.u32 %v4126, 7
    %v4128 = vsub.s32 0, %v4127
    %v4129 = vrot.slane %v3939, %v4128
    %v4131 = vsel %vm53, %v4118, 0
    %v4134 = vsel %vm53, %v4123, 0
    %4136 = vmatprep.subr.mxu0 0.0
    %4137 = vmatpush1.msra.mxu0 %v3935
    %4138 = vmatprep.subr.mxu0 0.0
    %4139 = vmatpush1.msra.mxu0 %v3936
    %4140 = vmatprep.subr.mxu0 0.0
    %4141 = vmatpush1.msra.mxu0 %v3937
    %4142 = vmatprep.subr.mxu0 0.0
    %4143 = vmatpush1.msra.mxu0 %v3938
    %4144 = vmatprep.subr.mxu0 0.0
    %4145 = vmatpush1.msra.mxu0 0.0
    %4146 = vmatprep.subr.mxu0 0.0
    %4147 = vmatpush1.msra.mxu0 0.0
    %4148 = vmatprep.subr.mxu0 0.0
    %4149 = vmatpush1.msra.mxu0 0.0
    %4150 = vmatprep.subr.mxu0 0.0
    %4151 = vmatpush1.msra.mxu0 0.0
    %4152 = vmatprep.subr.mxu0 0.0
    %4153 = vmatpush1.msra.mxu0 0.0
    %4154 = vmatprep.subr.mxu0 0.0
    %4155 = vmatpush1.msra.mxu0 0.0
    %4156 = vmatprep.subr.mxu0 0.0
    %4157 = vmatpush1.msra.mxu0 0.0
    %4158 = vmatprep.subr.mxu0 0.0
    %4159 = vmatpush1.msra.mxu0 0.0
    %4160 = vmatprep.subr.mxu0 0.0
    %4161 = vmatpush1.msra.mxu0 0.0
    %4162 = vmatprep.subr.mxu0 0.0
    %4163 = vmatpush1.msra.mxu0 0.0
    %4164 = vmatprep.subr.mxu0 0.0
    %4165 = vmatpush1.msra.mxu0 0.0
    %4166 = vmatprep.subr.mxu0 0.0
    %4167 = vmatpush1.msra.mxu0 0.0
    %4168 = vmatprep.subr.mxu0 0.0
    %4169 = vmatpush1.msra.mxu0 0.0
    %4170 = vmatprep.subr.mxu0 0.0
    %4171 = vmatpush1.msra.mxu0 0.0
    %4172 = vmatprep.subr.mxu0 0.0
    %4173 = vmatpush1.msra.mxu0 0.0
    %4174 = vmatprep.subr.mxu0 0.0
    %4175 = vmatpush1.msra.mxu0 0.0
    %4176 = vmatprep.subr.mxu0 0.0
    %4177 = vmatpush1.msra.mxu0 0.0
    %4178 = vmatprep.subr.mxu0 0.0
    %4179 = vmatpush1.msra.mxu0 0.0
    %4180 = vmatprep.subr.mxu0 0.0
    %4181 = vmatpush1.msra.mxu0 0.0
    %4182 = vmatprep.subr.mxu0 0.0
    %4183 = vmatpush1.msra.mxu0 0.0
    %4184 = vmatprep.subr.mxu0 0.0
    %4185 = vmatpush1.msra.mxu0 0.0
    %4186 = vmatprep.subr.mxu0 0.0
    %4187 = vmatpush1.msra.mxu0 0.0
    %4188 = vmatprep.subr.mxu0 0.0
    %4189 = vmatpush1.msra.mxu0 0.0
    %4190 = vmatprep.subr.mxu0 0.0
    %4191 = vmatpush1.msra.mxu0 0.0
    %4192 = vmatprep.subr.mxu0 0.0
    %4193 = vmatpush1.msra.mxu0 0.0
    %4194 = vmatprep.subr.mxu0 0.0
    %4195 = vmatpush1.msra.mxu0 0.0
    %4196 = vmatprep.subr.mxu0 0.0
    %4197 = vmatpush1.msra.mxu0 0.0
    %4198 = vmatprep.subr.mxu0 0.0
    %4199 = vmatpush1.msra.mxu0 0.0
    %4200 = vmatprep.mubr.f32.mxu0 0.0
    %4201 = vmatmul.mubr.f32.gmra.mrb[0].mxu0 %v4131
    %v4202 = vpop.f32.mrb[0].mxu0
    %v4203 = vadd.f32 %v4129, %v4202
    %v4204 = vpop.f32.mrb[0].mxu0
    %4205 = vmatprep.mubr.f32.mxu0 0.0
    %4206 = vmatmul.mubr.f32.gmra.mrb[0].mxu0 %v4134
    %v4207 = vpop.f32.mrb[0].mxu0
    %v4208 = vadd.f32 %v4129, %v4207
    %v4209 = vpop.f32.mrb[0].mxu0
    %4210 = vdwg.mxu0
    %v4211 = vxor.u32 %v4203, 2147483648
    %v4212 = vxor.u32 %v4208, 2147483648
    %v4213 = vmul.f32 %v4211, 1.442695
    %v4214 = vpow.pop %v4213
    %v4215 = vmul.f32 %v4212, 1.442695
    %v4216 = vpow.pop %v4215
    %v4217 = vadd.f32 %v4214, 1.0
    %v4218 = vadd.f32 %v4216, 1.0
    %v4219 = vrcp.pop %v4217
    %v4220 = vmul.f32 1.0, %v4219
    %v4221 = vrcp.pop %v4218
    %v4222 = vmul.f32 1.0, %v4221
    %4225 = vrot.lane.b32.xlu0 %v4203, 96
    %v4226 = vpop.permute.xlu0 %4225
    %4227 = vrot.lane.b32.xlu0 %v4208, 96
    %v4228 = vpop.permute.xlu0 %4227
    %v4231 = vmul.f32 %v4220, %v4226
    %v4232 = vmul.f32 %v4222, %v4228
    %v4233 = vadd.f32 %v3813, %v4231
    %v4234 = vadd.f32 %v3814, %v4232
    %v4235 = vsel %vm53, %v4233, 0.0
    %4236 = vadd.xlane.f32.xlu0 %v4235
    %v4237 = vpop.xlane.xlu0 %4236
    %v4238 = vsel %vm53, %v4234, 0.0
    %4239 = vadd.xlane.f32.xlu0 %v4238
    %v4240 = vpop.xlane.xlu0 %4239
    %v4241 = vmul.f32 %v4237, %v303
    %v4242 = vmul.f32 %v4240, %v303
    %v4243 = vsub.f32 %v4233, %v4241
    %v4244 = vsub.f32 %v4234, %v4242
    %v4245 = vmul.f32 %v4243, %v4243
    %v4246 = vmul.f32 %v4244, %v4244
    %v4247 = vsel %vm53, %v4245, 0.0
    %4248 = vadd.xlane.f32.xlu0 %v4247
    %v4249 = vpop.xlane.xlu0 %4248
    %v4250 = vsel %vm53, %v4246, 0.0
    %4251 = vadd.xlane.f32.xlu0 %v4250
    %v4252 = vpop.xlane.xlu0 %4251
    %v4253 = vmul.f32 %v4249, %v303
    %v4254 = vmul.f32 %v4252, %v303
    %v4255 = vadd.f32 %v4253, 1e-05
    %v4256 = vadd.f32 %v4254, 1e-05
    %v4257 = vrsqrt.pop %v4255
    %v4258 = vrsqrt.pop %v4256
    %v4259 = vmul.f32 %v4243, %v4257
    %v4260 = vmul.f32 %v4244, %v4258
    %v4261 = vlaneseq
    %v4262 = vshrl.u32 %v4261, 7
    %v4263 = vsub.s32 0, %v4262
    %v4264 = vrot.slane %v3940, %v4263
    %v4265 = vmul.f32 %v4259, %v4264
    %v4266 = vmul.f32 %v4260, %v4264
    %v4267 = vlaneseq
    %v4268 = vshrl.u32 %v4267, 7
    %v4269 = vsub.s32 0, %v4268
    %v4270 = vrot.slane %v3941, %v4269
    %v4271 = vadd.f32 %v4265, %v4270
    %v4272 = vadd.f32 %v4266, %v4270
    %v4273 = vld [vmem:[#allocation3 + $0x7e0] sm:$0xff]
    %v4274 = vld [vmem:[#allocation3 + $0x7e8] sm:$0xff]
    %v4275 = vld [vmem:[#allocation3 + $0x7f0] sm:$0xff]
    %v4276 = vld [vmem:[#allocation3 + $0x7f8] sm:$0xff]
    %v4278 = vsel %vm53, %v4271, 0
    %v4281 = vsel %vm53, %v4272, 0
    %4283 = vmatprep.subr.mxu0 0.0
    %4284 = vmatpush1.msra.mxu0 %v4273
    %4285 = vmatprep.subr.mxu0 0.0
    %4286 = vmatpush1.msra.mxu0 %v4274
    %4287 = vmatprep.subr.mxu0 0.0
    %4288 = vmatpush1.msra.mxu0 %v4275
    %4289 = vmatprep.subr.mxu0 0.0
    %4290 = vmatpush1.msra.mxu0 %v4276
    %4291 = vmatprep.subr.mxu0 0.0
    %4292 = vmatpush1.msra.mxu0 0.0
    %4293 = vmatprep.subr.mxu0 0.0
    %4294 = vmatpush1.msra.mxu0 0.0
    %4295 = vmatprep.subr.mxu0 0.0
    %4296 = vmatpush1.msra.mxu0 0.0
    %4297 = vmatprep.subr.mxu0 0.0
    %4298 = vmatpush1.msra.mxu0 0.0
    %4299 = vmatprep.subr.mxu0 0.0
    %4300 = vmatpush1.msra.mxu0 0.0
    %4301 = vmatprep.subr.mxu0 0.0
    %4302 = vmatpush1.msra.mxu0 0.0
    %4303 = vmatprep.subr.mxu0 0.0
    %4304 = vmatpush1.msra.mxu0 0.0
    %4305 = vmatprep.subr.mxu0 0.0
    %4306 = vmatpush1.msra.mxu0 0.0
    %4307 = vmatprep.subr.mxu0 0.0
    %4308 = vmatpush1.msra.mxu0 0.0
    %4309 = vmatprep.subr.mxu0 0.0
    %4310 = vmatpush1.msra.mxu0 0.0
    %4311 = vmatprep.subr.mxu0 0.0
    %4312 = vmatpush1.msra.mxu0 0.0
    %4313 = vmatprep.subr.mxu0 0.0
    %4314 = vmatpush1.msra.mxu0 0.0
    %4315 = vmatprep.subr.mxu0 0.0
    %4316 = vmatpush1.msra.mxu0 0.0
    %4317 = vmatprep.subr.mxu0 0.0
    %4318 = vmatpush1.msra.mxu0 0.0
    %4319 = vmatprep.subr.mxu0 0.0
    %4320 = vmatpush1.msra.mxu0 0.0
    %4321 = vmatprep.subr.mxu0 0.0
    %4322 = vmatpush1.msra.mxu0 0.0
    %4323 = vmatprep.subr.mxu0 0.0
    %4324 = vmatpush1.msra.mxu0 0.0
    %4325 = vmatprep.subr.mxu0 0.0
    %4326 = vmatpush1.msra.mxu0 0.0
    %4327 = vmatprep.subr.mxu0 0.0
    %4328 = vmatpush1.msra.mxu0 0.0
    %4329 = vmatprep.subr.mxu0 0.0
    %4330 = vmatpush1.msra.mxu0 0.0
    %4331 = vmatprep.subr.mxu0 0.0
    %4332 = vmatpush1.msra.mxu0 0.0
    %4333 = vmatprep.subr.mxu0 0.0
    %4334 = vmatpush1.msra.mxu0 0.0
    %4335 = vmatprep.subr.mxu0 0.0
    %4336 = vmatpush1.msra.mxu0 0.0
    %4337 = vmatprep.subr.mxu0 0.0
    %4338 = vmatpush1.msra.mxu0 0.0
    %4339 = vmatprep.subr.mxu0 0.0
    %4340 = vmatpush1.msra.mxu0 0.0
    %4341 = vmatprep.subr.mxu0 0.0
    %4342 = vmatpush1.msra.mxu0 0.0
    %4343 = vmatprep.subr.mxu0 0.0
    %4344 = vmatpush1.msra.mxu0 0.0
    %4345 = vmatprep.subr.mxu0 0.0
    %4346 = vmatpush1.msra.mxu0 0.0
    %4347 = vmatprep.mubr.f32.mxu0 0.0
    %4348 = vmatmul.mubr.f32.gmra.mrb[0].mxu0 %v4278
    %v4349 = vpop.f32.mrb[0].mxu0
    %v4350 = vadd.f32 0.0, %v4349
    %v4351 = vpop.f32.mrb[0].mxu0
    %4352 = vmatprep.mubr.f32.mxu0 0.0
    %4353 = vmatmul.mubr.f32.gmra.mrb[0].mxu0 %v4281
    %v4354 = vpop.f32.mrb[0].mxu0
    %v4355 = vadd.f32 0.0, %v4354
    %v4356 = vpop.f32.mrb[0].mxu0
    %4357 = vdwg.mxu0
    %4359 = vrot.lane.b32.xlu0 %v4350, 96
    %v4360 = vpop.permute.xlu0 %4359
    %vm4361 = vcmask 64512
    %v4362 = vsel %vm4361, %v4350, 0
    %v4364 = vsel %vm4361, %v4360, 0
    %4366 = vmatprep.subr.mxu0 0.0
    %4367 = vmatpush1.xpose.msra.mxu0 %v4364
    %4368 = vmatprep.subr.mxu0 0.0
    %4369 = vmatpush1.xpose.msra.mxu0 0.0
    %4370 = vmatprep.subr.mxu0 0.0
    %4371 = vmatpush1.xpose.msra.mxu0 0.0
    %4372 = vmatprep.subr.mxu0 0.0
    %4373 = vmatpush1.xpose.msra.mxu0 0.0
    %4374 = vmatprep.subr.mxu0 0.0
    %4375 = vmatpush1.xpose.msra.mxu0 0.0
    %4376 = vmatprep.subr.mxu0 0.0
    %4377 = vmatpush1.xpose.msra.mxu0 0.0
    %4378 = vmatprep.subr.mxu0 0.0
    %4379 = vmatpush1.xpose.msra.mxu0 0.0
    %4380 = vmatprep.subr.mxu0 0.0
    %4381 = vmatpush1.xpose.msra.mxu0 0.0
    %4382 = vmatprep.subr.mxu0 0.0
    %4383 = vmatpush1.xpose.msra.mxu0 0.0
    %4384 = vmatprep.subr.mxu0 0.0
    %4385 = vmatpush1.xpose.msra.mxu0 0.0
    %4386 = vmatprep.subr.mxu0 0.0
    %4387 = vmatpush1.xpose.msra.mxu0 0.0
    %4388 = vmatprep.subr.mxu0 0.0
    %4389 = vmatpush1.xpose.msra.mxu0 0.0
    %4390 = vmatprep.subr.mxu0 0.0
    %4391 = vmatpush1.xpose.msra.mxu0 0.0
    %4392 = vmatprep.subr.mxu0 0.0
    %4393 = vmatpush1.xpose.msra.mxu0 0.0
    %4394 = vmatprep.subr.mxu0 0.0
    %4395 = vmatpush1.xpose.msra.mxu0 0.0
    %4396 = vmatprep.subr.mxu0 0.0
    %4397 = vmatpush1.xpose.msra.mxu0 0.0
    %4398 = vmatprep.subr.mxu0 0.0
    %4399 = vmatpush1.xpose.msra.mxu0 0.0
    %4400 = vmatprep.subr.mxu0 0.0
    %4401 = vmatpush1.xpose.msra.mxu0 0.0
    %4402 = vmatprep.subr.mxu0 0.0
    %4403 = vmatpush1.xpose.msra.mxu0 0.0
    %4404 = vmatprep.subr.mxu0 0.0
    %4405 = vmatpush1.xpose.msra.mxu0 0.0
    %4406 = vmatprep.subr.mxu0 0.0
    %4407 = vmatpush1.xpose.msra.mxu0 0.0
    %4408 = vmatprep.subr.mxu0 0.0
    %4409 = vmatpush1.xpose.msra.mxu0 0.0
    %4410 = vmatprep.subr.mxu0 0.0
    %4411 = vmatpush1.xpose.msra.mxu0 0.0
    %4412 = vmatprep.subr.mxu0 0.0
    %4413 = vmatpush1.xpose.msra.mxu0 0.0
    %4414 = vmatprep.subr.mxu0 0.0
    %4415 = vmatpush1.xpose.msra.mxu0 0.0
    %4416 = vmatprep.subr.mxu0 0.0
    %4417 = vmatpush1.xpose.msra.mxu0 0.0
    %4418 = vmatprep.subr.mxu0 0.0
    %4419 = vmatpush1.xpose.msra.mxu0 0.0
    %4420 = vmatprep.subr.mxu0 0.0
    %4421 = vmatpush1.xpose.msra.mxu0 0.0
    %4422 = vmatprep.subr.mxu0 0.0
    %4423 = vmatpush1.xpose.msra.mxu0 0.0
    %4424 = vmatprep.subr.mxu0 0.0
    %4425 = vmatpush1.xpose.msra.mxu0 0.0
    %4426 = vmatprep.subr.mxu0 0.0
    %4427 = vmatpush1.xpose.msra.mxu0 0.0
    %4428 = vmatprep.subr.mxu0 0.0
    %4429 = vmatpush1.xpose.msra.mxu0 0.0
    %4430 = vmatprep.mubr.f32.mxu0 0.0
    %4431 = vmatmul.mubr.f32.gmra.mrb[0].mxu0 %v4362
    %v4432 = vpop.f32.mrb[0].mxu0
    %v4433 = vadd.f32 0.0, %v4432
    %v4434 = vpop.f32.mrb[0].mxu0
    %4435 = vdwg.mxu0
    %4437 = vrot.lane.b32.xlu0 %v4355, 96
    %v4438 = vpop.permute.xlu0 %4437
    %v4439 = vsel %vm4361, %v4355, 0
    %v4441 = vsel %vm4361, %v4438, 0
    %4443 = vmatprep.subr.mxu0 0.0
    %4444 = vmatpush1.xpose.msra.mxu0 %v4441
    %4445 = vmatprep.subr.mxu0 0.0
    %4446 = vmatpush1.xpose.msra.mxu0 0.0
    %4447 = vmatprep.subr.mxu0 0.0
    %4448 = vmatpush1.xpose.msra.mxu0 0.0
    %4449 = vmatprep.subr.mxu0 0.0
    %4450 = vmatpush1.xpose.msra.mxu0 0.0
    %4451 = vmatprep.subr.mxu0 0.0
    %4452 = vmatpush1.xpose.msra.mxu0 0.0
    %4453 = vmatprep.subr.mxu0 0.0
    %4454 = vmatpush1.xpose.msra.mxu0 0.0
    %4455 = vmatprep.subr.mxu0 0.0
    %4456 = vmatpush1.xpose.msra.mxu0 0.0
    %4457 = vmatprep.subr.mxu0 0.0
    %4458 = vmatpush1.xpose.msra.mxu0 0.0
    %4459 = vmatprep.subr.mxu0 0.0
    %4460 = vmatpush1.xpose.msra.mxu0 0.0
    %4461 = vmatprep.subr.mxu0 0.0
    %4462 = vmatpush1.xpose.msra.mxu0 0.0
    %4463 = vmatprep.subr.mxu0 0.0
    %4464 = vmatpush1.xpose.msra.mxu0 0.0
    %4465 = vmatprep.subr.mxu0 0.0
    %4466 = vmatpush1.xpose.msra.mxu0 0.0
    %4467 = vmatprep.subr.mxu0 0.0
    %4468 = vmatpush1.xpose.msra.mxu0 0.0
    %4469 = vmatprep.subr.mxu0 0.0
    %4470 = vmatpush1.xpose.msra.mxu0 0.0
    %4471 = vmatprep.subr.mxu0 0.0
    %4472 = vmatpush1.xpose.msra.mxu0 0.0
    %4473 = vmatprep.subr.mxu0 0.0
    %4474 = vmatpush1.xpose.msra.mxu0 0.0
    %4475 = vmatprep.subr.mxu0 0.0
    %4476 = vmatpush1.xpose.msra.mxu0 0.0
    %4477 = vmatprep.subr.mxu0 0.0
    %4478 = vmatpush1.xpose.msra.mxu0 0.0
    %4479 = vmatprep.subr.mxu0 0.0
    %4480 = vmatpush1.xpose.msra.mxu0 0.0
    %4481 = vmatprep.subr.mxu0 0.0
    %4482 = vmatpush1.xpose.msra.mxu0 0.0
    %4483 = vmatprep.subr.mxu0 0.0
    %4484 = vmatpush1.xpose.msra.mxu0 0.0
    %4485 = vmatprep.subr.mxu0 0.0
    %4486 = vmatpush1.xpose.msra.mxu0 0.0
    %4487 = vmatprep.subr.mxu0 0.0
    %4488 = vmatpush1.xpose.msra.mxu0 0.0
    %4489 = vmatprep.subr.mxu0 0.0
    %4490 = vmatpush1.xpose.msra.mxu0 0.0
    %4491 = vmatprep.subr.mxu0 0.0
    %4492 = vmatpush1.xpose.msra.mxu0 0.0
    %4493 = vmatprep.subr.mxu0 0.0
    %4494 = vmatpush1.xpose.msra.mxu0 0.0
    %4495 = vmatprep.subr.mxu0 0.0
    %4496 = vmatpush1.xpose.msra.mxu0 0.0
    %4497 = vmatprep.subr.mxu0 0.0
    %4498 = vmatpush1.xpose.msra.mxu0 0.0
    %4499 = vmatprep.subr.mxu0 0.0
    %4500 = vmatpush1.xpose.msra.mxu0 0.0
    %4501 = vmatprep.subr.mxu0 0.0
    %4502 = vmatpush1.xpose.msra.mxu0 0.0
    %4503 = vmatprep.subr.mxu0 0.0
    %4504 = vmatpush1.xpose.msra.mxu0 0.0
    %4505 = vmatprep.subr.mxu0 0.0
    %4506 = vmatpush1.xpose.msra.mxu0 0.0
    %4507 = vmatprep.mubr.f32.mxu0 0.0
    %4508 = vmatmul.mubr.f32.gmra.mrb[0].mxu0 %v4439
    %v4509 = vpop.f32.mrb[0].mxu0
    %v4510 = vadd.f32 0.0, %v4509
    %v4511 = vpop.f32.mrb[0].mxu0
    %4512 = vdwg.mxu0
    %4513 = vrot.lane.b32.xlu0 %v4350, 120
    %v4514 = vpop.permute.xlu0 %4513
    %4515 = vrot.lane.b32.xlu0 %v4350, 88
    %v4516 = vpop.permute.xlu0 %4515
    %v4517 = vsel %vm4361, %v4514, 0
    %v4519 = vsel %vm4361, %v4516, 0
    %4521 = vmatprep.subr.mxu0 0.0
    %4522 = vmatpush1.xpose.msra.mxu0 %v4519
    %4523 = vmatprep.subr.mxu0 0.0
    %4524 = vmatpush1.xpose.msra.mxu0 0.0
    %4525 = vmatprep.subr.mxu0 0.0
    %4526 = vmatpush1.xpose.msra.mxu0 0.0
    %4527 = vmatprep.subr.mxu0 0.0
    %4528 = vmatpush1.xpose.msra.mxu0 0.0
    %4529 = vmatprep.subr.mxu0 0.0
    %4530 = vmatpush1.xpose.msra.mxu0 0.0
    %4531 = vmatprep.subr.mxu0 0.0
    %4532 = vmatpush1.xpose.msra.mxu0 0.0
    %4533 = vmatprep.subr.mxu0 0.0
    %4534 = vmatpush1.xpose.msra.mxu0 0.0
    %4535 = vmatprep.subr.mxu0 0.0
    %4536 = vmatpush1.xpose.msra.mxu0 0.0
    %4537 = vmatprep.subr.mxu0 0.0
    %4538 = vmatpush1.xpose.msra.mxu0 0.0
    %4539 = vmatprep.subr.mxu0 0.0
    %4540 = vmatpush1.xpose.msra.mxu0 0.0
    %4541 = vmatprep.subr.mxu0 0.0
    %4542 = vmatpush1.xpose.msra.mxu0 0.0
    %4543 = vmatprep.subr.mxu0 0.0
    %4544 = vmatpush1.xpose.msra.mxu0 0.0
    %4545 = vmatprep.subr.mxu0 0.0
    %4546 = vmatpush1.xpose.msra.mxu0 0.0
    %4547 = vmatprep.subr.mxu0 0.0
    %4548 = vmatpush1.xpose.msra.mxu0 0.0
    %4549 = vmatprep.subr.mxu0 0.0
    %4550 = vmatpush1.xpose.msra.mxu0 0.0
    %4551 = vmatprep.subr.mxu0 0.0
    %4552 = vmatpush1.xpose.msra.mxu0 0.0
    %4553 = vmatprep.subr.mxu0 0.0
    %4554 = vmatpush1.xpose.msra.mxu0 0.0
    %4555 = vmatprep.subr.mxu0 0.0
    %4556 = vmatpush1.xpose.msra.mxu0 0.0
    %4557 = vmatprep.subr.mxu0 0.0
    %4558 = vmatpush1.xpose.msra.mxu0 0.0
    %4559 = vmatprep.subr.mxu0 0.0
    %4560 = vmatpush1.xpose.msra.mxu0 0.0
    %4561 = vmatprep.subr.mxu0 0.0
    %4562 = vmatpush1.xpose.msra.mxu0 0.0
    %4563 = vmatprep.subr.mxu0 0.0
    %4564 = vmatpush1.xpose.msra.mxu0 0.0
    %4565 = vmatprep.subr.mxu0 0.0
    %4566 = vmatpush1.xpose.msra.mxu0 0.0
    %4567 = vmatprep.subr.mxu0 0.0
    %4568 = vmatpush1.xpose.msra.mxu0 0.0
    %4569 = vmatprep.subr.mxu0 0.0
    %4570 = vmatpush1.xpose.msra.mxu0 0.0
    %4571 = vmatprep.subr.mxu0 0.0
    %4572 = vmatpush1.xpose.msra.mxu0 0.0
    %4573 = vmatprep.subr.mxu0 0.0
    %4574 = vmatpush1.xpose.msra.mxu0 0.0
    %4575 = vmatprep.subr.mxu0 0.0
    %4576 = vmatpush1.xpose.msra.mxu0 0.0
    %4577 = vmatprep.subr.mxu0 0.0
    %4578 = vmatpush1.xpose.msra.mxu0 0.0
    %4579 = vmatprep.subr.mxu0 0.0
    %4580 = vmatpush1.xpose.msra.mxu0 0.0
    %4581 = vmatprep.subr.mxu0 0.0
    %4582 = vmatpush1.xpose.msra.mxu0 0.0
    %4583 = vmatprep.subr.mxu0 0.0
    %4584 = vmatpush1.xpose.msra.mxu0 0.0
    %4585 = vmatprep.mubr.f32.mxu0 0.0
    %4586 = vmatmul.mubr.f32.gmra.mrb[0].mxu0 %v4517
    %v4587 = vpop.f32.mrb[0].mxu0
    %v4588 = vadd.f32 0.0, %v4587
    %v4589 = vpop.f32.mrb[0].mxu0
    %4590 = vdwg.mxu0
    %4591 = vrot.lane.b32.xlu0 %v4355, 120
    %v4592 = vpop.permute.xlu0 %4591
    %4593 = vrot.lane.b32.xlu0 %v4355, 88
    %v4594 = vpop.permute.xlu0 %4593
    %v4595 = vsel %vm4361, %v4592, 0
    %v4597 = vsel %vm4361, %v4594, 0
    %4599 = vmatprep.subr.mxu0 0.0
    %4600 = vmatpush1.xpose.msra.mxu0 %v4597
    %4601 = vmatprep.subr.mxu0 0.0
    %4602 = vmatpush1.xpose.msra.mxu0 0.0
    %4603 = vmatprep.subr.mxu0 0.0
    %4604 = vmatpush1.xpose.msra.mxu0 0.0
    %4605 = vmatprep.subr.mxu0 0.0
    %4606 = vmatpush1.xpose.msra.mxu0 0.0
    %4607 = vmatprep.subr.mxu0 0.0
    %4608 = vmatpush1.xpose.msra.mxu0 0.0
    %4609 = vmatprep.subr.mxu0 0.0
    %4610 = vmatpush1.xpose.msra.mxu0 0.0
    %4611 = vmatprep.subr.mxu0 0.0
    %4612 = vmatpush1.xpose.msra.mxu0 0.0
    %4613 = vmatprep.subr.mxu0 0.0
    %4614 = vmatpush1.xpose.msra.mxu0 0.0
    %4615 = vmatprep.subr.mxu0 0.0
    %4616 = vmatpush1.xpose.msra.mxu0 0.0
    %4617 = vmatprep.subr.mxu0 0.0
    %4618 = vmatpush1.xpose.msra.mxu0 0.0
    %4619 = vmatprep.subr.mxu0 0.0
    %4620 = vmatpush1.xpose.msra.mxu0 0.0
    %4621 = vmatprep.subr.mxu0 0.0
    %4622 = vmatpush1.xpose.msra.mxu0 0.0
    %4623 = vmatprep.subr.mxu0 0.0
    %4624 = vmatpush1.xpose.msra.mxu0 0.0
    %4625 = vmatprep.subr.mxu0 0.0
    %4626 = vmatpush1.xpose.msra.mxu0 0.0
    %4627 = vmatprep.subr.mxu0 0.0
    %4628 = vmatpush1.xpose.msra.mxu0 0.0
    %4629 = vmatprep.subr.mxu0 0.0
    %4630 = vmatpush1.xpose.msra.mxu0 0.0
    %4631 = vmatprep.subr.mxu0 0.0
    %4632 = vmatpush1.xpose.msra.mxu0 0.0
    %4633 = vmatprep.subr.mxu0 0.0
    %4634 = vmatpush1.xpose.msra.mxu0 0.0
    %4635 = vmatprep.subr.mxu0 0.0
    %4636 = vmatpush1.xpose.msra.mxu0 0.0
    %4637 = vmatprep.subr.mxu0 0.0
    %4638 = vmatpush1.xpose.msra.mxu0 0.0
    %4639 = vmatprep.subr.mxu0 0.0
    %4640 = vmatpush1.xpose.msra.mxu0 0.0
    %4641 = vmatprep.subr.mxu0 0.0
    %4642 = vmatpush1.xpose.msra.mxu0 0.0
    %4643 = vmatprep.subr.mxu0 0.0
    %4644 = vmatpush1.xpose.msra.mxu0 0.0
    %4645 = vmatprep.subr.mxu0 0.0
    %4646 = vmatpush1.xpose.msra.mxu0 0.0
    %4647 = vmatprep.subr.mxu0 0.0
    %4648 = vmatpush1.xpose.msra.mxu0 0.0
    %4649 = vmatprep.subr.mxu0 0.0
    %4650 = vmatpush1.xpose.msra.mxu0 0.0
    %4651 = vmatprep.subr.mxu0 0.0
    %4652 = vmatpush1.xpose.msra.mxu0 0.0
    %4653 = vmatprep.subr.mxu0 0.0
    %4654 = vmatpush1.xpose.msra.mxu0 0.0
    %4655 = vmatprep.subr.mxu0 0.0
    %4656 = vmatpush1.xpose.msra.mxu0 0.0
    %4657 = vmatprep.subr.mxu0 0.0
    %4658 = vmatpush1.xpose.msra.mxu0 0.0
    %4659 = vmatprep.subr.mxu0 0.0
    %4660 = vmatpush1.xpose.msra.mxu0 0.0
    %4661 = vmatprep.subr.mxu0 0.0
    %4662 = vmatpush1.xpose.msra.mxu0 0.0
    %4663 = vmatprep.mubr.f32.mxu0 0.0
    %4664 = vmatmul.mubr.f32.gmra.mrb[0].mxu0 %v4595
    %v4665 = vpop.f32.mrb[0].mxu0
    %v4666 = vadd.f32 0.0, %v4665
    %v4667 = vpop.f32.mrb[0].mxu0
    %4668 = vdwg.mxu0
    %4669 = vrot.lane.b32.xlu0 %v4350, 112
    %v4670 = vpop.permute.xlu0 %4669
    %4671 = vrot.lane.b32.xlu0 %v4350, 80
    %v4672 = vpop.permute.xlu0 %4671
    %v4673 = vsel %vm4361, %v4670, 0
    %v4675 = vsel %vm4361, %v4672, 0
    %4677 = vmatprep.subr.mxu0 0.0
    %4678 = vmatpush1.xpose.msra.mxu0 %v4675
    %4679 = vmatprep.subr.mxu0 0.0
    %4680 = vmatpush1.xpose.msra.mxu0 0.0
    %4681 = vmatprep.subr.mxu0 0.0
    %4682 = vmatpush1.xpose.msra.mxu0 0.0
    %4683 = vmatprep.subr.mxu0 0.0
    %4684 = vmatpush1.xpose.msra.mxu0 0.0
    %4685 = vmatprep.subr.mxu0 0.0
    %4686 = vmatpush1.xpose.msra.mxu0 0.0
    %4687 = vmatprep.subr.mxu0 0.0
    %4688 = vmatpush1.xpose.msra.mxu0 0.0
    %4689 = vmatprep.subr.mxu0 0.0
    %4690 = vmatpush1.xpose.msra.mxu0 0.0
    %4691 = vmatprep.subr.mxu0 0.0
    %4692 = vmatpush1.xpose.msra.mxu0 0.0
    %4693 = vmatprep.subr.mxu0 0.0
    %4694 = vmatpush1.xpose.msra.mxu0 0.0
    %4695 = vmatprep.subr.mxu0 0.0
    %4696 = vmatpush1.xpose.msra.mxu0 0.0
    %4697 = vmatprep.subr.mxu0 0.0
    %4698 = vmatpush1.xpose.msra.mxu0 0.0
    %4699 = vmatprep.subr.mxu0 0.0
    %4700 = vmatpush1.xpose.msra.mxu0 0.0
    %4701 = vmatprep.subr.mxu0 0.0
    %4702 = vmatpush1.xpose.msra.mxu0 0.0
    %4703 = vmatprep.subr.mxu0 0.0
    %4704 = vmatpush1.xpose.msra.mxu0 0.0
    %4705 = vmatprep.subr.mxu0 0.0
    %4706 = vmatpush1.xpose.msra.mxu0 0.0
    %4707 = vmatprep.subr.mxu0 0.0
    %4708 = vmatpush1.xpose.msra.mxu0 0.0
    %4709 = vmatprep.subr.mxu0 0.0
    %4710 = vmatpush1.xpose.msra.mxu0 0.0
    %4711 = vmatprep.subr.mxu0 0.0
    %4712 = vmatpush1.xpose.msra.mxu0 0.0
    %4713 = vmatprep.subr.mxu0 0.0
    %4714 = vmatpush1.xpose.msra.mxu0 0.0
    %4715 = vmatprep.subr.mxu0 0.0
    %4716 = vmatpush1.xpose.msra.mxu0 0.0
    %4717 = vmatprep.subr.mxu0 0.0
    %4718 = vmatpush1.xpose.msra.mxu0 0.0
    %4719 = vmatprep.subr.mxu0 0.0
    %4720 = vmatpush1.xpose.msra.mxu0 0.0
    %4721 = vmatprep.subr.mxu0 0.0
    %4722 = vmatpush1.xpose.msra.mxu0 0.0
    %4723 = vmatprep.subr.mxu0 0.0
    %4724 = vmatpush1.xpose.msra.mxu0 0.0
    %4725 = vmatprep.subr.mxu0 0.0
    %4726 = vmatpush1.xpose.msra.mxu0 0.0
    %4727 = vmatprep.subr.mxu0 0.0
    %4728 = vmatpush1.xpose.msra.mxu0 0.0
    %4729 = vmatprep.subr.mxu0 0.0
    %4730 = vmatpush1.xpose.msra.mxu0 0.0
    %4731 = vmatprep.subr.mxu0 0.0
    %4732 = vmatpush1.xpose.msra.mxu0 0.0
    %4733 = vmatprep.subr.mxu0 0.0
    %4734 = vmatpush1.xpose.msra.mxu0 0.0
    %4735 = vmatprep.subr.mxu0 0.0
    %4736 = vmatpush1.xpose.msra.mxu0 0.0
    %4737 = vmatprep.subr.mxu0 0.0
    %4738 = vmatpush1.xpose.msra.mxu0 0.0
    %4739 = vmatprep.subr.mxu0 0.0
    %4740 = vmatpush1.xpose.msra.mxu0 0.0
    %4741 = vmatprep.mubr.f32.mxu0 0.0
    %4742 = vmatmul.mubr.f32.gmra.mrb[0].mxu0 %v4673
    %v4743 = vpop.f32.mrb[0].mxu0
    %v4744 = vadd.f32 0.0, %v4743
    %v4745 = vpop.f32.mrb[0].mxu0
    %4746 = vdwg.mxu0
    %4747 = vrot.lane.b32.xlu0 %v4355, 112
    %v4748 = vpop.permute.xlu0 %4747
    %4749 = vrot.lane.b32.xlu0 %v4355, 80
    %v4750 = vpop.permute.xlu0 %4749
    %v4751 = vsel %vm4361, %v4748, 0
    %v4753 = vsel %vm4361, %v4750, 0
    %4755 = vmatprep.subr.mxu0 0.0
    %4756 = vmatpush1.xpose.msra.mxu0 %v4753
    %4757 = vmatprep.subr.mxu0 0.0
    %4758 = vmatpush1.xpose.msra.mxu0 0.0
    %4759 = vmatprep.subr.mxu0 0.0
    %4760 = vmatpush1.xpose.msra.mxu0 0.0
    %4761 = vmatprep.subr.mxu0 0.0
    %4762 = vmatpush1.xpose.msra.mxu0 0.0
    %4763 = vmatprep.subr.mxu0 0.0
    %4764 = vmatpush1.xpose.msra.mxu0 0.0
    %4765 = vmatprep.subr.mxu0 0.0
    %4766 = vmatpush1.xpose.msra.mxu0 0.0
    %4767 = vmatprep.subr.mxu0 0.0
    %4768 = vmatpush1.xpose.msra.mxu0 0.0
    %4769 = vmatprep.subr.mxu0 0.0
    %4770 = vmatpush1.xpose.msra.mxu0 0.0
    %4771 = vmatprep.subr.mxu0 0.0
    %4772 = vmatpush1.xpose.msra.mxu0 0.0
    %4773 = vmatprep.subr.mxu0 0.0
    %4774 = vmatpush1.xpose.msra.mxu0 0.0
    %4775 = vmatprep.subr.mxu0 0.0
    %4776 = vmatpush1.xpose.msra.mxu0 0.0
    %4777 = vmatprep.subr.mxu0 0.0
    %4778 = vmatpush1.xpose.msra.mxu0 0.0
    %4779 = vmatprep.subr.mxu0 0.0
    %4780 = vmatpush1.xpose.msra.mxu0 0.0
    %4781 = vmatprep.subr.mxu0 0.0
    %4782 = vmatpush1.xpose.msra.mxu0 0.0
    %4783 = vmatprep.subr.mxu0 0.0
    %4784 = vmatpush1.xpose.msra.mxu0 0.0
    %4785 = vmatprep.subr.mxu0 0.0
    %4786 = vmatpush1.xpose.msra.mxu0 0.0
    %4787 = vmatprep.subr.mxu0 0.0
    %4788 = vmatpush1.xpose.msra.mxu0 0.0
    %4789 = vmatprep.subr.mxu0 0.0
    %4790 = vmatpush1.xpose.msra.mxu0 0.0
    %4791 = vmatprep.subr.mxu0 0.0
    %4792 = vmatpush1.xpose.msra.mxu0 0.0
    %4793 = vmatprep.subr.mxu0 0.0
    %4794 = vmatpush1.xpose.msra.mxu0 0.0
    %4795 = vmatprep.subr.mxu0 0.0
    %4796 = vmatpush1.xpose.msra.mxu0 0.0
    %4797 = vmatprep.subr.mxu0 0.0
    %4798 = vmatpush1.xpose.msra.mxu0 0.0
    %4799 = vmatprep.subr.mxu0 0.0
    %4800 = vmatpush1.xpose.msra.mxu0 0.0
    %4801 = vmatprep.subr.mxu0 0.0
    %4802 = vmatpush1.xpose.msra.mxu0 0.0
    %4803 = vmatprep.subr.mxu0 0.0
    %4804 = vmatpush1.xpose.msra.mxu0 0.0
    %4805 = vmatprep.subr.mxu0 0.0
    %4806 = vmatpush1.xpose.msra.mxu0 0.0
    %4807 = vmatprep.subr.mxu0 0.0
    %4808 = vmatpush1.xpose.msra.mxu0 0.0
    %4809 = vmatprep.subr.mxu0 0.0
    %4810 = vmatpush1.xpose.msra.mxu0 0.0
    %4811 = vmatprep.subr.mxu0 0.0
    %4812 = vmatpush1.xpose.msra.mxu0 0.0
    %4813 = vmatprep.subr.mxu0 0.0
    %4814 = vmatpush1.xpose.msra.mxu0 0.0
    %4815 = vmatprep.subr.mxu0 0.0
    %4816 = vmatpush1.xpose.msra.mxu0 0.0
    %4817 = vmatprep.subr.mxu0 0.0
    %4818 = vmatpush1.xpose.msra.mxu0 0.0
    %4819 = vmatprep.mubr.f32.mxu0 0.0
    %4820 = vmatmul.mubr.f32.gmra.mrb[0].mxu0 %v4751
    %v4821 = vpop.f32.mrb[0].mxu0
    %v4822 = vadd.f32 0.0, %v4821
    %v4823 = vpop.f32.mrb[0].mxu0
    %4824 = vdwg.mxu0
    %4825 = vrot.lane.b32.xlu0 %v4350, 104
    %v4826 = vpop.permute.xlu0 %4825
    %4827 = vrot.lane.b32.xlu0 %v4350, 72
    %v4828 = vpop.permute.xlu0 %4827
    %v4829 = vsel %vm4361, %v4826, 0
    %v4831 = vsel %vm4361, %v4828, 0
    %4833 = vmatprep.subr.mxu0 0.0
    %4834 = vmatpush1.xpose.msra.mxu0 %v4831
    %4835 = vmatprep.subr.mxu0 0.0
    %4836 = vmatpush1.xpose.msra.mxu0 0.0
    %4837 = vmatprep.subr.mxu0 0.0
    %4838 = vmatpush1.xpose.msra.mxu0 0.0
    %4839 = vmatprep.subr.mxu0 0.0
    %4840 = vmatpush1.xpose.msra.mxu0 0.0
    %4841 = vmatprep.subr.mxu0 0.0
    %4842 = vmatpush1.xpose.msra.mxu0 0.0
    %4843 = vmatprep.subr.mxu0 0.0
    %4844 = vmatpush1.xpose.msra.mxu0 0.0
    %4845 = vmatprep.subr.mxu0 0.0
    %4846 = vmatpush1.xpose.msra.mxu0 0.0
    %4847 = vmatprep.subr.mxu0 0.0
    %4848 = vmatpush1.xpose.msra.mxu0 0.0
    %4849 = vmatprep.subr.mxu0 0.0
    %4850 = vmatpush1.xpose.msra.mxu0 0.0
    %4851 = vmatprep.subr.mxu0 0.0
    %4852 = vmatpush1.xpose.msra.mxu0 0.0
    %4853 = vmatprep.subr.mxu0 0.0
    %4854 = vmatpush1.xpose.msra.mxu0 0.0
    %4855 = vmatprep.subr.mxu0 0.0
    %4856 = vmatpush1.xpose.msra.mxu0 0.0
    %4857 = vmatprep.subr.mxu0 0.0
    %4858 = vmatpush1.xpose.msra.mxu0 0.0
    %4859 = vmatprep.subr.mxu0 0.0
    %4860 = vmatpush1.xpose.msra.mxu0 0.0
    %4861 = vmatprep.subr.mxu0 0.0
    %4862 = vmatpush1.xpose.msra.mxu0 0.0
    %4863 = vmatprep.subr.mxu0 0.0
    %4864 = vmatpush1.xpose.msra.mxu0 0.0
    %4865 = vmatprep.subr.mxu0 0.0
    %4866 = vmatpush1.xpose.msra.mxu0 0.0
    %4867 = vmatprep.subr.mxu0 0.0
    %4868 = vmatpush1.xpose.msra.mxu0 0.0
    %4869 = vmatprep.subr.mxu0 0.0
    %4870 = vmatpush1.xpose.msra.mxu0 0.0
    %4871 = vmatprep.subr.mxu0 0.0
    %4872 = vmatpush1.xpose.msra.mxu0 0.0
    %4873 = vmatprep.subr.mxu0 0.0
    %4874 = vmatpush1.xpose.msra.mxu0 0.0
    %4875 = vmatprep.subr.mxu0 0.0
    %4876 = vmatpush1.xpose.msra.mxu0 0.0
    %4877 = vmatprep.subr.mxu0 0.0
    %4878 = vmatpush1.xpose.msra.mxu0 0.0
    %4879 = vmatprep.subr.mxu0 0.0
    %4880 = vmatpush1.xpose.msra.mxu0 0.0
    %4881 = vmatprep.subr.mxu0 0.0
    %4882 = vmatpush1.xpose.msra.mxu0 0.0
    %4883 = vmatprep.subr.mxu0 0.0
    %4884 = vmatpush1.xpose.msra.mxu0 0.0
    %4885 = vmatprep.subr.mxu0 0.0
    %4886 = vmatpush1.xpose.msra.mxu0 0.0
    %4887 = vmatprep.subr.mxu0 0.0
    %4888 = vmatpush1.xpose.msra.mxu0 0.0
    %4889 = vmatprep.subr.mxu0 0.0
    %4890 = vmatpush1.xpose.msra.mxu0 0.0
    %4891 = vmatprep.subr.mxu0 0.0
    %4892 = vmatpush1.xpose.msra.mxu0 0.0
    %4893 = vmatprep.subr.mxu0 0.0
    %4894 = vmatpush1.xpose.msra.mxu0 0.0
    %4895 = vmatprep.subr.mxu0 0.0
    %4896 = vmatpush1.xpose.msra.mxu0 0.0
    %4897 = vmatprep.mubr.f32.mxu0 0.0
    %4898 = vmatmul.mubr.f32.gmra.mrb[0].mxu0 %v4829
    %v4899 = vpop.f32.mrb[0].mxu0
    %v4900 = vadd.f32 0.0, %v4899
    %v4901 = vpop.f32.mrb[0].mxu0
    %4902 = vdwg.mxu0
    %4903 = vrot.lane.b32.xlu0 %v4355, 104
    %v4904 = vpop.permute.xlu0 %4903
    %4905 = vrot.lane.b32.xlu0 %v4355, 72
    %v4906 = vpop.permute.xlu0 %4905
    %v4907 = vsel %vm4361, %v4904, 0
    %v4909 = vsel %vm4361, %v4906, 0
    %4911 = vmatprep.subr.mxu0 0.0
    %4912 = vmatpush1.xpose.msra.mxu0 %v4909
    %4913 = vmatprep.subr.mxu0 0.0
    %4914 = vmatpush1.xpose.msra.mxu0 0.0
    %4915 = vmatprep.subr.mxu0 0.0
    %4916 = vmatpush1.xpose.msra.mxu0 0.0
    %4917 = vmatprep.subr.mxu0 0.0
    %4918 = vmatpush1.xpose.msra.mxu0 0.0
    %4919 = vmatprep.subr.mxu0 0.0
    %4920 = vmatpush1.xpose.msra.mxu0 0.0
    %4921 = vmatprep.subr.mxu0 0.0
    %4922 = vmatpush1.xpose.msra.mxu0 0.0
    %4923 = vmatprep.subr.mxu0 0.0
    %4924 = vmatpush1.xpose.msra.mxu0 0.0
    %4925 = vmatprep.subr.mxu0 0.0
    %4926 = vmatpush1.xpose.msra.mxu0 0.0
    %4927 = vmatprep.subr.mxu0 0.0
    %4928 = vmatpush1.xpose.msra.mxu0 0.0
    %4929 = vmatprep.subr.mxu0 0.0
    %4930 = vmatpush1.xpose.msra.mxu0 0.0
    %4931 = vmatprep.subr.mxu0 0.0
    %4932 = vmatpush1.xpose.msra.mxu0 0.0
    %4933 = vmatprep.subr.mxu0 0.0
    %4934 = vmatpush1.xpose.msra.mxu0 0.0
    %4935 = vmatprep.subr.mxu0 0.0
    %4936 = vmatpush1.xpose.msra.mxu0 0.0
    %4937 = vmatprep.subr.mxu0 0.0
    %4938 = vmatpush1.xpose.msra.mxu0 0.0
    %4939 = vmatprep.subr.mxu0 0.0
    %4940 = vmatpush1.xpose.msra.mxu0 0.0
    %4941 = vmatprep.subr.mxu0 0.0
    %4942 = vmatpush1.xpose.msra.mxu0 0.0
    %4943 = vmatprep.subr.mxu0 0.0
    %4944 = vmatpush1.xpose.msra.mxu0 0.0
    %4945 = vmatprep.subr.mxu0 0.0
    %4946 = vmatpush1.xpose.msra.mxu0 0.0
    %4947 = vmatprep.subr.mxu0 0.0
    %4948 = vmatpush1.xpose.msra.mxu0 0.0
    %4949 = vmatprep.subr.mxu0 0.0
    %4950 = vmatpush1.xpose.msra.mxu0 0.0
    %4951 = vmatprep.subr.mxu0 0.0
    %4952 = vmatpush1.xpose.msra.mxu0 0.0
    %4953 = vmatprep.subr.mxu0 0.0
    %4954 = vmatpush1.xpose.msra.mxu0 0.0
    %4955 = vmatprep.subr.mxu0 0.0
    %4956 = vmatpush1.xpose.msra.mxu0 0.0
    %4957 = vmatprep.subr.mxu0 0.0
    %4958 = vmatpush1.xpose.msra.mxu0 0.0
    %4959 = vmatprep.subr.mxu0 0.0
    %4960 = vmatpush1.xpose.msra.mxu0 0.0
    %4961 = vmatprep.subr.mxu0 0.0
    %4962 = vmatpush1.xpose.msra.mxu0 0.0
    %4963 = vmatprep.subr.mxu0 0.0
    %4964 = vmatpush1.xpose.msra.mxu0 0.0
    %4965 = vmatprep.subr.mxu0 0.0
    %4966 = vmatpush1.xpose.msra.mxu0 0.0
    %4967 = vmatprep.subr.mxu0 0.0
    %4968 = vmatpush1.xpose.msra.mxu0 0.0
    %4969 = vmatprep.subr.mxu0 0.0
    %4970 = vmatpush1.xpose.msra.mxu0 0.0
    %4971 = vmatprep.subr.mxu0 0.0
    %4972 = vmatpush1.xpose.msra.mxu0 0.0
    %4973 = vmatprep.subr.mxu0 0.0
    %4974 = vmatpush1.xpose.msra.mxu0 0.0
    %4975 = vmatprep.mubr.f32.mxu0 0.0
    %4976 = vmatmul.mubr.f32.gmra.mrb[0].mxu0 %v4907
    %v4977 = vpop.f32.mrb[0].mxu0
    %v4978 = vadd.f32 0.0, %v4977
    %v4979 = vpop.f32.mrb[0].mxu0
    %4980 = vdwg.mxu0
    %4983 = vrot.lane.b32.xlu0 %v4588, 8
    %v4984 = vpop.permute.xlu0 %4983
    %4985 = vrot.lane.b32.xlu0 %v4666, 8
    %v4986 = vpop.permute.xlu0 %4985
    %4991 = vrot.lane.b32.xlu0 %v4744, 16
    %v4992 = vpop.permute.xlu0 %4991
    %4993 = vrot.lane.b32.xlu0 %v4822, 16
    %v4994 = vpop.permute.xlu0 %4993
    %4999 = vrot.lane.b32.xlu0 %v4900, 24
    %v5000 = vpop.permute.xlu0 %4999
    %5001 = vrot.lane.b32.xlu0 %v4978, 24
    %v5002 = vpop.permute.xlu0 %5001
    %v5005 = vsel %vm4361, %v4433, %v4984
    %v5006 = vsel %vm4361, %v4510, %v4986
    %vm5007 = vcmask 130048
    %v5008 = vsel %vm5007, %v5005, %v4992
    %v5009 = vsel %vm5007, %v5006, %v4994
    %vm5010 = vcmask 195584
    %v5011 = vsel %vm5010, %v5008, %v5000
    %v5012 = vsel %vm5010, %v5009, %v5002
    %v5013 = vld [vmem:[#allocation3 + $0x808] sm:$0xff]
    %v5014 = vadd.f32 %v5011, %v5013
    %v5015 = vadd.f32 %v5012, %v5013
    %v5016 = vsel %vm53, %v5014, -inf
    %5017 = vmax.xlane.f32.xlu0 %v5016
    %v5018 = vpop.xlane.xlu0 %5017
    %v5019 = vsel %vm53, %v5015, -inf
    %5020 = vmax.xlane.f32.xlu0 %v5019
    %v5021 = vpop.xlane.xlu0 %5020
    %v5022 = vsub.f32 %v5014, %v5018
    %v5023 = vsub.f32 %v5015, %v5021
    %v5024 = vmul.f32 %v5022, 1.442695
    %v5025 = vpow.pop %v5024
    %v5026 = vmul.f32 %v5023, 1.442695
    %v5027 = vpow.pop %v5026
    %v5028 = vld [vmem:[#allocation3 + $0x810] sm:$0xff]
    %v5029 = vld [vmem:[#allocation3 + $0x818] sm:$0xff]
    %v5030 = vld [vmem:[#allocation3 + $0x820] sm:$0xff]
    %v5031 = vld [vmem:[#allocation3 + $0x828] sm:$0xff]
    %v5033 = vsel %vm53, %v5025, 0
    %v5036 = vsel %vm53, %v5027, 0
    %5038 = vmatprep.subr.mxu0 0.0
    %5039 = vmatpush1.msra.mxu0 %v5028
    %5040 = vmatprep.subr.mxu0 0.0
    %5041 = vmatpush1.msra.mxu0 %v5029
    %5042 = vmatprep.subr.mxu0 0.0
    %5043 = vmatpush1.msra.mxu0 %v5030
    %5044 = vmatprep.subr.mxu0 0.0
    %5045 = vmatpush1.msra.mxu0 %v5031
    %5046 = vmatprep.subr.mxu0 0.0
    %5047 = vmatpush1.msra.mxu0 0.0
    %5048 = vmatprep.subr.mxu0 0.0
    %5049 = vmatpush1.msra.mxu0 0.0
    %5050 = vmatprep.subr.mxu0 0.0
    %5051 = vmatpush1.msra.mxu0 0.0
    %5052 = vmatprep.subr.mxu0 0.0
    %5053 = vmatpush1.msra.mxu0 0.0
    %5054 = vmatprep.subr.mxu0 0.0
    %5055 = vmatpush1.msra.mxu0 0.0
    %5056 = vmatprep.subr.mxu0 0.0
    %5057 = vmatpush1.msra.mxu0 0.0
    %5058 = vmatprep.subr.mxu0 0.0
    %5059 = vmatpush1.msra.mxu0 0.0
    %5060 = vmatprep.subr.mxu0 0.0
    %5061 = vmatpush1.msra.mxu0 0.0
    %5062 = vmatprep.subr.mxu0 0.0
    %5063 = vmatpush1.msra.mxu0 0.0
    %5064 = vmatprep.subr.mxu0 0.0
    %5065 = vmatpush1.msra.mxu0 0.0
    %5066 = vmatprep.subr.mxu0 0.0
    %5067 = vmatpush1.msra.mxu0 0.0
    %5068 = vmatprep.subr.mxu0 0.0
    %5069 = vmatpush1.msra.mxu0 0.0
    %5070 = vmatprep.subr.mxu0 0.0
    %5071 = vmatpush1.msra.mxu0 0.0
    %5072 = vmatprep.subr.mxu0 0.0
    %5073 = vmatpush1.msra.mxu0 0.0
    %5074 = vmatprep.subr.mxu0 0.0
    %5075 = vmatpush1.msra.mxu0 0.0
    %5076 = vmatprep.subr.mxu0 0.0
    %5077 = vmatpush1.msra.mxu0 0.0
    %5078 = vmatprep.subr.mxu0 0.0
    %5079 = vmatpush1.msra.mxu0 0.0
    %5080 = vmatprep.subr.mxu0 0.0
    %5081 = vmatpush1.msra.mxu0 0.0
    %5082 = vmatprep.subr.mxu0 0.0
    %5083 = vmatpush1.msra.mxu0 0.0
    %5084 = vmatprep.subr.mxu0 0.0
    %5085 = vmatpush1.msra.mxu0 0.0
    %5086 = vmatprep.subr.mxu0 0.0
    %5087 = vmatpush1.msra.mxu0 0.0
    %5088 = vmatprep.subr.mxu0 0.0
    %5089 = vmatpush1.msra.mxu0 0.0
    %5090 = vmatprep.subr.mxu0 0.0
    %5091 = vmatpush1.msra.mxu0 0.0
    %5092 = vmatprep.subr.mxu0 0.0
    %5093 = vmatpush1.msra.mxu0 0.0
    %5094 = vmatprep.subr.mxu0 0.0
    %5095 = vmatpush1.msra.mxu0 0.0
    %5096 = vmatprep.subr.mxu0 0.0
    %5097 = vmatpush1.msra.mxu0 0.0
    %5098 = vmatprep.subr.mxu0 0.0
    %5099 = vmatpush1.msra.mxu0 0.0
    %5100 = vmatprep.subr.mxu0 0.0
    %5101 = vmatpush1.msra.mxu0 0.0
    %5102 = vmatprep.mubr.f32.mxu0 0.0
    %5103 = vmatmul.mubr.f32.gmra.mrb[0].mxu0 %v5033
    %v5104 = vpop.f32.mrb[0].mxu0
    %v5105 = vadd.f32 0.0, %v5104
    %v5106 = vpop.f32.mrb[0].mxu0
    %5107 = vmatprep.mubr.f32.mxu0 0.0
    %5108 = vmatmul.mubr.f32.gmra.mrb[0].mxu0 %v5036
    %v5109 = vpop.f32.mrb[0].mxu0
    %v5110 = vadd.f32 0.0, %v5109
    %v5111 = vpop.f32.mrb[0].mxu0
    %5112 = vdwg.mxu0
    %v5113 = vmax.f32 %v5105, 1e-30
    %v5114 = vmax.f32 %v5110, 1e-30
    %v5115 = vrcp.pop %v5113
    %v5116 = vmul.f32 1.0, %v5115
    %v5117 = vrcp.pop %v5114
    %v5118 = vmul.f32 1.0, %v5117
    %v5119 = vld [vmem:[#allocation3 + $0x830] sm:$0xf]
    %v5121 = vsel %vm330, %v5116, 0
    %v5124 = vsel %vm330, %v5118, 0
    %v5127 = vsel %vm337, %v5119, 0
    %5129 = vmatprep.subr.mxu0 0.0
    %5130 = vmatpush1.msra.mxu0 %v5127
    %5131 = vmatprep.subr.mxu0 0.0
    %5132 = vmatpush1.msra.mxu0 0.0
    %5133 = vmatprep.subr.mxu0 0.0
    %5134 = vmatpush1.msra.mxu0 0.0
    %5135 = vmatprep.subr.mxu0 0.0
    %5136 = vmatpush1.msra.mxu0 0.0
    %5137 = vmatprep.subr.mxu0 0.0
    %5138 = vmatpush1.msra.mxu0 0.0
    %5139 = vmatprep.subr.mxu0 0.0
    %5140 = vmatpush1.msra.mxu0 0.0
    %5141 = vmatprep.subr.mxu0 0.0
    %5142 = vmatpush1.msra.mxu0 0.0
    %5143 = vmatprep.subr.mxu0 0.0
    %5144 = vmatpush1.msra.mxu0 0.0
    %5145 = vmatprep.subr.mxu0 0.0
    %5146 = vmatpush1.msra.mxu0 0.0
    %5147 = vmatprep.subr.mxu0 0.0
    %5148 = vmatpush1.msra.mxu0 0.0
    %5149 = vmatprep.subr.mxu0 0.0
    %5150 = vmatpush1.msra.mxu0 0.0
    %5151 = vmatprep.subr.mxu0 0.0
    %5152 = vmatpush1.msra.mxu0 0.0
    %5153 = vmatprep.subr.mxu0 0.0
    %5154 = vmatpush1.msra.mxu0 0.0
    %5155 = vmatprep.subr.mxu0 0.0
    %5156 = vmatpush1.msra.mxu0 0.0
    %5157 = vmatprep.subr.mxu0 0.0
    %5158 = vmatpush1.msra.mxu0 0.0
    %5159 = vmatprep.subr.mxu0 0.0
    %5160 = vmatpush1.msra.mxu0 0.0
    %5161 = vmatprep.subr.mxu0 0.0
    %5162 = vmatpush1.msra.mxu0 0.0
    %5163 = vmatprep.subr.mxu0 0.0
    %5164 = vmatpush1.msra.mxu0 0.0
    %5165 = vmatprep.subr.mxu0 0.0
    %5166 = vmatpush1.msra.mxu0 0.0
    %5167 = vmatprep.subr.mxu0 0.0
    %5168 = vmatpush1.msra.mxu0 0.0
    %5169 = vmatprep.subr.mxu0 0.0
    %5170 = vmatpush1.msra.mxu0 0.0
    %5171 = vmatprep.subr.mxu0 0.0
    %5172 = vmatpush1.msra.mxu0 0.0
    %5173 = vmatprep.subr.mxu0 0.0
    %5174 = vmatpush1.msra.mxu0 0.0
    %5175 = vmatprep.subr.mxu0 0.0
    %5176 = vmatpush1.msra.mxu0 0.0
    %5177 = vmatprep.subr.mxu0 0.0
    %5178 = vmatpush1.msra.mxu0 0.0
    %5179 = vmatprep.subr.mxu0 0.0
    %5180 = vmatpush1.msra.mxu0 0.0
    %5181 = vmatprep.subr.mxu0 0.0
    %5182 = vmatpush1.msra.mxu0 0.0
    %5183 = vmatprep.subr.mxu0 0.0
    %5184 = vmatpush1.msra.mxu0 0.0
    %5185 = vmatprep.subr.mxu0 0.0
    %5186 = vmatpush1.msra.mxu0 0.0
    %5187 = vmatprep.subr.mxu0 0.0
    %5188 = vmatpush1.msra.mxu0 0.0
    %5189 = vmatprep.subr.mxu0 0.0
    %5190 = vmatpush1.msra.mxu0 0.0
    %5191 = vmatprep.subr.mxu0 0.0
    %5192 = vmatpush1.msra.mxu0 0.0
    %5193 = vmatprep.mubr.f32.mxu0 0.0
    %5194 = vmatmul.mubr.f32.gmra.mrb[0].mxu0 %v5121
    %v5195 = vpop.f32.mrb[0].mxu0
    %v5196 = vadd.f32 0.0, %v5195
    %v5197 = vpop.f32.mrb[0].mxu0
    %5198 = vmatprep.mubr.f32.mxu0 0.0
    %5199 = vmatmul.mubr.f32.gmra.mrb[0].mxu0 %v5124
    %v5200 = vpop.f32.mrb[0].mxu0
    %v5201 = vadd.f32 0.0, %v5200
    %v5202 = vpop.f32.mrb[0].mxu0
    %5203 = vdwg.mxu0
    %v5204 = vmul.f32 %v5025, %v5196
    %v5205 = vmul.f32 %v5027, %v5201
    %v5206 = vld [vmem:[#allocation3 + $0x838] sm:$0xff]
    %v5207 = vld [vmem:[#allocation3 + $0x840] sm:$0xff]
    %v5208 = vld [vmem:[#allocation3 + $0x848] sm:$0xff]
    %v5209 = vld [vmem:[#allocation3 + $0x850] sm:$0xff]
    %v5211 = vsel %vm53, %v5204, 0
    %v5214 = vsel %vm53, %v5205, 0
    %5216 = vmatprep.subr.mxu0 0.0
    %5217 = vmatpush1.msra.mxu0 %v5206
    %5218 = vmatprep.subr.mxu0 0.0
    %5219 = vmatpush1.msra.mxu0 %v5207
    %5220 = vmatprep.subr.mxu0 0.0
    %5221 = vmatpush1.msra.mxu0 %v5208
    %5222 = vmatprep.subr.mxu0 0.0
    %5223 = vmatpush1.msra.mxu0 %v5209
    %5224 = vmatprep.subr.mxu0 0.0
    %5225 = vmatpush1.msra.mxu0 0.0
    %5226 = vmatprep.subr.mxu0 0.0
    %5227 = vmatpush1.msra.mxu0 0.0
    %5228 = vmatprep.subr.mxu0 0.0
    %5229 = vmatpush1.msra.mxu0 0.0
    %5230 = vmatprep.subr.mxu0 0.0
    %5231 = vmatpush1.msra.mxu0 0.0
    %5232 = vmatprep.subr.mxu0 0.0
    %5233 = vmatpush1.msra.mxu0 0.0
    %5234 = vmatprep.subr.mxu0 0.0
    %5235 = vmatpush1.msra.mxu0 0.0
    %5236 = vmatprep.subr.mxu0 0.0
    %5237 = vmatpush1.msra.mxu0 0.0
    %5238 = vmatprep.subr.mxu0 0.0
    %5239 = vmatpush1.msra.mxu0 0.0
    %5240 = vmatprep.subr.mxu0 0.0
    %5241 = vmatpush1.msra.mxu0 0.0
    %5242 = vmatprep.subr.mxu0 0.0
    %5243 = vmatpush1.msra.mxu0 0.0
    %5244 = vmatprep.subr.mxu0 0.0
    %5245 = vmatpush1.msra.mxu0 0.0
    %5246 = vmatprep.subr.mxu0 0.0
    %5247 = vmatpush1.msra.mxu0 0.0
    %5248 = vmatprep.subr.mxu0 0.0
    %5249 = vmatpush1.msra.mxu0 0.0
    %5250 = vmatprep.subr.mxu0 0.0
    %5251 = vmatpush1.msra.mxu0 0.0
    %5252 = vmatprep.subr.mxu0 0.0
    %5253 = vmatpush1.msra.mxu0 0.0
    %5254 = vmatprep.subr.mxu0 0.0
    %5255 = vmatpush1.msra.mxu0 0.0
    %5256 = vmatprep.subr.mxu0 0.0
    %5257 = vmatpush1.msra.mxu0 0.0
    %5258 = vmatprep.subr.mxu0 0.0
    %5259 = vmatpush1.msra.mxu0 0.0
    %5260 = vmatprep.subr.mxu0 0.0
    %5261 = vmatpush1.msra.mxu0 0.0
    %5262 = vmatprep.subr.mxu0 0.0
    %5263 = vmatpush1.msra.mxu0 0.0
    %5264 = vmatprep.subr.mxu0 0.0
    %5265 = vmatpush1.msra.mxu0 0.0
    %5266 = vmatprep.subr.mxu0 0.0
    %5267 = vmatpush1.msra.mxu0 0.0
    %5268 = vmatprep.subr.mxu0 0.0
    %5269 = vmatpush1.msra.mxu0 0.0
    %5270 = vmatprep.subr.mxu0 0.0
    %5271 = vmatpush1.msra.mxu0 0.0
    %5272 = vmatprep.subr.mxu0 0.0
    %5273 = vmatpush1.msra.mxu0 0.0
    %5274 = vmatprep.subr.mxu0 0.0
    %5275 = vmatpush1.msra.mxu0 0.0
    %5276 = vmatprep.subr.mxu0 0.0
    %5277 = vmatpush1.msra.mxu0 0.0
    %5278 = vmatprep.subr.mxu0 0.0
    %5279 = vmatpush1.msra.mxu0 0.0
    %5280 = vmatprep.mubr.f32.mxu0 0.0
    %5281 = vmatmul.mubr.f32.gmra.mrb[0].mxu0 %v5211
    %v5282 = vpop.f32.mrb[0].mxu0
    %v5283 = vadd.f32 0.0, %v5282
    %v5284 = vpop.f32.mrb[0].mxu0
    %5285 = vmatprep.mubr.f32.mxu0 0.0
    %5286 = vmatmul.mubr.f32.gmra.mrb[0].mxu0 %v5214
    %v5287 = vpop.f32.mrb[0].mxu0
    %v5288 = vadd.f32 0.0, %v5287
    %v5289 = vpop.f32.mrb[0].mxu0
    %5290 = vdwg.mxu0
    %5291 = vrot.lane.b32.xlu0 %v4350, 64
    %v5292 = vpop.permute.xlu0 %5291
    %v5295 = vsel %vm4361, %v5283, 0
    %5297 = vmatprep.subr.mxu0 0.0
    %5298 = vmatpush1.msra.mxu0 %v5292
    %5299 = vmatprep.subr.mxu0 0.0
    %5300 = vmatpush1.msra.mxu0 0.0
    %5301 = vmatprep.subr.mxu0 0.0
    %5302 = vmatpush1.msra.mxu0 0.0
    %5303 = vmatprep.subr.mxu0 0.0
    %5304 = vmatpush1.msra.mxu0 0.0
    %5305 = vmatprep.subr.mxu0 0.0
    %5306 = vmatpush1.msra.mxu0 0.0
    %5307 = vmatprep.subr.mxu0 0.0
    %5308 = vmatpush1.msra.mxu0 0.0
    %5309 = vmatprep.subr.mxu0 0.0
    %5310 = vmatpush1.msra.mxu0 0.0
    %5311 = vmatprep.subr.mxu0 0.0
    %5312 = vmatpush1.msra.mxu0 0.0
    %5313 = vmatprep.subr.mxu0 0.0
    %5314 = vmatpush1.msra.mxu0 0.0
    %5315 = vmatprep.subr.mxu0 0.0
    %5316 = vmatpush1.msra.mxu0 0.0
    %5317 = vmatprep.subr.mxu0 0.0
    %5318 = vmatpush1.msra.mxu0 0.0
    %5319 = vmatprep.subr.mxu0 0.0
    %5320 = vmatpush1.msra.mxu0 0.0
    %5321 = vmatprep.subr.mxu0 0.0
    %5322 = vmatpush1.msra.mxu0 0.0
    %5323 = vmatprep.subr.mxu0 0.0
    %5324 = vmatpush1.msra.mxu0 0.0
    %5325 = vmatprep.subr.mxu0 0.0
    %5326 = vmatpush1.msra.mxu0 0.0
    %5327 = vmatprep.subr.mxu0 0.0
    %5328 = vmatpush1.msra.mxu0 0.0
    %5329 = vmatprep.subr.mxu0 0.0
    %5330 = vmatpush1.msra.mxu0 0.0
    %5331 = vmatprep.subr.mxu0 0.0
    %5332 = vmatpush1.msra.mxu0 0.0
    %5333 = vmatprep.subr.mxu0 0.0
    %5334 = vmatpush1.msra.mxu0 0.0
    %5335 = vmatprep.subr.mxu0 0.0
    %5336 = vmatpush1.msra.mxu0 0.0
    %5337 = vmatprep.subr.mxu0 0.0
    %5338 = vmatpush1.msra.mxu0 0.0
    %5339 = vmatprep.subr.mxu0 0.0
    %5340 = vmatpush1.msra.mxu0 0.0
    %5341 = vmatprep.subr.mxu0 0.0
    %5342 = vmatpush1.msra.mxu0 0.0
    %5343 = vmatprep.subr.mxu0 0.0
    %5344 = vmatpush1.msra.mxu0 0.0
    %5345 = vmatprep.subr.mxu0 0.0
    %5346 = vmatpush1.msra.mxu0 0.0
    %5347 = vmatprep.subr.mxu0 0.0
    %5348 = vmatpush1.msra.mxu0 0.0
    %5349 = vmatprep.subr.mxu0 0.0
    %5350 = vmatpush1.msra.mxu0 0.0
    %5351 = vmatprep.subr.mxu0 0.0
    %5352 = vmatpush1.msra.mxu0 0.0
    %5353 = vmatprep.subr.mxu0 0.0
    %5354 = vmatpush1.msra.mxu0 0.0
    %5355 = vmatprep.subr.mxu0 0.0
    %5356 = vmatpush1.msra.mxu0 0.0
    %5357 = vmatprep.subr.mxu0 0.0
    %5358 = vmatpush1.msra.mxu0 0.0
    %5359 = vmatprep.subr.mxu0 0.0
    %5360 = vmatpush1.msra.mxu0 0.0
    %5361 = vmatprep.mubr.f32.mxu0 0.0
    %5362 = vmatmul.mubr.f32.gmra.mrb[0].mxu0 %v5295
    %v5363 = vpop.f32.mrb[0].mxu0
    %v5364 = vadd.f32 0.0, %v5363
    %v5365 = vpop.f32.mrb[0].mxu0
    %5366 = vdwg.mxu0
    %5367 = vrot.lane.b32.xlu0 %v4355, 64
    %v5368 = vpop.permute.xlu0 %5367
    %v5371 = vsel %vm4361, %v5288, 0
    %5373 = vmatprep.subr.mxu0 0.0
    %5374 = vmatpush1.msra.mxu0 %v5368
    %5375 = vmatprep.subr.mxu0 0.0
    %5376 = vmatpush1.msra.mxu0 0.0
    %5377 = vmatprep.subr.mxu0 0.0
    %5378 = vmatpush1.msra.mxu0 0.0
    %5379 = vmatprep.subr.mxu0 0.0
    %5380 = vmatpush1.msra.mxu0 0.0
    %5381 = vmatprep.subr.mxu0 0.0
    %5382 = vmatpush1.msra.mxu0 0.0
    %5383 = vmatprep.subr.mxu0 0.0
    %5384 = vmatpush1.msra.mxu0 0.0
    %5385 = vmatprep.subr.mxu0 0.0
    %5386 = vmatpush1.msra.mxu0 0.0
    %5387 = vmatprep.subr.mxu0 0.0
    %5388 = vmatpush1.msra.mxu0 0.0
    %5389 = vmatprep.subr.mxu0 0.0
    %5390 = vmatpush1.msra.mxu0 0.0
    %5391 = vmatprep.subr.mxu0 0.0
    %5392 = vmatpush1.msra.mxu0 0.0
    %5393 = vmatprep.subr.mxu0 0.0
    %5394 = vmatpush1.msra.mxu0 0.0
    %5395 = vmatprep.subr.mxu0 0.0
    %5396 = vmatpush1.msra.mxu0 0.0
    %5397 = vmatprep.subr.mxu0 0.0
    %5398 = vmatpush1.msra.mxu0 0.0
    %5399 = vmatprep.subr.mxu0 0.0
    %5400 = vmatpush1.msra.mxu0 0.0
    %5401 = vmatprep.subr.mxu0 0.0
    %5402 = vmatpush1.msra.mxu0 0.0
    %5403 = vmatprep.subr.mxu0 0.0
    %5404 = vmatpush1.msra.mxu0 0.0
    %5405 = vmatprep.subr.mxu0 0.0
    %5406 = vmatpush1.msra.mxu0 0.0
    %5407 = vmatprep.subr.mxu0 0.0
    %5408 = vmatpush1.msra.mxu0 0.0
    %5409 = vmatprep.subr.mxu0 0.0
    %5410 = vmatpush1.msra.mxu0 0.0
    %5411 = vmatprep.subr.mxu0 0.0
    %5412 = vmatpush1.msra.mxu0 0.0
    %5413 = vmatprep.subr.mxu0 0.0
    %5414 = vmatpush1.msra.mxu0 0.0
    %5415 = vmatprep.subr.mxu0 0.0
    %5416 = vmatpush1.msra.mxu0 0.0
    %5417 = vmatprep.subr.mxu0 0.0
    %5418 = vmatpush1.msra.mxu0 0.0
    %5419 = vmatprep.subr.mxu0 0.0
    %5420 = vmatpush1.msra.mxu0 0.0
    %5421 = vmatprep.subr.mxu0 0.0
    %5422 = vmatpush1.msra.mxu0 0.0
    %5423 = vmatprep.subr.mxu0 0.0
    %5424 = vmatpush1.msra.mxu0 0.0
    %5425 = vmatprep.subr.mxu0 0.0
    %5426 = vmatpush1.msra.mxu0 0.0
    %5427 = vmatprep.subr.mxu0 0.0
    %5428 = vmatpush1.msra.mxu0 0.0
    %5429 = vmatprep.subr.mxu0 0.0
    %5430 = vmatpush1.msra.mxu0 0.0
    %5431 = vmatprep.subr.mxu0 0.0
    %5432 = vmatpush1.msra.mxu0 0.0
    %5433 = vmatprep.subr.mxu0 0.0
    %5434 = vmatpush1.msra.mxu0 0.0
    %5435 = vmatprep.subr.mxu0 0.0
    %5436 = vmatpush1.msra.mxu0 0.0
    %5437 = vmatprep.mubr.f32.mxu0 0.0
    %5438 = vmatmul.mubr.f32.gmra.mrb[0].mxu0 %v5371
    %v5439 = vpop.f32.mrb[0].mxu0
    %v5440 = vadd.f32 0.0, %v5439
    %v5441 = vpop.f32.mrb[0].mxu0
    %5442 = vdwg.mxu0
    %v5443 = vld [vmem:[#allocation3 + $0x800] sm:$0xff]
    %v5445 = vsel %vm4361, %v5364, 0
    %v5448 = vsel %vm4361, %v5440, 0
    %5450 = vmatprep.subr.mxu0 0.0
    %5451 = vmatpush1.msra.mxu0 %v5443
    %5452 = vmatprep.subr.mxu0 0.0
    %5453 = vmatpush1.msra.mxu0 0.0
    %5454 = vmatprep.subr.mxu0 0.0
    %5455 = vmatpush1.msra.mxu0 0.0
    %5456 = vmatprep.subr.mxu0 0.0
    %5457 = vmatpush1.msra.mxu0 0.0
    %5458 = vmatprep.subr.mxu0 0.0
    %5459 = vmatpush1.msra.mxu0 0.0
    %5460 = vmatprep.subr.mxu0 0.0
    %5461 = vmatpush1.msra.mxu0 0.0
    %5462 = vmatprep.subr.mxu0 0.0
    %5463 = vmatpush1.msra.mxu0 0.0
    %5464 = vmatprep.subr.mxu0 0.0
    %5465 = vmatpush1.msra.mxu0 0.0
    %5466 = vmatprep.subr.mxu0 0.0
    %5467 = vmatpush1.msra.mxu0 0.0
    %5468 = vmatprep.subr.mxu0 0.0
    %5469 = vmatpush1.msra.mxu0 0.0
    %5470 = vmatprep.subr.mxu0 0.0
    %5471 = vmatpush1.msra.mxu0 0.0
    %5472 = vmatprep.subr.mxu0 0.0
    %5473 = vmatpush1.msra.mxu0 0.0
    %5474 = vmatprep.subr.mxu0 0.0
    %5475 = vmatpush1.msra.mxu0 0.0
    %5476 = vmatprep.subr.mxu0 0.0
    %5477 = vmatpush1.msra.mxu0 0.0
    %5478 = vmatprep.subr.mxu0 0.0
    %5479 = vmatpush1.msra.mxu0 0.0
    %5480 = vmatprep.subr.mxu0 0.0
    %5481 = vmatpush1.msra.mxu0 0.0
    %5482 = vmatprep.subr.mxu0 0.0
    %5483 = vmatpush1.msra.mxu0 0.0
    %5484 = vmatprep.subr.mxu0 0.0
    %5485 = vmatpush1.msra.mxu0 0.0
    %5486 = vmatprep.subr.mxu0 0.0
    %5487 = vmatpush1.msra.mxu0 0.0
    %5488 = vmatprep.subr.mxu0 0.0
    %5489 = vmatpush1.msra.mxu0 0.0
    %5490 = vmatprep.subr.mxu0 0.0
    %5491 = vmatpush1.msra.mxu0 0.0
    %5492 = vmatprep.subr.mxu0 0.0
    %5493 = vmatpush1.msra.mxu0 0.0
    %5494 = vmatprep.subr.mxu0 0.0
    %5495 = vmatpush1.msra.mxu0 0.0
    %5496 = vmatprep.subr.mxu0 0.0
    %5497 = vmatpush1.msra.mxu0 0.0
    %5498 = vmatprep.subr.mxu0 0.0
    %5499 = vmatpush1.msra.mxu0 0.0
    %5500 = vmatprep.subr.mxu0 0.0
    %5501 = vmatpush1.msra.mxu0 0.0
    %5502 = vmatprep.subr.mxu0 0.0
    %5503 = vmatpush1.msra.mxu0 0.0
    %5504 = vmatprep.subr.mxu0 0.0
    %5505 = vmatpush1.msra.mxu0 0.0
    %5506 = vmatprep.subr.mxu0 0.0
    %5507 = vmatpush1.msra.mxu0 0.0
    %5508 = vmatprep.subr.mxu0 0.0
    %5509 = vmatpush1.msra.mxu0 0.0
    %5510 = vmatprep.subr.mxu0 0.0
    %5511 = vmatpush1.msra.mxu0 0.0
    %5512 = vmatprep.subr.mxu0 0.0
    %5513 = vmatpush1.msra.mxu0 0.0
    %5514 = vmatprep.mubr.f32.mxu0 0.0
    %5515 = vmatmul.mubr.f32.gmra.mrb[0].mxu0 %v5445
    %v5516 = vpop.f32.mrb[0].mxu0
    %v5517 = vadd.f32 0.0, %v5516
    %v5518 = vpop.f32.mrb[0].mxu0
    %5519 = vmatprep.mubr.f32.mxu0 0.0
    %5520 = vmatmul.mubr.f32.gmra.mrb[0].mxu0 %v5448
    %v5521 = vpop.f32.mrb[0].mxu0
    %v5522 = vadd.f32 0.0, %v5521
    %v5523 = vpop.f32.mrb[0].mxu0
    %5524 = vdwg.mxu0
    %v5525 = vld [vmem:[#allocation3 + $0x858] sm:$0xff]
    %v5526 = vld [vmem:[#allocation3 + $0x860] sm:$0xff]
    %v5527 = vld [vmem:[#allocation3 + $0x868] sm:$0xff]
    %v5528 = vld [vmem:[#allocation3 + $0x870] sm:$0xff]
    %v5529 = vld [vmem:[#allocation3 + $0x878] sm:$0x1]
    %v5530 = vld [vmem:[#allocation3 + $0x880] sm:$0x1]
    %v5531 = vld [vmem:[#allocation3 + $0x888] sm:$0x1]
    %v5532 = vlaneseq
    %v5533 = vshrl.u32 %v5532, 7
    %v5534 = vsub.s32 0, %v5533
    %v5535 = vrot.slane %v5529, %v5534
    %v5537 = vsel %vm53, %v5517, 0
    %v5540 = vsel %vm53, %v5522, 0
    %5542 = vmatprep.subr.mxu0 0.0
    %5543 = vmatpush1.msra.mxu0 %v5525
    %5544 = vmatprep.subr.mxu0 0.0
    %5545 = vmatpush1.msra.mxu0 %v5526
    %5546 = vmatprep.subr.mxu0 0.0
    %5547 = vmatpush1.msra.mxu0 %v5527
    %5548 = vmatprep.subr.mxu0 0.0
    %5549 = vmatpush1.msra.mxu0 %v5528
    %5550 = vmatprep.subr.mxu0 0.0
    %5551 = vmatpush1.msra.mxu0 0.0
    %5552 = vmatprep.subr.mxu0 0.0
    %5553 = vmatpush1.msra.mxu0 0.0
    %5554 = vmatprep.subr.mxu0 0.0
    %5555 = vmatpush1.msra.mxu0 0.0
    %5556 = vmatprep.subr.mxu0 0.0
    %5557 = vmatpush1.msra.mxu0 0.0
    %5558 = vmatprep.subr.mxu0 0.0
    %5559 = vmatpush1.msra.mxu0 0.0
    %5560 = vmatprep.subr.mxu0 0.0
    %5561 = vmatpush1.msra.mxu0 0.0
    %5562 = vmatprep.subr.mxu0 0.0
    %5563 = vmatpush1.msra.mxu0 0.0
    %5564 = vmatprep.subr.mxu0 0.0
    %5565 = vmatpush1.msra.mxu0 0.0
    %5566 = vmatprep.subr.mxu0 0.0
    %5567 = vmatpush1.msra.mxu0 0.0
    %5568 = vmatprep.subr.mxu0 0.0
    %5569 = vmatpush1.msra.mxu0 0.0
    %5570 = vmatprep.subr.mxu0 0.0
    %5571 = vmatpush1.msra.mxu0 0.0
    %5572 = vmatprep.subr.mxu0 0.0
    %5573 = vmatpush1.msra.mxu0 0.0
    %5574 = vmatprep.subr.mxu0 0.0
    %5575 = vmatpush1.msra.mxu0 0.0
    %5576 = vmatprep.subr.mxu0 0.0
    %5577 = vmatpush1.msra.mxu0 0.0
    %5578 = vmatprep.subr.mxu0 0.0
    %5579 = vmatpush1.msra.mxu0 0.0
    %5580 = vmatprep.subr.mxu0 0.0
    %5581 = vmatpush1.msra.mxu0 0.0
    %5582 = vmatprep.subr.mxu0 0.0
    %5583 = vmatpush1.msra.mxu0 0.0
    %5584 = vmatprep.subr.mxu0 0.0
    %5585 = vmatpush1.msra.mxu0 0.0
    %5586 = vmatprep.subr.mxu0 0.0
    %5587 = vmatpush1.msra.mxu0 0.0
    %5588 = vmatprep.subr.mxu0 0.0
    %5589 = vmatpush1.msra.mxu0 0.0
    %5590 = vmatprep.subr.mxu0 0.0
    %5591 = vmatpush1.msra.mxu0 0.0
    %5592 = vmatprep.subr.mxu0 0.0
    %5593 = vmatpush1.msra.mxu0 0.0
    %5594 = vmatprep.subr.mxu0 0.0
    %5595 = vmatpush1.msra.mxu0 0.0
    %5596 = vmatprep.subr.mxu0 0.0
    %5597 = vmatpush1.msra.mxu0 0.0
    %5598 = vmatprep.subr.mxu0 0.0
    %5599 = vmatpush1.msra.mxu0 0.0
    %5600 = vmatprep.subr.mxu0 0.0
    %5601 = vmatpush1.msra.mxu0 0.0
    %5602 = vmatprep.subr.mxu0 0.0
    %5603 = vmatpush1.msra.mxu0 0.0
    %5604 = vmatprep.subr.mxu0 0.0
    %5605 = vmatpush1.msra.mxu0 0.0
    %5606 = vmatprep.mubr.f32.mxu0 0.0
    %5607 = vmatmul.mubr.f32.gmra.mrb[0].mxu0 %v5537
    %v5608 = vpop.f32.mrb[0].mxu0
    %v5609 = vadd.f32 %v5535, %v5608
    %v5610 = vpop.f32.mrb[0].mxu0
    %5611 = vmatprep.mubr.f32.mxu0 0.0
    %5612 = vmatmul.mubr.f32.gmra.mrb[0].mxu0 %v5540
    %v5613 = vpop.f32.mrb[0].mxu0
    %v5614 = vadd.f32 %v5535, %v5613
    %v5615 = vpop.f32.mrb[0].mxu0
    %5616 = vdwg.mxu0
    %v5617 = vxor.u32 %v5609, 2147483648
    %v5618 = vxor.u32 %v5614, 2147483648
    %v5619 = vmul.f32 %v5617, 1.442695
    %v5620 = vpow.pop %v5619
    %v5621 = vmul.f32 %v5618, 1.442695
    %v5622 = vpow.pop %v5621
    %v5623 = vadd.f32 %v5620, 1.0
    %v5624 = vadd.f32 %v5622, 1.0
    %v5625 = vrcp.pop %v5623
    %v5626 = vmul.f32 1.0, %v5625
    %v5627 = vrcp.pop %v5624
    %v5628 = vmul.f32 1.0, %v5627
    %5631 = vrot.lane.b32.xlu0 %v5609, 96
    %v5632 = vpop.permute.xlu0 %5631
    %5633 = vrot.lane.b32.xlu0 %v5614, 96
    %v5634 = vpop.permute.xlu0 %5633
    %v5637 = vmul.f32 %v5626, %v5632
    %v5638 = vmul.f32 %v5628, %v5634
    %v5639 = vadd.f32 %v5637, %v4271
    %v5640 = vadd.f32 %v5638, %v4272
    %v5641 = vsel %vm53, %v5639, 0.0
    %5642 = vadd.xlane.f32.xlu0 %v5641
    %v5643 = vpop.xlane.xlu0 %5642
    %v5644 = vsel %vm53, %v5640, 0.0
    %5645 = vadd.xlane.f32.xlu0 %v5644
    %v5646 = vpop.xlane.xlu0 %5645
    %v5647 = vmul.f32 %v5643, %v303
    %v5648 = vmul.f32 %v5646, %v303
    %v5649 = vsub.f32 %v5639, %v5647
    %v5650 = vsub.f32 %v5640, %v5648
    %v5651 = vmul.f32 %v5649, %v5649
    %v5652 = vmul.f32 %v5650, %v5650
    %v5653 = vsel %vm53, %v5651, 0.0
    %5654 = vadd.xlane.f32.xlu0 %v5653
    %v5655 = vpop.xlane.xlu0 %5654
    %v5656 = vsel %vm53, %v5652, 0.0
    %5657 = vadd.xlane.f32.xlu0 %v5656
    %v5658 = vpop.xlane.xlu0 %5657
    %v5659 = vmul.f32 %v5655, %v303
    %v5660 = vmul.f32 %v5658, %v303
    %v5661 = vadd.f32 %v5659, 1e-05
    %v5662 = vadd.f32 %v5660, 1e-05
    %v5663 = vrsqrt.pop %v5661
    %v5664 = vrsqrt.pop %v5662
    %v5665 = vmul.f32 %v5649, %v5663
    %v5666 = vmul.f32 %v5650, %v5664
    %v5667 = vlaneseq
    %v5668 = vshrl.u32 %v5667, 7
    %v5669 = vsub.s32 0, %v5668
    %v5670 = vrot.slane %v5530, %v5669
    %v5671 = vmul.f32 %v5665, %v5670
    %v5672 = vmul.f32 %v5666, %v5670
    %v5673 = vlaneseq
    %v5674 = vshrl.u32 %v5673, 7
    %v5675 = vsub.s32 0, %v5674
    %v5676 = vrot.slane %v5531, %v5675
    %v5677 = vadd.f32 %v5671, %v5676
    %v5678 = vadd.f32 %v5672, %v5676
    %v5679 = vld [vmem:[#allocation3 + $0x890] sm:$0xff]
    %v5680 = vld [vmem:[#allocation3 + $0x898] sm:$0xff]
    %v5681 = vld [vmem:[#allocation3 + $0x8a0] sm:$0xff]
    %v5682 = vld [vmem:[#allocation3 + $0x8a8] sm:$0xff]
    %v5683 = vld [vmem:[#allocation3 + $0x8b0] sm:$0x1]
    %v5684 = vld [vmem:[#allocation3 + $0x8b8] sm:$0xff]
    %v5685 = vld [vmem:[#allocation3 + $0x8c0] sm:$0xff]
    %v5686 = vld [vmem:[#allocation3 + $0x8c8] sm:$0xff]
    %v5687 = vld [vmem:[#allocation3 + $0x8d0] sm:$0xff]
    %v5688 = vld [vmem:[#allocation3 + $0x8d8] sm:$0x1]
    %v5689 = vld [vmem:[#allocation3 + $0x8e0] sm:$0xff]
    %v5690 = vld [vmem:[#allocation3 + $0x8e8] sm:$0xff]
    %v5691 = vld [vmem:[#allocation3 + $0x8f0] sm:$0xff]
    %v5692 = vld [vmem:[#allocation3 + $0x8f8] sm:$0xff]
    %v5693 = vld [vmem:[#allocation3 + $0x900] sm:$0x1]
    %v5694 = vld [vmem:[#allocation3 + $0x908] sm:$0x1]
    %v5695 = vld [vmem:[#allocation3 + $0x910] sm:$0x1]
    %v5696 = vlaneseq
    %v5697 = vshrl.u32 %v5696, 7
    %v5698 = vsub.s32 0, %v5697
    %v5699 = vrot.slane %v5683, %v5698
    %v5701 = vsel %vm53, %v5677, 0
    %v5704 = vsel %vm53, %v5678, 0
    %5706 = vmatprep.subr.mxu0 0.0
    %5707 = vmatpush1.msra.mxu0 %v5679
    %5708 = vmatprep.subr.mxu0 0.0
    %5709 = vmatpush1.msra.mxu0 %v5680
    %5710 = vmatprep.subr.mxu0 0.0
    %5711 = vmatpush1.msra.mxu0 %v5681
    %5712 = vmatprep.subr.mxu0 0.0
    %5713 = vmatpush1.msra.mxu0 %v5682
    %5714 = vmatprep.subr.mxu0 0.0
    %5715 = vmatpush1.msra.mxu0 0.0
    %5716 = vmatprep.subr.mxu0 0.0
    %5717 = vmatpush1.msra.mxu0 0.0
    %5718 = vmatprep.subr.mxu0 0.0
    %5719 = vmatpush1.msra.mxu0 0.0
    %5720 = vmatprep.subr.mxu0 0.0
    %5721 = vmatpush1.msra.mxu0 0.0
    %5722 = vmatprep.subr.mxu0 0.0
    %5723 = vmatpush1.msra.mxu0 0.0
    %5724 = vmatprep.subr.mxu0 0.0
    %5725 = vmatpush1.msra.mxu0 0.0
    %5726 = vmatprep.subr.mxu0 0.0
    %5727 = vmatpush1.msra.mxu0 0.0
    %5728 = vmatprep.subr.mxu0 0.0
    %5729 = vmatpush1.msra.mxu0 0.0
    %5730 = vmatprep.subr.mxu0 0.0
    %5731 = vmatpush1.msra.mxu0 0.0
    %5732 = vmatprep.subr.mxu0 0.0
    %5733 = vmatpush1.msra.mxu0 0.0
    %5734 = vmatprep.subr.mxu0 0.0
    %5735 = vmatpush1.msra.mxu0 0.0
    %5736 = vmatprep.subr.mxu0 0.0
    %5737 = vmatpush1.msra.mxu0 0.0
    %5738 = vmatprep.subr.mxu0 0.0
    %5739 = vmatpush1.msra.mxu0 0.0
    %5740 = vmatprep.subr.mxu0 0.0
    %5741 = vmatpush1.msra.mxu0 0.0
    %5742 = vmatprep.subr.mxu0 0.0
    %5743 = vmatpush1.msra.mxu0 0.0
    %5744 = vmatprep.subr.mxu0 0.0
    %5745 = vmatpush1.msra.mxu0 0.0
    %5746 = vmatprep.subr.mxu0 0.0
    %5747 = vmatpush1.msra.mxu0 0.0
    %5748 = vmatprep.subr.mxu0 0.0
    %5749 = vmatpush1.msra.mxu0 0.0
    %5750 = vmatprep.subr.mxu0 0.0
    %5751 = vmatpush1.msra.mxu0 0.0
    %5752 = vmatprep.subr.mxu0 0.0
    %5753 = vmatpush1.msra.mxu0 0.0
    %5754 = vmatprep.subr.mxu0 0.0
    %5755 = vmatpush1.msra.mxu0 0.0
    %5756 = vmatprep.subr.mxu0 0.0
    %5757 = vmatpush1.msra.mxu0 0.0
    %5758 = vmatprep.subr.mxu0 0.0
    %5759 = vmatpush1.msra.mxu0 0.0
    %5760 = vmatprep.subr.mxu0 0.0
    %5761 = vmatpush1.msra.mxu0 0.0
    %5762 = vmatprep.subr.mxu0 0.0
    %5763 = vmatpush1.msra.mxu0 0.0
    %5764 = vmatprep.subr.mxu0 0.0
    %5765 = vmatpush1.msra.mxu0 0.0
    %5766 = vmatprep.subr.mxu0 0.0
    %5767 = vmatpush1.msra.mxu0 0.0
    %5768 = vmatprep.subr.mxu0 0.0
    %5769 = vmatpush1.msra.mxu0 0.0
    %5770 = vmatprep.mubr.f32.mxu0 0.0
    %5771 = vmatmul.mubr.f32.gmra.mrb[0].mxu0 %v5701
    %v5772 = vpop.f32.mrb[0].mxu0
    %v5773 = vadd.f32 %v5699, %v5772
    %v5774 = vpop.f32.mrb[0].mxu0
    %5775 = vmatprep.mubr.f32.mxu0 0.0
    %5776 = vmatmul.mubr.f32.gmra.mrb[0].mxu0 %v5704
    %v5777 = vpop.f32.mrb[0].mxu0
    %v5778 = vadd.f32 %v5699, %v5777
    %v5779 = vpop.f32.mrb[0].mxu0
    %5780 = vdwg.mxu0
    %vm5781 = vcmp.gt.f32.partialorder %v5773, 0.0
    %vm5782 = vcmp.gt.f32.partialorder %v5778, 0.0
    %v5783 = vmin.f32 %v5773, 0.0
    %v5784 = vmin.f32 %v5778, 0.0
    %v5785 = vmul.f32 %v5783, 1.442695
    %v5786 = vpow.pop %v5785
    %v5787 = vmul.f32 %v5784, 1.442695
    %v5788 = vpow.pop %v5787
    %v5789 = vsub.f32 %v5786, 1.0
    %v5790 = vsub.f32 %v5788, 1.0
    %v5791 = vsel %vm5781, %v5773, %v5789
    %v5792 = vsel %vm5782, %v5778, %v5790
    %v5793 = vlaneseq
    %v5794 = vshrl.u32 %v5793, 7
    %v5795 = vsub.s32 0, %v5794
    %v5796 = vrot.slane %v5688, %v5795
    %v5798 = vsel %vm53, %v5791, 0
    %v5801 = vsel %vm53, %v5792, 0
    %5803 = vmatprep.subr.mxu0 0.0
    %5804 = vmatpush1.msra.mxu0 %v5684
    %5805 = vmatprep.subr.mxu0 0.0
    %5806 = vmatpush1.msra.mxu0 %v5685
    %5807 = vmatprep.subr.mxu0 0.0
    %5808 = vmatpush1.msra.mxu0 %v5686
    %5809 = vmatprep.subr.mxu0 0.0
    %5810 = vmatpush1.msra.mxu0 %v5687
    %5811 = vmatprep.subr.mxu0 0.0
    %5812 = vmatpush1.msra.mxu0 0.0
    %5813 = vmatprep.subr.mxu0 0.0
    %5814 = vmatpush1.msra.mxu0 0.0
    %5815 = vmatprep.subr.mxu0 0.0
    %5816 = vmatpush1.msra.mxu0 0.0
    %5817 = vmatprep.subr.mxu0 0.0
    %5818 = vmatpush1.msra.mxu0 0.0
    %5819 = vmatprep.subr.mxu0 0.0
    %5820 = vmatpush1.msra.mxu0 0.0
    %5821 = vmatprep.subr.mxu0 0.0
    %5822 = vmatpush1.msra.mxu0 0.0
    %5823 = vmatprep.subr.mxu0 0.0
    %5824 = vmatpush1.msra.mxu0 0.0
    %5825 = vmatprep.subr.mxu0 0.0
    %5826 = vmatpush1.msra.mxu0 0.0
    %5827 = vmatprep.subr.mxu0 0.0
    %5828 = vmatpush1.msra.mxu0 0.0
    %5829 = vmatprep.subr.mxu0 0.0
    %5830 = vmatpush1.msra.mxu0 0.0
    %5831 = vmatprep.subr.mxu0 0.0
    %5832 = vmatpush1.msra.mxu0 0.0
    %5833 = vmatprep.subr.mxu0 0.0
    %5834 = vmatpush1.msra.mxu0 0.0
    %5835 = vmatprep.subr.mxu0 0.0
    %5836 = vmatpush1.msra.mxu0 0.0
    %5837 = vmatprep.subr.mxu0 0.0
    %5838 = vmatpush1.msra.mxu0 0.0
    %5839 = vmatprep.subr.mxu0 0.0
    %5840 = vmatpush1.msra.mxu0 0.0
    %5841 = vmatprep.subr.mxu0 0.0
    %5842 = vmatpush1.msra.mxu0 0.0
    %5843 = vmatprep.subr.mxu0 0.0
    %5844 = vmatpush1.msra.mxu0 0.0
    %5845 = vmatprep.subr.mxu0 0.0
    %5846 = vmatpush1.msra.mxu0 0.0
    %5847 = vmatprep.subr.mxu0 0.0
    %5848 = vmatpush1.msra.mxu0 0.0
    %5849 = vmatprep.subr.mxu0 0.0
    %5850 = vmatpush1.msra.mxu0 0.0
    %5851 = vmatprep.subr.mxu0 0.0
    %5852 = vmatpush1.msra.mxu0 0.0
    %5853 = vmatprep.subr.mxu0 0.0
    %5854 = vmatpush1.msra.mxu0 0.0
    %5855 = vmatprep.subr.mxu0 0.0
    %5856 = vmatpush1.msra.mxu0 0.0
    %5857 = vmatprep.subr.mxu0 0.0
    %5858 = vmatpush1.msra.mxu0 0.0
    %5859 = vmatprep.subr.mxu0 0.0
    %5860 = vmatpush1.msra.mxu0 0.0
    %5861 = vmatprep.subr.mxu0 0.0
    %5862 = vmatpush1.msra.mxu0 0.0
    %5863 = vmatprep.subr.mxu0 0.0
    %5864 = vmatpush1.msra.mxu0 0.0
    %5865 = vmatprep.subr.mxu0 0.0
    %5866 = vmatpush1.msra.mxu0 0.0
    %5867 = vmatprep.mubr.f32.mxu0 0.0
    %5868 = vmatmul.mubr.f32.gmra.mrb[0].mxu0 %v5798
    %v5869 = vpop.f32.mrb[0].mxu0
    %v5870 = vadd.f32 %v5796, %v5869
    %v5871 = vpop.f32.mrb[0].mxu0
    %5872 = vmatprep.mubr.f32.mxu0 0.0
    %5873 = vmatmul.mubr.f32.gmra.mrb[0].mxu0 %v5801
    %v5874 = vpop.f32.mrb[0].mxu0
    %v5875 = vadd.f32 %v5796, %v5874
    %v5876 = vpop.f32.mrb[0].mxu0
    %5877 = vdwg.mxu0
    %v5878 = vlaneseq
    %v5879 = vshrl.u32 %v5878, 7
    %v5880 = vsub.s32 0, %v5879
    %v5881 = vrot.slane %v5693, %v5880
    %v5883 = vsel %vm53, %v5870, 0
    %v5886 = vsel %vm53, %v5875, 0
    %5888 = vmatprep.subr.mxu0 0.0
    %5889 = vmatpush1.msra.mxu0 %v5689
    %5890 = vmatprep.subr.mxu0 0.0
    %5891 = vmatpush1.msra.mxu0 %v5690
    %5892 = vmatprep.subr.mxu0 0.0
    %5893 = vmatpush1.msra.mxu0 %v5691
    %5894 = vmatprep.subr.mxu0 0.0
    %5895 = vmatpush1.msra.mxu0 %v5692
    %5896 = vmatprep.subr.mxu0 0.0
    %5897 = vmatpush1.msra.mxu0 0.0
    %5898 = vmatprep.subr.mxu0 0.0
    %5899 = vmatpush1.msra.mxu0 0.0
    %5900 = vmatprep.subr.mxu0 0.0
    %5901 = vmatpush1.msra.mxu0 0.0
    %5902 = vmatprep.subr.mxu0 0.0
    %5903 = vmatpush1.msra.mxu0 0.0
    %5904 = vmatprep.subr.mxu0 0.0
    %5905 = vmatpush1.msra.mxu0 0.0
    %5906 = vmatprep.subr.mxu0 0.0
    %5907 = vmatpush1.msra.mxu0 0.0
    %5908 = vmatprep.subr.mxu0 0.0
    %5909 = vmatpush1.msra.mxu0 0.0
    %5910 = vmatprep.subr.mxu0 0.0
    %5911 = vmatpush1.msra.mxu0 0.0
    %5912 = vmatprep.subr.mxu0 0.0
    %5913 = vmatpush1.msra.mxu0 0.0
    %5914 = vmatprep.subr.mxu0 0.0
    %5915 = vmatpush1.msra.mxu0 0.0
    %5916 = vmatprep.subr.mxu0 0.0
    %5917 = vmatpush1.msra.mxu0 0.0
    %5918 = vmatprep.subr.mxu0 0.0
    %5919 = vmatpush1.msra.mxu0 0.0
    %5920 = vmatprep.subr.mxu0 0.0
    %5921 = vmatpush1.msra.mxu0 0.0
    %5922 = vmatprep.subr.mxu0 0.0
    %5923 = vmatpush1.msra.mxu0 0.0
    %5924 = vmatprep.subr.mxu0 0.0
    %5925 = vmatpush1.msra.mxu0 0.0
    %5926 = vmatprep.subr.mxu0 0.0
    %5927 = vmatpush1.msra.mxu0 0.0
    %5928 = vmatprep.subr.mxu0 0.0
    %5929 = vmatpush1.msra.mxu0 0.0
    %5930 = vmatprep.subr.mxu0 0.0
    %5931 = vmatpush1.msra.mxu0 0.0
    %5932 = vmatprep.subr.mxu0 0.0
    %5933 = vmatpush1.msra.mxu0 0.0
    %5934 = vmatprep.subr.mxu0 0.0
    %5935 = vmatpush1.msra.mxu0 0.0
    %5936 = vmatprep.subr.mxu0 0.0
    %5937 = vmatpush1.msra.mxu0 0.0
    %5938 = vmatprep.subr.mxu0 0.0
    %5939 = vmatpush1.msra.mxu0 0.0
    %5940 = vmatprep.subr.mxu0 0.0
    %5941 = vmatpush1.msra.mxu0 0.0
    %5942 = vmatprep.subr.mxu0 0.0
    %5943 = vmatpush1.msra.mxu0 0.0
    %5944 = vmatprep.subr.mxu0 0.0
    %5945 = vmatpush1.msra.mxu0 0.0
    %5946 = vmatprep.subr.mxu0 0.0
    %5947 = vmatpush1.msra.mxu0 0.0
    %5948 = vmatprep.subr.mxu0 0.0
    %5949 = vmatpush1.msra.mxu0 0.0
    %5950 = vmatprep.subr.mxu0 0.0
    %5951 = vmatpush1.msra.mxu0 0.0
    %5952 = vmatprep.mubr.f32.mxu0 0.0
    %5953 = vmatmul.mubr.f32.gmra.mrb[0].mxu0 %v5883
    %v5954 = vpop.f32.mrb[0].mxu0
    %v5955 = vadd.f32 %v5881, %v5954
    %v5956 = vpop.f32.mrb[0].mxu0
    %5957 = vmatprep.mubr.f32.mxu0 0.0
    %5958 = vmatmul.mubr.f32.gmra.mrb[0].mxu0 %v5886
    %v5959 = vpop.f32.mrb[0].mxu0
    %v5960 = vadd.f32 %v5881, %v5959
    %v5961 = vpop.f32.mrb[0].mxu0
    %5962 = vdwg.mxu0
    %v5963 = vxor.u32 %v5955, 2147483648
    %v5964 = vxor.u32 %v5960, 2147483648
    %v5965 = vmul.f32 %v5963, 1.442695
    %v5966 = vpow.pop %v5965
    %v5967 = vmul.f32 %v5964, 1.442695
    %v5968 = vpow.pop %v5967
    %v5969 = vadd.f32 %v5966, 1.0
    %v5970 = vadd.f32 %v5968, 1.0
    %v5971 = vrcp.pop %v5969
    %v5972 = vmul.f32 1.0, %v5971
    %v5973 = vrcp.pop %v5970
    %v5974 = vmul.f32 1.0, %v5973
    %5977 = vrot.lane.b32.xlu0 %v5955, 96
    %v5978 = vpop.permute.xlu0 %5977
    %5979 = vrot.lane.b32.xlu0 %v5960, 96
    %v5980 = vpop.permute.xlu0 %5979
    %v5983 = vmul.f32 %v5972, %v5978
    %v5984 = vmul.f32 %v5974, %v5980
    %v5985 = vadd.f32 %v5677, %v5983
    %v5986 = vadd.f32 %v5678, %v5984
    %v5987 = vsel %vm53, %v5985, 0.0
    %5988 = vadd.xlane.f32.xlu0 %v5987
    %v5989 = vpop.xlane.xlu0 %5988
    %v5990 = vsel %vm53, %v5986, 0.0
    %5991 = vadd.xlane.f32.xlu0 %v5990
    %v5992 = vpop.xlane.xlu0 %5991
    %v5993 = vmul.f32 %v5989, %v303
    %v5994 = vmul.f32 %v5992, %v303
    %v5995 = vsub.f32 %v5985, %v5993
    %v5996 = vsub.f32 %v5986, %v5994
    %v5997 = vmul.f32 %v5995, %v5995
    %v5998 = vmul.f32 %v5996, %v5996
    %v5999 = vsel %vm53, %v5997, 0.0
    %6000 = vadd.xlane.f32.xlu0 %v5999
    %v6001 = vpop.xlane.xlu0 %6000
    %v6002 = vsel %vm53, %v5998, 0.0
    %6003 = vadd.xlane.f32.xlu0 %v6002
    %v6004 = vpop.xlane.xlu0 %6003
    %v6005 = vmul.f32 %v6001, %v303
    %v6006 = vmul.f32 %v6004, %v303
    %v6007 = vadd.f32 %v6005, 1e-05
    %v6008 = vadd.f32 %v6006, 1e-05
    %v6009 = vrsqrt.pop %v6007
    %v6010 = vrsqrt.pop %v6008
    %v6011 = vmul.f32 %v5995, %v6009
    %v6012 = vmul.f32 %v5996, %v6010
    %v6013 = vlaneseq
    %v6014 = vshrl.u32 %v6013, 7
    %v6015 = vsub.s32 0, %v6014
    %v6016 = vrot.slane %v5694, %v6015
    %v6017 = vmul.f32 %v6011, %v6016
    %v6018 = vmul.f32 %v6012, %v6016
    %v6019 = vlaneseq
    %v6020 = vshrl.u32 %v6019, 7
    %v6021 = vsub.s32 0, %v6020
    %v6022 = vrot.slane %v5695, %v6021
    %v6023 = vadd.f32 %v6017, %v6022
    %v6024 = vadd.f32 %v6018, %v6022
    %v6025 = vld [vmem:[#allocation3 + $0x918] sm:$0xff]
    %v6026 = vld [vmem:[#allocation3 + $0x920] sm:$0xff]
    %v6027 = vld [vmem:[#allocation3 + $0x928] sm:$0xff]
    %v6028 = vld [vmem:[#allocation3 + $0x930] sm:$0xff]
    %v6029 = vld [vmem:[#allocation3 + $0x938] sm:$0x1]
    %v6030 = vld [vmem:[#allocation3 + $0x940] sm:$0x1]
    %v6031 = vld [vmem:[#allocation3 + $0x948] sm:$0x1]
    %v6032 = vlaneseq
    %v6033 = vshrl.u32 %v6032, 7
    %v6034 = vsub.s32 0, %v6033
    %v6035 = vrot.slane %v6029, %v6034
    %v6037 = vsel %vm53, %v6023, 0
    %v6040 = vsel %vm53, %v6024, 0
    %6042 = vmatprep.subr.mxu0 0.0
    %6043 = vmatpush1.msra.mxu0 %v6025
    %6044 = vmatprep.subr.mxu0 0.0
    %6045 = vmatpush1.msra.mxu0 %v6026
    %6046 = vmatprep.subr.mxu0 0.0
    %6047 = vmatpush1.msra.mxu0 %v6027
    %6048 = vmatprep.subr.mxu0 0.0
    %6049 = vmatpush1.msra.mxu0 %v6028
    %6050 = vmatprep.subr.mxu0 0.0
    %6051 = vmatpush1.msra.mxu0 0.0
    %6052 = vmatprep.subr.mxu0 0.0
    %6053 = vmatpush1.msra.mxu0 0.0
    %6054 = vmatprep.subr.mxu0 0.0
    %6055 = vmatpush1.msra.mxu0 0.0
    %6056 = vmatprep.subr.mxu0 0.0
    %6057 = vmatpush1.msra.mxu0 0.0
    %6058 = vmatprep.subr.mxu0 0.0
    %6059 = vmatpush1.msra.mxu0 0.0
    %6060 = vmatprep.subr.mxu0 0.0
    %6061 = vmatpush1.msra.mxu0 0.0
    %6062 = vmatprep.subr.mxu0 0.0
    %6063 = vmatpush1.msra.mxu0 0.0
    %6064 = vmatprep.subr.mxu0 0.0
    %6065 = vmatpush1.msra.mxu0 0.0
    %6066 = vmatprep.subr.mxu0 0.0
    %6067 = vmatpush1.msra.mxu0 0.0
    %6068 = vmatprep.subr.mxu0 0.0
    %6069 = vmatpush1.msra.mxu0 0.0
    %6070 = vmatprep.subr.mxu0 0.0
    %6071 = vmatpush1.msra.mxu0 0.0
    %6072 = vmatprep.subr.mxu0 0.0
    %6073 = vmatpush1.msra.mxu0 0.0
    %6074 = vmatprep.subr.mxu0 0.0
    %6075 = vmatpush1.msra.mxu0 0.0
    %6076 = vmatprep.subr.mxu0 0.0
    %6077 = vmatpush1.msra.mxu0 0.0
    %6078 = vmatprep.subr.mxu0 0.0
    %6079 = vmatpush1.msra.mxu0 0.0
    %6080 = vmatprep.subr.mxu0 0.0
    %6081 = vmatpush1.msra.mxu0 0.0
    %6082 = vmatprep.subr.mxu0 0.0
    %6083 = vmatpush1.msra.mxu0 0.0
    %6084 = vmatprep.subr.mxu0 0.0
    %6085 = vmatpush1.msra.mxu0 0.0
    %6086 = vmatprep.subr.mxu0 0.0
    %6087 = vmatpush1.msra.mxu0 0.0
    %6088 = vmatprep.subr.mxu0 0.0
    %6089 = vmatpush1.msra.mxu0 0.0
    %6090 = vmatprep.subr.mxu0 0.0
    %6091 = vmatpush1.msra.mxu0 0.0
    %6092 = vmatprep.subr.mxu0 0.0
    %6093 = vmatpush1.msra.mxu0 0.0
    %6094 = vmatprep.subr.mxu0 0.0
    %6095 = vmatpush1.msra.mxu0 0.0
    %6096 = vmatprep.subr.mxu0 0.0
    %6097 = vmatpush1.msra.mxu0 0.0
    %6098 = vmatprep.subr.mxu0 0.0
    %6099 = vmatpush1.msra.mxu0 0.0
    %6100 = vmatprep.subr.mxu0 0.0
    %6101 = vmatpush1.msra.mxu0 0.0
    %6102 = vmatprep.subr.mxu0 0.0
    %6103 = vmatpush1.msra.mxu0 0.0
    %6104 = vmatprep.subr.mxu0 0.0
    %6105 = vmatpush1.msra.mxu0 0.0
    %6106 = vmatprep.mubr.f32.mxu0 0.0
    %6107 = vmatmul.mubr.f32.gmra.mrb[0].mxu0 %v6037
    %v6108 = vpop.f32.mrb[0].mxu0
    %v6109 = vadd.f32 %v6035, %v6108
    %v6110 = vpop.f32.mrb[0].mxu0
    %6111 = vmatprep.mubr.f32.mxu0 0.0
    %6112 = vmatmul.mubr.f32.gmra.mrb[0].mxu0 %v6040
    %v6113 = vpop.f32.mrb[0].mxu0
    %v6114 = vadd.f32 %v6035, %v6113
    %v6115 = vpop.f32.mrb[0].mxu0
    %6116 = vdwg.mxu0
    %v6117 = vxor.u32 %v6109, 2147483648
    %v6118 = vxor.u32 %v6114, 2147483648
    %v6119 = vmul.f32 %v6117, 1.442695
    %v6120 = vpow.pop %v6119
    %v6121 = vmul.f32 %v6118, 1.442695
    %v6122 = vpow.pop %v6121
    %v6123 = vadd.f32 %v6120, 1.0
    %v6124 = vadd.f32 %v6122, 1.0
    %v6125 = vrcp.pop %v6123
    %v6126 = vmul.f32 1.0, %v6125
    %v6127 = vrcp.pop %v6124
    %v6128 = vmul.f32 1.0, %v6127
    %6131 = vrot.lane.b32.xlu0 %v6109, 96
    %v6132 = vpop.permute.xlu0 %6131
    %6133 = vrot.lane.b32.xlu0 %v6114, 96
    %v6134 = vpop.permute.xlu0 %6133
    %v6137 = vmul.f32 %v6126, %v6132
    %v6138 = vmul.f32 %v6128, %v6134
    %v6139 = vadd.f32 %v6137, %v3813
    %v6140 = vadd.f32 %v6138, %v3814
    %v6141 = vsel %vm53, %v6139, 0.0
    %6142 = vadd.xlane.f32.xlu0 %v6141
    %v6143 = vpop.xlane.xlu0 %6142
    %v6144 = vsel %vm53, %v6140, 0.0
    %6145 = vadd.xlane.f32.xlu0 %v6144
    %v6146 = vpop.xlane.xlu0 %6145
    %v6147 = vmul.f32 %v6143, %v303
    %v6148 = vmul.f32 %v6146, %v303
    %v6149 = vsub.f32 %v6139, %v6147
    %v6150 = vsub.f32 %v6140, %v6148
    %v6151 = vmul.f32 %v6149, %v6149
    %v6152 = vmul.f32 %v6150, %v6150
    %v6153 = vsel %vm53, %v6151, 0.0
    %6154 = vadd.xlane.f32.xlu0 %v6153
    %v6155 = vpop.xlane.xlu0 %6154
    %v6156 = vsel %vm53, %v6152, 0.0
    %6157 = vadd.xlane.f32.xlu0 %v6156
    %v6158 = vpop.xlane.xlu0 %6157
    %v6159 = vmul.f32 %v6155, %v303
    %v6160 = vmul.f32 %v6158, %v303
    %v6161 = vadd.f32 %v6159, 1e-05
    %v6162 = vadd.f32 %v6160, 1e-05
    %v6163 = vrsqrt.pop %v6161
    %v6164 = vrsqrt.pop %v6162
    %v6165 = vmul.f32 %v6149, %v6163
    %v6166 = vmul.f32 %v6150, %v6164
    %v6167 = vlaneseq
    %v6168 = vshrl.u32 %v6167, 7
    %v6169 = vsub.s32 0, %v6168
    %v6170 = vrot.slane %v6030, %v6169
    %v6171 = vmul.f32 %v6165, %v6170
    %v6172 = vmul.f32 %v6166, %v6170
    %v6173 = vlaneseq
    %v6174 = vshrl.u32 %v6173, 7
    %v6175 = vsub.s32 0, %v6174
    %v6176 = vrot.slane %v6031, %v6175
    %v6177 = vadd.f32 %v6171, %v6176
    %v6178 = vadd.f32 %v6172, %v6176
    %v6179 = vld [vmem:[#allocation3 + $0x950] sm:$0x1]
    %v6180 = vlaneseq
    %v6181 = vshrl.u32 %v6180, 7
    %v6182 = vsub.s32 0, %v6181
    %v6183 = vrot.slane %v6179, %v6182
    %v6184 = vmul.f32 %v6177, %v6183
    %v6185 = vmul.f32 %v6178, %v6183
    %v6186 = vsel %vm53, %v6184, 0.0
    %6187 = vadd.xlane.f32.xlu0 %v6186
    %v6188 = vpop.xlane.xlu0 %6187
    %v6189 = vsel %vm53, %v6185, 0.0
    %6190 = vadd.xlane.f32.xlu0 %v6189
    %v6191 = vpop.xlane.xlu0 %6190
    %v6192 = vld [vmem:[#allocation3 + $0x958] sm:$0x1]
    %s6194 = vtos %v6192
    %v6195 = vstv %s6194
    %v6197 = vadd.f32 %v6188, %v6195
    %v6198 = vadd.f32 %v6191, %v6195
    %v6201 = vlaneseq
    %v6202 = vand.u32 %v6201, 127
    %v6203 = vlaneseq
    %v6204 = vshrl.u32 %v6203, 7
    %v6205 = vsub.s32 %v6202, %v6204
    %v6206 = vrot.slane %v6197, %v6205
    %v6207 = vlaneseq
    %v6208 = vshrl.u32 %v6207, 7
    %v6209 = vsub.s32 %v6202, %v6208
    %v6210 = vrot.slane %v6198, %v6209
    %v6211 = vsel %vm2619, %v6210, %v6206
    %vm6213 = vcmask 58368
    %6214 = vst.msk [vmem:[#allocation6] sm:$0x3] %vm6213, %v6211
    // Predicated region
    $region18: #{tmt_forward.1} parent=1 // pred_check
      _
    $region19: #{tmt_forward.1} parent=1 // pred_check_branch
      %6216 = sbr.rel (0) target = $region21
    $region20: #{tmt_forward.1} parent=1 // pred_region
      %s6218 = ssub.s32 32, 32
      %6219 = vsyncadd [#allocation5], %s6218
      %s6221 = sshll.u32 [#allocation6], 4
      %s6222 = int_to_ptr.vmem [resolvable:$true] %s6221
      %6224 = dma.vmem_to_hbm [thread:$0]  %s6222, 32, %s3, [#allocation5]
    $region21: #{tmt_forward.1} parent=1 // pred_fallthru
      _
    // Predicated region
    $region22: #{tmt_forward.1} parent=1 // pred_check
      _
    $region23: #{tmt_forward.1} parent=1 // pred_check_branch
      %6226 = sbr.rel (0) target = $region25
    $region24: #{tmt_forward.1} parent=1 // pred_region
      %6227 = dma.done [#allocation5], 32
    $region25: #{tmt_forward.1} parent=1 // pred_fallthru
      _
    %6228 = vsyncpa [#allocation4], 1
    %6229 = vsyncpa [#allocation5], 1

</llo_original>
